<compile_context>
chip_gen: v7x
topology: tpu7x:2x2x1
jax: 0.10.0
libtpu: 0.0.40
codegen_flags: <defaults>
</compile_context>

<pallas_src>
import functools

import jax
import jax.numpy as jnp
from jax.experimental import pallas as pl
from jax.experimental.pallas import tpu as pltpu

STRIDE1 = 2      # conv1 stride (module constant)
KH = KW = 5      # conv kernel size (module constant)


def _round_up(x, m):
    return ((x + m - 1) // m) * m


# ------------------------------ fused Pallas kernel --------------------------
def _model_a_kernel(p_ref, w1_ref, b1_ref, w2_ref, b2_ref, w3_ref, b3_ref,
                    w4_ref, b4_ref, o_ref, c1_ref,
                    *, tb, oh1, ow1, oh2, ow2, kh, kw):
    """Full Model_A forward for one batch tile of `tb` images; all VMEM-resident."""
    f32 = jnp.float32
    bf16 = jnp.bfloat16
    s1 = oh1 * ow1
    s2 = oh2 * ow2
    cout1 = w1_ref.shape[-1]
    cout2 = w2_ref.shape[-1]

    # ---- conv1: one (tb*s1, K1p) @ (K1p, 64) matmul + bias + ReLU ------------
    c1 = jnp.dot(p_ref[...], w1_ref[...], preferred_element_type=f32)
    c1 = jnp.maximum(c1 + b1_ref[...], 0.0)               # (tb*s1, 64) f32
    c1_ref[...] = c1.reshape(tb, s1, cout1)                # park in VMEM scratch

    # ---- conv2: build full im2col lhs from the resident conv1 activation ----
    # For tap (i, j) and output position (oy, ox) the needed conv1 row is
    # (oy+i)*ow1 + (ox+j); for fixed (i, j, oy) that's ow2 contiguous rows.
    tap_blocks = []
    for i in range(kh):
        for j in range(kw):
            parts = [c1_ref[:, (a + i) * ow1 + j:(a + i) * ow1 + j + ow2, :]
                     for a in range(oh2)]
            blk = jnp.concatenate(parts, axis=1)           # (tb, s2, cout1) f32
            tap_blocks.append(blk.astype(bf16))
    lhs = jnp.concatenate(tap_blocks, axis=2)              # (tb, s2, kh*kw*cout1)
    lhs = lhs.reshape(tb * s2, kh * kw * cout1)
    acc = jnp.dot(lhs, w2_ref[...], preferred_element_type=f32)
    o2 = jnp.maximum(acc + b2_ref[...], 0.0)               # (tb*s2, 64) f32
    o2 = o2.reshape(tb, s2, cout2)

    # ---- flatten in (spatial, channel) order + fc1 + ReLU --------------------
    # fc1's K axis was pre-permuted to this order in prepare_params(), so this
    # equals PyTorch's x.view(B, -1) @ fc1_w.T on the NCHW activation.
    flat = jnp.concatenate([o2[:, s, :] for s in range(s2)], axis=1)  # (tb, s2*cout2)
    h1 = jnp.dot(flat.astype(bf16), w3_ref[...], preferred_element_type=f32)
    h1 = jnp.maximum(h1 + b3_ref[...], 0.0)                # (tb, 128)

    # ---- fc2 (output lane-padded to 128; caller slices to num_classes) ------
    logits = jnp.dot(h1.astype(bf16), w4_ref[...], preferred_element_type=f32)
    o_ref[...] = (logits + b4_ref[...]).astype(o_ref.dtype)


# ------------------------------ host-side glue --------------------------------
def _conv1_patches(x, kh, kw, stride, k_pad):
    """NCHW -> (B, OH*OW, k_pad) bf16 im2col patches for conv1 (K zero-padded)."""
    B, C, H, W = x.shape
    oh = (H - kh) // stride + 1
    ow = (W - kw) // stride + 1
    cols = []
    for i in range(kh):
        for j in range(kw):
            cols.append(x[:, :, i:i + stride * (oh - 1) + 1:stride,
                              j:j + stride * (ow - 1) + 1:stride])
    p = jnp.stack(cols, axis=-1)                    # (B, C, oh, ow, kh*kw)
    p = p.reshape(B, C, oh, ow, kh, kw)
    p = p.transpose(0, 2, 3, 1, 4, 5)               # (B, oh, ow, C, kh, kw)
    p = p.reshape(B, oh * ow, C * kh * kw)          # K ordered (ci, i, j)
    k = C * kh * kw
    if k_pad > k:
        p = jnp.pad(p, ((0, 0), (0, 0), (0, k_pad - k)))
    return p.astype(jnp.bfloat16), oh, ow


def prepare_params(params, num_classes):
    """One-time weight prep (hoisted out of the forward): reshape / transpose /
    zero-pad / cast to bf16 so the kernel consumes weights as-is."""
    bf16 = jnp.bfloat16

    w1 = params["conv1_w"]                          # (64, Cin, 5, 5)
    cout1, cin, kh, kw = w1.shape
    k1 = cin * kh * kw
    k1p = _round_up(k1, 32)
    w1m = jnp.pad(w1.reshape(cout1, k1).T, ((0, k1p - k1), (0, 0)))   # (K1p, 64)
    b1 = params["conv1_b"].reshape(1, cout1).astype(jnp.float32)

    w2 = params["conv2_w"]                          # (64, 64, 5, 5)
    cout2, cin2 = w2.shape[0], w2.shape[1]
    # Rows ordered (i, j, ci) to match the kernel's im2col column order.
    w2p = w2.transpose(2, 3, 1, 0).reshape(kh * kw * cin2, cout2)     # (1600, 64)
    b2 = params["conv2_b"].reshape(1, cout2).astype(jnp.float32)

    fc1_w = params["fc1_w"]                         # (128, cout2 * n_spatial)
    nh = fc1_w.shape[0]
    n_sp = fc1_w.shape[1] // cout2
    # PyTorch flatten order is (channel, spatial); the kernel produces the flat
    # activation in (spatial, channel) order, so permute fc1's K axis accordingly.
    w3p = (fc1_w.reshape(nh, cout2, n_sp).transpose(2, 1, 0)
           .reshape(n_sp * cout2, nh))              # (4096, 128)
    b3 = params["fc1_b"].reshape(1, nh).astype(jnp.float32)

    fc2_w = params["fc2_w"]                         # (num_classes, 128)
    ncp = _round_up(num_classes, 128)
    w4p = jnp.pad(fc2_w.T, ((0, 0), (0, ncp - num_classes)))          # (128, ncp)
    b4 = jnp.pad(params["fc2_b"].reshape(1, num_classes),
                 ((0, 0), (0, ncp - num_classes))).astype(jnp.float32)

    return {
        "w1": w1m.astype(bf16), "b1": b1,
        "w2": w2p.astype(bf16), "b2": b2,
        "w3": w3p.astype(bf16), "b3": b3,
        "w4": w4p.astype(bf16), "b4": b4,
    }


def model_a_forward(prepped, x, *, num_classes, batch_tile=8):
    """Fused Model_A forward: one pallas_call over a batch-tile-parallel grid."""
    B = x.shape[0]
    TB = min(batch_tile, B)
    Bp = _round_up(B, TB)
    if Bp > B:
        x = jnp.pad(x, ((0, Bp - B), (0, 0), (0, 0), (0, 0)))

    k1p = prepped["w1"].shape[0]
    cout1 = prepped["w1"].shape[1]
    cout2 = prepped["w2"].shape[-1]
    ncp = prepped["w4"].shape[1]

    p1, oh1, ow1 = _conv1_patches(x, KH, KW, STRIDE1, k1p)      # (Bp, S1, K1p)
    oh2, ow2 = oh1 - KH + 1, ow1 - KW + 1                       # conv2 stride 1
    S1, S2 = oh1 * ow1, oh2 * ow2
    assert S2 * cout2 == prepped["w3"].shape[0], (
        "input spatial size inconsistent with fc1 (module expects 28x28 inputs)")
    p1 = p1.reshape(Bp * S1, k1p)                               # one 2D matmul lhs

    kernel = functools.partial(_model_a_kernel, tb=TB, oh1=oh1, ow1=ow1,
                               oh2=oh2, ow2=ow2, kh=KH, kw=KW)
    out = pl.pallas_call(
        kernel,
        out_shape=jax.ShapeDtypeStruct((Bp, ncp), jnp.float32),
        grid=(Bp // TB,),
        in_specs=[
            pl.BlockSpec((TB * S1, k1p), lambda g: (g, 0)),     # conv1 patches
            pl.BlockSpec(prepped["w1"].shape, lambda g: (0, 0)),
            pl.BlockSpec(prepped["b1"].shape, lambda g: (0, 0)),
            pl.BlockSpec(prepped["w2"].shape, lambda g: (0, 0)),
            pl.BlockSpec(prepped["b2"].shape, lambda g: (0, 0)),
            pl.BlockSpec(prepped["w3"].shape, lambda g: (0, 0)),
            pl.BlockSpec(prepped["b3"].shape, lambda g: (0, 0)),
            pl.BlockSpec(prepped["w4"].shape, lambda g: (0, 0)),
            pl.BlockSpec(prepped["b4"].shape, lambda g: (0, 0)),
        ],
        out_specs=pl.BlockSpec((TB, ncp), lambda g: (g, 0)),
        scratch_shapes=[pltpu.VMEM((TB, S1, cout1), jnp.float32)],  # conv1 act.
        compiler_params=pltpu.CompilerParams(
            dimension_semantics=("parallel",)),   # megacore: shard batch tiles
    )(p1, prepped["w1"], prepped["b1"], prepped["w2"], prepped["b2"],
      prepped["w3"], prepped["b3"], prepped["w4"], prepped["b4"])
    return out[:B, :num_classes]


def init_params(key, in_channels, num_classes):
    ks = jax.random.split(key, 8)

    def u(k, shape, fan_in):
        bound = 1.0 / (fan_in ** 0.5)
        return jax.random.uniform(k, shape, jnp.float32, -bound, bound)

    return {
        "conv1_w": u(ks[0], (64, in_channels, KH, KW), in_channels * KH * KW),
        "conv1_b": u(ks[1], (64,), in_channels * KH * KW),
        "conv2_w": u(ks[2], (64, 64, KH, KW), 64 * KH * KW),
        "conv2_b": u(ks[3], (64,), 64 * KH * KW),
        "fc1_w":   u(ks[4], (128, 8 * 8 * 64), 8 * 8 * 64),
        "fc1_b":   u(ks[5], (128,), 8 * 8 * 64),
        "fc2_w":   u(ks[6], (num_classes, 128), 128),
        "fc2_b":   u(ks[7], (num_classes,), 128),
    }


if __name__ == "__main__":
    in_channels, num_classes, batch = 1, 10, 2
    key = jax.random.PRNGKey(0)
    kx, kp = jax.random.split(key)
    # Spatial must be 28x28: fc1 expects an 8*8*64 flattened conv2 output.
    x = jax.random.normal(kx, (batch, in_channels, 28, 28), jnp.float32)
    params = init_params(kp, in_channels, num_classes)

    prepped = prepare_params(params, num_classes)          # hoisted weight prep
    fwd = jax.jit(functools.partial(model_a_forward, num_classes=num_classes))

    out = jax.block_until_ready(fwd(prepped, x))
    assert out.shape == (batch, num_classes), out.shape
    assert bool(jnp.all(jnp.isfinite(out))), "non-finite output"
    print("KERNEL_OK")
</pallas_src>

<mosaic_0001>
module attributes {stable_mosaic.version = 11 : i64} {
  func.func @_model_a_kernel(%arg0: i32, %arg1: memref<288x32xbf16, #tpu.memory_space<vmem>>, %arg2: memref<32x64xbf16, #tpu.memory_space<vmem>>, %arg3: memref<1x64xf32, #tpu.memory_space<vmem>>, %arg4: memref<1600x64xbf16, #tpu.memory_space<vmem>>, %arg5: memref<1x64xf32, #tpu.memory_space<vmem>>, %arg6: memref<4096x128xbf16, #tpu.memory_space<vmem>>, %arg7: memref<1x128xf32, #tpu.memory_space<vmem>>, %arg8: memref<128x128xbf16, #tpu.memory_space<vmem>>, %arg9: memref<1x128xf32, #tpu.memory_space<vmem>>, %arg10: memref<2x128xf32, #tpu.memory_space<vmem>>, %arg11: memref<2x144x64xf32, #tpu.memory_space<vmem>>) attributes {dimension_semantics = [#tpu.dimension_semantics<parallel>], iteration_bounds = array<i64: 1>, scalar_prefetch = 0 : i64, scratch_operands = 1 : i64, tpu.core_type = #tpu.core_type<tc>, window_params = [{transform_indices = @transform_0, window_bounds = array<i64: 288, 32>}, {pipeline_mode = #tpu.pipeline_mode<synchronous>, transform_indices = @transform_1, window_bounds = array<i64: 32, 64>}, {pipeline_mode = #tpu.pipeline_mode<synchronous>, transform_indices = @transform_2, window_bounds = array<i64: 1, 64>}, {pipeline_mode = #tpu.pipeline_mode<synchronous>, transform_indices = @transform_3, window_bounds = array<i64: 1600, 64>}, {pipeline_mode = #tpu.pipeline_mode<synchronous>, transform_indices = @transform_4, window_bounds = array<i64: 1, 64>}, {pipeline_mode = #tpu.pipeline_mode<synchronous>, transform_indices = @transform_5, window_bounds = array<i64: 4096, 128>}, {pipeline_mode = #tpu.pipeline_mode<synchronous>, transform_indices = @transform_6, window_bounds = array<i64: 1, 128>}, {pipeline_mode = #tpu.pipeline_mode<synchronous>, transform_indices = @transform_7, window_bounds = array<i64: 128, 128>}, {pipeline_mode = #tpu.pipeline_mode<synchronous>, transform_indices = @transform_8, window_bounds = array<i64: 1, 128>}, {transform_indices = @transform_9, window_bounds = array<i64: 2, 128>}]} {
    %c0 = arith.constant 0 : index
    %c0_0 = arith.constant 0 : index
    %0 = vector.load %arg1[%c0, %c0_0] : memref<288x32xbf16, #tpu.memory_space<vmem>>, vector<288x32xbf16>
    %c0_1 = arith.constant 0 : index
    %c0_2 = arith.constant 0 : index
    %1 = vector.load %arg2[%c0_1, %c0_2] : memref<32x64xbf16, #tpu.memory_space<vmem>>, vector<32x64xbf16>
    %cst = arith.constant dense<0.000000e+00> : vector<288x64xf32>
    %2 = tpu.matmul %0, %1, %cst {dimension_numbers = #tpu.dot_dimension_numbers<[1], [0], [0], [1], [0, 0, 1, 1], [], []>} : vector<288x32xbf16>, vector<32x64xbf16>, vector<288x64xf32> -> vector<288x64xf32>
    %c0_3 = arith.constant 0 : index
    %c0_4 = arith.constant 0 : index
    %3 = vector.load %arg3[%c0_3, %c0_4] : memref<1x64xf32, #tpu.memory_space<vmem>>, vector<1x64xf32>
    %4 = vector.broadcast %3 : vector<1x64xf32> to vector<288x64xf32>
    %5 = arith.addf %2, %4 : vector<288x64xf32>
    %cst_5 = arith.constant 0.000000e+00 : f32
    %6 = vector.broadcast %cst_5 : f32 to vector<288x64xf32>
    %7 = arith.maximumf %5, %6 : vector<288x64xf32>
    %8 = vector.shape_cast %7 : vector<288x64xf32> to vector<2x144x64xf32>
    %c0_6 = arith.constant 0 : index
    %c0_7 = arith.constant 0 : index
    %c0_8 = arith.constant 0 : index
    %9 = vector.load %arg11[%c0_6, %c0_7, %c0_8] : memref<2x144x64xf32, #tpu.memory_space<vmem>>, vector<2x144x64xf32>
    tpu.vector_store %arg11[%c0_6, %c0_7, %c0_8], %8 {strides = array<i32>} : memref<2x144x64xf32, #tpu.memory_space<vmem>>, vector<2x144x64xf32>,
    %c0_9 = arith.constant 0 : index
    %c0_10 = arith.constant 0 : index
    %c0_11 = arith.constant 0 : index
    %10 = vector.load %arg11[%c0_9, %c0_10, %c0_11] : memref<2x144x64xf32, #tpu.memory_space<vmem>>, vector<2x8x64xf32>
    %c0_12 = arith.constant 0 : index
    %c12 = arith.constant 12 : index
    %c0_13 = arith.constant 0 : index
    %11 = vector.load %arg11[%c0_12, %c12, %c0_13] : memref<2x144x64xf32, #tpu.memory_space<vmem>>, vector<2x8x64xf32>
    %c0_14 = arith.constant 0 : index
    %c24 = arith.constant 24 : index
    %c0_15 = arith.constant 0 : index
    %12 = vector.load %arg11[%c0_14, %c24, %c0_15] : memref<2x144x64xf32, #tpu.memory_space<vmem>>, vector<2x8x64xf32>
    %c0_16 = arith.constant 0 : index
    %c36 = arith.constant 36 : index
    %c0_17 = arith.constant 0 : index
    %13 = vector.load %arg11[%c0_16, %c36, %c0_17] : memref<2x144x64xf32, #tpu.memory_space<vmem>>, vector<2x8x64xf32>
    %c0_18 = arith.constant 0 : index
    %c48 = arith.constant 48 : index
    %c0_19 = arith.constant 0 : index
    %14 = vector.load %arg11[%c0_18, %c48, %c0_19] : memref<2x144x64xf32, #tpu.memory_space<vmem>>, vector<2x8x64xf32>
    %c0_20 = arith.constant 0 : index
    %c60 = arith.constant 60 : index
    %c0_21 = arith.constant 0 : index
    %15 = vector.load %arg11[%c0_20, %c60, %c0_21] : memref<2x144x64xf32, #tpu.memory_space<vmem>>, vector<2x8x64xf32>
    %c0_22 = arith.constant 0 : index
    %c72 = arith.constant 72 : index
    %c0_23 = arith.constant 0 : index
    %16 = vector.load %arg11[%c0_22, %c72, %c0_23] : memref<2x144x64xf32, #tpu.memory_space<vmem>>, vector<2x8x64xf32>
    %c0_24 = arith.constant 0 : index
    %c84 = arith.constant 84 : index
    %c0_25 = arith.constant 0 : index
    %17 = vector.load %arg11[%c0_24, %c84, %c0_25] : memref<2x144x64xf32, #tpu.memory_space<vmem>>, vector<2x8x64xf32>
    %18 = tpu.concatenate %10, %11, %12, %13, %14, %15, %16, %17 in 1 : vector<2x8x64xf32>, vector<2x8x64xf32>, vector<2x8x64xf32>, vector<2x8x64xf32>, vector<2x8x64xf32>, vector<2x8x64xf32>, vector<2x8x64xf32>, vector<2x8x64xf32> -> vector<2x64x64xf32>
    %19 = arith.truncf %18 : vector<2x64x64xf32> to vector<2x64x64xbf16>
    %c0_26 = arith.constant 0 : index
    %c1 = arith.constant 1 : index
    %c0_27 = arith.constant 0 : index
    %20 = vector.load %arg11[%c0_26, %c1, %c0_27] : memref<2x144x64xf32, #tpu.memory_space<vmem>>, vector<2x8x64xf32>
    %c0_28 = arith.constant 0 : index
    %c13 = arith.constant 13 : index
    %c0_29 = arith.constant 0 : index
    %21 = vector.load %arg11[%c0_28, %c13, %c0_29] : memref<2x144x64xf32, #tpu.memory_space<vmem>>, vector<2x8x64xf32>
    %c0_30 = arith.constant 0 : index
    %c25 = arith.constant 25 : index
    %c0_31 = arith.constant 0 : index
    %22 = vector.load %arg11[%c0_30, %c25, %c0_31] : memref<2x144x64xf32, #tpu.memory_space<vmem>>, vector<2x8x64xf32>
    %c0_32 = arith.constant 0 : index
    %c37 = arith.constant 37 : index
    %c0_33 = arith.constant 0 : index
    %23 = vector.load %arg11[%c0_32, %c37, %c0_33] : memref<2x144x64xf32, #tpu.memory_space<vmem>>, vector<2x8x64xf32>
    %c0_34 = arith.constant 0 : index
    %c49 = arith.constant 49 : index
    %c0_35 = arith.constant 0 : index
    %24 = vector.load %arg11[%c0_34, %c49, %c0_35] : memref<2x144x64xf32, #tpu.memory_space<vmem>>, vector<2x8x64xf32>
    %c0_36 = arith.constant 0 : index
    %c61 = arith.constant 61 : index
    %c0_37 = arith.constant 0 : index
    %25 = vector.load %arg11[%c0_36, %c61, %c0_37] : memref<2x144x64xf32, #tpu.memory_space<vmem>>, vector<2x8x64xf32>
    %c0_38 = arith.constant 0 : index
    %c73 = arith.constant 73 : index
    %c0_39 = arith.constant 0 : index
    %26 = vector.load %arg11[%c0_38, %c73, %c0_39] : memref<2x144x64xf32, #tpu.memory_space<vmem>>, vector<2x8x64xf32>
    %c0_40 = arith.constant 0 : index
    %c85 = arith.constant 85 : index
    %c0_41 = arith.constant 0 : index
    %27 = vector.load %arg11[%c0_40, %c85, %c0_41] : memref<2x144x64xf32, #tpu.memory_space<vmem>>, vector<2x8x64xf32>
    %28 = tpu.concatenate %20, %21, %22, %23, %24, %25, %26, %27 in 1 : vector<2x8x64xf32>, vector<2x8x64xf32>, vector<2x8x64xf32>, vector<2x8x64xf32>, vector<2x8x64xf32>, vector<2x8x64xf32>, vector<2x8x64xf32>, vector<2x8x64xf32> -> vector<2x64x64xf32>
    %29 = arith.truncf %28 : vector<2x64x64xf32> to vector<2x64x64xbf16>
    %c0_42 = arith.constant 0 : index
    %c2 = arith.constant 2 : index
    %c0_43 = arith.constant 0 : index
    %30 = vector.load %arg11[%c0_42, %c2, %c0_43] : memref<2x144x64xf32, #tpu.memory_space<vmem>>, vector<2x8x64xf32>
    %c0_44 = arith.constant 0 : index
    %c14 = arith.constant 14 : index
    %c0_45 = arith.constant 0 : index
    %31 = vector.load %arg11[%c0_44, %c14, %c0_45] : memref<2x144x64xf32, #tpu.memory_space<vmem>>, vector<2x8x64xf32>
    %c0_46 = arith.constant 0 : index
    %c26 = arith.constant 26 : index
    %c0_47 = arith.constant 0 : index
    %32 = vector.load %arg11[%c0_46, %c26, %c0_47] : memref<2x144x64xf32, #tpu.memory_space<vmem>>, vector<2x8x64xf32>
    %c0_48 = arith.constant 0 : index
    %c38 = arith.constant 38 : index
    %c0_49 = arith.constant 0 : index
    %33 = vector.load %arg11[%c0_48, %c38, %c0_49] : memref<2x144x64xf32, #tpu.memory_space<vmem>>, vector<2x8x64xf32>
    %c0_50 = arith.constant 0 : index
    %c50 = arith.constant 50 : index
    %c0_51 = arith.constant 0 : index
    %34 = vector.load %arg11[%c0_50, %c50, %c0_51] : memref<2x144x64xf32, #tpu.memory_space<vmem>>, vector<2x8x64xf32>
    %c0_52 = arith.constant 0 : index
    %c62 = arith.constant 62 : index
    %c0_53 = arith.constant 0 : index
    %35 = vector.load %arg11[%c0_52, %c62, %c0_53] : memref<2x144x64xf32, #tpu.memory_space<vmem>>, vector<2x8x64xf32>
    %c0_54 = arith.constant 0 : index
    %c74 = arith.constant 74 : index
    %c0_55 = arith.constant 0 : index
    %36 = vector.load %arg11[%c0_54, %c74, %c0_55] : memref<2x144x64xf32, #tpu.memory_space<vmem>>, vector<2x8x64xf32>
    %c0_56 = arith.constant 0 : index
    %c86 = arith.constant 86 : index
    %c0_57 = arith.constant 0 : index
    %37 = vector.load %arg11[%c0_56, %c86, %c0_57] : memref<2x144x64xf32, #tpu.memory_space<vmem>>, vector<2x8x64xf32>
    %38 = tpu.concatenate %30, %31, %32, %33, %34, %35, %36, %37 in 1 : vector<2x8x64xf32>, vector<2x8x64xf32>, vector<2x8x64xf32>, vector<2x8x64xf32>, vector<2x8x64xf32>, vector<2x8x64xf32>, vector<2x8x64xf32>, vector<2x8x64xf32> -> vector<2x64x64xf32>
    %39 = arith.truncf %38 : vector<2x64x64xf32> to vector<2x64x64xbf16>
    %c0_58 = arith.constant 0 : index
    %c3 = arith.constant 3 : index
    %c0_59 = arith.constant 0 : index
    %40 = vector.load %arg11[%c0_58, %c3, %c0_59] : memref<2x144x64xf32, #tpu.memory_space<vmem>>, vector<2x8x64xf32>
    %c0_60 = arith.constant 0 : index
    %c15 = arith.constant 15 : index
    %c0_61 = arith.constant 0 : index
    %41 = vector.load %arg11[%c0_60, %c15, %c0_61] : memref<2x144x64xf32, #tpu.memory_space<vmem>>, vector<2x8x64xf32>
    %c0_62 = arith.constant 0 : index
    %c27 = arith.constant 27 : index
    %c0_63 = arith.constant 0 : index
    %42 = vector.load %arg11[%c0_62, %c27, %c0_63] : memref<2x144x64xf32, #tpu.memory_space<vmem>>, vector<2x8x64xf32>
    %c0_64 = arith.constant 0 : index
    %c39 = arith.constant 39 : index
    %c0_65 = arith.constant 0 : index
    %43 = vector.load %arg11[%c0_64, %c39, %c0_65] : memref<2x144x64xf32, #tpu.memory_space<vmem>>, vector<2x8x64xf32>
    %c0_66 = arith.constant 0 : index
    %c51 = arith.constant 51 : index
    %c0_67 = arith.constant 0 : index
    %44 = vector.load %arg11[%c0_66, %c51, %c0_67] : memref<2x144x64xf32, #tpu.memory_space<vmem>>, vector<2x8x64xf32>
    %c0_68 = arith.constant 0 : index
    %c63 = arith.constant 63 : index
    %c0_69 = arith.constant 0 : index
    %45 = vector.load %arg11[%c0_68, %c63, %c0_69] : memref<2x144x64xf32, #tpu.memory_space<vmem>>, vector<2x8x64xf32>
    %c0_70 = arith.constant 0 : index
    %c75 = arith.constant 75 : index
    %c0_71 = arith.constant 0 : index
    %46 = vector.load %arg11[%c0_70, %c75, %c0_71] : memref<2x144x64xf32, #tpu.memory_space<vmem>>, vector<2x8x64xf32>
    %c0_72 = arith.constant 0 : index
    %c87 = arith.constant 87 : index
    %c0_73 = arith.constant 0 : index
    %47 = vector.load %arg11[%c0_72, %c87, %c0_73] : memref<2x144x64xf32, #tpu.memory_space<vmem>>, vector<2x8x64xf32>
    %48 = tpu.concatenate %40, %41, %42, %43, %44, %45, %46, %47 in 1 : vector<2x8x64xf32>, vector<2x8x64xf32>, vector<2x8x64xf32>, vector<2x8x64xf32>, vector<2x8x64xf32>, vector<2x8x64xf32>, vector<2x8x64xf32>, vector<2x8x64xf32> -> vector<2x64x64xf32>
    %49 = arith.truncf %48 : vector<2x64x64xf32> to vector<2x64x64xbf16>
    %c0_74 = arith.constant 0 : index
    %c4 = arith.constant 4 : index
    %c0_75 = arith.constant 0 : index
    %50 = vector.load %arg11[%c0_74, %c4, %c0_75] : memref<2x144x64xf32, #tpu.memory_space<vmem>>, vector<2x8x64xf32>
    %c0_76 = arith.constant 0 : index
    %c16 = arith.constant 16 : index
    %c0_77 = arith.constant 0 : index
    %51 = vector.load %arg11[%c0_76, %c16, %c0_77] : memref<2x144x64xf32, #tpu.memory_space<vmem>>, vector<2x8x64xf32>
    %c0_78 = arith.constant 0 : index
    %c28 = arith.constant 28 : index
    %c0_79 = arith.constant 0 : index
    %52 = vector.load %arg11[%c0_78, %c28, %c0_79] : memref<2x144x64xf32, #tpu.memory_space<vmem>>, vector<2x8x64xf32>
    %c0_80 = arith.constant 0 : index
    %c40 = arith.constant 40 : index
    %c0_81 = arith.constant 0 : index
    %53 = vector.load %arg11[%c0_80, %c40, %c0_81] : memref<2x144x64xf32, #tpu.memory_space<vmem>>, vector<2x8x64xf32>
    %c0_82 = arith.constant 0 : index
    %c52 = arith.constant 52 : index
    %c0_83 = arith.constant 0 : index
    %54 = vector.load %arg11[%c0_82, %c52, %c0_83] : memref<2x144x64xf32, #tpu.memory_space<vmem>>, vector<2x8x64xf32>
    %c0_84 = arith.constant 0 : index
    %c64 = arith.constant 64 : index
    %c0_85 = arith.constant 0 : index
    %55 = vector.load %arg11[%c0_84, %c64, %c0_85] : memref<2x144x64xf32, #tpu.memory_space<vmem>>, vector<2x8x64xf32>
    %c0_86 = arith.constant 0 : index
    %c76 = arith.constant 76 : index
    %c0_87 = arith.constant 0 : index
    %56 = vector.load %arg11[%c0_86, %c76, %c0_87] : memref<2x144x64xf32, #tpu.memory_space<vmem>>, vector<2x8x64xf32>
    %c0_88 = arith.constant 0 : index
    %c88 = arith.constant 88 : index
    %c0_89 = arith.constant 0 : index
    %57 = vector.load %arg11[%c0_88, %c88, %c0_89] : memref<2x144x64xf32, #tpu.memory_space<vmem>>, vector<2x8x64xf32>
    %58 = tpu.concatenate %50, %51, %52, %53, %54, %55, %56, %57 in 1 : vector<2x8x64xf32>, vector<2x8x64xf32>, vector<2x8x64xf32>, vector<2x8x64xf32>, vector<2x8x64xf32>, vector<2x8x64xf32>, vector<2x8x64xf32>, vector<2x8x64xf32> -> vector<2x64x64xf32>
    %59 = arith.truncf %58 : vector<2x64x64xf32> to vector<2x64x64xbf16>
    %c0_90 = arith.constant 0 : index
    %c12_91 = arith.constant 12 : index
    %c0_92 = arith.constant 0 : index
    %60 = vector.load %arg11[%c0_90, %c12_91, %c0_92] : memref<2x144x64xf32, #tpu.memory_space<vmem>>, vector<2x8x64xf32>
    %c0_93 = arith.constant 0 : index
    %c24_94 = arith.constant 24 : index
    %c0_95 = arith.constant 0 : index
    %61 = vector.load %arg11[%c0_93, %c24_94, %c0_95] : memref<2x144x64xf32, #tpu.memory_space<vmem>>, vector<2x8x64xf32>
    %c0_96 = arith.constant 0 : index
    %c36_97 = arith.constant 36 : index
    %c0_98 = arith.constant 0 : index
    %62 = vector.load %arg11[%c0_96, %c36_97, %c0_98] : memref<2x144x64xf32, #tpu.memory_space<vmem>>, vector<2x8x64xf32>
    %c0_99 = arith.constant 0 : index
    %c48_100 = arith.constant 48 : index
    %c0_101 = arith.constant 0 : index
    %63 = vector.load %arg11[%c0_99, %c48_100, %c0_101] : memref<2x144x64xf32, #tpu.memory_space<vmem>>, vector<2x8x64xf32>
    %c0_102 = arith.constant 0 : index
    %c60_103 = arith.constant 60 : index
    %c0_104 = arith.constant 0 : index
    %64 = vector.load %arg11[%c0_102, %c60_103, %c0_104] : memref<2x144x64xf32, #tpu.memory_space<vmem>>, vector<2x8x64xf32>
    %c0_105 = arith.constant 0 : index
    %c72_106 = arith.constant 72 : index
    %c0_107 = arith.constant 0 : index
    %65 = vector.load %arg11[%c0_105, %c72_106, %c0_107] : memref<2x144x64xf32, #tpu.memory_space<vmem>>, vector<2x8x64xf32>
    %c0_108 = arith.constant 0 : index
    %c84_109 = arith.constant 84 : index
    %c0_110 = arith.constant 0 : index
    %66 = vector.load %arg11[%c0_108, %c84_109, %c0_110] : memref<2x144x64xf32, #tpu.memory_space<vmem>>, vector<2x8x64xf32>
    %c0_111 = arith.constant 0 : index
    %c96 = arith.constant 96 : index
    %c0_112 = arith.constant 0 : index
    %67 = vector.load %arg11[%c0_111, %c96, %c0_112] : memref<2x144x64xf32, #tpu.memory_space<vmem>>, vector<2x8x64xf32>
    %68 = tpu.concatenate %60, %61, %62, %63, %64, %65, %66, %67 in 1 : vector<2x8x64xf32>, vector<2x8x64xf32>, vector<2x8x64xf32>, vector<2x8x64xf32>, vector<2x8x64xf32>, vector<2x8x64xf32>, vector<2x8x64xf32>, vector<2x8x64xf32> -> vector<2x64x64xf32>
    %69 = arith.truncf %68 : vector<2x64x64xf32> to vector<2x64x64xbf16>
    %c0_113 = arith.constant 0 : index
    %c13_114 = arith.constant 13 : index
    %c0_115 = arith.constant 0 : index
    %70 = vector.load %arg11[%c0_113, %c13_114, %c0_115] : memref<2x144x64xf32, #tpu.memory_space<vmem>>, vector<2x8x64xf32>
    %c0_116 = arith.constant 0 : index
    %c25_117 = arith.constant 25 : index
    %c0_118 = arith.constant 0 : index
    %71 = vector.load %arg11[%c0_116, %c25_117, %c0_118] : memref<2x144x64xf32, #tpu.memory_space<vmem>>, vector<2x8x64xf32>
    %c0_119 = arith.constant 0 : index
    %c37_120 = arith.constant 37 : index
    %c0_121 = arith.constant 0 : index
    %72 = vector.load %arg11[%c0_119, %c37_120, %c0_121] : memref<2x144x64xf32, #tpu.memory_space<vmem>>, vector<2x8x64xf32>
    %c0_122 = arith.constant 0 : index
    %c49_123 = arith.constant 49 : index
    %c0_124 = arith.constant 0 : index
    %73 = vector.load %arg11[%c0_122, %c49_123, %c0_124] : memref<2x144x64xf32, #tpu.memory_space<vmem>>, vector<2x8x64xf32>
    %c0_125 = arith.constant 0 : index
    %c61_126 = arith.constant 61 : index
    %c0_127 = arith.constant 0 : index
    %74 = vector.load %arg11[%c0_125, %c61_126, %c0_127] : memref<2x144x64xf32, #tpu.memory_space<vmem>>, vector<2x8x64xf32>
    %c0_128 = arith.constant 0 : index
    %c73_129 = arith.constant 73 : index
    %c0_130 = arith.constant 0 : index
    %75 = vector.load %arg11[%c0_128, %c73_129, %c0_130] : memref<2x144x64xf32, #tpu.memory_space<vmem>>, vector<2x8x64xf32>
    %c0_131 = arith.constant 0 : index
    %c85_132 = arith.constant 85 : index
    %c0_133 = arith.constant 0 : index
    %76 = vector.load %arg11[%c0_131, %c85_132, %c0_133] : memref<2x144x64xf32, #tpu.memory_space<vmem>>, vector<2x8x64xf32>
    %c0_134 = arith.constant 0 : index
    %c97 = arith.constant 97 : index
    %c0_135 = arith.constant 0 : index
    %77 = vector.load %arg11[%c0_134, %c97, %c0_135] : memref<2x144x64xf32, #tpu.memory_space<vmem>>, vector<2x8x64xf32>
    %78 = tpu.concatenate %70, %71, %72, %73, %74, %75, %76, %77 in 1 : vector<2x8x64xf32>, vector<2x8x64xf32>, vector<2x8x64xf32>, vector<2x8x64xf32>, vector<2x8x64xf32>, vector<2x8x64xf32>, vector<2x8x64xf32>, vector<2x8x64xf32> -> vector<2x64x64xf32>
    %79 = arith.truncf %78 : vector<2x64x64xf32> to vector<2x64x64xbf16>
    %c0_136 = arith.constant 0 : index
    %c14_137 = arith.constant 14 : index
    %c0_138 = arith.constant 0 : index
    %80 = vector.load %arg11[%c0_136, %c14_137, %c0_138] : memref<2x144x64xf32, #tpu.memory_space<vmem>>, vector<2x8x64xf32>
    %c0_139 = arith.constant 0 : index
    %c26_140 = arith.constant 26 : index
    %c0_141 = arith.constant 0 : index
    %81 = vector.load %arg11[%c0_139, %c26_140, %c0_141] : memref<2x144x64xf32, #tpu.memory_space<vmem>>, vector<2x8x64xf32>
    %c0_142 = arith.constant 0 : index
    %c38_143 = arith.constant 38 : index
    %c0_144 = arith.constant 0 : index
    %82 = vector.load %arg11[%c0_142, %c38_143, %c0_144] : memref<2x144x64xf32, #tpu.memory_space<vmem>>, vector<2x8x64xf32>
    %c0_145 = arith.constant 0 : index
    %c50_146 = arith.constant 50 : index
    %c0_147 = arith.constant 0 : index
    %83 = vector.load %arg11[%c0_145, %c50_146, %c0_147] : memref<2x144x64xf32, #tpu.memory_space<vmem>>, vector<2x8x64xf32>
    %c0_148 = arith.constant 0 : index
    %c62_149 = arith.constant 62 : index
    %c0_150 = arith.constant 0 : index
    %84 = vector.load %arg11[%c0_148, %c62_149, %c0_150] : memref<2x144x64xf32, #tpu.memory_space<vmem>>, vector<2x8x64xf32>
    %c0_151 = arith.constant 0 : index
    %c74_152 = arith.constant 74 : index
    %c0_153 = arith.constant 0 : index
    %85 = vector.load %arg11[%c0_151, %c74_152, %c0_153] : memref<2x144x64xf32, #tpu.memory_space<vmem>>, vector<2x8x64xf32>
    %c0_154 = arith.constant 0 : index
    %c86_155 = arith.constant 86 : index
    %c0_156 = arith.constant 0 : index
    %86 = vector.load %arg11[%c0_154, %c86_155, %c0_156] : memref<2x144x64xf32, #tpu.memory_space<vmem>>, vector<2x8x64xf32>
    %c0_157 = arith.constant 0 : index
    %c98 = arith.constant 98 : index
    %c0_158 = arith.constant 0 : index
    %87 = vector.load %arg11[%c0_157, %c98, %c0_158] : memref<2x144x64xf32, #tpu.memory_space<vmem>>, vector<2x8x64xf32>
    %88 = tpu.concatenate %80, %81, %82, %83, %84, %85, %86, %87 in 1 : vector<2x8x64xf32>, vector<2x8x64xf32>, vector<2x8x64xf32>, vector<2x8x64xf32>, vector<2x8x64xf32>, vector<2x8x64xf32>, vector<2x8x64xf32>, vector<2x8x64xf32> -> vector<2x64x64xf32>
    %89 = arith.truncf %88 : vector<2x64x64xf32> to vector<2x64x64xbf16>
    %c0_159 = arith.constant 0 : index
    %c15_160 = arith.constant 15 : index
    %c0_161 = arith.constant 0 : index
    %90 = vector.load %arg11[%c0_159, %c15_160, %c0_161] : memref<2x144x64xf32, #tpu.memory_space<vmem>>, vector<2x8x64xf32>
    %c0_162 = arith.constant 0 : index
    %c27_163 = arith.constant 27 : index
    %c0_164 = arith.constant 0 : index
    %91 = vector.load %arg11[%c0_162, %c27_163, %c0_164] : memref<2x144x64xf32, #tpu.memory_space<vmem>>, vector<2x8x64xf32>
    %c0_165 = arith.constant 0 : index
    %c39_166 = arith.constant 39 : index
    %c0_167 = arith.constant 0 : index
    %92 = vector.load %arg11[%c0_165, %c39_166, %c0_167] : memref<2x144x64xf32, #tpu.memory_space<vmem>>, vector<2x8x64xf32>
    %c0_168 = arith.constant 0 : index
    %c51_169 = arith.constant 51 : index
    %c0_170 = arith.constant 0 : index
    %93 = vector.load %arg11[%c0_168, %c51_169, %c0_170] : memref<2x144x64xf32, #tpu.memory_space<vmem>>, vector<2x8x64xf32>
    %c0_171 = arith.constant 0 : index
    %c63_172 = arith.constant 63 : index
    %c0_173 = arith.constant 0 : index
    %94 = vector.load %arg11[%c0_171, %c63_172, %c0_173] : memref<2x144x64xf32, #tpu.memory_space<vmem>>, vector<2x8x64xf32>
    %c0_174 = arith.constant 0 : index
    %c75_175 = arith.constant 75 : index
    %c0_176 = arith.constant 0 : index
    %95 = vector.load %arg11[%c0_174, %c75_175, %c0_176] : memref<2x144x64xf32, #tpu.memory_space<vmem>>, vector<2x8x64xf32>
    %c0_177 = arith.constant 0 : index
    %c87_178 = arith.constant 87 : index
    %c0_179 = arith.constant 0 : index
    %96 = vector.load %arg11[%c0_177, %c87_178, %c0_179] : memref<2x144x64xf32, #tpu.memory_space<vmem>>, vector<2x8x64xf32>
    %c0_180 = arith.constant 0 : index
    %c99 = arith.constant 99 : index
    %c0_181 = arith.constant 0 : index
    %97 = vector.load %arg11[%c0_180, %c99, %c0_181] : memref<2x144x64xf32, #tpu.memory_space<vmem>>, vector<2x8x64xf32>
    %98 = tpu.concatenate %90, %91, %92, %93, %94, %95, %96, %97 in 1 : vector<2x8x64xf32>, vector<2x8x64xf32>, vector<2x8x64xf32>, vector<2x8x64xf32>, vector<2x8x64xf32>, vector<2x8x64xf32>, vector<2x8x64xf32>, vector<2x8x64xf32> -> vector<2x64x64xf32>
    %99 = arith.truncf %98 : vector<2x64x64xf32> to vector<2x64x64xbf16>
    %c0_182 = arith.constant 0 : index
    %c16_183 = arith.constant 16 : index
    %c0_184 = arith.constant 0 : index
    %100 = vector.load %arg11[%c0_182, %c16_183, %c0_184] : memref<2x144x64xf32, #tpu.memory_space<vmem>>, vector<2x8x64xf32>
    %c0_185 = arith.constant 0 : index
    %c28_186 = arith.constant 28 : index
    %c0_187 = arith.constant 0 : index
    %101 = vector.load %arg11[%c0_185, %c28_186, %c0_187] : memref<2x144x64xf32, #tpu.memory_space<vmem>>, vector<2x8x64xf32>
    %c0_188 = arith.constant 0 : index
    %c40_189 = arith.constant 40 : index
    %c0_190 = arith.constant 0 : index
    %102 = vector.load %arg11[%c0_188, %c40_189, %c0_190] : memref<2x144x64xf32, #tpu.memory_space<vmem>>, vector<2x8x64xf32>
    %c0_191 = arith.constant 0 : index
    %c52_192 = arith.constant 52 : index
    %c0_193 = arith.constant 0 : index
    %103 = vector.load %arg11[%c0_191, %c52_192, %c0_193] : memref<2x144x64xf32, #tpu.memory_space<vmem>>, vector<2x8x64xf32>
    %c0_194 = arith.constant 0 : index
    %c64_195 = arith.constant 64 : index
    %c0_196 = arith.constant 0 : index
    %104 = vector.load %arg11[%c0_194, %c64_195, %c0_196] : memref<2x144x64xf32, #tpu.memory_space<vmem>>, vector<2x8x64xf32>
    %c0_197 = arith.constant 0 : index
    %c76_198 = arith.constant 76 : index
    %c0_199 = arith.constant 0 : index
    %105 = vector.load %arg11[%c0_197, %c76_198, %c0_199] : memref<2x144x64xf32, #tpu.memory_space<vmem>>, vector<2x8x64xf32>
    %c0_200 = arith.constant 0 : index
    %c88_201 = arith.constant 88 : index
    %c0_202 = arith.constant 0 : index
    %106 = vector.load %arg11[%c0_200, %c88_201, %c0_202] : memref<2x144x64xf32, #tpu.memory_space<vmem>>, vector<2x8x64xf32>
    %c0_203 = arith.constant 0 : index
    %c100 = arith.constant 100 : index
    %c0_204 = arith.constant 0 : index
    %107 = vector.load %arg11[%c0_203, %c100, %c0_204] : memref<2x144x64xf32, #tpu.memory_space<vmem>>, vector<2x8x64xf32>
    %108 = tpu.concatenate %100, %101, %102, %103, %104, %105, %106, %107 in 1 : vector<2x8x64xf32>, vector<2x8x64xf32>, vector<2x8x64xf32>, vector<2x8x64xf32>, vector<2x8x64xf32>, vector<2x8x64xf32>, vector<2x8x64xf32>, vector<2x8x64xf32> -> vector<2x64x64xf32>
    %109 = arith.truncf %108 : vector<2x64x64xf32> to vector<2x64x64xbf16>
    %c0_205 = arith.constant 0 : index
    %c24_206 = arith.constant 24 : index
    %c0_207 = arith.constant 0 : index
    %110 = vector.load %arg11[%c0_205, %c24_206, %c0_207] : memref<2x144x64xf32, #tpu.memory_space<vmem>>, vector<2x8x64xf32>
    %c0_208 = arith.constant 0 : index
    %c36_209 = arith.constant 36 : index
    %c0_210 = arith.constant 0 : index
    %111 = vector.load %arg11[%c0_208, %c36_209, %c0_210] : memref<2x144x64xf32, #tpu.memory_space<vmem>>, vector<2x8x64xf32>
    %c0_211 = arith.constant 0 : index
    %c48_212 = arith.constant 48 : index
    %c0_213 = arith.constant 0 : index
    %112 = vector.load %arg11[%c0_211, %c48_212, %c0_213] : memref<2x144x64xf32, #tpu.memory_space<vmem>>, vector<2x8x64xf32>
    %c0_214 = arith.constant 0 : index
    %c60_215 = arith.constant 60 : index
    %c0_216 = arith.constant 0 : index
    %113 = vector.load %arg11[%c0_214, %c60_215, %c0_216] : memref<2x144x64xf32, #tpu.memory_space<vmem>>, vector<2x8x64xf32>
    %c0_217 = arith.constant 0 : index
    %c72_218 = arith.constant 72 : index
    %c0_219 = arith.constant 0 : index
    %114 = vector.load %arg11[%c0_217, %c72_218, %c0_219] : memref<2x144x64xf32, #tpu.memory_space<vmem>>, vector<2x8x64xf32>
    %c0_220 = arith.constant 0 : index
    %c84_221 = arith.constant 84 : index
    %c0_222 = arith.constant 0 : index
    %115 = vector.load %arg11[%c0_220, %c84_221, %c0_222] : memref<2x144x64xf32, #tpu.memory_space<vmem>>, vector<2x8x64xf32>
    %c0_223 = arith.constant 0 : index
    %c96_224 = arith.constant 96 : index
    %c0_225 = arith.constant 0 : index
    %116 = vector.load %arg11[%c0_223, %c96_224, %c0_225] : memref<2x144x64xf32, #tpu.memory_space<vmem>>, vector<2x8x64xf32>
    %c0_226 = arith.constant 0 : index
    %c108 = arith.constant 108 : index
    %c0_227 = arith.constant 0 : index
    %117 = vector.load %arg11[%c0_226, %c108, %c0_227] : memref<2x144x64xf32, #tpu.memory_space<vmem>>, vector<2x8x64xf32>
    %118 = tpu.concatenate %110, %111, %112, %113, %114, %115, %116, %117 in 1 : vector<2x8x64xf32>, vector<2x8x64xf32>, vector<2x8x64xf32>, vector<2x8x64xf32>, vector<2x8x64xf32>, vector<2x8x64xf32>, vector<2x8x64xf32>, vector<2x8x64xf32> -> vector<2x64x64xf32>
    %119 = arith.truncf %118 : vector<2x64x64xf32> to vector<2x64x64xbf16>
    %c0_228 = arith.constant 0 : index
    %c25_229 = arith.constant 25 : index
    %c0_230 = arith.constant 0 : index
    %120 = vector.load %arg11[%c0_228, %c25_229, %c0_230] : memref<2x144x64xf32, #tpu.memory_space<vmem>>, vector<2x8x64xf32>
    %c0_231 = arith.constant 0 : index
    %c37_232 = arith.constant 37 : index
    %c0_233 = arith.constant 0 : index
    %121 = vector.load %arg11[%c0_231, %c37_232, %c0_233] : memref<2x144x64xf32, #tpu.memory_space<vmem>>, vector<2x8x64xf32>
    %c0_234 = arith.constant 0 : index
    %c49_235 = arith.constant 49 : index
    %c0_236 = arith.constant 0 : index
    %122 = vector.load %arg11[%c0_234, %c49_235, %c0_236] : memref<2x144x64xf32, #tpu.memory_space<vmem>>, vector<2x8x64xf32>
    %c0_237 = arith.constant 0 : index
    %c61_238 = arith.constant 61 : index
    %c0_239 = arith.constant 0 : index
    %123 = vector.load %arg11[%c0_237, %c61_238, %c0_239] : memref<2x144x64xf32, #tpu.memory_space<vmem>>, vector<2x8x64xf32>
    %c0_240 = arith.constant 0 : index
    %c73_241 = arith.constant 73 : index
    %c0_242 = arith.constant 0 : index
    %124 = vector.load %arg11[%c0_240, %c73_241, %c0_242] : memref<2x144x64xf32, #tpu.memory_space<vmem>>, vector<2x8x64xf32>
    %c0_243 = arith.constant 0 : index
    %c85_244 = arith.constant 85 : index
    %c0_245 = arith.constant 0 : index
    %125 = vector.load %arg11[%c0_243, %c85_244, %c0_245] : memref<2x144x64xf32, #tpu.memory_space<vmem>>, vector<2x8x64xf32>
    %c0_246 = arith.constant 0 : index
    %c97_247 = arith.constant 97 : index
    %c0_248 = arith.constant 0 : index
    %126 = vector.load %arg11[%c0_246, %c97_247, %c0_248] : memref<2x144x64xf32, #tpu.memory_space<vmem>>, vector<2x8x64xf32>
    %c0_249 = arith.constant 0 : index
    %c109 = arith.constant 109 : index
    %c0_250 = arith.constant 0 : index
    %127 = vector.load %arg11[%c0_249, %c109, %c0_250] : memref<2x144x64xf32, #tpu.memory_space<vmem>>, vector<2x8x64xf32>
    %128 = tpu.concatenate %120, %121, %122, %123, %124, %125, %126, %127 in 1 : vector<2x8x64xf32>, vector<2x8x64xf32>, vector<2x8x64xf32>, vector<2x8x64xf32>, vector<2x8x64xf32>, vector<2x8x64xf32>, vector<2x8x64xf32>, vector<2x8x64xf32> -> vector<2x64x64xf32>
    %129 = arith.truncf %128 : vector<2x64x64xf32> to vector<2x64x64xbf16>
    %c0_251 = arith.constant 0 : index
    %c26_252 = arith.constant 26 : index
    %c0_253 = arith.constant 0 : index
    %130 = vector.load %arg11[%c0_251, %c26_252, %c0_253] : memref<2x144x64xf32, #tpu.memory_space<vmem>>, vector<2x8x64xf32>
    %c0_254 = arith.constant 0 : index
    %c38_255 = arith.constant 38 : index
    %c0_256 = arith.constant 0 : index
    %131 = vector.load %arg11[%c0_254, %c38_255, %c0_256] : memref<2x144x64xf32, #tpu.memory_space<vmem>>, vector<2x8x64xf32>
    %c0_257 = arith.constant 0 : index
    %c50_258 = arith.constant 50 : index
    %c0_259 = arith.constant 0 : index
    %132 = vector.load %arg11[%c0_257, %c50_258, %c0_259] : memref<2x144x64xf32, #tpu.memory_space<vmem>>, vector<2x8x64xf32>
    %c0_260 = arith.constant 0 : index
    %c62_261 = arith.constant 62 : index
    %c0_262 = arith.constant 0 : index
    %133 = vector.load %arg11[%c0_260, %c62_261, %c0_262] : memref<2x144x64xf32, #tpu.memory_space<vmem>>, vector<2x8x64xf32>
    %c0_263 = arith.constant 0 : index
    %c74_264 = arith.constant 74 : index
    %c0_265 = arith.constant 0 : index
    %134 = vector.load %arg11[%c0_263, %c74_264, %c0_265] : memref<2x144x64xf32, #tpu.memory_space<vmem>>, vector<2x8x64xf32>
    %c0_266 = arith.constant 0 : index
    %c86_267 = arith.constant 86 : index
    %c0_268 = arith.constant 0 : index
    %135 = vector.load %arg11[%c0_266, %c86_267, %c0_268] : memref<2x144x64xf32, #tpu.memory_space<vmem>>, vector<2x8x64xf32>
    %c0_269 = arith.constant 0 : index
    %c98_270 = arith.constant 98 : index
    %c0_271 = arith.constant 0 : index
    %136 = vector.load %arg11[%c0_269, %c98_270, %c0_271] : memref<2x144x64xf32, #tpu.memory_space<vmem>>, vector<2x8x64xf32>
    %c0_272 = arith.constant 0 : index
    %c110 = arith.constant 110 : index
    %c0_273 = arith.constant 0 : index
    %137 = vector.load %arg11[%c0_272, %c110, %c0_273] : memref<2x144x64xf32, #tpu.memory_space<vmem>>, vector<2x8x64xf32>
    %138 = tpu.concatenate %130, %131, %132, %133, %134, %135, %136, %137 in 1 : vector<2x8x64xf32>, vector<2x8x64xf32>, vector<2x8x64xf32>, vector<2x8x64xf32>, vector<2x8x64xf32>, vector<2x8x64xf32>, vector<2x8x64xf32>, vector<2x8x64xf32> -> vector<2x64x64xf32>
    %139 = arith.truncf %138 : vector<2x64x64xf32> to vector<2x64x64xbf16>
    %c0_274 = arith.constant 0 : index
    %c27_275 = arith.constant 27 : index
    %c0_276 = arith.constant 0 : index
    %140 = vector.load %arg11[%c0_274, %c27_275, %c0_276] : memref<2x144x64xf32, #tpu.memory_space<vmem>>, vector<2x8x64xf32>
    %c0_277 = arith.constant 0 : index
    %c39_278 = arith.constant 39 : index
    %c0_279 = arith.constant 0 : index
    %141 = vector.load %arg11[%c0_277, %c39_278, %c0_279] : memref<2x144x64xf32, #tpu.memory_space<vmem>>, vector<2x8x64xf32>
    %c0_280 = arith.constant 0 : index
    %c51_281 = arith.constant 51 : index
    %c0_282 = arith.constant 0 : index
    %142 = vector.load %arg11[%c0_280, %c51_281, %c0_282] : memref<2x144x64xf32, #tpu.memory_space<vmem>>, vector<2x8x64xf32>
    %c0_283 = arith.constant 0 : index
    %c63_284 = arith.constant 63 : index
    %c0_285 = arith.constant 0 : index
    %143 = vector.load %arg11[%c0_283, %c63_284, %c0_285] : memref<2x144x64xf32, #tpu.memory_space<vmem>>, vector<2x8x64xf32>
    %c0_286 = arith.constant 0 : index
    %c75_287 = arith.constant 75 : index
    %c0_288 = arith.constant 0 : index
    %144 = vector.load %arg11[%c0_286, %c75_287, %c0_288] : memref<2x144x64xf32, #tpu.memory_space<vmem>>, vector<2x8x64xf32>
    %c0_289 = arith.constant 0 : index
    %c87_290 = arith.constant 87 : index
    %c0_291 = arith.constant 0 : index
    %145 = vector.load %arg11[%c0_289, %c87_290, %c0_291] : memref<2x144x64xf32, #tpu.memory_space<vmem>>, vector<2x8x64xf32>
    %c0_292 = arith.constant 0 : index
    %c99_293 = arith.constant 99 : index
    %c0_294 = arith.constant 0 : index
    %146 = vector.load %arg11[%c0_292, %c99_293, %c0_294] : memref<2x144x64xf32, #tpu.memory_space<vmem>>, vector<2x8x64xf32>
    %c0_295 = arith.constant 0 : index
    %c111 = arith.constant 111 : index
    %c0_296 = arith.constant 0 : index
    %147 = vector.load %arg11[%c0_295, %c111, %c0_296] : memref<2x144x64xf32, #tpu.memory_space<vmem>>, vector<2x8x64xf32>
    %148 = tpu.concatenate %140, %141, %142, %143, %144, %145, %146, %147 in 1 : vector<2x8x64xf32>, vector<2x8x64xf32>, vector<2x8x64xf32>, vector<2x8x64xf32>, vector<2x8x64xf32>, vector<2x8x64xf32>, vector<2x8x64xf32>, vector<2x8x64xf32> -> vector<2x64x64xf32>
    %149 = arith.truncf %148 : vector<2x64x64xf32> to vector<2x64x64xbf16>
    %c0_297 = arith.constant 0 : index
    %c28_298 = arith.constant 28 : index
    %c0_299 = arith.constant 0 : index
    %150 = vector.load %arg11[%c0_297, %c28_298, %c0_299] : memref<2x144x64xf32, #tpu.memory_space<vmem>>, vector<2x8x64xf32>
    %c0_300 = arith.constant 0 : index
    %c40_301 = arith.constant 40 : index
    %c0_302 = arith.constant 0 : index
    %151 = vector.load %arg11[%c0_300, %c40_301, %c0_302] : memref<2x144x64xf32, #tpu.memory_space<vmem>>, vector<2x8x64xf32>
    %c0_303 = arith.constant 0 : index
    %c52_304 = arith.constant 52 : index
    %c0_305 = arith.constant 0 : index
    %152 = vector.load %arg11[%c0_303, %c52_304, %c0_305] : memref<2x144x64xf32, #tpu.memory_space<vmem>>, vector<2x8x64xf32>
    %c0_306 = arith.constant 0 : index
    %c64_307 = arith.constant 64 : index
    %c0_308 = arith.constant 0 : index
    %153 = vector.load %arg11[%c0_306, %c64_307, %c0_308] : memref<2x144x64xf32, #tpu.memory_space<vmem>>, vector<2x8x64xf32>
    %c0_309 = arith.constant 0 : index
    %c76_310 = arith.constant 76 : index
    %c0_311 = arith.constant 0 : index
    %154 = vector.load %arg11[%c0_309, %c76_310, %c0_311] : memref<2x144x64xf32, #tpu.memory_space<vmem>>, vector<2x8x64xf32>
    %c0_312 = arith.constant 0 : index
    %c88_313 = arith.constant 88 : index
    %c0_314 = arith.constant 0 : index
    %155 = vector.load %arg11[%c0_312, %c88_313, %c0_314] : memref<2x144x64xf32, #tpu.memory_space<vmem>>, vector<2x8x64xf32>
    %c0_315 = arith.constant 0 : index
    %c100_316 = arith.constant 100 : index
    %c0_317 = arith.constant 0 : index
    %156 = vector.load %arg11[%c0_315, %c100_316, %c0_317] : memref<2x144x64xf32, #tpu.memory_space<vmem>>, vector<2x8x64xf32>
    %c0_318 = arith.constant 0 : index
    %c112 = arith.constant 112 : index
    %c0_319 = arith.constant 0 : index
    %157 = vector.load %arg11[%c0_318, %c112, %c0_319] : memref<2x144x64xf32, #tpu.memory_space<vmem>>, vector<2x8x64xf32>
    %158 = tpu.concatenate %150, %151, %152, %153, %154, %155, %156, %157 in 1 : vector<2x8x64xf32>, vector<2x8x64xf32>, vector<2x8x64xf32>, vector<2x8x64xf32>, vector<2x8x64xf32>, vector<2x8x64xf32>, vector<2x8x64xf32>, vector<2x8x64xf32> -> vector<2x64x64xf32>
    %159 = arith.truncf %158 : vector<2x64x64xf32> to vector<2x64x64xbf16>
    %c0_320 = arith.constant 0 : index
    %c36_321 = arith.constant 36 : index
    %c0_322 = arith.constant 0 : index
    %160 = vector.load %arg11[%c0_320, %c36_321, %c0_322] : memref<2x144x64xf32, #tpu.memory_space<vmem>>, vector<2x8x64xf32>
    %c0_323 = arith.constant 0 : index
    %c48_324 = arith.constant 48 : index
    %c0_325 = arith.constant 0 : index
    %161 = vector.load %arg11[%c0_323, %c48_324, %c0_325] : memref<2x144x64xf32, #tpu.memory_space<vmem>>, vector<2x8x64xf32>
    %c0_326 = arith.constant 0 : index
    %c60_327 = arith.constant 60 : index
    %c0_328 = arith.constant 0 : index
    %162 = vector.load %arg11[%c0_326, %c60_327, %c0_328] : memref<2x144x64xf32, #tpu.memory_space<vmem>>, vector<2x8x64xf32>
    %c0_329 = arith.constant 0 : index
    %c72_330 = arith.constant 72 : index
    %c0_331 = arith.constant 0 : index
    %163 = vector.load %arg11[%c0_329, %c72_330, %c0_331] : memref<2x144x64xf32, #tpu.memory_space<vmem>>, vector<2x8x64xf32>
    %c0_332 = arith.constant 0 : index
    %c84_333 = arith.constant 84 : index
    %c0_334 = arith.constant 0 : index
    %164 = vector.load %arg11[%c0_332, %c84_333, %c0_334] : memref<2x144x64xf32, #tpu.memory_space<vmem>>, vector<2x8x64xf32>
    %c0_335 = arith.constant 0 : index
    %c96_336 = arith.constant 96 : index
    %c0_337 = arith.constant 0 : index
    %165 = vector.load %arg11[%c0_335, %c96_336, %c0_337] : memref<2x144x64xf32, #tpu.memory_space<vmem>>, vector<2x8x64xf32>
    %c0_338 = arith.constant 0 : index
    %c108_339 = arith.constant 108 : index
    %c0_340 = arith.constant 0 : index
    %166 = vector.load %arg11[%c0_338, %c108_339, %c0_340] : memref<2x144x64xf32, #tpu.memory_space<vmem>>, vector<2x8x64xf32>
    %c0_341 = arith.constant 0 : index
    %c120 = arith.constant 120 : index
    %c0_342 = arith.constant 0 : index
    %167 = vector.load %arg11[%c0_341, %c120, %c0_342] : memref<2x144x64xf32, #tpu.memory_space<vmem>>, vector<2x8x64xf32>
    %168 = tpu.concatenate %160, %161, %162, %163, %164, %165, %166, %167 in 1 : vector<2x8x64xf32>, vector<2x8x64xf32>, vector<2x8x64xf32>, vector<2x8x64xf32>, vector<2x8x64xf32>, vector<2x8x64xf32>, vector<2x8x64xf32>, vector<2x8x64xf32> -> vector<2x64x64xf32>
    %169 = arith.truncf %168 : vector<2x64x64xf32> to vector<2x64x64xbf16>
    %c0_343 = arith.constant 0 : index
    %c37_344 = arith.constant 37 : index
    %c0_345 = arith.constant 0 : index
    %170 = vector.load %arg11[%c0_343, %c37_344, %c0_345] : memref<2x144x64xf32, #tpu.memory_space<vmem>>, vector<2x8x64xf32>
    %c0_346 = arith.constant 0 : index
    %c49_347 = arith.constant 49 : index
    %c0_348 = arith.constant 0 : index
    %171 = vector.load %arg11[%c0_346, %c49_347, %c0_348] : memref<2x144x64xf32, #tpu.memory_space<vmem>>, vector<2x8x64xf32>
    %c0_349 = arith.constant 0 : index
    %c61_350 = arith.constant 61 : index
    %c0_351 = arith.constant 0 : index
    %172 = vector.load %arg11[%c0_349, %c61_350, %c0_351] : memref<2x144x64xf32, #tpu.memory_space<vmem>>, vector<2x8x64xf32>
    %c0_352 = arith.constant 0 : index
    %c73_353 = arith.constant 73 : index
    %c0_354 = arith.constant 0 : index
    %173 = vector.load %arg11[%c0_352, %c73_353, %c0_354] : memref<2x144x64xf32, #tpu.memory_space<vmem>>, vector<2x8x64xf32>
    %c0_355 = arith.constant 0 : index
    %c85_356 = arith.constant 85 : index
    %c0_357 = arith.constant 0 : index
    %174 = vector.load %arg11[%c0_355, %c85_356, %c0_357] : memref<2x144x64xf32, #tpu.memory_space<vmem>>, vector<2x8x64xf32>
    %c0_358 = arith.constant 0 : index
    %c97_359 = arith.constant 97 : index
    %c0_360 = arith.constant 0 : index
    %175 = vector.load %arg11[%c0_358, %c97_359, %c0_360] : memref<2x144x64xf32, #tpu.memory_space<vmem>>, vector<2x8x64xf32>
    %c0_361 = arith.constant 0 : index
    %c109_362 = arith.constant 109 : index
    %c0_363 = arith.constant 0 : index
    %176 = vector.load %arg11[%c0_361, %c109_362, %c0_363] : memref<2x144x64xf32, #tpu.memory_space<vmem>>, vector<2x8x64xf32>
    %c0_364 = arith.constant 0 : index
    %c121 = arith.constant 121 : index
    %c0_365 = arith.constant 0 : index
    %177 = vector.load %arg11[%c0_364, %c121, %c0_365] : memref<2x144x64xf32, #tpu.memory_space<vmem>>, vector<2x8x64xf32>
    %178 = tpu.concatenate %170, %171, %172, %173, %174, %175, %176, %177 in 1 : vector<2x8x64xf32>, vector<2x8x64xf32>, vector<2x8x64xf32>, vector<2x8x64xf32>, vector<2x8x64xf32>, vector<2x8x64xf32>, vector<2x8x64xf32>, vector<2x8x64xf32> -> vector<2x64x64xf32>
    %179 = arith.truncf %178 : vector<2x64x64xf32> to vector<2x64x64xbf16>
    %c0_366 = arith.constant 0 : index
    %c38_367 = arith.constant 38 : index
    %c0_368 = arith.constant 0 : index
    %180 = vector.load %arg11[%c0_366, %c38_367, %c0_368] : memref<2x144x64xf32, #tpu.memory_space<vmem>>, vector<2x8x64xf32>
    %c0_369 = arith.constant 0 : index
    %c50_370 = arith.constant 50 : index
    %c0_371 = arith.constant 0 : index
    %181 = vector.load %arg11[%c0_369, %c50_370, %c0_371] : memref<2x144x64xf32, #tpu.memory_space<vmem>>, vector<2x8x64xf32>
    %c0_372 = arith.constant 0 : index
    %c62_373 = arith.constant 62 : index
    %c0_374 = arith.constant 0 : index
    %182 = vector.load %arg11[%c0_372, %c62_373, %c0_374] : memref<2x144x64xf32, #tpu.memory_space<vmem>>, vector<2x8x64xf32>
    %c0_375 = arith.constant 0 : index
    %c74_376 = arith.constant 74 : index
    %c0_377 = arith.constant 0 : index
    %183 = vector.load %arg11[%c0_375, %c74_376, %c0_377] : memref<2x144x64xf32, #tpu.memory_space<vmem>>, vector<2x8x64xf32>
    %c0_378 = arith.constant 0 : index
    %c86_379 = arith.constant 86 : index
    %c0_380 = arith.constant 0 : index
    %184 = vector.load %arg11[%c0_378, %c86_379, %c0_380] : memref<2x144x64xf32, #tpu.memory_space<vmem>>, vector<2x8x64xf32>
    %c0_381 = arith.constant 0 : index
    %c98_382 = arith.constant 98 : index
    %c0_383 = arith.constant 0 : index
    %185 = vector.load %arg11[%c0_381, %c98_382, %c0_383] : memref<2x144x64xf32, #tpu.memory_space<vmem>>, vector<2x8x64xf32>
    %c0_384 = arith.constant 0 : index
    %c110_385 = arith.constant 110 : index
    %c0_386 = arith.constant 0 : index
    %186 = vector.load %arg11[%c0_384, %c110_385, %c0_386] : memref<2x144x64xf32, #tpu.memory_space<vmem>>, vector<2x8x64xf32>
    %c0_387 = arith.constant 0 : index
    %c122 = arith.constant 122 : index
    %c0_388 = arith.constant 0 : index
    %187 = vector.load %arg11[%c0_387, %c122, %c0_388] : memref<2x144x64xf32, #tpu.memory_space<vmem>>, vector<2x8x64xf32>
    %188 = tpu.concatenate %180, %181, %182, %183, %184, %185, %186, %187 in 1 : vector<2x8x64xf32>, vector<2x8x64xf32>, vector<2x8x64xf32>, vector<2x8x64xf32>, vector<2x8x64xf32>, vector<2x8x64xf32>, vector<2x8x64xf32>, vector<2x8x64xf32> -> vector<2x64x64xf32>
    %189 = arith.truncf %188 : vector<2x64x64xf32> to vector<2x64x64xbf16>
    %c0_389 = arith.constant 0 : index
    %c39_390 = arith.constant 39 : index
    %c0_391 = arith.constant 0 : index
    %190 = vector.load %arg11[%c0_389, %c39_390, %c0_391] : memref<2x144x64xf32, #tpu.memory_space<vmem>>, vector<2x8x64xf32>
    %c0_392 = arith.constant 0 : index
    %c51_393 = arith.constant 51 : index
    %c0_394 = arith.constant 0 : index
    %191 = vector.load %arg11[%c0_392, %c51_393, %c0_394] : memref<2x144x64xf32, #tpu.memory_space<vmem>>, vector<2x8x64xf32>
    %c0_395 = arith.constant 0 : index
    %c63_396 = arith.constant 63 : index
    %c0_397 = arith.constant 0 : index
    %192 = vector.load %arg11[%c0_395, %c63_396, %c0_397] : memref<2x144x64xf32, #tpu.memory_space<vmem>>, vector<2x8x64xf32>
    %c0_398 = arith.constant 0 : index
    %c75_399 = arith.constant 75 : index
    %c0_400 = arith.constant 0 : index
    %193 = vector.load %arg11[%c0_398, %c75_399, %c0_400] : memref<2x144x64xf32, #tpu.memory_space<vmem>>, vector<2x8x64xf32>
    %c0_401 = arith.constant 0 : index
    %c87_402 = arith.constant 87 : index
    %c0_403 = arith.constant 0 : index
    %194 = vector.load %arg11[%c0_401, %c87_402, %c0_403] : memref<2x144x64xf32, #tpu.memory_space<vmem>>, vector<2x8x64xf32>
    %c0_404 = arith.constant 0 : index
    %c99_405 = arith.constant 99 : index
    %c0_406 = arith.constant 0 : index
    %195 = vector.load %arg11[%c0_404, %c99_405, %c0_406] : memref<2x144x64xf32, #tpu.memory_space<vmem>>, vector<2x8x64xf32>
    %c0_407 = arith.constant 0 : index
    %c111_408 = arith.constant 111 : index
    %c0_409 = arith.constant 0 : index
    %196 = vector.load %arg11[%c0_407, %c111_408, %c0_409] : memref<2x144x64xf32, #tpu.memory_space<vmem>>, vector<2x8x64xf32>
    %c0_410 = arith.constant 0 : index
    %c123 = arith.constant 123 : index
    %c0_411 = arith.constant 0 : index
    %197 = vector.load %arg11[%c0_410, %c123, %c0_411] : memref<2x144x64xf32, #tpu.memory_space<vmem>>, vector<2x8x64xf32>
    %198 = tpu.concatenate %190, %191, %192, %193, %194, %195, %196, %197 in 1 : vector<2x8x64xf32>, vector<2x8x64xf32>, vector<2x8x64xf32>, vector<2x8x64xf32>, vector<2x8x64xf32>, vector<2x8x64xf32>, vector<2x8x64xf32>, vector<2x8x64xf32> -> vector<2x64x64xf32>
    %199 = arith.truncf %198 : vector<2x64x64xf32> to vector<2x64x64xbf16>
    %c0_412 = arith.constant 0 : index
    %c40_413 = arith.constant 40 : index
    %c0_414 = arith.constant 0 : index
    %200 = vector.load %arg11[%c0_412, %c40_413, %c0_414] : memref<2x144x64xf32, #tpu.memory_space<vmem>>, vector<2x8x64xf32>
    %c0_415 = arith.constant 0 : index
    %c52_416 = arith.constant 52 : index
    %c0_417 = arith.constant 0 : index
    %201 = vector.load %arg11[%c0_415, %c52_416, %c0_417] : memref<2x144x64xf32, #tpu.memory_space<vmem>>, vector<2x8x64xf32>
    %c0_418 = arith.constant 0 : index
    %c64_419 = arith.constant 64 : index
    %c0_420 = arith.constant 0 : index
    %202 = vector.load %arg11[%c0_418, %c64_419, %c0_420] : memref<2x144x64xf32, #tpu.memory_space<vmem>>, vector<2x8x64xf32>
    %c0_421 = arith.constant 0 : index
    %c76_422 = arith.constant 76 : index
    %c0_423 = arith.constant 0 : index
    %203 = vector.load %arg11[%c0_421, %c76_422, %c0_423] : memref<2x144x64xf32, #tpu.memory_space<vmem>>, vector<2x8x64xf32>
    %c0_424 = arith.constant 0 : index
    %c88_425 = arith.constant 88 : index
    %c0_426 = arith.constant 0 : index
    %204 = vector.load %arg11[%c0_424, %c88_425, %c0_426] : memref<2x144x64xf32, #tpu.memory_space<vmem>>, vector<2x8x64xf32>
    %c0_427 = arith.constant 0 : index
    %c100_428 = arith.constant 100 : index
    %c0_429 = arith.constant 0 : index
    %205 = vector.load %arg11[%c0_427, %c100_428, %c0_429] : memref<2x144x64xf32, #tpu.memory_space<vmem>>, vector<2x8x64xf32>
    %c0_430 = arith.constant 0 : index
    %c112_431 = arith.constant 112 : index
    %c0_432 = arith.constant 0 : index
    %206 = vector.load %arg11[%c0_430, %c112_431, %c0_432] : memref<2x144x64xf32, #tpu.memory_space<vmem>>, vector<2x8x64xf32>
    %c0_433 = arith.constant 0 : index
    %c124 = arith.constant 124 : index
    %c0_434 = arith.constant 0 : index
    %207 = vector.load %arg11[%c0_433, %c124, %c0_434] : memref<2x144x64xf32, #tpu.memory_space<vmem>>, vector<2x8x64xf32>
    %208 = tpu.concatenate %200, %201, %202, %203, %204, %205, %206, %207 in 1 : vector<2x8x64xf32>, vector<2x8x64xf32>, vector<2x8x64xf32>, vector<2x8x64xf32>, vector<2x8x64xf32>, vector<2x8x64xf32>, vector<2x8x64xf32>, vector<2x8x64xf32> -> vector<2x64x64xf32>
    %209 = arith.truncf %208 : vector<2x64x64xf32> to vector<2x64x64xbf16>
    %c0_435 = arith.constant 0 : index
    %c48_436 = arith.constant 48 : index
    %c0_437 = arith.constant 0 : index
    %210 = vector.load %arg11[%c0_435, %c48_436, %c0_437] : memref<2x144x64xf32, #tpu.memory_space<vmem>>, vector<2x8x64xf32>
    %c0_438 = arith.constant 0 : index
    %c60_439 = arith.constant 60 : index
    %c0_440 = arith.constant 0 : index
    %211 = vector.load %arg11[%c0_438, %c60_439, %c0_440] : memref<2x144x64xf32, #tpu.memory_space<vmem>>, vector<2x8x64xf32>
    %c0_441 = arith.constant 0 : index
    %c72_442 = arith.constant 72 : index
    %c0_443 = arith.constant 0 : index
    %212 = vector.load %arg11[%c0_441, %c72_442, %c0_443] : memref<2x144x64xf32, #tpu.memory_space<vmem>>, vector<2x8x64xf32>
    %c0_444 = arith.constant 0 : index
    %c84_445 = arith.constant 84 : index
    %c0_446 = arith.constant 0 : index
    %213 = vector.load %arg11[%c0_444, %c84_445, %c0_446] : memref<2x144x64xf32, #tpu.memory_space<vmem>>, vector<2x8x64xf32>
    %c0_447 = arith.constant 0 : index
    %c96_448 = arith.constant 96 : index
    %c0_449 = arith.constant 0 : index
    %214 = vector.load %arg11[%c0_447, %c96_448, %c0_449] : memref<2x144x64xf32, #tpu.memory_space<vmem>>, vector<2x8x64xf32>
    %c0_450 = arith.constant 0 : index
    %c108_451 = arith.constant 108 : index
    %c0_452 = arith.constant 0 : index
    %215 = vector.load %arg11[%c0_450, %c108_451, %c0_452] : memref<2x144x64xf32, #tpu.memory_space<vmem>>, vector<2x8x64xf32>
    %c0_453 = arith.constant 0 : index
    %c120_454 = arith.constant 120 : index
    %c0_455 = arith.constant 0 : index
    %216 = vector.load %arg11[%c0_453, %c120_454, %c0_455] : memref<2x144x64xf32, #tpu.memory_space<vmem>>, vector<2x8x64xf32>
    %c0_456 = arith.constant 0 : index
    %c132 = arith.constant 132 : index
    %c0_457 = arith.constant 0 : index
    %217 = vector.load %arg11[%c0_456, %c132, %c0_457] : memref<2x144x64xf32, #tpu.memory_space<vmem>>, vector<2x8x64xf32>
    %218 = tpu.concatenate %210, %211, %212, %213, %214, %215, %216, %217 in 1 : vector<2x8x64xf32>, vector<2x8x64xf32>, vector<2x8x64xf32>, vector<2x8x64xf32>, vector<2x8x64xf32>, vector<2x8x64xf32>, vector<2x8x64xf32>, vector<2x8x64xf32> -> vector<2x64x64xf32>
    %219 = arith.truncf %218 : vector<2x64x64xf32> to vector<2x64x64xbf16>
    %c0_458 = arith.constant 0 : index
    %c49_459 = arith.constant 49 : index
    %c0_460 = arith.constant 0 : index
    %220 = vector.load %arg11[%c0_458, %c49_459, %c0_460] : memref<2x144x64xf32, #tpu.memory_space<vmem>>, vector<2x8x64xf32>
    %c0_461 = arith.constant 0 : index
    %c61_462 = arith.constant 61 : index
    %c0_463 = arith.constant 0 : index
    %221 = vector.load %arg11[%c0_461, %c61_462, %c0_463] : memref<2x144x64xf32, #tpu.memory_space<vmem>>, vector<2x8x64xf32>
    %c0_464 = arith.constant 0 : index
    %c73_465 = arith.constant 73 : index
    %c0_466 = arith.constant 0 : index
    %222 = vector.load %arg11[%c0_464, %c73_465, %c0_466] : memref<2x144x64xf32, #tpu.memory_space<vmem>>, vector<2x8x64xf32>
    %c0_467 = arith.constant 0 : index
    %c85_468 = arith.constant 85 : index
    %c0_469 = arith.constant 0 : index
    %223 = vector.load %arg11[%c0_467, %c85_468, %c0_469] : memref<2x144x64xf32, #tpu.memory_space<vmem>>, vector<2x8x64xf32>
    %c0_470 = arith.constant 0 : index
    %c97_471 = arith.constant 97 : index
    %c0_472 = arith.constant 0 : index
    %224 = vector.load %arg11[%c0_470, %c97_471, %c0_472] : memref<2x144x64xf32, #tpu.memory_space<vmem>>, vector<2x8x64xf32>
    %c0_473 = arith.constant 0 : index
    %c109_474 = arith.constant 109 : index
    %c0_475 = arith.constant 0 : index
    %225 = vector.load %arg11[%c0_473, %c109_474, %c0_475] : memref<2x144x64xf32, #tpu.memory_space<vmem>>, vector<2x8x64xf32>
    %c0_476 = arith.constant 0 : index
    %c121_477 = arith.constant 121 : index
    %c0_478 = arith.constant 0 : index
    %226 = vector.load %arg11[%c0_476, %c121_477, %c0_478] : memref<2x144x64xf32, #tpu.memory_space<vmem>>, vector<2x8x64xf32>
    %c0_479 = arith.constant 0 : index
    %c133 = arith.constant 133 : index
    %c0_480 = arith.constant 0 : index
    %227 = vector.load %arg11[%c0_479, %c133, %c0_480] : memref<2x144x64xf32, #tpu.memory_space<vmem>>, vector<2x8x64xf32>
    %228 = tpu.concatenate %220, %221, %222, %223, %224, %225, %226, %227 in 1 : vector<2x8x64xf32>, vector<2x8x64xf32>, vector<2x8x64xf32>, vector<2x8x64xf32>, vector<2x8x64xf32>, vector<2x8x64xf32>, vector<2x8x64xf32>, vector<2x8x64xf32> -> vector<2x64x64xf32>
    %229 = arith.truncf %228 : vector<2x64x64xf32> to vector<2x64x64xbf16>
    %c0_481 = arith.constant 0 : index
    %c50_482 = arith.constant 50 : index
    %c0_483 = arith.constant 0 : index
    %230 = vector.load %arg11[%c0_481, %c50_482, %c0_483] : memref<2x144x64xf32, #tpu.memory_space<vmem>>, vector<2x8x64xf32>
    %c0_484 = arith.constant 0 : index
    %c62_485 = arith.constant 62 : index
    %c0_486 = arith.constant 0 : index
    %231 = vector.load %arg11[%c0_484, %c62_485, %c0_486] : memref<2x144x64xf32, #tpu.memory_space<vmem>>, vector<2x8x64xf32>
    %c0_487 = arith.constant 0 : index
    %c74_488 = arith.constant 74 : index
    %c0_489 = arith.constant 0 : index
    %232 = vector.load %arg11[%c0_487, %c74_488, %c0_489] : memref<2x144x64xf32, #tpu.memory_space<vmem>>, vector<2x8x64xf32>
    %c0_490 = arith.constant 0 : index
    %c86_491 = arith.constant 86 : index
    %c0_492 = arith.constant 0 : index
    %233 = vector.load %arg11[%c0_490, %c86_491, %c0_492] : memref<2x144x64xf32, #tpu.memory_space<vmem>>, vector<2x8x64xf32>
    %c0_493 = arith.constant 0 : index
    %c98_494 = arith.constant 98 : index
    %c0_495 = arith.constant 0 : index
    %234 = vector.load %arg11[%c0_493, %c98_494, %c0_495] : memref<2x144x64xf32, #tpu.memory_space<vmem>>, vector<2x8x64xf32>
    %c0_496 = arith.constant 0 : index
    %c110_497 = arith.constant 110 : index
    %c0_498 = arith.constant 0 : index
    %235 = vector.load %arg11[%c0_496, %c110_497, %c0_498] : memref<2x144x64xf32, #tpu.memory_space<vmem>>, vector<2x8x64xf32>
    %c0_499 = arith.constant 0 : index
    %c122_500 = arith.constant 122 : index
    %c0_501 = arith.constant 0 : index
    %236 = vector.load %arg11[%c0_499, %c122_500, %c0_501] : memref<2x144x64xf32, #tpu.memory_space<vmem>>, vector<2x8x64xf32>
    %c0_502 = arith.constant 0 : index
    %c134 = arith.constant 134 : index
    %c0_503 = arith.constant 0 : index
    %237 = vector.load %arg11[%c0_502, %c134, %c0_503] : memref<2x144x64xf32, #tpu.memory_space<vmem>>, vector<2x8x64xf32>
    %238 = tpu.concatenate %230, %231, %232, %233, %234, %235, %236, %237 in 1 : vector<2x8x64xf32>, vector<2x8x64xf32>, vector<2x8x64xf32>, vector<2x8x64xf32>, vector<2x8x64xf32>, vector<2x8x64xf32>, vector<2x8x64xf32>, vector<2x8x64xf32> -> vector<2x64x64xf32>
    %239 = arith.truncf %238 : vector<2x64x64xf32> to vector<2x64x64xbf16>
    %c0_504 = arith.constant 0 : index
    %c51_505 = arith.constant 51 : index
    %c0_506 = arith.constant 0 : index
    %240 = vector.load %arg11[%c0_504, %c51_505, %c0_506] : memref<2x144x64xf32, #tpu.memory_space<vmem>>, vector<2x8x64xf32>
    %c0_507 = arith.constant 0 : index
    %c63_508 = arith.constant 63 : index
    %c0_509 = arith.constant 0 : index
    %241 = vector.load %arg11[%c0_507, %c63_508, %c0_509] : memref<2x144x64xf32, #tpu.memory_space<vmem>>, vector<2x8x64xf32>
    %c0_510 = arith.constant 0 : index
    %c75_511 = arith.constant 75 : index
    %c0_512 = arith.constant 0 : index
    %242 = vector.load %arg11[%c0_510, %c75_511, %c0_512] : memref<2x144x64xf32, #tpu.memory_space<vmem>>, vector<2x8x64xf32>
    %c0_513 = arith.constant 0 : index
    %c87_514 = arith.constant 87 : index
    %c0_515 = arith.constant 0 : index
    %243 = vector.load %arg11[%c0_513, %c87_514, %c0_515] : memref<2x144x64xf32, #tpu.memory_space<vmem>>, vector<2x8x64xf32>
    %c0_516 = arith.constant 0 : index
    %c99_517 = arith.constant 99 : index
    %c0_518 = arith.constant 0 : index
    %244 = vector.load %arg11[%c0_516, %c99_517, %c0_518] : memref<2x144x64xf32, #tpu.memory_space<vmem>>, vector<2x8x64xf32>
    %c0_519 = arith.constant 0 : index
    %c111_520 = arith.constant 111 : index
    %c0_521 = arith.constant 0 : index
    %245 = vector.load %arg11[%c0_519, %c111_520, %c0_521] : memref<2x144x64xf32, #tpu.memory_space<vmem>>, vector<2x8x64xf32>
    %c0_522 = arith.constant 0 : index
    %c123_523 = arith.constant 123 : index
    %c0_524 = arith.constant 0 : index
    %246 = vector.load %arg11[%c0_522, %c123_523, %c0_524] : memref<2x144x64xf32, #tpu.memory_space<vmem>>, vector<2x8x64xf32>
    %c0_525 = arith.constant 0 : index
    %c135 = arith.constant 135 : index
    %c0_526 = arith.constant 0 : index
    %247 = vector.load %arg11[%c0_525, %c135, %c0_526] : memref<2x144x64xf32, #tpu.memory_space<vmem>>, vector<2x8x64xf32>
    %248 = tpu.concatenate %240, %241, %242, %243, %244, %245, %246, %247 in 1 : vector<2x8x64xf32>, vector<2x8x64xf32>, vector<2x8x64xf32>, vector<2x8x64xf32>, vector<2x8x64xf32>, vector<2x8x64xf32>, vector<2x8x64xf32>, vector<2x8x64xf32> -> vector<2x64x64xf32>
    %249 = arith.truncf %248 : vector<2x64x64xf32> to vector<2x64x64xbf16>
    %c0_527 = arith.constant 0 : index
    %c52_528 = arith.constant 52 : index
    %c0_529 = arith.constant 0 : index
    %250 = vector.load %arg11[%c0_527, %c52_528, %c0_529] : memref<2x144x64xf32, #tpu.memory_space<vmem>>, vector<2x8x64xf32>
    %c0_530 = arith.constant 0 : index
    %c64_531 = arith.constant 64 : index
    %c0_532 = arith.constant 0 : index
    %251 = vector.load %arg11[%c0_530, %c64_531, %c0_532] : memref<2x144x64xf32, #tpu.memory_space<vmem>>, vector<2x8x64xf32>
    %c0_533 = arith.constant 0 : index
    %c76_534 = arith.constant 76 : index
    %c0_535 = arith.constant 0 : index
    %252 = vector.load %arg11[%c0_533, %c76_534, %c0_535] : memref<2x144x64xf32, #tpu.memory_space<vmem>>, vector<2x8x64xf32>
    %c0_536 = arith.constant 0 : index
    %c88_537 = arith.constant 88 : index
    %c0_538 = arith.constant 0 : index
    %253 = vector.load %arg11[%c0_536, %c88_537, %c0_538] : memref<2x144x64xf32, #tpu.memory_space<vmem>>, vector<2x8x64xf32>
    %c0_539 = arith.constant 0 : index
    %c100_540 = arith.constant 100 : index
    %c0_541 = arith.constant 0 : index
    %254 = vector.load %arg11[%c0_539, %c100_540, %c0_541] : memref<2x144x64xf32, #tpu.memory_space<vmem>>, vector<2x8x64xf32>
    %c0_542 = arith.constant 0 : index
    %c112_543 = arith.constant 112 : index
    %c0_544 = arith.constant 0 : index
    %255 = vector.load %arg11[%c0_542, %c112_543, %c0_544] : memref<2x144x64xf32, #tpu.memory_space<vmem>>, vector<2x8x64xf32>
    %c0_545 = arith.constant 0 : index
    %c124_546 = arith.constant 124 : index
    %c0_547 = arith.constant 0 : index
    %256 = vector.load %arg11[%c0_545, %c124_546, %c0_547] : memref<2x144x64xf32, #tpu.memory_space<vmem>>, vector<2x8x64xf32>
    %c0_548 = arith.constant 0 : index
    %c136 = arith.constant 136 : index
    %c0_549 = arith.constant 0 : index
    %257 = vector.load %arg11[%c0_548, %c136, %c0_549] : memref<2x144x64xf32, #tpu.memory_space<vmem>>, vector<2x8x64xf32>
    %258 = tpu.concatenate %250, %251, %252, %253, %254, %255, %256, %257 in 1 : vector<2x8x64xf32>, vector<2x8x64xf32>, vector<2x8x64xf32>, vector<2x8x64xf32>, vector<2x8x64xf32>, vector<2x8x64xf32>, vector<2x8x64xf32>, vector<2x8x64xf32> -> vector<2x64x64xf32>
    %259 = arith.truncf %258 : vector<2x64x64xf32> to vector<2x64x64xbf16>
    %260 = tpu.concatenate %19, %29, %39, %49, %59, %69, %79, %89, %99, %109, %119, %129, %139, %149, %159, %169 in 2 : vector<2x64x64xbf16>, vector<2x64x64xbf16>, vector<2x64x64xbf16>, vector<2x64x64xbf16>, vector<2x64x64xbf16>, vector<2x64x64xbf16>, vector<2x64x64xbf16>, vector<2x64x64xbf16>, vector<2x64x64xbf16>, vector<2x64x64xbf16>, vector<2x64x64xbf16>, vector<2x64x64xbf16>, vector<2x64x64xbf16>, vector<2x64x64xbf16>, vector<2x64x64xbf16>, vector<2x64x64xbf16> -> vector<2x64x1024xbf16>
    %261 = tpu.concatenate %179, %189, %199, %209, %219, %229, %239, %249, %259 in 2 : vector<2x64x64xbf16>, vector<2x64x64xbf16>, vector<2x64x64xbf16>, vector<2x64x64xbf16>, vector<2x64x64xbf16>, vector<2x64x64xbf16>, vector<2x64x64xbf16>, vector<2x64x64xbf16>, vector<2x64x64xbf16> -> vector<2x64x576xbf16>
    %262 = tpu.concatenate %260, %261 in 2 : vector<2x64x1024xbf16>, vector<2x64x576xbf16> -> vector<2x64x1600xbf16>
    %263 = vector.shape_cast %262 : vector<2x64x1600xbf16> to vector<128x1600xbf16>
    %c0_550 = arith.constant 0 : index
    %c0_551 = arith.constant 0 : index
    %264 = vector.load %arg4[%c0_550, %c0_551] : memref<1600x64xbf16, #tpu.memory_space<vmem>>, vector<1600x64xbf16>
    %cst_552 = arith.constant dense<0.000000e+00> : vector<128x64xf32>
    %265 = tpu.matmul %263, %264, %cst_552 {dimension_numbers = #tpu.dot_dimension_numbers<[1], [0], [0], [1], [0, 0, 1, 1], [], []>} : vector<128x1600xbf16>, vector<1600x64xbf16>, vector<128x64xf32> -> vector<128x64xf32>
    %c0_553 = arith.constant 0 : index
    %c0_554 = arith.constant 0 : index
    %266 = vector.load %arg5[%c0_553, %c0_554] : memref<1x64xf32, #tpu.memory_space<vmem>>, vector<1x64xf32>
    %267 = vector.broadcast %266 : vector<1x64xf32> to vector<128x64xf32>
    %268 = arith.addf %265, %267 : vector<128x64xf32>
    %cst_555 = arith.constant 0.000000e+00 : f32
    %269 = vector.broadcast %cst_555 : f32 to vector<128x64xf32>
    %270 = arith.maximumf %268, %269 : vector<128x64xf32>
    %271 = vector.shape_cast %270 : vector<128x64xf32> to vector<2x64x64xf32>
    %272 = vector.extract_strided_slice %271 {offsets = [0, 0, 0], sizes = [2, 1, 64], strides = [1, 1, 1]} : vector<2x64x64xf32> to vector<2x1x64xf32>
    %273 = vector.shape_cast %272 : vector<2x1x64xf32> to vector<2x64xf32>
    %274 = vector.extract_strided_slice %271 {offsets = [0, 1, 0], sizes = [2, 1, 64], strides = [1, 1, 1]} : vector<2x64x64xf32> to vector<2x1x64xf32>
    %275 = vector.shape_cast %274 : vector<2x1x64xf32> to vector<2x64xf32>
    %276 = vector.extract_strided_slice %271 {offsets = [0, 2, 0], sizes = [2, 1, 64], strides = [1, 1, 1]} : vector<2x64x64xf32> to vector<2x1x64xf32>
    %277 = vector.shape_cast %276 : vector<2x1x64xf32> to vector<2x64xf32>
    %278 = vector.extract_strided_slice %271 {offsets = [0, 3, 0], sizes = [2, 1, 64], strides = [1, 1, 1]} : vector<2x64x64xf32> to vector<2x1x64xf32>
    %279 = vector.shape_cast %278 : vector<2x1x64xf32> to vector<2x64xf32>
    %280 = vector.extract_strided_slice %271 {offsets = [0, 4, 0], sizes = [2, 1, 64], strides = [1, 1, 1]} : vector<2x64x64xf32> to vector<2x1x64xf32>
    %281 = vector.shape_cast %280 : vector<2x1x64xf32> to vector<2x64xf32>
    %282 = vector.extract_strided_slice %271 {offsets = [0, 5, 0], sizes = [2, 1, 64], strides = [1, 1, 1]} : vector<2x64x64xf32> to vector<2x1x64xf32>
    %283 = vector.shape_cast %282 : vector<2x1x64xf32> to vector<2x64xf32>
    %284 = vector.extract_strided_slice %271 {offsets = [0, 6, 0], sizes = [2, 1, 64], strides = [1, 1, 1]} : vector<2x64x64xf32> to vector<2x1x64xf32>
    %285 = vector.shape_cast %284 : vector<2x1x64xf32> to vector<2x64xf32>
    %286 = vector.extract_strided_slice %271 {offsets = [0, 7, 0], sizes = [2, 1, 64], strides = [1, 1, 1]} : vector<2x64x64xf32> to vector<2x1x64xf32>
    %287 = vector.shape_cast %286 : vector<2x1x64xf32> to vector<2x64xf32>
    %288 = vector.extract_strided_slice %271 {offsets = [0, 8, 0], sizes = [2, 1, 64], strides = [1, 1, 1]} : vector<2x64x64xf32> to vector<2x1x64xf32>
    %289 = vector.shape_cast %288 : vector<2x1x64xf32> to vector<2x64xf32>
    %290 = vector.extract_strided_slice %271 {offsets = [0, 9, 0], sizes = [2, 1, 64], strides = [1, 1, 1]} : vector<2x64x64xf32> to vector<2x1x64xf32>
    %291 = vector.shape_cast %290 : vector<2x1x64xf32> to vector<2x64xf32>
    %292 = vector.extract_strided_slice %271 {offsets = [0, 10, 0], sizes = [2, 1, 64], strides = [1, 1, 1]} : vector<2x64x64xf32> to vector<2x1x64xf32>
    %293 = vector.shape_cast %292 : vector<2x1x64xf32> to vector<2x64xf32>
    %294 = vector.extract_strided_slice %271 {offsets = [0, 11, 0], sizes = [2, 1, 64], strides = [1, 1, 1]} : vector<2x64x64xf32> to vector<2x1x64xf32>
    %295 = vector.shape_cast %294 : vector<2x1x64xf32> to vector<2x64xf32>
    %296 = vector.extract_strided_slice %271 {offsets = [0, 12, 0], sizes = [2, 1, 64], strides = [1, 1, 1]} : vector<2x64x64xf32> to vector<2x1x64xf32>
    %297 = vector.shape_cast %296 : vector<2x1x64xf32> to vector<2x64xf32>
    %298 = vector.extract_strided_slice %271 {offsets = [0, 13, 0], sizes = [2, 1, 64], strides = [1, 1, 1]} : vector<2x64x64xf32> to vector<2x1x64xf32>
    %299 = vector.shape_cast %298 : vector<2x1x64xf32> to vector<2x64xf32>
    %300 = vector.extract_strided_slice %271 {offsets = [0, 14, 0], sizes = [2, 1, 64], strides = [1, 1, 1]} : vector<2x64x64xf32> to vector<2x1x64xf32>
    %301 = vector.shape_cast %300 : vector<2x1x64xf32> to vector<2x64xf32>
    %302 = vector.extract_strided_slice %271 {offsets = [0, 15, 0], sizes = [2, 1, 64], strides = [1, 1, 1]} : vector<2x64x64xf32> to vector<2x1x64xf32>
    %303 = vector.shape_cast %302 : vector<2x1x64xf32> to vector<2x64xf32>
    %304 = vector.extract_strided_slice %271 {offsets = [0, 16, 0], sizes = [2, 1, 64], strides = [1, 1, 1]} : vector<2x64x64xf32> to vector<2x1x64xf32>
    %305 = vector.shape_cast %304 : vector<2x1x64xf32> to vector<2x64xf32>
    %306 = vector.extract_strided_slice %271 {offsets = [0, 17, 0], sizes = [2, 1, 64], strides = [1, 1, 1]} : vector<2x64x64xf32> to vector<2x1x64xf32>
    %307 = vector.shape_cast %306 : vector<2x1x64xf32> to vector<2x64xf32>
    %308 = vector.extract_strided_slice %271 {offsets = [0, 18, 0], sizes = [2, 1, 64], strides = [1, 1, 1]} : vector<2x64x64xf32> to vector<2x1x64xf32>
    %309 = vector.shape_cast %308 : vector<2x1x64xf32> to vector<2x64xf32>
    %310 = vector.extract_strided_slice %271 {offsets = [0, 19, 0], sizes = [2, 1, 64], strides = [1, 1, 1]} : vector<2x64x64xf32> to vector<2x1x64xf32>
    %311 = vector.shape_cast %310 : vector<2x1x64xf32> to vector<2x64xf32>
    %312 = vector.extract_strided_slice %271 {offsets = [0, 20, 0], sizes = [2, 1, 64], strides = [1, 1, 1]} : vector<2x64x64xf32> to vector<2x1x64xf32>
    %313 = vector.shape_cast %312 : vector<2x1x64xf32> to vector<2x64xf32>
    %314 = vector.extract_strided_slice %271 {offsets = [0, 21, 0], sizes = [2, 1, 64], strides = [1, 1, 1]} : vector<2x64x64xf32> to vector<2x1x64xf32>
    %315 = vector.shape_cast %314 : vector<2x1x64xf32> to vector<2x64xf32>
    %316 = vector.extract_strided_slice %271 {offsets = [0, 22, 0], sizes = [2, 1, 64], strides = [1, 1, 1]} : vector<2x64x64xf32> to vector<2x1x64xf32>
    %317 = vector.shape_cast %316 : vector<2x1x64xf32> to vector<2x64xf32>
    %318 = vector.extract_strided_slice %271 {offsets = [0, 23, 0], sizes = [2, 1, 64], strides = [1, 1, 1]} : vector<2x64x64xf32> to vector<2x1x64xf32>
    %319 = vector.shape_cast %318 : vector<2x1x64xf32> to vector<2x64xf32>
    %320 = vector.extract_strided_slice %271 {offsets = [0, 24, 0], sizes = [2, 1, 64], strides = [1, 1, 1]} : vector<2x64x64xf32> to vector<2x1x64xf32>
    %321 = vector.shape_cast %320 : vector<2x1x64xf32> to vector<2x64xf32>
    %322 = vector.extract_strided_slice %271 {offsets = [0, 25, 0], sizes = [2, 1, 64], strides = [1, 1, 1]} : vector<2x64x64xf32> to vector<2x1x64xf32>
    %323 = vector.shape_cast %322 : vector<2x1x64xf32> to vector<2x64xf32>
    %324 = vector.extract_strided_slice %271 {offsets = [0, 26, 0], sizes = [2, 1, 64], strides = [1, 1, 1]} : vector<2x64x64xf32> to vector<2x1x64xf32>
    %325 = vector.shape_cast %324 : vector<2x1x64xf32> to vector<2x64xf32>
    %326 = vector.extract_strided_slice %271 {offsets = [0, 27, 0], sizes = [2, 1, 64], strides = [1, 1, 1]} : vector<2x64x64xf32> to vector<2x1x64xf32>
    %327 = vector.shape_cast %326 : vector<2x1x64xf32> to vector<2x64xf32>
    %328 = vector.extract_strided_slice %271 {offsets = [0, 28, 0], sizes = [2, 1, 64], strides = [1, 1, 1]} : vector<2x64x64xf32> to vector<2x1x64xf32>
    %329 = vector.shape_cast %328 : vector<2x1x64xf32> to vector<2x64xf32>
    %330 = vector.extract_strided_slice %271 {offsets = [0, 29, 0], sizes = [2, 1, 64], strides = [1, 1, 1]} : vector<2x64x64xf32> to vector<2x1x64xf32>
    %331 = vector.shape_cast %330 : vector<2x1x64xf32> to vector<2x64xf32>
    %332 = vector.extract_strided_slice %271 {offsets = [0, 30, 0], sizes = [2, 1, 64], strides = [1, 1, 1]} : vector<2x64x64xf32> to vector<2x1x64xf32>
    %333 = vector.shape_cast %332 : vector<2x1x64xf32> to vector<2x64xf32>
    %334 = vector.extract_strided_slice %271 {offsets = [0, 31, 0], sizes = [2, 1, 64], strides = [1, 1, 1]} : vector<2x64x64xf32> to vector<2x1x64xf32>
    %335 = vector.shape_cast %334 : vector<2x1x64xf32> to vector<2x64xf32>
    %336 = vector.extract_strided_slice %271 {offsets = [0, 32, 0], sizes = [2, 1, 64], strides = [1, 1, 1]} : vector<2x64x64xf32> to vector<2x1x64xf32>
    %337 = vector.shape_cast %336 : vector<2x1x64xf32> to vector<2x64xf32>
    %338 = vector.extract_strided_slice %271 {offsets = [0, 33, 0], sizes = [2, 1, 64], strides = [1, 1, 1]} : vector<2x64x64xf32> to vector<2x1x64xf32>
    %339 = vector.shape_cast %338 : vector<2x1x64xf32> to vector<2x64xf32>
    %340 = vector.extract_strided_slice %271 {offsets = [0, 34, 0], sizes = [2, 1, 64], strides = [1, 1, 1]} : vector<2x64x64xf32> to vector<2x1x64xf32>
    %341 = vector.shape_cast %340 : vector<2x1x64xf32> to vector<2x64xf32>
    %342 = vector.extract_strided_slice %271 {offsets = [0, 35, 0], sizes = [2, 1, 64], strides = [1, 1, 1]} : vector<2x64x64xf32> to vector<2x1x64xf32>
    %343 = vector.shape_cast %342 : vector<2x1x64xf32> to vector<2x64xf32>
    %344 = vector.extract_strided_slice %271 {offsets = [0, 36, 0], sizes = [2, 1, 64], strides = [1, 1, 1]} : vector<2x64x64xf32> to vector<2x1x64xf32>
    %345 = vector.shape_cast %344 : vector<2x1x64xf32> to vector<2x64xf32>
    %346 = vector.extract_strided_slice %271 {offsets = [0, 37, 0], sizes = [2, 1, 64], strides = [1, 1, 1]} : vector<2x64x64xf32> to vector<2x1x64xf32>
    %347 = vector.shape_cast %346 : vector<2x1x64xf32> to vector<2x64xf32>
    %348 = vector.extract_strided_slice %271 {offsets = [0, 38, 0], sizes = [2, 1, 64], strides = [1, 1, 1]} : vector<2x64x64xf32> to vector<2x1x64xf32>
    %349 = vector.shape_cast %348 : vector<2x1x64xf32> to vector<2x64xf32>
    %350 = vector.extract_strided_slice %271 {offsets = [0, 39, 0], sizes = [2, 1, 64], strides = [1, 1, 1]} : vector<2x64x64xf32> to vector<2x1x64xf32>
    %351 = vector.shape_cast %350 : vector<2x1x64xf32> to vector<2x64xf32>
    %352 = vector.extract_strided_slice %271 {offsets = [0, 40, 0], sizes = [2, 1, 64], strides = [1, 1, 1]} : vector<2x64x64xf32> to vector<2x1x64xf32>
    %353 = vector.shape_cast %352 : vector<2x1x64xf32> to vector<2x64xf32>
    %354 = vector.extract_strided_slice %271 {offsets = [0, 41, 0], sizes = [2, 1, 64], strides = [1, 1, 1]} : vector<2x64x64xf32> to vector<2x1x64xf32>
    %355 = vector.shape_cast %354 : vector<2x1x64xf32> to vector<2x64xf32>
    %356 = vector.extract_strided_slice %271 {offsets = [0, 42, 0], sizes = [2, 1, 64], strides = [1, 1, 1]} : vector<2x64x64xf32> to vector<2x1x64xf32>
    %357 = vector.shape_cast %356 : vector<2x1x64xf32> to vector<2x64xf32>
    %358 = vector.extract_strided_slice %271 {offsets = [0, 43, 0], sizes = [2, 1, 64], strides = [1, 1, 1]} : vector<2x64x64xf32> to vector<2x1x64xf32>
    %359 = vector.shape_cast %358 : vector<2x1x64xf32> to vector<2x64xf32>
    %360 = vector.extract_strided_slice %271 {offsets = [0, 44, 0], sizes = [2, 1, 64], strides = [1, 1, 1]} : vector<2x64x64xf32> to vector<2x1x64xf32>
    %361 = vector.shape_cast %360 : vector<2x1x64xf32> to vector<2x64xf32>
    %362 = vector.extract_strided_slice %271 {offsets = [0, 45, 0], sizes = [2, 1, 64], strides = [1, 1, 1]} : vector<2x64x64xf32> to vector<2x1x64xf32>
    %363 = vector.shape_cast %362 : vector<2x1x64xf32> to vector<2x64xf32>
    %364 = vector.extract_strided_slice %271 {offsets = [0, 46, 0], sizes = [2, 1, 64], strides = [1, 1, 1]} : vector<2x64x64xf32> to vector<2x1x64xf32>
    %365 = vector.shape_cast %364 : vector<2x1x64xf32> to vector<2x64xf32>
    %366 = vector.extract_strided_slice %271 {offsets = [0, 47, 0], sizes = [2, 1, 64], strides = [1, 1, 1]} : vector<2x64x64xf32> to vector<2x1x64xf32>
    %367 = vector.shape_cast %366 : vector<2x1x64xf32> to vector<2x64xf32>
    %368 = vector.extract_strided_slice %271 {offsets = [0, 48, 0], sizes = [2, 1, 64], strides = [1, 1, 1]} : vector<2x64x64xf32> to vector<2x1x64xf32>
    %369 = vector.shape_cast %368 : vector<2x1x64xf32> to vector<2x64xf32>
    %370 = vector.extract_strided_slice %271 {offsets = [0, 49, 0], sizes = [2, 1, 64], strides = [1, 1, 1]} : vector<2x64x64xf32> to vector<2x1x64xf32>
    %371 = vector.shape_cast %370 : vector<2x1x64xf32> to vector<2x64xf32>
    %372 = vector.extract_strided_slice %271 {offsets = [0, 50, 0], sizes = [2, 1, 64], strides = [1, 1, 1]} : vector<2x64x64xf32> to vector<2x1x64xf32>
    %373 = vector.shape_cast %372 : vector<2x1x64xf32> to vector<2x64xf32>
    %374 = vector.extract_strided_slice %271 {offsets = [0, 51, 0], sizes = [2, 1, 64], strides = [1, 1, 1]} : vector<2x64x64xf32> to vector<2x1x64xf32>
    %375 = vector.shape_cast %374 : vector<2x1x64xf32> to vector<2x64xf32>
    %376 = vector.extract_strided_slice %271 {offsets = [0, 52, 0], sizes = [2, 1, 64], strides = [1, 1, 1]} : vector<2x64x64xf32> to vector<2x1x64xf32>
    %377 = vector.shape_cast %376 : vector<2x1x64xf32> to vector<2x64xf32>
    %378 = vector.extract_strided_slice %271 {offsets = [0, 53, 0], sizes = [2, 1, 64], strides = [1, 1, 1]} : vector<2x64x64xf32> to vector<2x1x64xf32>
    %379 = vector.shape_cast %378 : vector<2x1x64xf32> to vector<2x64xf32>
    %380 = vector.extract_strided_slice %271 {offsets = [0, 54, 0], sizes = [2, 1, 64], strides = [1, 1, 1]} : vector<2x64x64xf32> to vector<2x1x64xf32>
    %381 = vector.shape_cast %380 : vector<2x1x64xf32> to vector<2x64xf32>
    %382 = vector.extract_strided_slice %271 {offsets = [0, 55, 0], sizes = [2, 1, 64], strides = [1, 1, 1]} : vector<2x64x64xf32> to vector<2x1x64xf32>
    %383 = vector.shape_cast %382 : vector<2x1x64xf32> to vector<2x64xf32>
    %384 = vector.extract_strided_slice %271 {offsets = [0, 56, 0], sizes = [2, 1, 64], strides = [1, 1, 1]} : vector<2x64x64xf32> to vector<2x1x64xf32>
    %385 = vector.shape_cast %384 : vector<2x1x64xf32> to vector<2x64xf32>
    %386 = vector.extract_strided_slice %271 {offsets = [0, 57, 0], sizes = [2, 1, 64], strides = [1, 1, 1]} : vector<2x64x64xf32> to vector<2x1x64xf32>
    %387 = vector.shape_cast %386 : vector<2x1x64xf32> to vector<2x64xf32>
    %388 = vector.extract_strided_slice %271 {offsets = [0, 58, 0], sizes = [2, 1, 64], strides = [1, 1, 1]} : vector<2x64x64xf32> to vector<2x1x64xf32>
    %389 = vector.shape_cast %388 : vector<2x1x64xf32> to vector<2x64xf32>
    %390 = vector.extract_strided_slice %271 {offsets = [0, 59, 0], sizes = [2, 1, 64], strides = [1, 1, 1]} : vector<2x64x64xf32> to vector<2x1x64xf32>
    %391 = vector.shape_cast %390 : vector<2x1x64xf32> to vector<2x64xf32>
    %392 = vector.extract_strided_slice %271 {offsets = [0, 60, 0], sizes = [2, 1, 64], strides = [1, 1, 1]} : vector<2x64x64xf32> to vector<2x1x64xf32>
    %393 = vector.shape_cast %392 : vector<2x1x64xf32> to vector<2x64xf32>
    %394 = vector.extract_strided_slice %271 {offsets = [0, 61, 0], sizes = [2, 1, 64], strides = [1, 1, 1]} : vector<2x64x64xf32> to vector<2x1x64xf32>
    %395 = vector.shape_cast %394 : vector<2x1x64xf32> to vector<2x64xf32>
    %396 = vector.extract_strided_slice %271 {offsets = [0, 62, 0], sizes = [2, 1, 64], strides = [1, 1, 1]} : vector<2x64x64xf32> to vector<2x1x64xf32>
    %397 = vector.shape_cast %396 : vector<2x1x64xf32> to vector<2x64xf32>
    %398 = vector.extract_strided_slice %271 {offsets = [0, 63, 0], sizes = [2, 1, 64], strides = [1, 1, 1]} : vector<2x64x64xf32> to vector<2x1x64xf32>
    %399 = vector.shape_cast %398 : vector<2x1x64xf32> to vector<2x64xf32>
    %400 = tpu.concatenate %273, %275, %277, %279, %281, %283, %285, %287, %289, %291, %293, %295, %297, %299, %301, %303 in 1 : vector<2x64xf32>, vector<2x64xf32>, vector<2x64xf32>, vector<2x64xf32>, vector<2x64xf32>, vector<2x64xf32>, vector<2x64xf32>, vector<2x64xf32>, vector<2x64xf32>, vector<2x64xf32>, vector<2x64xf32>, vector<2x64xf32>, vector<2x64xf32>, vector<2x64xf32>, vector<2x64xf32>, vector<2x64xf32> -> vector<2x1024xf32>
    %401 = tpu.concatenate %305, %307, %309, %311, %313, %315, %317, %319, %321, %323, %325, %327, %329, %331, %333, %335 in 1 : vector<2x64xf32>, vector<2x64xf32>, vector<2x64xf32>, vector<2x64xf32>, vector<2x64xf32>, vector<2x64xf32>, vector<2x64xf32>, vector<2x64xf32>, vector<2x64xf32>, vector<2x64xf32>, vector<2x64xf32>, vector<2x64xf32>, vector<2x64xf32>, vector<2x64xf32>, vector<2x64xf32>, vector<2x64xf32> -> vector<2x1024xf32>
    %402 = tpu.concatenate %337, %339, %341, %343, %345, %347, %349, %351, %353, %355, %357, %359, %361, %363, %365, %367 in 1 : vector<2x64xf32>, vector<2x64xf32>, vector<2x64xf32>, vector<2x64xf32>, vector<2x64xf32>, vector<2x64xf32>, vector<2x64xf32>, vector<2x64xf32>, vector<2x64xf32>, vector<2x64xf32>, vector<2x64xf32>, vector<2x64xf32>, vector<2x64xf32>, vector<2x64xf32>, vector<2x64xf32>, vector<2x64xf32> -> vector<2x1024xf32>
    %403 = tpu.concatenate %369, %371, %373, %375, %377, %379, %381, %383, %385, %387, %389, %391, %393, %395, %397, %399 in 1 : vector<2x64xf32>, vector<2x64xf32>, vector<2x64xf32>, vector<2x64xf32>, vector<2x64xf32>, vector<2x64xf32>, vector<2x64xf32>, vector<2x64xf32>, vector<2x64xf32>, vector<2x64xf32>, vector<2x64xf32>, vector<2x64xf32>, vector<2x64xf32>, vector<2x64xf32>, vector<2x64xf32>, vector<2x64xf32> -> vector<2x1024xf32>
    %404 = tpu.concatenate %400, %401, %402, %403 in 1 : vector<2x1024xf32>, vector<2x1024xf32>, vector<2x1024xf32>, vector<2x1024xf32> -> vector<2x4096xf32>
    %405 = arith.truncf %404 : vector<2x4096xf32> to vector<2x4096xbf16>
    %c0_556 = arith.constant 0 : index
    %c0_557 = arith.constant 0 : index
    %406 = vector.load %arg6[%c0_556, %c0_557] : memref<4096x128xbf16, #tpu.memory_space<vmem>>, vector<4096x128xbf16>
    %cst_558 = arith.constant dense<0.000000e+00> : vector<2x128xf32>
    %407 = tpu.matmul %405, %406, %cst_558 {dimension_numbers = #tpu.dot_dimension_numbers<[1], [0], [0], [1], [0, 0, 1, 1], [], []>} : vector<2x4096xbf16>, vector<4096x128xbf16>, vector<2x128xf32> -> vector<2x128xf32>
    %c0_559 = arith.constant 0 : index
    %c0_560 = arith.constant 0 : index
    %408 = vector.load %arg7[%c0_559, %c0_560] : memref<1x128xf32, #tpu.memory_space<vmem>>, vector<1x128xf32>
    %409 = vector.broadcast %408 : vector<1x128xf32> to vector<2x128xf32>
    %410 = arith.addf %407, %409 : vector<2x128xf32>
    %cst_561 = arith.constant 0.000000e+00 : f32
    %411 = vector.broadcast %cst_561 : f32 to vector<2x128xf32>
    %412 = arith.maximumf %410, %411 : vector<2x128xf32>
    %413 = arith.truncf %412 : vector<2x128xf32> to vector<2x128xbf16>
    %c0_562 = arith.constant 0 : index
    %c0_563 = arith.constant 0 : index
    %414 = vector.load %arg8[%c0_562, %c0_563] : memref<128x128xbf16, #tpu.memory_space<vmem>>, vector<128x128xbf16>
    %cst_564 = arith.constant dense<0.000000e+00> : vector<2x128xf32>
    %415 = tpu.matmul %413, %414, %cst_564 {dimension_numbers = #tpu.dot_dimension_numbers<[1], [0], [0], [1], [0, 0, 1, 1], [], []>} : vector<2x128xbf16>, vector<128x128xbf16>, vector<2x128xf32> -> vector<2x128xf32>
    %c0_565 = arith.constant 0 : index
    %c0_566 = arith.constant 0 : index
    %416 = vector.load %arg9[%c0_565, %c0_566] : memref<1x128xf32, #tpu.memory_space<vmem>>, vector<1x128xf32>
    %417 = vector.broadcast %416 : vector<1x128xf32> to vector<2x128xf32>
    %418 = arith.addf %415, %417 : vector<2x128xf32>
    %c0_567 = arith.constant 0 : index
    %c0_568 = arith.constant 0 : index
    %419 = vector.load %arg10[%c0_567, %c0_568] : memref<2x128xf32, #tpu.memory_space<vmem>>, vector<2x128xf32>
    tpu.vector_store %arg10[%c0_567, %c0_568], %418 {strides = array<i32>} : memref<2x128xf32, #tpu.memory_space<vmem>>, vector<2x128xf32>,
    return
  }
  func.func @transform_0(%arg0: i32) -> (i32, i32) {
    %c0_i32 = arith.constant 0 : i32
    %c0_i32_0 = arith.constant 0 : i32
    return %arg0, %c0_i32 : i32, i32
  }
  func.func @transform_1(%arg0: i32) -> (i32, i32) {
    %c0_i32 = arith.constant 0 : i32
    %c0_i32_0 = arith.constant 0 : i32
    %c0_i32_1 = arith.constant 0 : i32
    return %c0_i32, %c0_i32_0 : i32, i32
  }
  func.func @transform_2(%arg0: i32) -> (i32, i32) {
    %c0_i32 = arith.constant 0 : i32
    %c0_i32_0 = arith.constant 0 : i32
    %c0_i32_1 = arith.constant 0 : i32
    return %c0_i32, %c0_i32_0 : i32, i32
  }
  func.func @transform_3(%arg0: i32) -> (i32, i32) {
    %c0_i32 = arith.constant 0 : i32
    %c0_i32_0 = arith.constant 0 : i32
    %c0_i32_1 = arith.constant 0 : i32
    return %c0_i32, %c0_i32_0 : i32, i32
  }
  func.func @transform_4(%arg0: i32) -> (i32, i32) {
    %c0_i32 = arith.constant 0 : i32
    %c0_i32_0 = arith.constant 0 : i32
    %c0_i32_1 = arith.constant 0 : i32
    return %c0_i32, %c0_i32_0 : i32, i32
  }
  func.func @transform_5(%arg0: i32) -> (i32, i32) {
    %c0_i32 = arith.constant 0 : i32
    %c0_i32_0 = arith.constant 0 : i32
    %c0_i32_1 = arith.constant 0 : i32
    return %c0_i32, %c0_i32_0 : i32, i32
  }
  func.func @transform_6(%arg0: i32) -> (i32, i32) {
    %c0_i32 = arith.constant 0 : i32
    %c0_i32_0 = arith.constant 0 : i32
    %c0_i32_1 = arith.constant 0 : i32
    return %c0_i32, %c0_i32_0 : i32, i32
  }
  func.func @transform_7(%arg0: i32) -> (i32, i32) {
    %c0_i32 = arith.constant 0 : i32
    %c0_i32_0 = arith.constant 0 : i32
    %c0_i32_1 = arith.constant 0 : i32
    return %c0_i32, %c0_i32_0 : i32, i32
  }
  func.func @transform_8(%arg0: i32) -> (i32, i32) {
    %c0_i32 = arith.constant 0 : i32
    %c0_i32_0 = arith.constant 0 : i32
    %c0_i32_1 = arith.constant 0 : i32
    return %c0_i32, %c0_i32_0 : i32, i32
  }
  func.func @transform_9(%arg0: i32) -> (i32, i32) {
    %c0_i32 = arith.constant 0 : i32
    %c0_i32_0 = arith.constant 0 : i32
    return %arg0, %c0_i32 : i32, i32
  }
}

</mosaic_0001>

<llo_original>
// kernel: model_a_forward.1
$region0: #{model_a_forward.1}
  #allocation0 [shape = 'u32[]', space=smem, size = 0x4, offset = 0x4, fixed_abs, tag = 'smem constant byte address 0x4 - core index']
  #allocation1 [shape = 'u32[144,128]{1,0:T(1,128)}', space=vmem, size = 0x12000, scoped, tag = 'internal scratch']
  #allocation2 [shape = 'f32[2,144,64]{2,1,0:T(8,128)}', space=vmem, size = 0x24000, scoped, tag = 'scratch operand']
  %s0 = inlined_call_operand.vmem [shape: bf16[288,32], index: 0, kind: input, shape index: {}]
  %s1 = inlined_call_operand.vmem [shape: bf16[32,64], index: 1, kind: input, shape index: {}]
  %s2 = inlined_call_operand.vmem [shape: f32[1,64], index: 2, kind: input, shape index: {}]
  %s3 = inlined_call_operand.vmem [shape: bf16[1600,64], index: 3, kind: input, shape index: {}]
  %s4 = inlined_call_operand.vmem [shape: f32[1,64], index: 4, kind: input, shape index: {}]
  %s5 = inlined_call_operand.vmem [shape: bf16[4096,128], index: 5, kind: input, shape index: {}]
  %s6 = inlined_call_operand.vmem [shape: f32[1,128], index: 6, kind: input, shape index: {}]
  %s7 = inlined_call_operand.vmem [shape: bf16[128,128], index: 7, kind: input, shape index: {}]
  %s8 = inlined_call_operand.vmem [shape: f32[1,128], index: 8, kind: input, shape index: {}]
  %s9 = inlined_call_operand.hbm [shape: f32[2,128], index: 9, kind: output, shape index: {}]
  %s10 = sld [smem:[#allocation0]]
  $region46: #{model_a_forward.1} parent=0
    _
  %s12 = ssub.s32 1, %s10
  %s13 = scalar_select 0, %s12, %s10
  $region1: #{model_a_forward.1} parent=0
    #allocation3 [shape = 'u8[1024]{0}', space=vmem, size = 0x400, scoped, tag = 'output window, operand 0, single buffered']
    #allocation4 [shape = 's32[1]{0}', space=sflag, size = 0x4, scoped, tag = 'scoped memory for model_a_forward.1']
    %14 = vsyncpa [#allocation4], 0
    // Predicated region
    $region2: #{model_a_forward.1} parent=1 // pred_check
      _
    $region3: #{model_a_forward.1} parent=1 // pred_check_branch
      %16 = sbr.rel (0) target = $region5
    $region4: #{model_a_forward.1} parent=1 // pred_region
      _
    $region5: #{model_a_forward.1} parent=1 // pred_fallthru
      _
    // Predicated region
    $region6: #{model_a_forward.1} parent=1 // pred_check
      _
    $region7: #{model_a_forward.1} parent=1 // pred_check_branch
      %18 = sbr.rel (0) target = $region9
    $region8: #{model_a_forward.1} parent=1 // pred_region
      _
    $region9: #{model_a_forward.1} parent=1 // pred_fallthru
      _
    // Predicated region
    $region10: #{model_a_forward.1} parent=1 // pred_check
      _
    $region11: #{model_a_forward.1} parent=1 // pred_check_branch
      %20 = sbr.rel (0) target = $region13
    $region12: #{model_a_forward.1} parent=1 // pred_region
      _
    $region13: #{model_a_forward.1} parent=1 // pred_fallthru
      _
    // Predicated region
    $region14: #{model_a_forward.1} parent=1 // pred_check
      _
    $region15: #{model_a_forward.1} parent=1 // pred_check_branch
      %22 = sbr.rel (0) target = $region17
    $region16: #{model_a_forward.1} parent=1 // pred_region
      _
    $region17: #{model_a_forward.1} parent=1 // pred_fallthru
      _
    // Predicated region
    $region18: #{model_a_forward.1} parent=1 // pred_check
      _
    $region19: #{model_a_forward.1} parent=1 // pred_check_branch
      %24 = sbr.rel (0) target = $region21
    $region20: #{model_a_forward.1} parent=1 // pred_region
      _
    $region21: #{model_a_forward.1} parent=1 // pred_fallthru
      _
    // Predicated region
    $region22: #{model_a_forward.1} parent=1 // pred_check
      _
    $region23: #{model_a_forward.1} parent=1 // pred_check_branch
      %26 = sbr.rel (0) target = $region25
    $region24: #{model_a_forward.1} parent=1 // pred_region
      _
    $region25: #{model_a_forward.1} parent=1 // pred_fallthru
      _
    // Predicated region
    $region26: #{model_a_forward.1} parent=1 // pred_check
      _
    $region27: #{model_a_forward.1} parent=1 // pred_check_branch
      %28 = sbr.rel (0) target = $region29
    $region28: #{model_a_forward.1} parent=1 // pred_region
      _
    $region29: #{model_a_forward.1} parent=1 // pred_fallthru
      _
    // Predicated region
    $region30: #{model_a_forward.1} parent=1 // pred_check
      _
    $region31: #{model_a_forward.1} parent=1 // pred_check_branch
      %30 = sbr.rel (0) target = $region33
    $region32: #{model_a_forward.1} parent=1 // pred_region
      _
    $region33: #{model_a_forward.1} parent=1 // pred_fallthru
      _
    // Predicated region
    $region34: #{model_a_forward.1} parent=1 // pred_check
      _
    $region35: #{model_a_forward.1} parent=1 // pred_check_branch
      %32 = sbr.rel (0) target = $region37
    $region36: #{model_a_forward.1} parent=1 // pred_region
      _
    $region37: #{model_a_forward.1} parent=1 // pred_fallthru
      _
    %v34 = vld [vmem:[%s0] sm:$0xf]
    %v35 = vld [vmem:[%s0 + $0x4] sm:$0xf]
    %v36 = vld [vmem:[%s0 + $0x8] sm:$0xf]
    %v37 = vld [vmem:[%s0 + $0xc] sm:$0xf]
    %v38 = vld [vmem:[%s0 + $0x10] sm:$0xf]
    %v39 = vld [vmem:[%s0 + $0x14] sm:$0xf]
    %v40 = vld [vmem:[%s0 + $0x18] sm:$0xf]
    %v41 = vld [vmem:[%s0 + $0x1c] sm:$0xf]
    %v42 = vld [vmem:[%s0 + $0x20] sm:$0xf]
    %v43 = vld [vmem:[%s0 + $0x24] sm:$0xf]
    %v44 = vld [vmem:[%s0 + $0x28] sm:$0xf]
    %v45 = vld [vmem:[%s0 + $0x2c] sm:$0xf]
    %v46 = vld [vmem:[%s0 + $0x30] sm:$0xf]
    %v47 = vld [vmem:[%s0 + $0x34] sm:$0xf]
    %v48 = vld [vmem:[%s0 + $0x38] sm:$0xf]
    %v49 = vld [vmem:[%s0 + $0x3c] sm:$0xf]
    %v50 = vld [vmem:[%s0 + $0x40] sm:$0xf]
    %v51 = vld [vmem:[%s0 + $0x44] sm:$0xf]
    %v52 = vld [vmem:[%s0 + $0x48] sm:$0xf]
    %v53 = vld [vmem:[%s0 + $0x4c] sm:$0xf]
    %v54 = vld [vmem:[%s0 + $0x50] sm:$0xf]
    %v55 = vld [vmem:[%s0 + $0x54] sm:$0xf]
    %v56 = vld [vmem:[%s0 + $0x58] sm:$0xf]
    %v57 = vld [vmem:[%s0 + $0x5c] sm:$0xf]
    %v58 = vld [vmem:[%s0 + $0x60] sm:$0xf]
    %v59 = vld [vmem:[%s0 + $0x64] sm:$0xf]
    %v60 = vld [vmem:[%s0 + $0x68] sm:$0xf]
    %v61 = vld [vmem:[%s0 + $0x6c] sm:$0xf]
    %v62 = vld [vmem:[%s0 + $0x70] sm:$0xf]
    %v63 = vld [vmem:[%s0 + $0x74] sm:$0xf]
    %v64 = vld [vmem:[%s0 + $0x78] sm:$0xf]
    %v65 = vld [vmem:[%s0 + $0x7c] sm:$0xf]
    %v66 = vld [vmem:[%s0 + $0x80] sm:$0xf]
    %v67 = vld [vmem:[%s0 + $0x84] sm:$0xf]
    %v68 = vld [vmem:[%s0 + $0x88] sm:$0xf]
    %v69 = vld [vmem:[%s0 + $0x8c] sm:$0xf]
    %v70 = vld [vmem:[%s1] sm:$0xf]
    %v71 = vld [vmem:[%s1 + $0x4] sm:$0xf]
    %v72 = vld [vmem:[%s1 + $0x8] sm:$0xf]
    %v73 = vld [vmem:[%s1 + $0xc] sm:$0xf]
    %v74 = vld [vmem:[%s2] sm:$0x1]
    %v76 = vlaneseq
    %v77 = vshrl.u32 %v76, 7
    %v78 = vsub.s32 0, %v77
    %v79 = vrot.slane %v74, %v78
    %v117 = vunpack.c.l.b16 %v34
    %v118 = vunpack.c.l.b16 %v35
    %v119 = vunpack.c.l.b16 %v36
    %v120 = vunpack.c.l.b16 %v37
    %v121 = vunpack.c.l.b16 %v38
    %v122 = vunpack.c.l.b16 %v39
    %v123 = vunpack.c.l.b16 %v40
    %v124 = vunpack.c.l.b16 %v41
    %v125 = vunpack.c.l.b16 %v42
    %v126 = vunpack.c.l.b16 %v43
    %v127 = vunpack.c.l.b16 %v44
    %v128 = vunpack.c.l.b16 %v45
    %v129 = vunpack.c.l.b16 %v46
    %v130 = vunpack.c.l.b16 %v47
    %v131 = vunpack.c.l.b16 %v48
    %v132 = vunpack.c.l.b16 %v49
    %v133 = vunpack.c.l.b16 %v50
    %v134 = vunpack.c.l.b16 %v51
    %v135 = vunpack.c.l.b16 %v52
    %v136 = vunpack.c.l.b16 %v53
    %v137 = vunpack.c.l.b16 %v54
    %v138 = vunpack.c.l.b16 %v55
    %v139 = vunpack.c.l.b16 %v56
    %v140 = vunpack.c.l.b16 %v57
    %v141 = vunpack.c.l.b16 %v58
    %v142 = vunpack.c.l.b16 %v59
    %v143 = vunpack.c.l.b16 %v60
    %v144 = vunpack.c.l.b16 %v61
    %v145 = vunpack.c.l.b16 %v62
    %v146 = vunpack.c.l.b16 %v63
    %v147 = vunpack.c.l.b16 %v64
    %v148 = vunpack.c.l.b16 %v65
    %v149 = vunpack.c.l.b16 %v66
    %v150 = vunpack.c.l.b16 %v67
    %v151 = vunpack.c.l.b16 %v68
    %v152 = vunpack.c.l.b16 %v69
    %v153 = vpack.c.b16 %v118, %v117
    %v154 = vpack.c.b16 %v120, %v119
    %v155 = vpack.c.b16 %v122, %v121
    %v156 = vpack.c.b16 %v124, %v123
    %v157 = vpack.c.b16 %v126, %v125
    %v158 = vpack.c.b16 %v128, %v127
    %v159 = vpack.c.b16 %v130, %v129
    %v160 = vpack.c.b16 %v132, %v131
    %v161 = vpack.c.b16 %v134, %v133
    %v162 = vpack.c.b16 %v136, %v135
    %v163 = vpack.c.b16 %v138, %v137
    %v164 = vpack.c.b16 %v140, %v139
    %v165 = vpack.c.b16 %v142, %v141
    %v166 = vpack.c.b16 %v144, %v143
    %v167 = vpack.c.b16 %v146, %v145
    %v168 = vpack.c.b16 %v148, %v147
    %v169 = vpack.c.b16 %v150, %v149
    %v170 = vpack.c.b16 %v152, %v151
    %v175 = vunpack.c.l.b16 %v70
    %v176 = vunpack.c.l.b16 %v71
    %v177 = vunpack.c.l.b16 %v72
    %v178 = vunpack.c.l.b16 %v73
    %v179 = vpack.c.b16 %v176, %v175
    %v180 = vpack.c.b16 %v178, %v177
    %vm183 = vcmask 261120
    %v185 = vsel %vm183, %v153, 0
    %v188 = vsel %vm183, %v154, 0
    %v191 = vsel %vm183, %v155, 0
    %v194 = vsel %vm183, %v156, 0
    %v197 = vsel %vm183, %v157, 0
    %v200 = vsel %vm183, %v158, 0
    %v203 = vsel %vm183, %v159, 0
    %v206 = vsel %vm183, %v160, 0
    %v209 = vsel %vm183, %v161, 0
    %v212 = vsel %vm183, %v162, 0
    %v215 = vsel %vm183, %v163, 0
    %v218 = vsel %vm183, %v164, 0
    %v221 = vsel %vm183, %v165, 0
    %v224 = vsel %vm183, %v166, 0
    %v227 = vsel %vm183, %v167, 0
    %v230 = vsel %vm183, %v168, 0
    %v233 = vsel %vm183, %v169, 0
    %v236 = vsel %vm183, %v170, 0
    %238 = vmatprep.subr.bf16.mxu0 0
    %239 = vmatpush1.bf16.msra.mxu0 %v179
    %240 = vmatprep.subr.bf16.mxu0 0
    %241 = vmatpush1.bf16.msra.mxu0 %v180
    %242 = vmatprep.subr.bf16.mxu0 0
    %243 = vmatpush1.bf16.msra.mxu0 0
    %244 = vmatprep.subr.bf16.mxu0 0
    %245 = vmatpush1.bf16.msra.mxu0 0
    %246 = vmatprep.subr.bf16.mxu0 0
    %247 = vmatpush1.bf16.msra.mxu0 0
    %248 = vmatprep.subr.bf16.mxu0 0
    %249 = vmatpush1.bf16.msra.mxu0 0
    %250 = vmatprep.subr.bf16.mxu0 0
    %251 = vmatpush1.bf16.msra.mxu0 0
    %252 = vmatprep.subr.bf16.mxu0 0
    %253 = vmatpush1.bf16.msra.mxu0 0
    %254 = vmatprep.subr.bf16.mxu0 0
    %255 = vmatpush1.bf16.msra.mxu0 0
    %256 = vmatprep.subr.bf16.mxu0 0
    %257 = vmatpush1.bf16.msra.mxu0 0
    %258 = vmatprep.subr.bf16.mxu0 0
    %259 = vmatpush1.bf16.msra.mxu0 0
    %260 = vmatprep.subr.bf16.mxu0 0
    %261 = vmatpush1.bf16.msra.mxu0 0
    %262 = vmatprep.subr.bf16.mxu0 0
    %263 = vmatpush1.bf16.msra.mxu0 0
    %264 = vmatprep.subr.bf16.mxu0 0
    %265 = vmatpush1.bf16.msra.mxu0 0
    %266 = vmatprep.subr.bf16.mxu0 0
    %267 = vmatpush1.bf16.msra.mxu0 0
    %268 = vmatprep.subr.bf16.mxu0 0
    %269 = vmatpush1.bf16.msra.mxu0 0
    %270 = vmatprep.mubr.bf16.mxu0 0
    %271 = vmatmul.mubr.bf16.gmra.mrb[0].mxu0 %v185
    %v272 = vpop.f32.mrb[0].mxu0
    %v273 = vadd.f32 %v79, %v272
    %v274 = vpop.f32.mrb[0].mxu0
    %v275 = vpop.f32.mrb[0].mxu0
    %v276 = vadd.f32 %v79, %v275
    %v277 = vpop.f32.mrb[0].mxu0
    %278 = vmatprep.mubr.bf16.mxu0 0
    %279 = vmatmul.mubr.bf16.gmra.mrb[0].mxu0 %v188
    %v280 = vpop.f32.mrb[0].mxu0
    %v281 = vadd.f32 %v79, %v280
    %v282 = vpop.f32.mrb[0].mxu0
    %v283 = vpop.f32.mrb[0].mxu0
    %v284 = vadd.f32 %v79, %v283
    %v285 = vpop.f32.mrb[0].mxu0
    %286 = vmatprep.mubr.bf16.mxu0 0
    %287 = vmatmul.mubr.bf16.gmra.mrb[0].mxu0 %v191
    %v288 = vpop.f32.mrb[0].mxu0
    %v289 = vadd.f32 %v79, %v288
    %v290 = vpop.f32.mrb[0].mxu0
    %v291 = vpop.f32.mrb[0].mxu0
    %v292 = vadd.f32 %v79, %v291
    %v293 = vpop.f32.mrb[0].mxu0
    %294 = vmatprep.mubr.bf16.mxu0 0
    %295 = vmatmul.mubr.bf16.gmra.mrb[0].mxu0 %v194
    %v296 = vpop.f32.mrb[0].mxu0
    %v297 = vadd.f32 %v79, %v296
    %v298 = vpop.f32.mrb[0].mxu0
    %v299 = vpop.f32.mrb[0].mxu0
    %v300 = vadd.f32 %v79, %v299
    %v301 = vpop.f32.mrb[0].mxu0
    %302 = vmatprep.mubr.bf16.mxu0 0
    %303 = vmatmul.mubr.bf16.gmra.mrb[0].mxu0 %v197
    %v304 = vpop.f32.mrb[0].mxu0
    %v305 = vadd.f32 %v79, %v304
    %v306 = vpop.f32.mrb[0].mxu0
    %v307 = vpop.f32.mrb[0].mxu0
    %v308 = vadd.f32 %v79, %v307
    %v309 = vpop.f32.mrb[0].mxu0
    %310 = vmatprep.mubr.bf16.mxu0 0
    %311 = vmatmul.mubr.bf16.gmra.mrb[0].mxu0 %v200
    %v312 = vpop.f32.mrb[0].mxu0
    %v313 = vadd.f32 %v79, %v312
    %v314 = vpop.f32.mrb[0].mxu0
    %v315 = vpop.f32.mrb[0].mxu0
    %v316 = vadd.f32 %v79, %v315
    %v317 = vpop.f32.mrb[0].mxu0
    %318 = vmatprep.mubr.bf16.mxu0 0
    %319 = vmatmul.mubr.bf16.gmra.mrb[0].mxu0 %v203
    %v320 = vpop.f32.mrb[0].mxu0
    %v321 = vadd.f32 %v79, %v320
    %v322 = vpop.f32.mrb[0].mxu0
    %v323 = vpop.f32.mrb[0].mxu0
    %v324 = vadd.f32 %v79, %v323
    %v325 = vpop.f32.mrb[0].mxu0
    %326 = vmatprep.mubr.bf16.mxu0 0
    %327 = vmatmul.mubr.bf16.gmra.mrb[0].mxu0 %v206
    %v328 = vpop.f32.mrb[0].mxu0
    %v329 = vadd.f32 %v79, %v328
    %v330 = vpop.f32.mrb[0].mxu0
    %v331 = vpop.f32.mrb[0].mxu0
    %v332 = vadd.f32 %v79, %v331
    %v333 = vpop.f32.mrb[0].mxu0
    %334 = vmatprep.mubr.bf16.mxu0 0
    %335 = vmatmul.mubr.bf16.gmra.mrb[0].mxu0 %v209
    %v336 = vpop.f32.mrb[0].mxu0
    %v337 = vadd.f32 %v79, %v336
    %v338 = vpop.f32.mrb[0].mxu0
    %v339 = vpop.f32.mrb[0].mxu0
    %v340 = vadd.f32 %v79, %v339
    %v341 = vpop.f32.mrb[0].mxu0
    %342 = vmatprep.mubr.bf16.mxu0 0
    %343 = vmatmul.mubr.bf16.gmra.mrb[0].mxu0 %v212
    %v344 = vpop.f32.mrb[0].mxu0
    %v345 = vadd.f32 %v79, %v344
    %v346 = vpop.f32.mrb[0].mxu0
    %v347 = vpop.f32.mrb[0].mxu0
    %v348 = vadd.f32 %v79, %v347
    %v349 = vpop.f32.mrb[0].mxu0
    %350 = vmatprep.mubr.bf16.mxu0 0
    %351 = vmatmul.mubr.bf16.gmra.mrb[0].mxu0 %v215
    %v352 = vpop.f32.mrb[0].mxu0
    %v353 = vadd.f32 %v79, %v352
    %v354 = vpop.f32.mrb[0].mxu0
    %v355 = vpop.f32.mrb[0].mxu0
    %v356 = vadd.f32 %v79, %v355
    %v357 = vpop.f32.mrb[0].mxu0
    %358 = vmatprep.mubr.bf16.mxu0 0
    %359 = vmatmul.mubr.bf16.gmra.mrb[0].mxu0 %v218
    %v360 = vpop.f32.mrb[0].mxu0
    %v361 = vadd.f32 %v79, %v360
    %v362 = vpop.f32.mrb[0].mxu0
    %v363 = vpop.f32.mrb[0].mxu0
    %v364 = vadd.f32 %v79, %v363
    %v365 = vpop.f32.mrb[0].mxu0
    %366 = vmatprep.mubr.bf16.mxu0 0
    %367 = vmatmul.mubr.bf16.gmra.mrb[0].mxu0 %v221
    %v368 = vpop.f32.mrb[0].mxu0
    %v369 = vadd.f32 %v79, %v368
    %v370 = vpop.f32.mrb[0].mxu0
    %v371 = vpop.f32.mrb[0].mxu0
    %v372 = vadd.f32 %v79, %v371
    %v373 = vpop.f32.mrb[0].mxu0
    %374 = vmatprep.mubr.bf16.mxu0 0
    %375 = vmatmul.mubr.bf16.gmra.mrb[0].mxu0 %v224
    %v376 = vpop.f32.mrb[0].mxu0
    %v377 = vadd.f32 %v79, %v376
    %v378 = vpop.f32.mrb[0].mxu0
    %v379 = vpop.f32.mrb[0].mxu0
    %v380 = vadd.f32 %v79, %v379
    %v381 = vpop.f32.mrb[0].mxu0
    %382 = vmatprep.mubr.bf16.mxu0 0
    %383 = vmatmul.mubr.bf16.gmra.mrb[0].mxu0 %v227
    %v384 = vpop.f32.mrb[0].mxu0
    %v385 = vadd.f32 %v79, %v384
    %v386 = vpop.f32.mrb[0].mxu0
    %v387 = vpop.f32.mrb[0].mxu0
    %v388 = vadd.f32 %v79, %v387
    %v389 = vpop.f32.mrb[0].mxu0
    %390 = vmatprep.mubr.bf16.mxu0 0
    %391 = vmatmul.mubr.bf16.gmra.mrb[0].mxu0 %v230
    %v392 = vpop.f32.mrb[0].mxu0
    %v393 = vadd.f32 %v79, %v392
    %v394 = vpop.f32.mrb[0].mxu0
    %v395 = vpop.f32.mrb[0].mxu0
    %v396 = vadd.f32 %v79, %v395
    %v397 = vpop.f32.mrb[0].mxu0
    %398 = vmatprep.mubr.bf16.mxu0 0
    %399 = vmatmul.mubr.bf16.gmra.mrb[0].mxu0 %v233
    %v400 = vpop.f32.mrb[0].mxu0
    %v401 = vadd.f32 %v79, %v400
    %v402 = vpop.f32.mrb[0].mxu0
    %v403 = vpop.f32.mrb[0].mxu0
    %v404 = vadd.f32 %v79, %v403
    %v405 = vpop.f32.mrb[0].mxu0
    %406 = vmatprep.mubr.bf16.mxu0 0
    %407 = vmatmul.mubr.bf16.gmra.mrb[0].mxu0 %v236
    %v408 = vpop.f32.mrb[0].mxu0
    %v409 = vadd.f32 %v79, %v408
    %v410 = vpop.f32.mrb[0].mxu0
    %v411 = vpop.f32.mrb[0].mxu0
    %v412 = vadd.f32 %v79, %v411
    %v413 = vpop.f32.mrb[0].mxu0
    %414 = vdwg.mxu0
    %v415 = vmax.f32 %v273, 0.0
    %v416 = vmax.f32 %v276, 0.0
    %v417 = vmax.f32 %v281, 0.0
    %v418 = vmax.f32 %v284, 0.0
    %v419 = vmax.f32 %v289, 0.0
    %v420 = vmax.f32 %v292, 0.0
    %v421 = vmax.f32 %v297, 0.0
    %v422 = vmax.f32 %v300, 0.0
    %v423 = vmax.f32 %v305, 0.0
    %v424 = vmax.f32 %v308, 0.0
    %v425 = vmax.f32 %v313, 0.0
    %v426 = vmax.f32 %v316, 0.0
    %v427 = vmax.f32 %v321, 0.0
    %v428 = vmax.f32 %v324, 0.0
    %v429 = vmax.f32 %v329, 0.0
    %v430 = vmax.f32 %v332, 0.0
    %v431 = vmax.f32 %v337, 0.0
    %v432 = vmax.f32 %v340, 0.0
    %v433 = vmax.f32 %v345, 0.0
    %v434 = vmax.f32 %v348, 0.0
    %v435 = vmax.f32 %v353, 0.0
    %v436 = vmax.f32 %v356, 0.0
    %v437 = vmax.f32 %v361, 0.0
    %v438 = vmax.f32 %v364, 0.0
    %v439 = vmax.f32 %v369, 0.0
    %v440 = vmax.f32 %v372, 0.0
    %v441 = vmax.f32 %v377, 0.0
    %v442 = vmax.f32 %v380, 0.0
    %v443 = vmax.f32 %v385, 0.0
    %v444 = vmax.f32 %v388, 0.0
    %v445 = vmax.f32 %v393, 0.0
    %v446 = vmax.f32 %v396, 0.0
    %v447 = vmax.f32 %v401, 0.0
    %v448 = vmax.f32 %v404, 0.0
    %v449 = vmax.f32 %v409, 0.0
    %v450 = vmax.f32 %v412, 0.0
    %vm451 = vcmask 523264
    %452 = vst.msk [vmem:[#allocation2] sm:$0xff] %vm451, %v415
    %453 = vst.msk [vmem:[#allocation2 + $0x8] sm:$0xff] %vm451, %v416
    %454 = vst.msk [vmem:[#allocation2 + $0x10] sm:$0xff] %vm451, %v417
    %455 = vst.msk [vmem:[#allocation2 + $0x18] sm:$0xff] %vm451, %v418
    %456 = vst.msk [vmem:[#allocation2 + $0x20] sm:$0xff] %vm451, %v419
    %457 = vst.msk [vmem:[#allocation2 + $0x28] sm:$0xff] %vm451, %v420
    %458 = vst.msk [vmem:[#allocation2 + $0x30] sm:$0xff] %vm451, %v421
    %459 = vst.msk [vmem:[#allocation2 + $0x38] sm:$0xff] %vm451, %v422
    %460 = vst.msk [vmem:[#allocation2 + $0x40] sm:$0xff] %vm451, %v423
    %461 = vst.msk [vmem:[#allocation2 + $0x48] sm:$0xff] %vm451, %v424
    %462 = vst.msk [vmem:[#allocation2 + $0x50] sm:$0xff] %vm451, %v425
    %463 = vst.msk [vmem:[#allocation2 + $0x58] sm:$0xff] %vm451, %v426
    %464 = vst.msk [vmem:[#allocation2 + $0x60] sm:$0xff] %vm451, %v427
    %465 = vst.msk [vmem:[#allocation2 + $0x68] sm:$0xff] %vm451, %v428
    %466 = vst.msk [vmem:[#allocation2 + $0x70] sm:$0xff] %vm451, %v429
    %467 = vst.msk [vmem:[#allocation2 + $0x78] sm:$0xff] %vm451, %v430
    %468 = vst.msk [vmem:[#allocation2 + $0x80] sm:$0xff] %vm451, %v431
    %469 = vst.msk [vmem:[#allocation2 + $0x88] sm:$0xff] %vm451, %v432
    %470 = vst.msk [vmem:[#allocation2 + $0x90] sm:$0xff] %vm451, %v433
    %471 = vst.msk [vmem:[#allocation2 + $0x98] sm:$0xff] %vm451, %v434
    %472 = vst.msk [vmem:[#allocation2 + $0xa0] sm:$0xff] %vm451, %v435
    %473 = vst.msk [vmem:[#allocation2 + $0xa8] sm:$0xff] %vm451, %v436
    %474 = vst.msk [vmem:[#allocation2 + $0xb0] sm:$0xff] %vm451, %v437
    %475 = vst.msk [vmem:[#allocation2 + $0xb8] sm:$0xff] %vm451, %v438
    %476 = vst.msk [vmem:[#allocation2 + $0xc0] sm:$0xff] %vm451, %v439
    %477 = vst.msk [vmem:[#allocation2 + $0xc8] sm:$0xff] %vm451, %v440
    %478 = vst.msk [vmem:[#allocation2 + $0xd0] sm:$0xff] %vm451, %v441
    %479 = vst.msk [vmem:[#allocation2 + $0xd8] sm:$0xff] %vm451, %v442
    %480 = vst.msk [vmem:[#allocation2 + $0xe0] sm:$0xff] %vm451, %v443
    %481 = vst.msk [vmem:[#allocation2 + $0xe8] sm:$0xff] %vm451, %v444
    %482 = vst.msk [vmem:[#allocation2 + $0xf0] sm:$0xff] %vm451, %v445
    %483 = vst.msk [vmem:[#allocation2 + $0xf8] sm:$0xff] %vm451, %v446
    %484 = vst.msk [vmem:[#allocation2 + $0x100] sm:$0xff] %vm451, %v447
    %485 = vst.msk [vmem:[#allocation2 + $0x108] sm:$0xff] %vm451, %v448
    %486 = vst.msk [vmem:[#allocation2 + $0x110] sm:$0xff] %vm451, %v449
    %487 = vst.msk [vmem:[#allocation2 + $0x118] sm:$0xff] %vm451, %v450
    %v488 = vld [vmem:[#allocation2] sm:$0xff]
    %v489 = vld [vmem:[#allocation2 + $0x90] sm:$0xff]
    %v490 = vld [vmem:[#allocation2 + $0xc] sm:$0xff]
    %v491 = vld [vmem:[#allocation2 + $0x9c] sm:$0xff]
    %v492 = vld [vmem:[#allocation2 + $0x18] sm:$0xff]
    %v493 = vld [vmem:[#allocation2 + $0xa8] sm:$0xff]
    %v494 = vld [vmem:[#allocation2 + $0x24] sm:$0xff]
    %v495 = vld [vmem:[#allocation2 + $0xb4] sm:$0xff]
    %v496 = vld [vmem:[#allocation2 + $0x30] sm:$0xff]
    %v497 = vld [vmem:[#allocation2 + $0xc0] sm:$0xff]
    %v498 = vld [vmem:[#allocation2 + $0x3c] sm:$0xff]
    %v499 = vld [vmem:[#allocation2 + $0xcc] sm:$0xff]
    %v500 = vld [vmem:[#allocation2 + $0x48] sm:$0xff]
    %v501 = vld [vmem:[#allocation2 + $0xd8] sm:$0xff]
    %v502 = vld [vmem:[#allocation2 + $0x54] sm:$0xff]
    %v503 = vld [vmem:[#allocation2 + $0xe4] sm:$0xff]
    %v504 = vpack.c.bf16 %v490, %v488
    %v505 = vpack.c.bf16 %v494, %v492
    %v506 = vpack.c.bf16 %v498, %v496
    %v507 = vpack.c.bf16 %v502, %v500
    %v508 = vpack.c.bf16 %v491, %v489
    %v509 = vpack.c.bf16 %v495, %v493
    %v510 = vpack.c.bf16 %v499, %v497
    %v511 = vpack.c.bf16 %v503, %v501
    %v512 = vld [vmem:[#allocation2 + $0x1] sm:$0xff]
    %v513 = vld [vmem:[#allocation2 + $0x91] sm:$0xff]
    %v514 = vld [vmem:[#allocation2 + $0xd] sm:$0xff]
    %v515 = vld [vmem:[#allocation2 + $0x9d] sm:$0xff]
    %v516 = vld [vmem:[#allocation2 + $0x19] sm:$0xff]
    %v517 = vld [vmem:[#allocation2 + $0xa9] sm:$0xff]
    %v518 = vld [vmem:[#allocation2 + $0x25] sm:$0xff]
    %v519 = vld [vmem:[#allocation2 + $0xb5] sm:$0xff]
    %v520 = vld [vmem:[#allocation2 + $0x31] sm:$0xff]
    %v521 = vld [vmem:[#allocation2 + $0xc1] sm:$0xff]
    %v522 = vld [vmem:[#allocation2 + $0x3d] sm:$0xff]
    %v523 = vld [vmem:[#allocation2 + $0xcd] sm:$0xff]
    %v524 = vld [vmem:[#allocation2 + $0x49] sm:$0xff]
    %v525 = vld [vmem:[#allocation2 + $0xd9] sm:$0xff]
    %v526 = vld [vmem:[#allocation2 + $0x55] sm:$0xff]
    %v527 = vld [vmem:[#allocation2 + $0xe5] sm:$0xff]
    %v528 = vpack.c.bf16 %v514, %v512
    %v529 = vpack.c.bf16 %v518, %v516
    %v530 = vpack.c.bf16 %v522, %v520
    %v531 = vpack.c.bf16 %v526, %v524
    %v532 = vpack.c.bf16 %v515, %v513
    %v533 = vpack.c.bf16 %v519, %v517
    %v534 = vpack.c.bf16 %v523, %v521
    %v535 = vpack.c.bf16 %v527, %v525
    %v536 = vld [vmem:[#allocation2 + $0x2] sm:$0xff]
    %v537 = vld [vmem:[#allocation2 + $0x92] sm:$0xff]
    %v538 = vld [vmem:[#allocation2 + $0xe] sm:$0xff]
    %v539 = vld [vmem:[#allocation2 + $0x9e] sm:$0xff]
    %v540 = vld [vmem:[#allocation2 + $0x1a] sm:$0xff]
    %v541 = vld [vmem:[#allocation2 + $0xaa] sm:$0xff]
    %v542 = vld [vmem:[#allocation2 + $0x26] sm:$0xff]
    %v543 = vld [vmem:[#allocation2 + $0xb6] sm:$0xff]
    %v544 = vld [vmem:[#allocation2 + $0x32] sm:$0xff]
    %v545 = vld [vmem:[#allocation2 + $0xc2] sm:$0xff]
    %v546 = vld [vmem:[#allocation2 + $0x3e] sm:$0xff]
    %v547 = vld [vmem:[#allocation2 + $0xce] sm:$0xff]
    %v548 = vld [vmem:[#allocation2 + $0x4a] sm:$0xff]
    %v549 = vld [vmem:[#allocation2 + $0xda] sm:$0xff]
    %v550 = vld [vmem:[#allocation2 + $0x56] sm:$0xff]
    %v551 = vld [vmem:[#allocation2 + $0xe6] sm:$0xff]
    %v552 = vpack.c.bf16 %v538, %v536
    %v553 = vpack.c.bf16 %v542, %v540
    %v554 = vpack.c.bf16 %v546, %v544
    %v555 = vpack.c.bf16 %v550, %v548
    %v556 = vpack.c.bf16 %v539, %v537
    %v557 = vpack.c.bf16 %v543, %v541
    %v558 = vpack.c.bf16 %v547, %v545
    %v559 = vpack.c.bf16 %v551, %v549
    %v560 = vld [vmem:[#allocation2 + $0x3] sm:$0xff]
    %v561 = vld [vmem:[#allocation2 + $0x93] sm:$0xff]
    %v562 = vld [vmem:[#allocation2 + $0xf] sm:$0xff]
    %v563 = vld [vmem:[#allocation2 + $0x9f] sm:$0xff]
    %v564 = vld [vmem:[#allocation2 + $0x1b] sm:$0xff]
    %v565 = vld [vmem:[#allocation2 + $0xab] sm:$0xff]
    %v566 = vld [vmem:[#allocation2 + $0x27] sm:$0xff]
    %v567 = vld [vmem:[#allocation2 + $0xb7] sm:$0xff]
    %v568 = vld [vmem:[#allocation2 + $0x33] sm:$0xff]
    %v569 = vld [vmem:[#allocation2 + $0xc3] sm:$0xff]
    %v570 = vld [vmem:[#allocation2 + $0x3f] sm:$0xff]
    %v571 = vld [vmem:[#allocation2 + $0xcf] sm:$0xff]
    %v572 = vld [vmem:[#allocation2 + $0x4b] sm:$0xff]
    %v573 = vld [vmem:[#allocation2 + $0xdb] sm:$0xff]
    %v574 = vld [vmem:[#allocation2 + $0x57] sm:$0xff]
    %v575 = vld [vmem:[#allocation2 + $0xe7] sm:$0xff]
    %v576 = vpack.c.bf16 %v562, %v560
    %v577 = vpack.c.bf16 %v566, %v564
    %v578 = vpack.c.bf16 %v570, %v568
    %v579 = vpack.c.bf16 %v574, %v572
    %v580 = vpack.c.bf16 %v563, %v561
    %v581 = vpack.c.bf16 %v567, %v565
    %v582 = vpack.c.bf16 %v571, %v569
    %v583 = vpack.c.bf16 %v575, %v573
    %v584 = vld [vmem:[#allocation2 + $0x4] sm:$0xff]
    %v585 = vld [vmem:[#allocation2 + $0x94] sm:$0xff]
    %v586 = vld [vmem:[#allocation2 + $0x10] sm:$0xff]
    %v587 = vld [vmem:[#allocation2 + $0xa0] sm:$0xff]
    %v588 = vld [vmem:[#allocation2 + $0x1c] sm:$0xff]
    %v589 = vld [vmem:[#allocation2 + $0xac] sm:$0xff]
    %v590 = vld [vmem:[#allocation2 + $0x28] sm:$0xff]
    %v591 = vld [vmem:[#allocation2 + $0xb8] sm:$0xff]
    %v592 = vld [vmem:[#allocation2 + $0x34] sm:$0xff]
    %v593 = vld [vmem:[#allocation2 + $0xc4] sm:$0xff]
    %v594 = vld [vmem:[#allocation2 + $0x40] sm:$0xff]
    %v595 = vld [vmem:[#allocation2 + $0xd0] sm:$0xff]
    %v596 = vld [vmem:[#allocation2 + $0x4c] sm:$0xff]
    %v597 = vld [vmem:[#allocation2 + $0xdc] sm:$0xff]
    %v598 = vld [vmem:[#allocation2 + $0x58] sm:$0xff]
    %v599 = vld [vmem:[#allocation2 + $0xe8] sm:$0xff]
    %v600 = vpack.c.bf16 %v586, %v584
    %v601 = vpack.c.bf16 %v590, %v588
    %v602 = vpack.c.bf16 %v594, %v592
    %v603 = vpack.c.bf16 %v598, %v596
    %v604 = vpack.c.bf16 %v587, %v585
    %v605 = vpack.c.bf16 %v591, %v589
    %v606 = vpack.c.bf16 %v595, %v593
    %v607 = vpack.c.bf16 %v599, %v597
    %v608 = vld [vmem:[#allocation2 + $0x60] sm:$0xff]
    %v609 = vld [vmem:[#allocation2 + $0xf0] sm:$0xff]
    %v610 = vpack.c.bf16 %v492, %v490
    %v611 = vpack.c.bf16 %v496, %v494
    %v612 = vpack.c.bf16 %v500, %v498
    %v613 = vpack.c.bf16 %v608, %v502
    %v614 = vpack.c.bf16 %v493, %v491
    %v615 = vpack.c.bf16 %v497, %v495
    %v616 = vpack.c.bf16 %v501, %v499
    %v617 = vpack.c.bf16 %v609, %v503
    %v618 = vld [vmem:[#allocation2 + $0x61] sm:$0xff]
    %v619 = vld [vmem:[#allocation2 + $0xf1] sm:$0xff]
    %v620 = vpack.c.bf16 %v516, %v514
    %v621 = vpack.c.bf16 %v520, %v518
    %v622 = vpack.c.bf16 %v524, %v522
    %v623 = vpack.c.bf16 %v618, %v526
    %v624 = vpack.c.bf16 %v517, %v515
    %v625 = vpack.c.bf16 %v521, %v519
    %v626 = vpack.c.bf16 %v525, %v523
    %v627 = vpack.c.bf16 %v619, %v527
    %v628 = vld [vmem:[#allocation2 + $0x62] sm:$0xff]
    %v629 = vld [vmem:[#allocation2 + $0xf2] sm:$0xff]
    %v630 = vpack.c.bf16 %v540, %v538
    %v631 = vpack.c.bf16 %v544, %v542
    %v632 = vpack.c.bf16 %v548, %v546
    %v633 = vpack.c.bf16 %v628, %v550
    %v634 = vpack.c.bf16 %v541, %v539
    %v635 = vpack.c.bf16 %v545, %v543
    %v636 = vpack.c.bf16 %v549, %v547
    %v637 = vpack.c.bf16 %v629, %v551
    %v638 = vld [vmem:[#allocation2 + $0x63] sm:$0xff]
    %v639 = vld [vmem:[#allocation2 + $0xf3] sm:$0xff]
    %v640 = vpack.c.bf16 %v564, %v562
    %v641 = vpack.c.bf16 %v568, %v566
    %v642 = vpack.c.bf16 %v572, %v570
    %v643 = vpack.c.bf16 %v638, %v574
    %v644 = vpack.c.bf16 %v565, %v563
    %v645 = vpack.c.bf16 %v569, %v567
    %v646 = vpack.c.bf16 %v573, %v571
    %v647 = vpack.c.bf16 %v639, %v575
    %v648 = vld [vmem:[#allocation2 + $0x64] sm:$0xff]
    %v649 = vld [vmem:[#allocation2 + $0xf4] sm:$0xff]
    %v650 = vpack.c.bf16 %v588, %v586
    %v651 = vpack.c.bf16 %v592, %v590
    %v652 = vpack.c.bf16 %v596, %v594
    %v653 = vpack.c.bf16 %v648, %v598
    %v654 = vpack.c.bf16 %v589, %v587
    %v655 = vpack.c.bf16 %v593, %v591
    %v656 = vpack.c.bf16 %v597, %v595
    %v657 = vpack.c.bf16 %v649, %v599
    %v658 = vld [vmem:[#allocation2 + $0x6c] sm:$0xff]
    %v659 = vld [vmem:[#allocation2 + $0xfc] sm:$0xff]
    %v660 = vpack.c.bf16 %v658, %v608
    %v661 = vpack.c.bf16 %v659, %v609
    %v662 = vld [vmem:[#allocation2 + $0x6d] sm:$0xff]
    %v663 = vld [vmem:[#allocation2 + $0xfd] sm:$0xff]
    %v664 = vpack.c.bf16 %v662, %v618
    %v665 = vpack.c.bf16 %v663, %v619
    %v666 = vld [vmem:[#allocation2 + $0x6e] sm:$0xff]
    %v667 = vld [vmem:[#allocation2 + $0xfe] sm:$0xff]
    %v668 = vpack.c.bf16 %v666, %v628
    %v669 = vpack.c.bf16 %v667, %v629
    %v670 = vld [vmem:[#allocation2 + $0x6f] sm:$0xff]
    %v671 = vld [vmem:[#allocation2 + $0xff] sm:$0xff]
    %v672 = vpack.c.bf16 %v670, %v638
    %v673 = vpack.c.bf16 %v671, %v639
    %v674 = vld [vmem:[#allocation2 + $0x70] sm:$0xff]
    %v675 = vld [vmem:[#allocation2 + $0x100] sm:$0xff]
    %v676 = vpack.c.bf16 %v674, %v648
    %v677 = vpack.c.bf16 %v675, %v649
    %v678 = vld [vmem:[#allocation2 + $0x78] sm:$0xff]
    %v679 = vld [vmem:[#allocation2 + $0x108] sm:$0xff]
    %v680 = vpack.c.bf16 %v678, %v658
    %v681 = vpack.c.bf16 %v679, %v659
    %v682 = vld [vmem:[#allocation2 + $0x79] sm:$0xff]
    %v683 = vld [vmem:[#allocation2 + $0x109] sm:$0xff]
    %v684 = vpack.c.bf16 %v682, %v662
    %v685 = vpack.c.bf16 %v683, %v663
    %v686 = vld [vmem:[#allocation2 + $0x7a] sm:$0xff]
    %v687 = vld [vmem:[#allocation2 + $0x10a] sm:$0xff]
    %v688 = vpack.c.bf16 %v686, %v666
    %v689 = vpack.c.bf16 %v687, %v667
    %v690 = vld [vmem:[#allocation2 + $0x7b] sm:$0xff]
    %v691 = vld [vmem:[#allocation2 + $0x10b] sm:$0xff]
    %v692 = vpack.c.bf16 %v690, %v670
    %v693 = vpack.c.bf16 %v691, %v671
    %v694 = vld [vmem:[#allocation2 + $0x7c] sm:$0xff]
    %v695 = vld [vmem:[#allocation2 + $0x10c] sm:$0xff]
    %v696 = vpack.c.bf16 %v694, %v674
    %v697 = vpack.c.bf16 %v695, %v675
    %v698 = vld [vmem:[#allocation2 + $0x84] sm:$0xff]
    %v699 = vld [vmem:[#allocation2 + $0x114] sm:$0xff]
    %v700 = vpack.c.bf16 %v698, %v678
    %v701 = vpack.c.bf16 %v699, %v679
    %v702 = vld [vmem:[#allocation2 + $0x85] sm:$0xff]
    %v703 = vld [vmem:[#allocation2 + $0x115] sm:$0xff]
    %v704 = vpack.c.bf16 %v702, %v682
    %v705 = vpack.c.bf16 %v703, %v683
    %v706 = vld [vmem:[#allocation2 + $0x86] sm:$0xff]
    %v707 = vld [vmem:[#allocation2 + $0x116] sm:$0xff]
    %v708 = vpack.c.bf16 %v706, %v686
    %v709 = vpack.c.bf16 %v707, %v687
    %v710 = vld [vmem:[#allocation2 + $0x87] sm:$0xff]
    %v711 = vld [vmem:[#allocation2 + $0x117] sm:$0xff]
    %v712 = vpack.c.bf16 %v710, %v690
    %v713 = vpack.c.bf16 %v711, %v691
    %v714 = vld [vmem:[#allocation2 + $0x88] sm:$0xff]
    %v715 = vld [vmem:[#allocation2 + $0x118] sm:$0xff]
    %v716 = vpack.c.bf16 %v714, %v694
    %v717 = vpack.c.bf16 %v715, %v695
    %726 = vrot.lane.b32.xlu0 %v528, 64
    %v727 = vpop.permute.xlu0 %726
    %728 = vrot.lane.b32.xlu0 %v529, 64
    %v729 = vpop.permute.xlu0 %728
    %730 = vrot.lane.b32.xlu0 %v530, 64
    %v731 = vpop.permute.xlu0 %730
    %732 = vrot.lane.b32.xlu0 %v531, 64
    %v733 = vpop.permute.xlu0 %732
    %734 = vrot.lane.b32.xlu0 %v532, 64
    %v735 = vpop.permute.xlu0 %734
    %736 = vrot.lane.b32.xlu0 %v533, 64
    %v737 = vpop.permute.xlu0 %736
    %738 = vrot.lane.b32.xlu0 %v534, 64
    %v739 = vpop.permute.xlu0 %738
    %740 = vrot.lane.b32.xlu0 %v535, 64
    %v741 = vpop.permute.xlu0 %740
    %750 = vrot.lane.b32.xlu0 %v576, 64
    %v751 = vpop.permute.xlu0 %750
    %752 = vrot.lane.b32.xlu0 %v577, 64
    %v753 = vpop.permute.xlu0 %752
    %754 = vrot.lane.b32.xlu0 %v578, 64
    %v755 = vpop.permute.xlu0 %754
    %756 = vrot.lane.b32.xlu0 %v579, 64
    %v757 = vpop.permute.xlu0 %756
    %758 = vrot.lane.b32.xlu0 %v580, 64
    %v759 = vpop.permute.xlu0 %758
    %760 = vrot.lane.b32.xlu0 %v581, 64
    %v761 = vpop.permute.xlu0 %760
    %762 = vrot.lane.b32.xlu0 %v582, 64
    %v763 = vpop.permute.xlu0 %762
    %764 = vrot.lane.b32.xlu0 %v583, 64
    %v765 = vpop.permute.xlu0 %764
    %774 = vrot.lane.b32.xlu0 %v610, 64
    %v775 = vpop.permute.xlu0 %774
    %776 = vrot.lane.b32.xlu0 %v611, 64
    %v777 = vpop.permute.xlu0 %776
    %778 = vrot.lane.b32.xlu0 %v612, 64
    %v779 = vpop.permute.xlu0 %778
    %780 = vrot.lane.b32.xlu0 %v613, 64
    %v781 = vpop.permute.xlu0 %780
    %782 = vrot.lane.b32.xlu0 %v614, 64
    %v783 = vpop.permute.xlu0 %782
    %784 = vrot.lane.b32.xlu0 %v615, 64
    %v785 = vpop.permute.xlu0 %784
    %786 = vrot.lane.b32.xlu0 %v616, 64
    %v787 = vpop.permute.xlu0 %786
    %788 = vrot.lane.b32.xlu0 %v617, 64
    %v789 = vpop.permute.xlu0 %788
    %798 = vrot.lane.b32.xlu0 %v630, 64
    %v799 = vpop.permute.xlu0 %798
    %800 = vrot.lane.b32.xlu0 %v631, 64
    %v801 = vpop.permute.xlu0 %800
    %802 = vrot.lane.b32.xlu0 %v632, 64
    %v803 = vpop.permute.xlu0 %802
    %804 = vrot.lane.b32.xlu0 %v633, 64
    %v805 = vpop.permute.xlu0 %804
    %806 = vrot.lane.b32.xlu0 %v634, 64
    %v807 = vpop.permute.xlu0 %806
    %808 = vrot.lane.b32.xlu0 %v635, 64
    %v809 = vpop.permute.xlu0 %808
    %810 = vrot.lane.b32.xlu0 %v636, 64
    %v811 = vpop.permute.xlu0 %810
    %812 = vrot.lane.b32.xlu0 %v637, 64
    %v813 = vpop.permute.xlu0 %812
    %822 = vrot.lane.b32.xlu0 %v650, 64
    %v823 = vpop.permute.xlu0 %822
    %824 = vrot.lane.b32.xlu0 %v651, 64
    %v825 = vpop.permute.xlu0 %824
    %826 = vrot.lane.b32.xlu0 %v652, 64
    %v827 = vpop.permute.xlu0 %826
    %828 = vrot.lane.b32.xlu0 %v653, 64
    %v829 = vpop.permute.xlu0 %828
    %830 = vrot.lane.b32.xlu0 %v654, 64
    %v831 = vpop.permute.xlu0 %830
    %832 = vrot.lane.b32.xlu0 %v655, 64
    %v833 = vpop.permute.xlu0 %832
    %834 = vrot.lane.b32.xlu0 %v656, 64
    %v835 = vpop.permute.xlu0 %834
    %836 = vrot.lane.b32.xlu0 %v657, 64
    %v837 = vpop.permute.xlu0 %836
    %840 = vrot.lane.b32.xlu0 %v664, 64
    %v841 = vpop.permute.xlu0 %840
    %842 = vrot.lane.b32.xlu0 %v665, 64
    %v843 = vpop.permute.xlu0 %842
    %846 = vrot.lane.b32.xlu0 %v672, 64
    %v847 = vpop.permute.xlu0 %846
    %848 = vrot.lane.b32.xlu0 %v673, 64
    %v849 = vpop.permute.xlu0 %848
    %852 = vrot.lane.b32.xlu0 %v680, 64
    %v853 = vpop.permute.xlu0 %852
    %854 = vrot.lane.b32.xlu0 %v681, 64
    %v855 = vpop.permute.xlu0 %854
    %v858 = vsel %vm451, %v504, %v727
    %v862 = vsel %vm451, %v505, %v729
    %v866 = vsel %vm451, %v506, %v731
    %v870 = vsel %vm451, %v507, %v733
    %v874 = vsel %vm451, %v508, %v735
    %v878 = vsel %vm451, %v509, %v737
    %v882 = vsel %vm451, %v510, %v739
    %v886 = vsel %vm451, %v511, %v741
    %v890 = vsel %vm451, %v552, %v751
    %v894 = vsel %vm451, %v553, %v753
    %v898 = vsel %vm451, %v554, %v755
    %v902 = vsel %vm451, %v555, %v757
    %v906 = vsel %vm451, %v556, %v759
    %v910 = vsel %vm451, %v557, %v761
    %v914 = vsel %vm451, %v558, %v763
    %v918 = vsel %vm451, %v559, %v765
    %v922 = vsel %vm451, %v600, %v775
    %v926 = vsel %vm451, %v601, %v777
    %v930 = vsel %vm451, %v602, %v779
    %v934 = vsel %vm451, %v603, %v781
    %v938 = vsel %vm451, %v604, %v783
    %v942 = vsel %vm451, %v605, %v785
    %v946 = vsel %vm451, %v606, %v787
    %v950 = vsel %vm451, %v607, %v789
    %v954 = vsel %vm451, %v620, %v799
    %v958 = vsel %vm451, %v621, %v801
    %v962 = vsel %vm451, %v622, %v803
    %v966 = vsel %vm451, %v623, %v805
    %v970 = vsel %vm451, %v624, %v807
    %v974 = vsel %vm451, %v625, %v809
    %v978 = vsel %vm451, %v626, %v811
    %v982 = vsel %vm451, %v627, %v813
    %v986 = vsel %vm451, %v640, %v823
    %v990 = vsel %vm451, %v641, %v825
    %v994 = vsel %vm451, %v642, %v827
    %v998 = vsel %vm451, %v643, %v829
    %v1002 = vsel %vm451, %v644, %v831
    %v1006 = vsel %vm451, %v645, %v833
    %v1010 = vsel %vm451, %v646, %v835
    %v1014 = vsel %vm451, %v647, %v837
    %v1018 = vsel %vm451, %v660, %v841
    %v1022 = vsel %vm451, %v661, %v843
    %v1026 = vsel %vm451, %v668, %v847
    %v1030 = vsel %vm451, %v669, %v849
    %v1034 = vsel %vm451, %v676, %v853
    %v1038 = vsel %vm451, %v677, %v855
    %1042 = vrot.lane.b32.xlu0 %v688, 64
    %v1043 = vpop.permute.xlu0 %1042
    %1044 = vrot.lane.b32.xlu0 %v689, 64
    %v1045 = vpop.permute.xlu0 %1044
    %1048 = vrot.lane.b32.xlu0 %v696, 64
    %v1049 = vpop.permute.xlu0 %1048
    %1050 = vrot.lane.b32.xlu0 %v697, 64
    %v1051 = vpop.permute.xlu0 %1050
    %1054 = vrot.lane.b32.xlu0 %v704, 64
    %v1055 = vpop.permute.xlu0 %1054
    %1056 = vrot.lane.b32.xlu0 %v705, 64
    %v1057 = vpop.permute.xlu0 %1056
    %1060 = vrot.lane.b32.xlu0 %v712, 64
    %v1061 = vpop.permute.xlu0 %1060
    %1062 = vrot.lane.b32.xlu0 %v713, 64
    %v1063 = vpop.permute.xlu0 %1062
    %v1066 = vsel %vm451, %v684, %v1043
    %v1070 = vsel %vm451, %v685, %v1045
    %v1074 = vsel %vm451, %v692, %v1049
    %v1078 = vsel %vm451, %v693, %v1051
    %v1082 = vsel %vm451, %v700, %v1055
    %v1086 = vsel %vm451, %v701, %v1057
    %v1090 = vsel %vm451, %v708, %v1061
    %v1094 = vsel %vm451, %v709, %v1063
    %v1096 = vld [vmem:[%s3] sm:$0xf]
    %v1097 = vld [vmem:[%s3 + $0x4] sm:$0xf]
    %v1098 = vld [vmem:[%s3 + $0x8] sm:$0xf]
    %v1099 = vld [vmem:[%s3 + $0xc] sm:$0xf]
    %v1100 = vld [vmem:[%s3 + $0x10] sm:$0xf]
    %v1101 = vld [vmem:[%s3 + $0x14] sm:$0xf]
    %v1102 = vld [vmem:[%s3 + $0x18] sm:$0xf]
    %v1103 = vld [vmem:[%s3 + $0x1c] sm:$0xf]
    %v1104 = vld [vmem:[%s3 + $0x20] sm:$0xf]
    %v1105 = vld [vmem:[%s3 + $0x24] sm:$0xf]
    %v1106 = vld [vmem:[%s3 + $0x28] sm:$0xf]
    %v1107 = vld [vmem:[%s3 + $0x2c] sm:$0xf]
    %v1108 = vld [vmem:[%s3 + $0x30] sm:$0xf]
    %v1109 = vld [vmem:[%s3 + $0x34] sm:$0xf]
    %v1110 = vld [vmem:[%s3 + $0x38] sm:$0xf]
    %v1111 = vld [vmem:[%s3 + $0x3c] sm:$0xf]
    %v1112 = vld [vmem:[%s3 + $0x40] sm:$0xf]
    %v1113 = vld [vmem:[%s3 + $0x44] sm:$0xf]
    %v1114 = vld [vmem:[%s3 + $0x48] sm:$0xf]
    %v1115 = vld [vmem:[%s3 + $0x4c] sm:$0xf]
    %v1116 = vld [vmem:[%s3 + $0x50] sm:$0xf]
    %v1117 = vld [vmem:[%s3 + $0x54] sm:$0xf]
    %v1118 = vld [vmem:[%s3 + $0x58] sm:$0xf]
    %v1119 = vld [vmem:[%s3 + $0x5c] sm:$0xf]
    %v1120 = vld [vmem:[%s3 + $0x60] sm:$0xf]
    %v1121 = vld [vmem:[%s3 + $0x64] sm:$0xf]
    %v1122 = vld [vmem:[%s3 + $0x68] sm:$0xf]
    %v1123 = vld [vmem:[%s3 + $0x6c] sm:$0xf]
    %v1124 = vld [vmem:[%s3 + $0x70] sm:$0xf]
    %v1125 = vld [vmem:[%s3 + $0x74] sm:$0xf]
    %v1126 = vld [vmem:[%s3 + $0x78] sm:$0xf]
    %v1127 = vld [vmem:[%s3 + $0x7c] sm:$0xf]
    %v1128 = vld [vmem:[%s3 + $0x80] sm:$0xf]
    %v1129 = vld [vmem:[%s3 + $0x84] sm:$0xf]
    %v1130 = vld [vmem:[%s3 + $0x88] sm:$0xf]
    %v1131 = vld [vmem:[%s3 + $0x8c] sm:$0xf]
    %v1132 = vld [vmem:[%s3 + $0x90] sm:$0xf]
    %v1133 = vld [vmem:[%s3 + $0x94] sm:$0xf]
    %v1134 = vld [vmem:[%s3 + $0x98] sm:$0xf]
    %v1135 = vld [vmem:[%s3 + $0x9c] sm:$0xf]
    %v1136 = vld [vmem:[%s3 + $0xa0] sm:$0xf]
    %v1137 = vld [vmem:[%s3 + $0xa4] sm:$0xf]
    %v1138 = vld [vmem:[%s3 + $0xa8] sm:$0xf]
    %v1139 = vld [vmem:[%s3 + $0xac] sm:$0xf]
    %v1140 = vld [vmem:[%s3 + $0xb0] sm:$0xf]
    %v1141 = vld [vmem:[%s3 + $0xb4] sm:$0xf]
    %v1142 = vld [vmem:[%s3 + $0xb8] sm:$0xf]
    %v1143 = vld [vmem:[%s3 + $0xbc] sm:$0xf]
    %v1144 = vld [vmem:[%s3 + $0xc0] sm:$0xf]
    %v1145 = vld [vmem:[%s3 + $0xc4] sm:$0xf]
    %v1146 = vld [vmem:[%s3 + $0xc8] sm:$0xf]
    %v1147 = vld [vmem:[%s3 + $0xcc] sm:$0xf]
    %v1148 = vld [vmem:[%s3 + $0xd0] sm:$0xf]
    %v1149 = vld [vmem:[%s3 + $0xd4] sm:$0xf]
    %v1150 = vld [vmem:[%s3 + $0xd8] sm:$0xf]
    %v1151 = vld [vmem:[%s3 + $0xdc] sm:$0xf]
    %v1152 = vld [vmem:[%s3 + $0xe0] sm:$0xf]
    %v1153 = vld [vmem:[%s3 + $0xe4] sm:$0xf]
    %v1154 = vld [vmem:[%s3 + $0xe8] sm:$0xf]
    %v1155 = vld [vmem:[%s3 + $0xec] sm:$0xf]
    %v1156 = vld [vmem:[%s3 + $0xf0] sm:$0xf]
    %v1157 = vld [vmem:[%s3 + $0xf4] sm:$0xf]
    %v1158 = vld [vmem:[%s3 + $0xf8] sm:$0xf]
    %v1159 = vld [vmem:[%s3 + $0xfc] sm:$0xf]
    %v1160 = vld [vmem:[%s3 + $0x100] sm:$0xf]
    %v1161 = vld [vmem:[%s3 + $0x104] sm:$0xf]
    %v1162 = vld [vmem:[%s3 + $0x108] sm:$0xf]
    %v1163 = vld [vmem:[%s3 + $0x10c] sm:$0xf]
    %v1164 = vld [vmem:[%s3 + $0x110] sm:$0xf]
    %v1165 = vld [vmem:[%s3 + $0x114] sm:$0xf]
    %v1166 = vld [vmem:[%s3 + $0x118] sm:$0xf]
    %v1167 = vld [vmem:[%s3 + $0x11c] sm:$0xf]
    %v1168 = vld [vmem:[%s3 + $0x120] sm:$0xf]
    %v1169 = vld [vmem:[%s3 + $0x124] sm:$0xf]
    %v1170 = vld [vmem:[%s3 + $0x128] sm:$0xf]
    %v1171 = vld [vmem:[%s3 + $0x12c] sm:$0xf]
    %v1172 = vld [vmem:[%s3 + $0x130] sm:$0xf]
    %v1173 = vld [vmem:[%s3 + $0x134] sm:$0xf]
    %v1174 = vld [vmem:[%s3 + $0x138] sm:$0xf]
    %v1175 = vld [vmem:[%s3 + $0x13c] sm:$0xf]
    %v1176 = vld [vmem:[%s3 + $0x140] sm:$0xf]
    %v1177 = vld [vmem:[%s3 + $0x144] sm:$0xf]
    %v1178 = vld [vmem:[%s3 + $0x148] sm:$0xf]
    %v1179 = vld [vmem:[%s3 + $0x14c] sm:$0xf]
    %v1180 = vld [vmem:[%s3 + $0x150] sm:$0xf]
    %v1181 = vld [vmem:[%s3 + $0x154] sm:$0xf]
    %v1182 = vld [vmem:[%s3 + $0x158] sm:$0xf]
    %v1183 = vld [vmem:[%s3 + $0x15c] sm:$0xf]
    %v1184 = vld [vmem:[%s3 + $0x160] sm:$0xf]
    %v1185 = vld [vmem:[%s3 + $0x164] sm:$0xf]
    %v1186 = vld [vmem:[%s3 + $0x168] sm:$0xf]
    %v1187 = vld [vmem:[%s3 + $0x16c] sm:$0xf]
    %v1188 = vld [vmem:[%s3 + $0x170] sm:$0xf]
    %v1189 = vld [vmem:[%s3 + $0x174] sm:$0xf]
    %v1190 = vld [vmem:[%s3 + $0x178] sm:$0xf]
    %v1191 = vld [vmem:[%s3 + $0x17c] sm:$0xf]
    %v1192 = vld [vmem:[%s3 + $0x180] sm:$0xf]
    %v1193 = vld [vmem:[%s3 + $0x184] sm:$0xf]
    %v1194 = vld [vmem:[%s3 + $0x188] sm:$0xf]
    %v1195 = vld [vmem:[%s3 + $0x18c] sm:$0xf]
    %v1196 = vld [vmem:[%s3 + $0x190] sm:$0xf]
    %v1197 = vld [vmem:[%s3 + $0x194] sm:$0xf]
    %v1198 = vld [vmem:[%s3 + $0x198] sm:$0xf]
    %v1199 = vld [vmem:[%s3 + $0x19c] sm:$0xf]
    %v1200 = vld [vmem:[%s3 + $0x1a0] sm:$0xf]
    %v1201 = vld [vmem:[%s3 + $0x1a4] sm:$0xf]
    %v1202 = vld [vmem:[%s3 + $0x1a8] sm:$0xf]
    %v1203 = vld [vmem:[%s3 + $0x1ac] sm:$0xf]
    %v1204 = vld [vmem:[%s3 + $0x1b0] sm:$0xf]
    %v1205 = vld [vmem:[%s3 + $0x1b4] sm:$0xf]
    %v1206 = vld [vmem:[%s3 + $0x1b8] sm:$0xf]
    %v1207 = vld [vmem:[%s3 + $0x1bc] sm:$0xf]
    %v1208 = vld [vmem:[%s3 + $0x1c0] sm:$0xf]
    %v1209 = vld [vmem:[%s3 + $0x1c4] sm:$0xf]
    %v1210 = vld [vmem:[%s3 + $0x1c8] sm:$0xf]
    %v1211 = vld [vmem:[%s3 + $0x1cc] sm:$0xf]
    %v1212 = vld [vmem:[%s3 + $0x1d0] sm:$0xf]
    %v1213 = vld [vmem:[%s3 + $0x1d4] sm:$0xf]
    %v1214 = vld [vmem:[%s3 + $0x1d8] sm:$0xf]
    %v1215 = vld [vmem:[%s3 + $0x1dc] sm:$0xf]
    %v1216 = vld [vmem:[%s3 + $0x1e0] sm:$0xf]
    %v1217 = vld [vmem:[%s3 + $0x1e4] sm:$0xf]
    %v1218 = vld [vmem:[%s3 + $0x1e8] sm:$0xf]
    %v1219 = vld [vmem:[%s3 + $0x1ec] sm:$0xf]
    %v1220 = vld [vmem:[%s3 + $0x1f0] sm:$0xf]
    %v1221 = vld [vmem:[%s3 + $0x1f4] sm:$0xf]
    %v1222 = vld [vmem:[%s3 + $0x1f8] sm:$0xf]
    %v1223 = vld [vmem:[%s3 + $0x1fc] sm:$0xf]
    %v1224 = vld [vmem:[%s3 + $0x200] sm:$0xf]
    %v1225 = vld [vmem:[%s3 + $0x204] sm:$0xf]
    %v1226 = vld [vmem:[%s3 + $0x208] sm:$0xf]
    %v1227 = vld [vmem:[%s3 + $0x20c] sm:$0xf]
    %v1228 = vld [vmem:[%s3 + $0x210] sm:$0xf]
    %v1229 = vld [vmem:[%s3 + $0x214] sm:$0xf]
    %v1230 = vld [vmem:[%s3 + $0x218] sm:$0xf]
    %v1231 = vld [vmem:[%s3 + $0x21c] sm:$0xf]
    %v1232 = vld [vmem:[%s3 + $0x220] sm:$0xf]
    %v1233 = vld [vmem:[%s3 + $0x224] sm:$0xf]
    %v1234 = vld [vmem:[%s3 + $0x228] sm:$0xf]
    %v1235 = vld [vmem:[%s3 + $0x22c] sm:$0xf]
    %v1236 = vld [vmem:[%s3 + $0x230] sm:$0xf]
    %v1237 = vld [vmem:[%s3 + $0x234] sm:$0xf]
    %v1238 = vld [vmem:[%s3 + $0x238] sm:$0xf]
    %v1239 = vld [vmem:[%s3 + $0x23c] sm:$0xf]
    %v1240 = vld [vmem:[%s3 + $0x240] sm:$0xf]
    %v1241 = vld [vmem:[%s3 + $0x244] sm:$0xf]
    %v1242 = vld [vmem:[%s3 + $0x248] sm:$0xf]
    %v1243 = vld [vmem:[%s3 + $0x24c] sm:$0xf]
    %v1244 = vld [vmem:[%s3 + $0x250] sm:$0xf]
    %v1245 = vld [vmem:[%s3 + $0x254] sm:$0xf]
    %v1246 = vld [vmem:[%s3 + $0x258] sm:$0xf]
    %v1247 = vld [vmem:[%s3 + $0x25c] sm:$0xf]
    %v1248 = vld [vmem:[%s3 + $0x260] sm:$0xf]
    %v1249 = vld [vmem:[%s3 + $0x264] sm:$0xf]
    %v1250 = vld [vmem:[%s3 + $0x268] sm:$0xf]
    %v1251 = vld [vmem:[%s3 + $0x26c] sm:$0xf]
    %v1252 = vld [vmem:[%s3 + $0x270] sm:$0xf]
    %v1253 = vld [vmem:[%s3 + $0x274] sm:$0xf]
    %v1254 = vld [vmem:[%s3 + $0x278] sm:$0xf]
    %v1255 = vld [vmem:[%s3 + $0x27c] sm:$0xf]
    %v1256 = vld [vmem:[%s3 + $0x280] sm:$0xf]
    %v1257 = vld [vmem:[%s3 + $0x284] sm:$0xf]
    %v1258 = vld [vmem:[%s3 + $0x288] sm:$0xf]
    %v1259 = vld [vmem:[%s3 + $0x28c] sm:$0xf]
    %v1260 = vld [vmem:[%s3 + $0x290] sm:$0xf]
    %v1261 = vld [vmem:[%s3 + $0x294] sm:$0xf]
    %v1262 = vld [vmem:[%s3 + $0x298] sm:$0xf]
    %v1263 = vld [vmem:[%s3 + $0x29c] sm:$0xf]
    %v1264 = vld [vmem:[%s3 + $0x2a0] sm:$0xf]
    %v1265 = vld [vmem:[%s3 + $0x2a4] sm:$0xf]
    %v1266 = vld [vmem:[%s3 + $0x2a8] sm:$0xf]
    %v1267 = vld [vmem:[%s3 + $0x2ac] sm:$0xf]
    %v1268 = vld [vmem:[%s3 + $0x2b0] sm:$0xf]
    %v1269 = vld [vmem:[%s3 + $0x2b4] sm:$0xf]
    %v1270 = vld [vmem:[%s3 + $0x2b8] sm:$0xf]
    %v1271 = vld [vmem:[%s3 + $0x2bc] sm:$0xf]
    %v1272 = vld [vmem:[%s3 + $0x2c0] sm:$0xf]
    %v1273 = vld [vmem:[%s3 + $0x2c4] sm:$0xf]
    %v1274 = vld [vmem:[%s3 + $0x2c8] sm:$0xf]
    %v1275 = vld [vmem:[%s3 + $0x2cc] sm:$0xf]
    %v1276 = vld [vmem:[%s3 + $0x2d0] sm:$0xf]
    %v1277 = vld [vmem:[%s3 + $0x2d4] sm:$0xf]
    %v1278 = vld [vmem:[%s3 + $0x2d8] sm:$0xf]
    %v1279 = vld [vmem:[%s3 + $0x2dc] sm:$0xf]
    %v1280 = vld [vmem:[%s3 + $0x2e0] sm:$0xf]
    %v1281 = vld [vmem:[%s3 + $0x2e4] sm:$0xf]
    %v1282 = vld [vmem:[%s3 + $0x2e8] sm:$0xf]
    %v1283 = vld [vmem:[%s3 + $0x2ec] sm:$0xf]
    %v1284 = vld [vmem:[%s3 + $0x2f0] sm:$0xf]
    %v1285 = vld [vmem:[%s3 + $0x2f4] sm:$0xf]
    %v1286 = vld [vmem:[%s3 + $0x2f8] sm:$0xf]
    %v1287 = vld [vmem:[%s3 + $0x2fc] sm:$0xf]
    %v1288 = vld [vmem:[%s3 + $0x300] sm:$0xf]
    %v1289 = vld [vmem:[%s3 + $0x304] sm:$0xf]
    %v1290 = vld [vmem:[%s3 + $0x308] sm:$0xf]
    %v1291 = vld [vmem:[%s3 + $0x30c] sm:$0xf]
    %v1292 = vld [vmem:[%s3 + $0x310] sm:$0xf]
    %v1293 = vld [vmem:[%s3 + $0x314] sm:$0xf]
    %v1294 = vld [vmem:[%s3 + $0x318] sm:$0xf]
    %v1295 = vld [vmem:[%s3 + $0x31c] sm:$0xf]
    %v1296 = vld [vmem:[%s4] sm:$0x1]
    %v1298 = vlaneseq
    %v1299 = vshrl.u32 %v1298, 7
    %v1300 = vsub.s32 0, %v1299
    %v1301 = vrot.slane %v1296, %v1300
    %v1503 = vunpack.c.l.b16 %v1096
    %v1504 = vunpack.c.l.b16 %v1097
    %v1505 = vunpack.c.l.b16 %v1098
    %v1506 = vunpack.c.l.b16 %v1099
    %v1507 = vunpack.c.l.b16 %v1100
    %v1508 = vunpack.c.l.b16 %v1101
    %v1509 = vunpack.c.l.b16 %v1102
    %v1510 = vunpack.c.l.b16 %v1103
    %v1511 = vunpack.c.l.b16 %v1104
    %v1512 = vunpack.c.l.b16 %v1105
    %v1513 = vunpack.c.l.b16 %v1106
    %v1514 = vunpack.c.l.b16 %v1107
    %v1515 = vunpack.c.l.b16 %v1108
    %v1516 = vunpack.c.l.b16 %v1109
    %v1517 = vunpack.c.l.b16 %v1110
    %v1518 = vunpack.c.l.b16 %v1111
    %v1519 = vunpack.c.l.b16 %v1112
    %v1520 = vunpack.c.l.b16 %v1113
    %v1521 = vunpack.c.l.b16 %v1114
    %v1522 = vunpack.c.l.b16 %v1115
    %v1523 = vunpack.c.l.b16 %v1116
    %v1524 = vunpack.c.l.b16 %v1117
    %v1525 = vunpack.c.l.b16 %v1118
    %v1526 = vunpack.c.l.b16 %v1119
    %v1527 = vunpack.c.l.b16 %v1120
    %v1528 = vunpack.c.l.b16 %v1121
    %v1529 = vunpack.c.l.b16 %v1122
    %v1530 = vunpack.c.l.b16 %v1123
    %v1531 = vunpack.c.l.b16 %v1124
    %v1532 = vunpack.c.l.b16 %v1125
    %v1533 = vunpack.c.l.b16 %v1126
    %v1534 = vunpack.c.l.b16 %v1127
    %v1535 = vunpack.c.l.b16 %v1128
    %v1536 = vunpack.c.l.b16 %v1129
    %v1537 = vunpack.c.l.b16 %v1130
    %v1538 = vunpack.c.l.b16 %v1131
    %v1539 = vunpack.c.l.b16 %v1132
    %v1540 = vunpack.c.l.b16 %v1133
    %v1541 = vunpack.c.l.b16 %v1134
    %v1542 = vunpack.c.l.b16 %v1135
    %v1543 = vunpack.c.l.b16 %v1136
    %v1544 = vunpack.c.l.b16 %v1137
    %v1545 = vunpack.c.l.b16 %v1138
    %v1546 = vunpack.c.l.b16 %v1139
    %v1547 = vunpack.c.l.b16 %v1140
    %v1548 = vunpack.c.l.b16 %v1141
    %v1549 = vunpack.c.l.b16 %v1142
    %v1550 = vunpack.c.l.b16 %v1143
    %v1551 = vunpack.c.l.b16 %v1144
    %v1552 = vunpack.c.l.b16 %v1145
    %v1553 = vunpack.c.l.b16 %v1146
    %v1554 = vunpack.c.l.b16 %v1147
    %v1555 = vunpack.c.l.b16 %v1148
    %v1556 = vunpack.c.l.b16 %v1149
    %v1557 = vunpack.c.l.b16 %v1150
    %v1558 = vunpack.c.l.b16 %v1151
    %v1559 = vunpack.c.l.b16 %v1152
    %v1560 = vunpack.c.l.b16 %v1153
    %v1561 = vunpack.c.l.b16 %v1154
    %v1562 = vunpack.c.l.b16 %v1155
    %v1563 = vunpack.c.l.b16 %v1156
    %v1564 = vunpack.c.l.b16 %v1157
    %v1565 = vunpack.c.l.b16 %v1158
    %v1566 = vunpack.c.l.b16 %v1159
    %v1567 = vunpack.c.l.b16 %v1160
    %v1568 = vunpack.c.l.b16 %v1161
    %v1569 = vunpack.c.l.b16 %v1162
    %v1570 = vunpack.c.l.b16 %v1163
    %v1571 = vunpack.c.l.b16 %v1164
    %v1572 = vunpack.c.l.b16 %v1165
    %v1573 = vunpack.c.l.b16 %v1166
    %v1574 = vunpack.c.l.b16 %v1167
    %v1575 = vunpack.c.l.b16 %v1168
    %v1576 = vunpack.c.l.b16 %v1169
    %v1577 = vunpack.c.l.b16 %v1170
    %v1578 = vunpack.c.l.b16 %v1171
    %v1579 = vunpack.c.l.b16 %v1172
    %v1580 = vunpack.c.l.b16 %v1173
    %v1581 = vunpack.c.l.b16 %v1174
    %v1582 = vunpack.c.l.b16 %v1175
    %v1583 = vunpack.c.l.b16 %v1176
    %v1584 = vunpack.c.l.b16 %v1177
    %v1585 = vunpack.c.l.b16 %v1178
    %v1586 = vunpack.c.l.b16 %v1179
    %v1587 = vunpack.c.l.b16 %v1180
    %v1588 = vunpack.c.l.b16 %v1181
    %v1589 = vunpack.c.l.b16 %v1182
    %v1590 = vunpack.c.l.b16 %v1183
    %v1591 = vunpack.c.l.b16 %v1184
    %v1592 = vunpack.c.l.b16 %v1185
    %v1593 = vunpack.c.l.b16 %v1186
    %v1594 = vunpack.c.l.b16 %v1187
    %v1595 = vunpack.c.l.b16 %v1188
    %v1596 = vunpack.c.l.b16 %v1189
    %v1597 = vunpack.c.l.b16 %v1190
    %v1598 = vunpack.c.l.b16 %v1191
    %v1599 = vunpack.c.l.b16 %v1192
    %v1600 = vunpack.c.l.b16 %v1193
    %v1601 = vunpack.c.l.b16 %v1194
    %v1602 = vunpack.c.l.b16 %v1195
    %v1603 = vunpack.c.l.b16 %v1196
    %v1604 = vunpack.c.l.b16 %v1197
    %v1605 = vunpack.c.l.b16 %v1198
    %v1606 = vunpack.c.l.b16 %v1199
    %v1607 = vunpack.c.l.b16 %v1200
    %v1608 = vunpack.c.l.b16 %v1201
    %v1609 = vunpack.c.l.b16 %v1202
    %v1610 = vunpack.c.l.b16 %v1203
    %v1611 = vunpack.c.l.b16 %v1204
    %v1612 = vunpack.c.l.b16 %v1205
    %v1613 = vunpack.c.l.b16 %v1206
    %v1614 = vunpack.c.l.b16 %v1207
    %v1615 = vunpack.c.l.b16 %v1208
    %v1616 = vunpack.c.l.b16 %v1209
    %v1617 = vunpack.c.l.b16 %v1210
    %v1618 = vunpack.c.l.b16 %v1211
    %v1619 = vunpack.c.l.b16 %v1212
    %v1620 = vunpack.c.l.b16 %v1213
    %v1621 = vunpack.c.l.b16 %v1214
    %v1622 = vunpack.c.l.b16 %v1215
    %v1623 = vunpack.c.l.b16 %v1216
    %v1624 = vunpack.c.l.b16 %v1217
    %v1625 = vunpack.c.l.b16 %v1218
    %v1626 = vunpack.c.l.b16 %v1219
    %v1627 = vunpack.c.l.b16 %v1220
    %v1628 = vunpack.c.l.b16 %v1221
    %v1629 = vunpack.c.l.b16 %v1222
    %v1630 = vunpack.c.l.b16 %v1223
    %v1631 = vunpack.c.l.b16 %v1224
    %v1632 = vunpack.c.l.b16 %v1225
    %v1633 = vunpack.c.l.b16 %v1226
    %v1634 = vunpack.c.l.b16 %v1227
    %v1635 = vunpack.c.l.b16 %v1228
    %v1636 = vunpack.c.l.b16 %v1229
    %v1637 = vunpack.c.l.b16 %v1230
    %v1638 = vunpack.c.l.b16 %v1231
    %v1639 = vunpack.c.l.b16 %v1232
    %v1640 = vunpack.c.l.b16 %v1233
    %v1641 = vunpack.c.l.b16 %v1234
    %v1642 = vunpack.c.l.b16 %v1235
    %v1643 = vunpack.c.l.b16 %v1236
    %v1644 = vunpack.c.l.b16 %v1237
    %v1645 = vunpack.c.l.b16 %v1238
    %v1646 = vunpack.c.l.b16 %v1239
    %v1647 = vunpack.c.l.b16 %v1240
    %v1648 = vunpack.c.l.b16 %v1241
    %v1649 = vunpack.c.l.b16 %v1242
    %v1650 = vunpack.c.l.b16 %v1243
    %v1651 = vunpack.c.l.b16 %v1244
    %v1652 = vunpack.c.l.b16 %v1245
    %v1653 = vunpack.c.l.b16 %v1246
    %v1654 = vunpack.c.l.b16 %v1247
    %v1655 = vunpack.c.l.b16 %v1248
    %v1656 = vunpack.c.l.b16 %v1249
    %v1657 = vunpack.c.l.b16 %v1250
    %v1658 = vunpack.c.l.b16 %v1251
    %v1659 = vunpack.c.l.b16 %v1252
    %v1660 = vunpack.c.l.b16 %v1253
    %v1661 = vunpack.c.l.b16 %v1254
    %v1662 = vunpack.c.l.b16 %v1255
    %v1663 = vunpack.c.l.b16 %v1256
    %v1664 = vunpack.c.l.b16 %v1257
    %v1665 = vunpack.c.l.b16 %v1258
    %v1666 = vunpack.c.l.b16 %v1259
    %v1667 = vunpack.c.l.b16 %v1260
    %v1668 = vunpack.c.l.b16 %v1261
    %v1669 = vunpack.c.l.b16 %v1262
    %v1670 = vunpack.c.l.b16 %v1263
    %v1671 = vunpack.c.l.b16 %v1264
    %v1672 = vunpack.c.l.b16 %v1265
    %v1673 = vunpack.c.l.b16 %v1266
    %v1674 = vunpack.c.l.b16 %v1267
    %v1675 = vunpack.c.l.b16 %v1268
    %v1676 = vunpack.c.l.b16 %v1269
    %v1677 = vunpack.c.l.b16 %v1270
    %v1678 = vunpack.c.l.b16 %v1271
    %v1679 = vunpack.c.l.b16 %v1272
    %v1680 = vunpack.c.l.b16 %v1273
    %v1681 = vunpack.c.l.b16 %v1274
    %v1682 = vunpack.c.l.b16 %v1275
    %v1683 = vunpack.c.l.b16 %v1276
    %v1684 = vunpack.c.l.b16 %v1277
    %v1685 = vunpack.c.l.b16 %v1278
    %v1686 = vunpack.c.l.b16 %v1279
    %v1687 = vunpack.c.l.b16 %v1280
    %v1688 = vunpack.c.l.b16 %v1281
    %v1689 = vunpack.c.l.b16 %v1282
    %v1690 = vunpack.c.l.b16 %v1283
    %v1691 = vunpack.c.l.b16 %v1284
    %v1692 = vunpack.c.l.b16 %v1285
    %v1693 = vunpack.c.l.b16 %v1286
    %v1694 = vunpack.c.l.b16 %v1287
    %v1695 = vunpack.c.l.b16 %v1288
    %v1696 = vunpack.c.l.b16 %v1289
    %v1697 = vunpack.c.l.b16 %v1290
    %v1698 = vunpack.c.l.b16 %v1291
    %v1699 = vunpack.c.l.b16 %v1292
    %v1700 = vunpack.c.l.b16 %v1293
    %v1701 = vunpack.c.l.b16 %v1294
    %v1702 = vunpack.c.l.b16 %v1295
    %v1703 = vpack.c.b16 %v1504, %v1503
    %v1704 = vpack.c.b16 %v1506, %v1505
    %v1705 = vpack.c.b16 %v1508, %v1507
    %v1706 = vpack.c.b16 %v1510, %v1509
    %v1707 = vpack.c.b16 %v1512, %v1511
    %v1708 = vpack.c.b16 %v1514, %v1513
    %v1709 = vpack.c.b16 %v1516, %v1515
    %v1710 = vpack.c.b16 %v1518, %v1517
    %v1711 = vpack.c.b16 %v1520, %v1519
    %v1712 = vpack.c.b16 %v1522, %v1521
    %v1713 = vpack.c.b16 %v1524, %v1523
    %v1714 = vpack.c.b16 %v1526, %v1525
    %v1715 = vpack.c.b16 %v1528, %v1527
    %v1716 = vpack.c.b16 %v1530, %v1529
    %v1717 = vpack.c.b16 %v1532, %v1531
    %v1718 = vpack.c.b16 %v1534, %v1533
    %v1719 = vpack.c.b16 %v1536, %v1535
    %v1720 = vpack.c.b16 %v1538, %v1537
    %v1721 = vpack.c.b16 %v1540, %v1539
    %v1722 = vpack.c.b16 %v1542, %v1541
    %v1723 = vpack.c.b16 %v1544, %v1543
    %v1724 = vpack.c.b16 %v1546, %v1545
    %v1725 = vpack.c.b16 %v1548, %v1547
    %v1726 = vpack.c.b16 %v1550, %v1549
    %v1727 = vpack.c.b16 %v1552, %v1551
    %v1728 = vpack.c.b16 %v1554, %v1553
    %v1729 = vpack.c.b16 %v1556, %v1555
    %v1730 = vpack.c.b16 %v1558, %v1557
    %v1731 = vpack.c.b16 %v1560, %v1559
    %v1732 = vpack.c.b16 %v1562, %v1561
    %v1733 = vpack.c.b16 %v1564, %v1563
    %v1734 = vpack.c.b16 %v1566, %v1565
    %v1735 = vpack.c.b16 %v1568, %v1567
    %v1736 = vpack.c.b16 %v1570, %v1569
    %v1737 = vpack.c.b16 %v1572, %v1571
    %v1738 = vpack.c.b16 %v1574, %v1573
    %v1739 = vpack.c.b16 %v1576, %v1575
    %v1740 = vpack.c.b16 %v1578, %v1577
    %v1741 = vpack.c.b16 %v1580, %v1579
    %v1742 = vpack.c.b16 %v1582, %v1581
    %v1743 = vpack.c.b16 %v1584, %v1583
    %v1744 = vpack.c.b16 %v1586, %v1585
    %v1745 = vpack.c.b16 %v1588, %v1587
    %v1746 = vpack.c.b16 %v1590, %v1589
    %v1747 = vpack.c.b16 %v1592, %v1591
    %v1748 = vpack.c.b16 %v1594, %v1593
    %v1749 = vpack.c.b16 %v1596, %v1595
    %v1750 = vpack.c.b16 %v1598, %v1597
    %v1751 = vpack.c.b16 %v1600, %v1599
    %v1752 = vpack.c.b16 %v1602, %v1601
    %v1753 = vpack.c.b16 %v1604, %v1603
    %v1754 = vpack.c.b16 %v1606, %v1605
    %v1755 = vpack.c.b16 %v1608, %v1607
    %v1756 = vpack.c.b16 %v1610, %v1609
    %v1757 = vpack.c.b16 %v1612, %v1611
    %v1758 = vpack.c.b16 %v1614, %v1613
    %v1759 = vpack.c.b16 %v1616, %v1615
    %v1760 = vpack.c.b16 %v1618, %v1617
    %v1761 = vpack.c.b16 %v1620, %v1619
    %v1762 = vpack.c.b16 %v1622, %v1621
    %v1763 = vpack.c.b16 %v1624, %v1623
    %v1764 = vpack.c.b16 %v1626, %v1625
    %v1765 = vpack.c.b16 %v1628, %v1627
    %v1766 = vpack.c.b16 %v1630, %v1629
    %v1767 = vpack.c.b16 %v1632, %v1631
    %v1768 = vpack.c.b16 %v1634, %v1633
    %v1769 = vpack.c.b16 %v1636, %v1635
    %v1770 = vpack.c.b16 %v1638, %v1637
    %v1771 = vpack.c.b16 %v1640, %v1639
    %v1772 = vpack.c.b16 %v1642, %v1641
    %v1773 = vpack.c.b16 %v1644, %v1643
    %v1774 = vpack.c.b16 %v1646, %v1645
    %v1775 = vpack.c.b16 %v1648, %v1647
    %v1776 = vpack.c.b16 %v1650, %v1649
    %v1777 = vpack.c.b16 %v1652, %v1651
    %v1778 = vpack.c.b16 %v1654, %v1653
    %v1779 = vpack.c.b16 %v1656, %v1655
    %v1780 = vpack.c.b16 %v1658, %v1657
    %v1781 = vpack.c.b16 %v1660, %v1659
    %v1782 = vpack.c.b16 %v1662, %v1661
    %v1783 = vpack.c.b16 %v1664, %v1663
    %v1784 = vpack.c.b16 %v1666, %v1665
    %v1785 = vpack.c.b16 %v1668, %v1667
    %v1786 = vpack.c.b16 %v1670, %v1669
    %v1787 = vpack.c.b16 %v1672, %v1671
    %v1788 = vpack.c.b16 %v1674, %v1673
    %v1789 = vpack.c.b16 %v1676, %v1675
    %v1790 = vpack.c.b16 %v1678, %v1677
    %v1791 = vpack.c.b16 %v1680, %v1679
    %v1792 = vpack.c.b16 %v1682, %v1681
    %v1793 = vpack.c.b16 %v1684, %v1683
    %v1794 = vpack.c.b16 %v1686, %v1685
    %v1795 = vpack.c.b16 %v1688, %v1687
    %v1796 = vpack.c.b16 %v1690, %v1689
    %v1797 = vpack.c.b16 %v1692, %v1691
    %v1798 = vpack.c.b16 %v1694, %v1693
    %v1799 = vpack.c.b16 %v1696, %v1695
    %v1800 = vpack.c.b16 %v1698, %v1697
    %v1801 = vpack.c.b16 %v1700, %v1699
    %v1802 = vpack.c.b16 %v1702, %v1701
    %v1903 = vsel %vm451, %v602, 0
    %v1905 = vsel %vm451, %v603, 0
    %v1907 = vsel %vm451, %v676, 0
    %v1910 = vsel %vm451, %v716, 0
    %v1912 = vsel %vm451, %v606, 0
    %v1914 = vsel %vm451, %v607, 0
    %v1916 = vsel %vm451, %v677, 0
    %v1919 = vsel %vm451, %v717, 0
    %1921 = vmatprep.subr.bf16.mxu0 0
    %1922 = vmatpush1.bf16.msra.mxu0 %v1703
    %1923 = vmatprep.subr.bf16.mxu0 0
    %1924 = vmatpush1.bf16.msra.mxu0 %v1704
    %1925 = vmatprep.subr.bf16.mxu0 0
    %1926 = vmatpush1.bf16.msra.mxu0 %v1705
    %1927 = vmatprep.subr.bf16.mxu0 0
    %1928 = vmatpush1.bf16.msra.mxu0 %v1706
    %1929 = vmatprep.subr.bf16.mxu0 0
    %1930 = vmatpush1.bf16.msra.mxu0 %v1707
    %1931 = vmatprep.subr.bf16.mxu0 0
    %1932 = vmatpush1.bf16.msra.mxu0 %v1708
    %1933 = vmatprep.subr.bf16.mxu0 0
    %1934 = vmatpush1.bf16.msra.mxu0 %v1709
    %1935 = vmatprep.subr.bf16.mxu0 0
    %1936 = vmatpush1.bf16.msra.mxu0 %v1710
    %1937 = vmatprep.subr.bf16.mxu0 0
    %1938 = vmatpush1.bf16.msra.mxu0 %v1711
    %1939 = vmatprep.subr.bf16.mxu0 0
    %1940 = vmatpush1.bf16.msra.mxu0 %v1712
    %1941 = vmatprep.subr.bf16.mxu0 0
    %1942 = vmatpush1.bf16.msra.mxu0 %v1713
    %1943 = vmatprep.subr.bf16.mxu0 0
    %1944 = vmatpush1.bf16.msra.mxu0 %v1714
    %1945 = vmatprep.subr.bf16.mxu0 0
    %1946 = vmatpush1.bf16.msra.mxu0 %v1715
    %1947 = vmatprep.subr.bf16.mxu0 0
    %1948 = vmatpush1.bf16.msra.mxu0 %v1716
    %1949 = vmatprep.subr.bf16.mxu0 0
    %1950 = vmatpush1.bf16.msra.mxu0 %v1717
    %1951 = vmatprep.subr.bf16.mxu0 0
    %1952 = vmatpush1.bf16.msra.mxu0 %v1718
    %1953 = vmatprep.mubr.bf16.mxu0 %v890
    %1954 = vmatmul.mubr.bf16.gmra.mrb[0].mxu0 %v858
    %v1955 = vpop.f32.mrb[0].mxu0
    %v1956 = vadd.f32 %v1301, %v1955
    %v1957 = vpop.f32.mrb[0].mxu0
    %v1958 = vpop.f32.mrb[0].mxu0
    %v1959 = vadd.f32 %v1301, %v1958
    %v1960 = vpop.f32.mrb[0].mxu0
    %1961 = vmatprep.mubr.bf16.mxu0 %v894
    %1962 = vmatmul.mubr.bf16.gmra.mrb[0].mxu0 %v862
    %v1963 = vpop.f32.mrb[0].mxu0
    %v1964 = vadd.f32 %v1301, %v1963
    %v1965 = vpop.f32.mrb[0].mxu0
    %v1966 = vpop.f32.mrb[0].mxu0
    %v1967 = vadd.f32 %v1301, %v1966
    %v1968 = vpop.f32.mrb[0].mxu0
    %1969 = vmatprep.mubr.bf16.mxu0 %v898
    %1970 = vmatmul.mubr.bf16.gmra.mrb[0].mxu0 %v866
    %v1971 = vpop.f32.mrb[0].mxu0
    %v1972 = vadd.f32 %v1301, %v1971
    %v1973 = vpop.f32.mrb[0].mxu0
    %v1974 = vpop.f32.mrb[0].mxu0
    %v1975 = vadd.f32 %v1301, %v1974
    %v1976 = vpop.f32.mrb[0].mxu0
    %1977 = vmatprep.mubr.bf16.mxu0 %v902
    %1978 = vmatmul.mubr.bf16.gmra.mrb[0].mxu0 %v870
    %v1979 = vpop.f32.mrb[0].mxu0
    %v1980 = vadd.f32 %v1301, %v1979
    %v1981 = vpop.f32.mrb[0].mxu0
    %v1982 = vpop.f32.mrb[0].mxu0
    %v1983 = vadd.f32 %v1301, %v1982
    %v1984 = vpop.f32.mrb[0].mxu0
    %1985 = vmatprep.mubr.bf16.mxu0 %v906
    %1986 = vmatmul.mubr.bf16.gmra.mrb[0].mxu0 %v874
    %v1987 = vpop.f32.mrb[0].mxu0
    %v1988 = vadd.f32 %v1301, %v1987
    %v1989 = vpop.f32.mrb[0].mxu0
    %v1990 = vpop.f32.mrb[0].mxu0
    %v1991 = vadd.f32 %v1301, %v1990
    %v1992 = vpop.f32.mrb[0].mxu0
    %1993 = vmatprep.mubr.bf16.mxu0 %v910
    %1994 = vmatmul.mubr.bf16.gmra.mrb[0].mxu0 %v878
    %v1995 = vpop.f32.mrb[0].mxu0
    %v1996 = vadd.f32 %v1301, %v1995
    %v1997 = vpop.f32.mrb[0].mxu0
    %v1998 = vpop.f32.mrb[0].mxu0
    %v1999 = vadd.f32 %v1301, %v1998
    %v2000 = vpop.f32.mrb[0].mxu0
    %2001 = vmatprep.mubr.bf16.mxu0 %v914
    %2002 = vmatmul.mubr.bf16.gmra.mrb[0].mxu0 %v882
    %v2003 = vpop.f32.mrb[0].mxu0
    %v2004 = vadd.f32 %v1301, %v2003
    %v2005 = vpop.f32.mrb[0].mxu0
    %v2006 = vpop.f32.mrb[0].mxu0
    %v2007 = vadd.f32 %v1301, %v2006
    %v2008 = vpop.f32.mrb[0].mxu0
    %2009 = vmatprep.mubr.bf16.mxu0 %v918
    %2010 = vmatmul.mubr.bf16.gmra.mrb[0].mxu0 %v886
    %v2011 = vpop.f32.mrb[0].mxu0
    %v2012 = vadd.f32 %v1301, %v2011
    %v2013 = vpop.f32.mrb[0].mxu0
    %v2014 = vpop.f32.mrb[0].mxu0
    %v2015 = vadd.f32 %v1301, %v2014
    %v2016 = vpop.f32.mrb[0].mxu0
    %2017 = vdwg.mxu0
    %2018 = vmatprep.subr.bf16.mxu0 0
    %2019 = vmatpush1.bf16.msra.mxu0 %v1719
    %2020 = vmatprep.subr.bf16.mxu0 0
    %2021 = vmatpush1.bf16.msra.mxu0 %v1720
    %2022 = vmatprep.subr.bf16.mxu0 0
    %2023 = vmatpush1.bf16.msra.mxu0 %v1721
    %2024 = vmatprep.subr.bf16.mxu0 0
    %2025 = vmatpush1.bf16.msra.mxu0 %v1722
    %2026 = vmatprep.subr.bf16.mxu0 0
    %2027 = vmatpush1.bf16.msra.mxu0 %v1723
    %2028 = vmatprep.subr.bf16.mxu0 0
    %2029 = vmatpush1.bf16.msra.mxu0 %v1724
    %2030 = vmatprep.subr.bf16.mxu0 0
    %2031 = vmatpush1.bf16.msra.mxu0 %v1725
    %2032 = vmatprep.subr.bf16.mxu0 0
    %2033 = vmatpush1.bf16.msra.mxu0 %v1726
    %2034 = vmatprep.subr.bf16.mxu0 0
    %2035 = vmatpush1.bf16.msra.mxu0 %v1727
    %2036 = vmatprep.subr.bf16.mxu0 0
    %2037 = vmatpush1.bf16.msra.mxu0 %v1728
    %2038 = vmatprep.subr.bf16.mxu0 0
    %2039 = vmatpush1.bf16.msra.mxu0 %v1729
    %2040 = vmatprep.subr.bf16.mxu0 0
    %2041 = vmatpush1.bf16.msra.mxu0 %v1730
    %2042 = vmatprep.subr.bf16.mxu0 0
    %2043 = vmatpush1.bf16.msra.mxu0 %v1731
    %2044 = vmatprep.subr.bf16.mxu0 0
    %2045 = vmatpush1.bf16.msra.mxu0 %v1732
    %2046 = vmatprep.subr.bf16.mxu0 0
    %2047 = vmatpush1.bf16.msra.mxu0 %v1733
    %2048 = vmatprep.subr.bf16.mxu0 0
    %2049 = vmatpush1.bf16.msra.mxu0 %v1734
    %2050 = vmatprep.mubr.bf16.mxu0 %v954
    %2051 = vmatmul.mubr.bf16.gmra.mrb[0].mxu0 %v922
    %v2052 = vpop.f32.mrb[0].mxu0
    %v2053 = vadd.f32 %v1956, %v2052
    %v2054 = vpop.f32.mrb[0].mxu0
    %v2055 = vpop.f32.mrb[0].mxu0
    %v2056 = vadd.f32 %v1959, %v2055
    %v2057 = vpop.f32.mrb[0].mxu0
    %2058 = vmatprep.mubr.bf16.mxu0 %v958
    %2059 = vmatmul.mubr.bf16.gmra.mrb[0].mxu0 %v926
    %v2060 = vpop.f32.mrb[0].mxu0
    %v2061 = vadd.f32 %v1964, %v2060
    %v2062 = vpop.f32.mrb[0].mxu0
    %v2063 = vpop.f32.mrb[0].mxu0
    %v2064 = vadd.f32 %v1967, %v2063
    %v2065 = vpop.f32.mrb[0].mxu0
    %2066 = vmatprep.mubr.bf16.mxu0 %v962
    %2067 = vmatmul.mubr.bf16.gmra.mrb[0].mxu0 %v930
    %v2068 = vpop.f32.mrb[0].mxu0
    %v2069 = vadd.f32 %v1972, %v2068
    %v2070 = vpop.f32.mrb[0].mxu0
    %v2071 = vpop.f32.mrb[0].mxu0
    %v2072 = vadd.f32 %v1975, %v2071
    %v2073 = vpop.f32.mrb[0].mxu0
    %2074 = vmatprep.mubr.bf16.mxu0 %v966
    %2075 = vmatmul.mubr.bf16.gmra.mrb[0].mxu0 %v934
    %v2076 = vpop.f32.mrb[0].mxu0
    %v2077 = vadd.f32 %v1980, %v2076
    %v2078 = vpop.f32.mrb[0].mxu0
    %v2079 = vpop.f32.mrb[0].mxu0
    %v2080 = vadd.f32 %v1983, %v2079
    %v2081 = vpop.f32.mrb[0].mxu0
    %2082 = vmatprep.mubr.bf16.mxu0 %v970
    %2083 = vmatmul.mubr.bf16.gmra.mrb[0].mxu0 %v938
    %v2084 = vpop.f32.mrb[0].mxu0
    %v2085 = vadd.f32 %v1988, %v2084
    %v2086 = vpop.f32.mrb[0].mxu0
    %v2087 = vpop.f32.mrb[0].mxu0
    %v2088 = vadd.f32 %v1991, %v2087
    %v2089 = vpop.f32.mrb[0].mxu0
    %2090 = vmatprep.mubr.bf16.mxu0 %v974
    %2091 = vmatmul.mubr.bf16.gmra.mrb[0].mxu0 %v942
    %v2092 = vpop.f32.mrb[0].mxu0
    %v2093 = vadd.f32 %v1996, %v2092
    %v2094 = vpop.f32.mrb[0].mxu0
    %v2095 = vpop.f32.mrb[0].mxu0
    %v2096 = vadd.f32 %v1999, %v2095
    %v2097 = vpop.f32.mrb[0].mxu0
    %2098 = vmatprep.mubr.bf16.mxu0 %v978
    %2099 = vmatmul.mubr.bf16.gmra.mrb[0].mxu0 %v946
    %v2100 = vpop.f32.mrb[0].mxu0
    %v2101 = vadd.f32 %v2004, %v2100
    %v2102 = vpop.f32.mrb[0].mxu0
    %v2103 = vpop.f32.mrb[0].mxu0
    %v2104 = vadd.f32 %v2007, %v2103
    %v2105 = vpop.f32.mrb[0].mxu0
    %2106 = vmatprep.mubr.bf16.mxu0 %v982
    %2107 = vmatmul.mubr.bf16.gmra.mrb[0].mxu0 %v950
    %v2108 = vpop.f32.mrb[0].mxu0
    %v2109 = vadd.f32 %v2012, %v2108
    %v2110 = vpop.f32.mrb[0].mxu0
    %v2111 = vpop.f32.mrb[0].mxu0
    %v2112 = vadd.f32 %v2015, %v2111
    %v2113 = vpop.f32.mrb[0].mxu0
    %2114 = vdwg.mxu0
    %2115 = vmatprep.subr.bf16.mxu0 0
    %2116 = vmatpush1.bf16.msra.mxu0 %v1735
    %2117 = vmatprep.subr.bf16.mxu0 0
    %2118 = vmatpush1.bf16.msra.mxu0 %v1736
    %2119 = vmatprep.subr.bf16.mxu0 0
    %2120 = vmatpush1.bf16.msra.mxu0 %v1737
    %2121 = vmatprep.subr.bf16.mxu0 0
    %2122 = vmatpush1.bf16.msra.mxu0 %v1738
    %2123 = vmatprep.subr.bf16.mxu0 0
    %2124 = vmatpush1.bf16.msra.mxu0 %v1739
    %2125 = vmatprep.subr.bf16.mxu0 0
    %2126 = vmatpush1.bf16.msra.mxu0 %v1740
    %2127 = vmatprep.subr.bf16.mxu0 0
    %2128 = vmatpush1.bf16.msra.mxu0 %v1741
    %2129 = vmatprep.subr.bf16.mxu0 0
    %2130 = vmatpush1.bf16.msra.mxu0 %v1742
    %2131 = vmatprep.subr.bf16.mxu0 0
    %2132 = vmatpush1.bf16.msra.mxu0 %v1743
    %2133 = vmatprep.subr.bf16.mxu0 0
    %2134 = vmatpush1.bf16.msra.mxu0 %v1744
    %2135 = vmatprep.subr.bf16.mxu0 0
    %2136 = vmatpush1.bf16.msra.mxu0 %v1745
    %2137 = vmatprep.subr.bf16.mxu0 0
    %2138 = vmatpush1.bf16.msra.mxu0 %v1746
    %2139 = vmatprep.subr.bf16.mxu0 0
    %2140 = vmatpush1.bf16.msra.mxu0 %v1747
    %2141 = vmatprep.subr.bf16.mxu0 0
    %2142 = vmatpush1.bf16.msra.mxu0 %v1748
    %2143 = vmatprep.subr.bf16.mxu0 0
    %2144 = vmatpush1.bf16.msra.mxu0 %v1749
    %2145 = vmatprep.subr.bf16.mxu0 0
    %2146 = vmatpush1.bf16.msra.mxu0 %v1750
    %2147 = vmatprep.mubr.bf16.mxu0 %v862
    %2148 = vmatmul.mubr.bf16.gmra.mrb[0].mxu0 %v986
    %v2149 = vpop.f32.mrb[0].mxu0
    %v2150 = vadd.f32 %v2053, %v2149
    %v2151 = vpop.f32.mrb[0].mxu0
    %v2152 = vpop.f32.mrb[0].mxu0
    %v2153 = vadd.f32 %v2056, %v2152
    %v2154 = vpop.f32.mrb[0].mxu0
    %2155 = vmatprep.mubr.bf16.mxu0 %v866
    %2156 = vmatmul.mubr.bf16.gmra.mrb[0].mxu0 %v990
    %v2157 = vpop.f32.mrb[0].mxu0
    %v2158 = vadd.f32 %v2061, %v2157
    %v2159 = vpop.f32.mrb[0].mxu0
    %v2160 = vpop.f32.mrb[0].mxu0
    %v2161 = vadd.f32 %v2064, %v2160
    %v2162 = vpop.f32.mrb[0].mxu0
    %2163 = vmatprep.mubr.bf16.mxu0 %v870
    %2164 = vmatmul.mubr.bf16.gmra.mrb[0].mxu0 %v994
    %v2165 = vpop.f32.mrb[0].mxu0
    %v2166 = vadd.f32 %v2069, %v2165
    %v2167 = vpop.f32.mrb[0].mxu0
    %v2168 = vpop.f32.mrb[0].mxu0
    %v2169 = vadd.f32 %v2072, %v2168
    %v2170 = vpop.f32.mrb[0].mxu0
    %2171 = vmatprep.mubr.bf16.mxu0 %v1018
    %2172 = vmatmul.mubr.bf16.gmra.mrb[0].mxu0 %v998
    %v2173 = vpop.f32.mrb[0].mxu0
    %v2174 = vadd.f32 %v2077, %v2173
    %v2175 = vpop.f32.mrb[0].mxu0
    %v2176 = vpop.f32.mrb[0].mxu0
    %v2177 = vadd.f32 %v2080, %v2176
    %v2178 = vpop.f32.mrb[0].mxu0
    %2179 = vmatprep.mubr.bf16.mxu0 %v878
    %2180 = vmatmul.mubr.bf16.gmra.mrb[0].mxu0 %v1002
    %v2181 = vpop.f32.mrb[0].mxu0
    %v2182 = vadd.f32 %v2085, %v2181
    %v2183 = vpop.f32.mrb[0].mxu0
    %v2184 = vpop.f32.mrb[0].mxu0
    %v2185 = vadd.f32 %v2088, %v2184
    %v2186 = vpop.f32.mrb[0].mxu0
    %2187 = vmatprep.mubr.bf16.mxu0 %v882
    %2188 = vmatmul.mubr.bf16.gmra.mrb[0].mxu0 %v1006
    %v2189 = vpop.f32.mrb[0].mxu0
    %v2190 = vadd.f32 %v2093, %v2189
    %v2191 = vpop.f32.mrb[0].mxu0
    %v2192 = vpop.f32.mrb[0].mxu0
    %v2193 = vadd.f32 %v2096, %v2192
    %v2194 = vpop.f32.mrb[0].mxu0
    %2195 = vmatprep.mubr.bf16.mxu0 %v886
    %2196 = vmatmul.mubr.bf16.gmra.mrb[0].mxu0 %v1010
    %v2197 = vpop.f32.mrb[0].mxu0
    %v2198 = vadd.f32 %v2101, %v2197
    %v2199 = vpop.f32.mrb[0].mxu0
    %v2200 = vpop.f32.mrb[0].mxu0
    %v2201 = vadd.f32 %v2104, %v2200
    %v2202 = vpop.f32.mrb[0].mxu0
    %2203 = vmatprep.mubr.bf16.mxu0 %v1022
    %2204 = vmatmul.mubr.bf16.gmra.mrb[0].mxu0 %v1014
    %v2205 = vpop.f32.mrb[0].mxu0
    %v2206 = vadd.f32 %v2109, %v2205
    %v2207 = vpop.f32.mrb[0].mxu0
    %v2208 = vpop.f32.mrb[0].mxu0
    %v2209 = vadd.f32 %v2112, %v2208
    %v2210 = vpop.f32.mrb[0].mxu0
    %2211 = vdwg.mxu0
    %2212 = vmatprep.subr.bf16.mxu0 0
    %2213 = vmatpush1.bf16.msra.mxu0 %v1751
    %2214 = vmatprep.subr.bf16.mxu0 0
    %2215 = vmatpush1.bf16.msra.mxu0 %v1752
    %2216 = vmatprep.subr.bf16.mxu0 0
    %2217 = vmatpush1.bf16.msra.mxu0 %v1753
    %2218 = vmatprep.subr.bf16.mxu0 0
    %2219 = vmatpush1.bf16.msra.mxu0 %v1754
    %2220 = vmatprep.subr.bf16.mxu0 0
    %2221 = vmatpush1.bf16.msra.mxu0 %v1755
    %2222 = vmatprep.subr.bf16.mxu0 0
    %2223 = vmatpush1.bf16.msra.mxu0 %v1756
    %2224 = vmatprep.subr.bf16.mxu0 0
    %2225 = vmatpush1.bf16.msra.mxu0 %v1757
    %2226 = vmatprep.subr.bf16.mxu0 0
    %2227 = vmatpush1.bf16.msra.mxu0 %v1758
    %2228 = vmatprep.subr.bf16.mxu0 0
    %2229 = vmatpush1.bf16.msra.mxu0 %v1759
    %2230 = vmatprep.subr.bf16.mxu0 0
    %2231 = vmatpush1.bf16.msra.mxu0 %v1760
    %2232 = vmatprep.subr.bf16.mxu0 0
    %2233 = vmatpush1.bf16.msra.mxu0 %v1761
    %2234 = vmatprep.subr.bf16.mxu0 0
    %2235 = vmatpush1.bf16.msra.mxu0 %v1762
    %2236 = vmatprep.subr.bf16.mxu0 0
    %2237 = vmatpush1.bf16.msra.mxu0 %v1763
    %2238 = vmatprep.subr.bf16.mxu0 0
    %2239 = vmatpush1.bf16.msra.mxu0 %v1764
    %2240 = vmatprep.subr.bf16.mxu0 0
    %2241 = vmatpush1.bf16.msra.mxu0 %v1765
    %2242 = vmatprep.subr.bf16.mxu0 0
    %2243 = vmatpush1.bf16.msra.mxu0 %v1766
    %2244 = vmatprep.mubr.bf16.mxu0 %v926
    %2245 = vmatmul.mubr.bf16.gmra.mrb[0].mxu0 %v894
    %v2246 = vpop.f32.mrb[0].mxu0
    %v2247 = vadd.f32 %v2150, %v2246
    %v2248 = vpop.f32.mrb[0].mxu0
    %v2249 = vpop.f32.mrb[0].mxu0
    %v2250 = vadd.f32 %v2153, %v2249
    %v2251 = vpop.f32.mrb[0].mxu0
    %2252 = vmatprep.mubr.bf16.mxu0 %v930
    %2253 = vmatmul.mubr.bf16.gmra.mrb[0].mxu0 %v898
    %v2254 = vpop.f32.mrb[0].mxu0
    %v2255 = vadd.f32 %v2158, %v2254
    %v2256 = vpop.f32.mrb[0].mxu0
    %v2257 = vpop.f32.mrb[0].mxu0
    %v2258 = vadd.f32 %v2161, %v2257
    %v2259 = vpop.f32.mrb[0].mxu0
    %2260 = vmatprep.mubr.bf16.mxu0 %v934
    %2261 = vmatmul.mubr.bf16.gmra.mrb[0].mxu0 %v902
    %v2262 = vpop.f32.mrb[0].mxu0
    %v2263 = vadd.f32 %v2166, %v2262
    %v2264 = vpop.f32.mrb[0].mxu0
    %v2265 = vpop.f32.mrb[0].mxu0
    %v2266 = vadd.f32 %v2169, %v2265
    %v2267 = vpop.f32.mrb[0].mxu0
    %2268 = vmatprep.mubr.bf16.mxu0 %v1034
    %2269 = vmatmul.mubr.bf16.gmra.mrb[0].mxu0 %v1026
    %v2270 = vpop.f32.mrb[0].mxu0
    %v2271 = vadd.f32 %v2174, %v2270
    %v2272 = vpop.f32.mrb[0].mxu0
    %v2273 = vpop.f32.mrb[0].mxu0
    %v2274 = vadd.f32 %v2177, %v2273
    %v2275 = vpop.f32.mrb[0].mxu0
    %2276 = vmatprep.mubr.bf16.mxu0 %v942
    %2277 = vmatmul.mubr.bf16.gmra.mrb[0].mxu0 %v910
    %v2278 = vpop.f32.mrb[0].mxu0
    %v2279 = vadd.f32 %v2182, %v2278
    %v2280 = vpop.f32.mrb[0].mxu0
    %v2281 = vpop.f32.mrb[0].mxu0
    %v2282 = vadd.f32 %v2185, %v2281
    %v2283 = vpop.f32.mrb[0].mxu0
    %2284 = vmatprep.mubr.bf16.mxu0 %v946
    %2285 = vmatmul.mubr.bf16.gmra.mrb[0].mxu0 %v914
    %v2286 = vpop.f32.mrb[0].mxu0
    %v2287 = vadd.f32 %v2190, %v2286
    %v2288 = vpop.f32.mrb[0].mxu0
    %v2289 = vpop.f32.mrb[0].mxu0
    %v2290 = vadd.f32 %v2193, %v2289
    %v2291 = vpop.f32.mrb[0].mxu0
    %2292 = vmatprep.mubr.bf16.mxu0 %v950
    %2293 = vmatmul.mubr.bf16.gmra.mrb[0].mxu0 %v918
    %v2294 = vpop.f32.mrb[0].mxu0
    %v2295 = vadd.f32 %v2198, %v2294
    %v2296 = vpop.f32.mrb[0].mxu0
    %v2297 = vpop.f32.mrb[0].mxu0
    %v2298 = vadd.f32 %v2201, %v2297
    %v2299 = vpop.f32.mrb[0].mxu0
    %2300 = vmatprep.mubr.bf16.mxu0 %v1038
    %2301 = vmatmul.mubr.bf16.gmra.mrb[0].mxu0 %v1030
    %v2302 = vpop.f32.mrb[0].mxu0
    %v2303 = vadd.f32 %v2206, %v2302
    %v2304 = vpop.f32.mrb[0].mxu0
    %v2305 = vpop.f32.mrb[0].mxu0
    %v2306 = vadd.f32 %v2209, %v2305
    %v2307 = vpop.f32.mrb[0].mxu0
    %2308 = vdwg.mxu0
    %2309 = vmatprep.subr.bf16.mxu0 0
    %2310 = vmatpush1.bf16.msra.mxu0 %v1767
    %2311 = vmatprep.subr.bf16.mxu0 0
    %2312 = vmatpush1.bf16.msra.mxu0 %v1768
    %2313 = vmatprep.subr.bf16.mxu0 0
    %2314 = vmatpush1.bf16.msra.mxu0 %v1769
    %2315 = vmatprep.subr.bf16.mxu0 0
    %2316 = vmatpush1.bf16.msra.mxu0 %v1770
    %2317 = vmatprep.subr.bf16.mxu0 0
    %2318 = vmatpush1.bf16.msra.mxu0 %v1771
    %2319 = vmatprep.subr.bf16.mxu0 0
    %2320 = vmatpush1.bf16.msra.mxu0 %v1772
    %2321 = vmatprep.subr.bf16.mxu0 0
    %2322 = vmatpush1.bf16.msra.mxu0 %v1773
    %2323 = vmatprep.subr.bf16.mxu0 0
    %2324 = vmatpush1.bf16.msra.mxu0 %v1774
    %2325 = vmatprep.subr.bf16.mxu0 0
    %2326 = vmatpush1.bf16.msra.mxu0 %v1775
    %2327 = vmatprep.subr.bf16.mxu0 0
    %2328 = vmatpush1.bf16.msra.mxu0 %v1776
    %2329 = vmatprep.subr.bf16.mxu0 0
    %2330 = vmatpush1.bf16.msra.mxu0 %v1777
    %2331 = vmatprep.subr.bf16.mxu0 0
    %2332 = vmatpush1.bf16.msra.mxu0 %v1778
    %2333 = vmatprep.subr.bf16.mxu0 0
    %2334 = vmatpush1.bf16.msra.mxu0 %v1779
    %2335 = vmatprep.subr.bf16.mxu0 0
    %2336 = vmatpush1.bf16.msra.mxu0 %v1780
    %2337 = vmatprep.subr.bf16.mxu0 0
    %2338 = vmatpush1.bf16.msra.mxu0 %v1781
    %2339 = vmatprep.subr.bf16.mxu0 0
    %2340 = vmatpush1.bf16.msra.mxu0 %v1782
    %2341 = vmatprep.mubr.bf16.mxu0 %v990
    %2342 = vmatmul.mubr.bf16.gmra.mrb[0].mxu0 %v958
    %v2343 = vpop.f32.mrb[0].mxu0
    %v2344 = vadd.f32 %v2247, %v2343
    %v2345 = vpop.f32.mrb[0].mxu0
    %v2346 = vpop.f32.mrb[0].mxu0
    %v2347 = vadd.f32 %v2250, %v2346
    %v2348 = vpop.f32.mrb[0].mxu0
    %2349 = vmatprep.mubr.bf16.mxu0 %v994
    %2350 = vmatmul.mubr.bf16.gmra.mrb[0].mxu0 %v962
    %v2351 = vpop.f32.mrb[0].mxu0
    %v2352 = vadd.f32 %v2255, %v2351
    %v2353 = vpop.f32.mrb[0].mxu0
    %v2354 = vpop.f32.mrb[0].mxu0
    %v2355 = vadd.f32 %v2258, %v2354
    %v2356 = vpop.f32.mrb[0].mxu0
    %2357 = vmatprep.mubr.bf16.mxu0 %v998
    %2358 = vmatmul.mubr.bf16.gmra.mrb[0].mxu0 %v966
    %v2359 = vpop.f32.mrb[0].mxu0
    %v2360 = vadd.f32 %v2263, %v2359
    %v2361 = vpop.f32.mrb[0].mxu0
    %v2362 = vpop.f32.mrb[0].mxu0
    %v2363 = vadd.f32 %v2266, %v2362
    %v2364 = vpop.f32.mrb[0].mxu0
    %2365 = vmatprep.mubr.bf16.mxu0 %v1074
    %2366 = vmatmul.mubr.bf16.gmra.mrb[0].mxu0 %v1066
    %v2367 = vpop.f32.mrb[0].mxu0
    %v2368 = vadd.f32 %v2271, %v2367
    %v2369 = vpop.f32.mrb[0].mxu0
    %v2370 = vpop.f32.mrb[0].mxu0
    %v2371 = vadd.f32 %v2274, %v2370
    %v2372 = vpop.f32.mrb[0].mxu0
    %2373 = vmatprep.mubr.bf16.mxu0 %v1006
    %2374 = vmatmul.mubr.bf16.gmra.mrb[0].mxu0 %v974
    %v2375 = vpop.f32.mrb[0].mxu0
    %v2376 = vadd.f32 %v2279, %v2375
    %v2377 = vpop.f32.mrb[0].mxu0
    %v2378 = vpop.f32.mrb[0].mxu0
    %v2379 = vadd.f32 %v2282, %v2378
    %v2380 = vpop.f32.mrb[0].mxu0
    %2381 = vmatprep.mubr.bf16.mxu0 %v1010
    %2382 = vmatmul.mubr.bf16.gmra.mrb[0].mxu0 %v978
    %v2383 = vpop.f32.mrb[0].mxu0
    %v2384 = vadd.f32 %v2287, %v2383
    %v2385 = vpop.f32.mrb[0].mxu0
    %v2386 = vpop.f32.mrb[0].mxu0
    %v2387 = vadd.f32 %v2290, %v2386
    %v2388 = vpop.f32.mrb[0].mxu0
    %2389 = vmatprep.mubr.bf16.mxu0 %v1014
    %2390 = vmatmul.mubr.bf16.gmra.mrb[0].mxu0 %v982
    %v2391 = vpop.f32.mrb[0].mxu0
    %v2392 = vadd.f32 %v2295, %v2391
    %v2393 = vpop.f32.mrb[0].mxu0
    %v2394 = vpop.f32.mrb[0].mxu0
    %v2395 = vadd.f32 %v2298, %v2394
    %v2396 = vpop.f32.mrb[0].mxu0
    %2397 = vmatprep.mubr.bf16.mxu0 %v1078
    %2398 = vmatmul.mubr.bf16.gmra.mrb[0].mxu0 %v1070
    %v2399 = vpop.f32.mrb[0].mxu0
    %v2400 = vadd.f32 %v2303, %v2399
    %v2401 = vpop.f32.mrb[0].mxu0
    %v2402 = vpop.f32.mrb[0].mxu0
    %v2403 = vadd.f32 %v2306, %v2402
    %v2404 = vpop.f32.mrb[0].mxu0
    %2405 = vdwg.mxu0
    %2406 = vmatprep.subr.bf16.mxu0 0
    %2407 = vmatpush1.bf16.msra.mxu0 %v1783
    %2408 = vmatprep.subr.bf16.mxu0 0
    %2409 = vmatpush1.bf16.msra.mxu0 %v1784
    %2410 = vmatprep.subr.bf16.mxu0 0
    %2411 = vmatpush1.bf16.msra.mxu0 %v1785
    %2412 = vmatprep.subr.bf16.mxu0 0
    %2413 = vmatpush1.bf16.msra.mxu0 %v1786
    %2414 = vmatprep.subr.bf16.mxu0 0
    %2415 = vmatpush1.bf16.msra.mxu0 %v1787
    %2416 = vmatprep.subr.bf16.mxu0 0
    %2417 = vmatpush1.bf16.msra.mxu0 %v1788
    %2418 = vmatprep.subr.bf16.mxu0 0
    %2419 = vmatpush1.bf16.msra.mxu0 %v1789
    %2420 = vmatprep.subr.bf16.mxu0 0
    %2421 = vmatpush1.bf16.msra.mxu0 %v1790
    %2422 = vmatprep.subr.bf16.mxu0 0
    %2423 = vmatpush1.bf16.msra.mxu0 %v1791
    %2424 = vmatprep.subr.bf16.mxu0 0
    %2425 = vmatpush1.bf16.msra.mxu0 %v1792
    %2426 = vmatprep.subr.bf16.mxu0 0
    %2427 = vmatpush1.bf16.msra.mxu0 %v1793
    %2428 = vmatprep.subr.bf16.mxu0 0
    %2429 = vmatpush1.bf16.msra.mxu0 %v1794
    %2430 = vmatprep.subr.bf16.mxu0 0
    %2431 = vmatpush1.bf16.msra.mxu0 %v1795
    %2432 = vmatprep.subr.bf16.mxu0 0
    %2433 = vmatpush1.bf16.msra.mxu0 %v1796
    %2434 = vmatprep.subr.bf16.mxu0 0
    %2435 = vmatpush1.bf16.msra.mxu0 %v1797
    %2436 = vmatprep.subr.bf16.mxu0 0
    %2437 = vmatpush1.bf16.msra.mxu0 %v1798
    %2438 = vmatprep.mubr.bf16.mxu0 %v898
    %2439 = vmatmul.mubr.bf16.gmra.mrb[0].mxu0 %v866
    %v2440 = vpop.f32.mrb[0].mxu0
    %v2441 = vadd.f32 %v2344, %v2440
    %v2442 = vpop.f32.mrb[0].mxu0
    %v2443 = vpop.f32.mrb[0].mxu0
    %v2444 = vadd.f32 %v2347, %v2443
    %v2445 = vpop.f32.mrb[0].mxu0
    %2446 = vmatprep.mubr.bf16.mxu0 %v902
    %2447 = vmatmul.mubr.bf16.gmra.mrb[0].mxu0 %v870
    %v2448 = vpop.f32.mrb[0].mxu0
    %v2449 = vadd.f32 %v2352, %v2448
    %v2450 = vpop.f32.mrb[0].mxu0
    %v2451 = vpop.f32.mrb[0].mxu0
    %v2452 = vadd.f32 %v2355, %v2451
    %v2453 = vpop.f32.mrb[0].mxu0
    %2454 = vmatprep.mubr.bf16.mxu0 %v1026
    %2455 = vmatmul.mubr.bf16.gmra.mrb[0].mxu0 %v1018
    %v2456 = vpop.f32.mrb[0].mxu0
    %v2457 = vadd.f32 %v2360, %v2456
    %v2458 = vpop.f32.mrb[0].mxu0
    %v2459 = vpop.f32.mrb[0].mxu0
    %v2460 = vadd.f32 %v2363, %v2459
    %v2461 = vpop.f32.mrb[0].mxu0
    %2462 = vmatprep.mubr.bf16.mxu0 %v1090
    %2463 = vmatmul.mubr.bf16.gmra.mrb[0].mxu0 %v1082
    %v2464 = vpop.f32.mrb[0].mxu0
    %v2465 = vadd.f32 %v2368, %v2464
    %v2466 = vpop.f32.mrb[0].mxu0
    %v2467 = vpop.f32.mrb[0].mxu0
    %v2468 = vadd.f32 %v2371, %v2467
    %v2469 = vpop.f32.mrb[0].mxu0
    %2470 = vmatprep.mubr.bf16.mxu0 %v914
    %2471 = vmatmul.mubr.bf16.gmra.mrb[0].mxu0 %v882
    %v2472 = vpop.f32.mrb[0].mxu0
    %v2473 = vadd.f32 %v2376, %v2472
    %v2474 = vpop.f32.mrb[0].mxu0
    %v2475 = vpop.f32.mrb[0].mxu0
    %v2476 = vadd.f32 %v2379, %v2475
    %v2477 = vpop.f32.mrb[0].mxu0
    %2478 = vmatprep.mubr.bf16.mxu0 %v918
    %2479 = vmatmul.mubr.bf16.gmra.mrb[0].mxu0 %v886
    %v2480 = vpop.f32.mrb[0].mxu0
    %v2481 = vadd.f32 %v2384, %v2480
    %v2482 = vpop.f32.mrb[0].mxu0
    %v2483 = vpop.f32.mrb[0].mxu0
    %v2484 = vadd.f32 %v2387, %v2483
    %v2485 = vpop.f32.mrb[0].mxu0
    %2486 = vmatprep.mubr.bf16.mxu0 %v1030
    %2487 = vmatmul.mubr.bf16.gmra.mrb[0].mxu0 %v1022
    %v2488 = vpop.f32.mrb[0].mxu0
    %v2489 = vadd.f32 %v2392, %v2488
    %v2490 = vpop.f32.mrb[0].mxu0
    %v2491 = vpop.f32.mrb[0].mxu0
    %v2492 = vadd.f32 %v2395, %v2491
    %v2493 = vpop.f32.mrb[0].mxu0
    %2494 = vmatprep.mubr.bf16.mxu0 %v1094
    %2495 = vmatmul.mubr.bf16.gmra.mrb[0].mxu0 %v1086
    %v2496 = vpop.f32.mrb[0].mxu0
    %v2497 = vadd.f32 %v2400, %v2496
    %v2498 = vpop.f32.mrb[0].mxu0
    %v2499 = vpop.f32.mrb[0].mxu0
    %v2500 = vadd.f32 %v2403, %v2499
    %v2501 = vpop.f32.mrb[0].mxu0
    %2502 = vdwg.mxu0
    %2503 = vmatprep.subr.bf16.mxu0 0
    %2504 = vmatpush1.bf16.msra.mxu0 %v1799
    %2505 = vmatprep.subr.bf16.mxu0 0
    %2506 = vmatpush1.bf16.msra.mxu0 %v1800
    %2507 = vmatprep.subr.bf16.mxu0 0
    %2508 = vmatpush1.bf16.msra.mxu0 %v1801
    %2509 = vmatprep.subr.bf16.mxu0 0
    %2510 = vmatpush1.bf16.msra.mxu0 %v1802
    %2511 = vmatprep.subr.bf16.mxu0 0
    %2512 = vmatpush1.bf16.msra.mxu0 0
    %2513 = vmatprep.subr.bf16.mxu0 0
    %2514 = vmatpush1.bf16.msra.mxu0 0
    %2515 = vmatprep.subr.bf16.mxu0 0
    %2516 = vmatpush1.bf16.msra.mxu0 0
    %2517 = vmatprep.subr.bf16.mxu0 0
    %2518 = vmatpush1.bf16.msra.mxu0 0
    %2519 = vmatprep.subr.bf16.mxu0 0
    %2520 = vmatpush1.bf16.msra.mxu0 0
    %2521 = vmatprep.subr.bf16.mxu0 0
    %2522 = vmatpush1.bf16.msra.mxu0 0
    %2523 = vmatprep.subr.bf16.mxu0 0
    %2524 = vmatpush1.bf16.msra.mxu0 0
    %2525 = vmatprep.subr.bf16.mxu0 0
    %2526 = vmatpush1.bf16.msra.mxu0 0
    %2527 = vmatprep.subr.bf16.mxu0 0
    %2528 = vmatpush1.bf16.msra.mxu0 0
    %2529 = vmatprep.subr.bf16.mxu0 0
    %2530 = vmatpush1.bf16.msra.mxu0 0
    %2531 = vmatprep.subr.bf16.mxu0 0
    %2532 = vmatpush1.bf16.msra.mxu0 0
    %2533 = vmatprep.subr.bf16.mxu0 0
    %2534 = vmatpush1.bf16.msra.mxu0 0
    %2535 = vmatprep.mubr.bf16.mxu0 0
    %2536 = vmatmul.mubr.bf16.gmra.mrb[0].mxu0 %v1903
    %v2537 = vpop.f32.mrb[0].mxu0
    %v2538 = vadd.f32 %v2441, %v2537
    %v2539 = vpop.f32.mrb[0].mxu0
    %v2540 = vpop.f32.mrb[0].mxu0
    %v2541 = vadd.f32 %v2444, %v2540
    %v2542 = vpop.f32.mrb[0].mxu0
    %2543 = vmatprep.mubr.bf16.mxu0 0
    %2544 = vmatmul.mubr.bf16.gmra.mrb[0].mxu0 %v1905
    %v2545 = vpop.f32.mrb[0].mxu0
    %v2546 = vadd.f32 %v2449, %v2545
    %v2547 = vpop.f32.mrb[0].mxu0
    %v2548 = vpop.f32.mrb[0].mxu0
    %v2549 = vadd.f32 %v2452, %v2548
    %v2550 = vpop.f32.mrb[0].mxu0
    %2551 = vmatprep.mubr.bf16.mxu0 0
    %2552 = vmatmul.mubr.bf16.gmra.mrb[0].mxu0 %v1907
    %v2553 = vpop.f32.mrb[0].mxu0
    %v2554 = vadd.f32 %v2457, %v2553
    %v2555 = vpop.f32.mrb[0].mxu0
    %v2556 = vpop.f32.mrb[0].mxu0
    %v2557 = vadd.f32 %v2460, %v2556
    %v2558 = vpop.f32.mrb[0].mxu0
    %2559 = vmatprep.mubr.bf16.mxu0 0
    %2560 = vmatmul.mubr.bf16.gmra.mrb[0].mxu0 %v1910
    %v2561 = vpop.f32.mrb[0].mxu0
    %v2562 = vadd.f32 %v2465, %v2561
    %v2563 = vpop.f32.mrb[0].mxu0
    %v2564 = vpop.f32.mrb[0].mxu0
    %v2565 = vadd.f32 %v2468, %v2564
    %v2566 = vpop.f32.mrb[0].mxu0
    %2567 = vmatprep.mubr.bf16.mxu0 0
    %2568 = vmatmul.mubr.bf16.gmra.mrb[0].mxu0 %v1912
    %v2569 = vpop.f32.mrb[0].mxu0
    %v2570 = vadd.f32 %v2473, %v2569
    %v2571 = vpop.f32.mrb[0].mxu0
    %v2572 = vpop.f32.mrb[0].mxu0
    %v2573 = vadd.f32 %v2476, %v2572
    %v2574 = vpop.f32.mrb[0].mxu0
    %2575 = vmatprep.mubr.bf16.mxu0 0
    %2576 = vmatmul.mubr.bf16.gmra.mrb[0].mxu0 %v1914
    %v2577 = vpop.f32.mrb[0].mxu0
    %v2578 = vadd.f32 %v2481, %v2577
    %v2579 = vpop.f32.mrb[0].mxu0
    %v2580 = vpop.f32.mrb[0].mxu0
    %v2581 = vadd.f32 %v2484, %v2580
    %v2582 = vpop.f32.mrb[0].mxu0
    %2583 = vmatprep.mubr.bf16.mxu0 0
    %2584 = vmatmul.mubr.bf16.gmra.mrb[0].mxu0 %v1916
    %v2585 = vpop.f32.mrb[0].mxu0
    %v2586 = vadd.f32 %v2489, %v2585
    %v2587 = vpop.f32.mrb[0].mxu0
    %v2588 = vpop.f32.mrb[0].mxu0
    %v2589 = vadd.f32 %v2492, %v2588
    %v2590 = vpop.f32.mrb[0].mxu0
    %2591 = vmatprep.mubr.bf16.mxu0 0
    %2592 = vmatmul.mubr.bf16.gmra.mrb[0].mxu0 %v1919
    %v2593 = vpop.f32.mrb[0].mxu0
    %v2594 = vadd.f32 %v2497, %v2593
    %v2595 = vpop.f32.mrb[0].mxu0
    %v2596 = vpop.f32.mrb[0].mxu0
    %v2597 = vadd.f32 %v2500, %v2596
    %v2598 = vpop.f32.mrb[0].mxu0
    %2599 = vdwg.mxu0
    %v2600 = vmax.f32 %v2538, 0.0
    %v2601 = vmax.f32 %v2541, 0.0
    %v2602 = vmax.f32 %v2546, 0.0
    %v2603 = vmax.f32 %v2549, 0.0
    %v2604 = vmax.f32 %v2554, 0.0
    %v2605 = vmax.f32 %v2557, 0.0
    %v2606 = vmax.f32 %v2562, 0.0
    %v2607 = vmax.f32 %v2565, 0.0
    %v2608 = vmax.f32 %v2570, 0.0
    %v2609 = vmax.f32 %v2573, 0.0
    %v2610 = vmax.f32 %v2578, 0.0
    %v2611 = vmax.f32 %v2581, 0.0
    %v2612 = vmax.f32 %v2586, 0.0
    %v2613 = vmax.f32 %v2589, 0.0
    %v2614 = vmax.f32 %v2594, 0.0
    %v2615 = vmax.f32 %v2597, 0.0
    %v2618 = vrot.slane %v2608, 7
    %vm2619 = vcmask 1041409
    %v2620 = vsel %vm2619, %v2618, %v2600
    %v2622 = vrot.slane %v2600, 1
    %v2623 = vsel %vm2619, %v2608, %v2622
    %2624 = vrot.lane.b32.xlu0 %v2623, 64
    %v2625 = vpop.permute.xlu0 %2624
    %v2627 = vrot.slane %v2600, 2
    %v2628 = vrot.slane %v2608, 1
    %v2629 = vsel %vm2619, %v2628, %v2627
    %v2631 = vrot.slane %v2600, 3
    %v2632 = vrot.slane %v2608, 2
    %v2633 = vsel %vm2619, %v2632, %v2631
    %2634 = vrot.lane.b32.xlu0 %v2633, 64
    %v2635 = vpop.permute.xlu0 %2634
    %v2637 = vrot.slane %v2600, 4
    %v2638 = vrot.slane %v2608, 3
    %v2639 = vsel %vm2619, %v2638, %v2637
    %v2641 = vrot.slane %v2600, 5
    %v2642 = vrot.slane %v2608, 4
    %v2643 = vsel %vm2619, %v2642, %v2641
    %2644 = vrot.lane.b32.xlu0 %v2643, 64
    %v2645 = vpop.permute.xlu0 %2644
    %v2647 = vrot.slane %v2600, 6
    %v2648 = vrot.slane %v2608, 5
    %v2649 = vsel %vm2619, %v2648, %v2647
    %v2651 = vrot.slane %v2600, 7
    %v2652 = vrot.slane %v2608, 6
    %v2653 = vsel %vm2619, %v2652, %v2651
    %2654 = vrot.lane.b32.xlu0 %v2653, 64
    %v2655 = vpop.permute.xlu0 %2654
    %v2659 = vrot.slane %v2609, 7
    %v2660 = vsel %vm2619, %v2659, %v2601
    %v2662 = vrot.slane %v2601, 1
    %v2663 = vsel %vm2619, %v2609, %v2662
    %2664 = vrot.lane.b32.xlu0 %v2663, 64
    %v2665 = vpop.permute.xlu0 %2664
    %v2667 = vrot.slane %v2601, 2
    %v2668 = vrot.slane %v2609, 1
    %v2669 = vsel %vm2619, %v2668, %v2667
    %v2671 = vrot.slane %v2601, 3
    %v2672 = vrot.slane %v2609, 2
    %v2673 = vsel %vm2619, %v2672, %v2671
    %2674 = vrot.lane.b32.xlu0 %v2673, 64
    %v2675 = vpop.permute.xlu0 %2674
    %v2677 = vrot.slane %v2601, 4
    %v2678 = vrot.slane %v2609, 3
    %v2679 = vsel %vm2619, %v2678, %v2677
    %v2681 = vrot.slane %v2601, 5
    %v2682 = vrot.slane %v2609, 4
    %v2683 = vsel %vm2619, %v2682, %v2681
    %2684 = vrot.lane.b32.xlu0 %v2683, 64
    %v2685 = vpop.permute.xlu0 %2684
    %v2687 = vrot.slane %v2601, 6
    %v2688 = vrot.slane %v2609, 5
    %v2689 = vsel %vm2619, %v2688, %v2687
    %v2691 = vrot.slane %v2601, 7
    %v2692 = vrot.slane %v2609, 6
    %v2693 = vsel %vm2619, %v2692, %v2691
    %2694 = vrot.lane.b32.xlu0 %v2693, 64
    %v2695 = vpop.permute.xlu0 %2694
    %v2697 = vsel %vm451, %v2620, %v2625
    %v2698 = vsel %vm451, %v2629, %v2635
    %v2699 = vsel %vm451, %v2639, %v2645
    %v2700 = vsel %vm451, %v2649, %v2655
    %v2701 = vsel %vm451, %v2660, %v2665
    %v2702 = vsel %vm451, %v2669, %v2675
    %v2703 = vsel %vm451, %v2679, %v2685
    %v2704 = vsel %vm451, %v2689, %v2695
    %v2707 = vrot.slane %v2610, 7
    %v2708 = vsel %vm2619, %v2707, %v2602
    %v2710 = vrot.slane %v2602, 1
    %v2711 = vsel %vm2619, %v2610, %v2710
    %2712 = vrot.lane.b32.xlu0 %v2711, 64
    %v2713 = vpop.permute.xlu0 %2712
    %v2715 = vrot.slane %v2602, 2
    %v2716 = vrot.slane %v2610, 1
    %v2717 = vsel %vm2619, %v2716, %v2715
    %v2719 = vrot.slane %v2602, 3
    %v2720 = vrot.slane %v2610, 2
    %v2721 = vsel %vm2619, %v2720, %v2719
    %2722 = vrot.lane.b32.xlu0 %v2721, 64
    %v2723 = vpop.permute.xlu0 %2722
    %v2725 = vrot.slane %v2602, 4
    %v2726 = vrot.slane %v2610, 3
    %v2727 = vsel %vm2619, %v2726, %v2725
    %v2729 = vrot.slane %v2602, 5
    %v2730 = vrot.slane %v2610, 4
    %v2731 = vsel %vm2619, %v2730, %v2729
    %2732 = vrot.lane.b32.xlu0 %v2731, 64
    %v2733 = vpop.permute.xlu0 %2732
    %v2735 = vrot.slane %v2602, 6
    %v2736 = vrot.slane %v2610, 5
    %v2737 = vsel %vm2619, %v2736, %v2735
    %v2739 = vrot.slane %v2602, 7
    %v2740 = vrot.slane %v2610, 6
    %v2741 = vsel %vm2619, %v2740, %v2739
    %2742 = vrot.lane.b32.xlu0 %v2741, 64
    %v2743 = vpop.permute.xlu0 %2742
    %v2747 = vrot.slane %v2611, 7
    %v2748 = vsel %vm2619, %v2747, %v2603
    %v2750 = vrot.slane %v2603, 1
    %v2751 = vsel %vm2619, %v2611, %v2750
    %2752 = vrot.lane.b32.xlu0 %v2751, 64
    %v2753 = vpop.permute.xlu0 %2752
    %v2755 = vrot.slane %v2603, 2
    %v2756 = vrot.slane %v2611, 1
    %v2757 = vsel %vm2619, %v2756, %v2755
    %v2759 = vrot.slane %v2603, 3
    %v2760 = vrot.slane %v2611, 2
    %v2761 = vsel %vm2619, %v2760, %v2759
    %2762 = vrot.lane.b32.xlu0 %v2761, 64
    %v2763 = vpop.permute.xlu0 %2762
    %v2765 = vrot.slane %v2603, 4
    %v2766 = vrot.slane %v2611, 3
    %v2767 = vsel %vm2619, %v2766, %v2765
    %v2769 = vrot.slane %v2603, 5
    %v2770 = vrot.slane %v2611, 4
    %v2771 = vsel %vm2619, %v2770, %v2769
    %2772 = vrot.lane.b32.xlu0 %v2771, 64
    %v2773 = vpop.permute.xlu0 %2772
    %v2775 = vrot.slane %v2603, 6
    %v2776 = vrot.slane %v2611, 5
    %v2777 = vsel %vm2619, %v2776, %v2775
    %v2779 = vrot.slane %v2603, 7
    %v2780 = vrot.slane %v2611, 6
    %v2781 = vsel %vm2619, %v2780, %v2779
    %2782 = vrot.lane.b32.xlu0 %v2781, 64
    %v2783 = vpop.permute.xlu0 %2782
    %v2785 = vsel %vm451, %v2708, %v2713
    %v2786 = vsel %vm451, %v2717, %v2723
    %v2787 = vsel %vm451, %v2727, %v2733
    %v2788 = vsel %vm451, %v2737, %v2743
    %v2789 = vsel %vm451, %v2748, %v2753
    %v2790 = vsel %vm451, %v2757, %v2763
    %v2791 = vsel %vm451, %v2767, %v2773
    %v2792 = vsel %vm451, %v2777, %v2783
    %v2795 = vrot.slane %v2612, 7
    %v2796 = vsel %vm2619, %v2795, %v2604
    %v2798 = vrot.slane %v2604, 1
    %v2799 = vsel %vm2619, %v2612, %v2798
    %2800 = vrot.lane.b32.xlu0 %v2799, 64
    %v2801 = vpop.permute.xlu0 %2800
    %v2803 = vrot.slane %v2604, 2
    %v2804 = vrot.slane %v2612, 1
    %v2805 = vsel %vm2619, %v2804, %v2803
    %v2807 = vrot.slane %v2604, 3
    %v2808 = vrot.slane %v2612, 2
    %v2809 = vsel %vm2619, %v2808, %v2807
    %2810 = vrot.lane.b32.xlu0 %v2809, 64
    %v2811 = vpop.permute.xlu0 %2810
    %v2813 = vrot.slane %v2604, 4
    %v2814 = vrot.slane %v2612, 3
    %v2815 = vsel %vm2619, %v2814, %v2813
    %v2817 = vrot.slane %v2604, 5
    %v2818 = vrot.slane %v2612, 4
    %v2819 = vsel %vm2619, %v2818, %v2817
    %2820 = vrot.lane.b32.xlu0 %v2819, 64
    %v2821 = vpop.permute.xlu0 %2820
    %v2823 = vrot.slane %v2604, 6
    %v2824 = vrot.slane %v2612, 5
    %v2825 = vsel %vm2619, %v2824, %v2823
    %v2827 = vrot.slane %v2604, 7
    %v2828 = vrot.slane %v2612, 6
    %v2829 = vsel %vm2619, %v2828, %v2827
    %2830 = vrot.lane.b32.xlu0 %v2829, 64
    %v2831 = vpop.permute.xlu0 %2830
    %v2835 = vrot.slane %v2613, 7
    %v2836 = vsel %vm2619, %v2835, %v2605
    %v2838 = vrot.slane %v2605, 1
    %v2839 = vsel %vm2619, %v2613, %v2838
    %2840 = vrot.lane.b32.xlu0 %v2839, 64
    %v2841 = vpop.permute.xlu0 %2840
    %v2843 = vrot.slane %v2605, 2
    %v2844 = vrot.slane %v2613, 1
    %v2845 = vsel %vm2619, %v2844, %v2843
    %v2847 = vrot.slane %v2605, 3
    %v2848 = vrot.slane %v2613, 2
    %v2849 = vsel %vm2619, %v2848, %v2847
    %2850 = vrot.lane.b32.xlu0 %v2849, 64
    %v2851 = vpop.permute.xlu0 %2850
    %v2853 = vrot.slane %v2605, 4
    %v2854 = vrot.slane %v2613, 3
    %v2855 = vsel %vm2619, %v2854, %v2853
    %v2857 = vrot.slane %v2605, 5
    %v2858 = vrot.slane %v2613, 4
    %v2859 = vsel %vm2619, %v2858, %v2857
    %2860 = vrot.lane.b32.xlu0 %v2859, 64
    %v2861 = vpop.permute.xlu0 %2860
    %v2863 = vrot.slane %v2605, 6
    %v2864 = vrot.slane %v2613, 5
    %v2865 = vsel %vm2619, %v2864, %v2863
    %v2867 = vrot.slane %v2605, 7
    %v2868 = vrot.slane %v2613, 6
    %v2869 = vsel %vm2619, %v2868, %v2867
    %2870 = vrot.lane.b32.xlu0 %v2869, 64
    %v2871 = vpop.permute.xlu0 %2870
    %v2873 = vsel %vm451, %v2796, %v2801
    %v2874 = vsel %vm451, %v2805, %v2811
    %v2875 = vsel %vm451, %v2815, %v2821
    %v2876 = vsel %vm451, %v2825, %v2831
    %v2877 = vsel %vm451, %v2836, %v2841
    %v2878 = vsel %vm451, %v2845, %v2851
    %v2879 = vsel %vm451, %v2855, %v2861
    %v2880 = vsel %vm451, %v2865, %v2871
    %v2883 = vrot.slane %v2614, 7
    %v2884 = vsel %vm2619, %v2883, %v2606
    %v2886 = vrot.slane %v2606, 1
    %v2887 = vsel %vm2619, %v2614, %v2886
    %2888 = vrot.lane.b32.xlu0 %v2887, 64
    %v2889 = vpop.permute.xlu0 %2888
    %v2891 = vrot.slane %v2606, 2
    %v2892 = vrot.slane %v2614, 1
    %v2893 = vsel %vm2619, %v2892, %v2891
    %v2895 = vrot.slane %v2606, 3
    %v2896 = vrot.slane %v2614, 2
    %v2897 = vsel %vm2619, %v2896, %v2895
    %2898 = vrot.lane.b32.xlu0 %v2897, 64
    %v2899 = vpop.permute.xlu0 %2898
    %v2901 = vrot.slane %v2606, 4
    %v2902 = vrot.slane %v2614, 3
    %v2903 = vsel %vm2619, %v2902, %v2901
    %v2905 = vrot.slane %v2606, 5
    %v2906 = vrot.slane %v2614, 4
    %v2907 = vsel %vm2619, %v2906, %v2905
    %2908 = vrot.lane.b32.xlu0 %v2907, 64
    %v2909 = vpop.permute.xlu0 %2908
    %v2911 = vrot.slane %v2606, 6
    %v2912 = vrot.slane %v2614, 5
    %v2913 = vsel %vm2619, %v2912, %v2911
    %v2915 = vrot.slane %v2606, 7
    %v2916 = vrot.slane %v2614, 6
    %v2917 = vsel %vm2619, %v2916, %v2915
    %2918 = vrot.lane.b32.xlu0 %v2917, 64
    %v2919 = vpop.permute.xlu0 %2918
    %v2923 = vrot.slane %v2615, 7
    %v2924 = vsel %vm2619, %v2923, %v2607
    %v2926 = vrot.slane %v2607, 1
    %v2927 = vsel %vm2619, %v2615, %v2926
    %2928 = vrot.lane.b32.xlu0 %v2927, 64
    %v2929 = vpop.permute.xlu0 %2928
    %v2931 = vrot.slane %v2607, 2
    %v2932 = vrot.slane %v2615, 1
    %v2933 = vsel %vm2619, %v2932, %v2931
    %v2935 = vrot.slane %v2607, 3
    %v2936 = vrot.slane %v2615, 2
    %v2937 = vsel %vm2619, %v2936, %v2935
    %2938 = vrot.lane.b32.xlu0 %v2937, 64
    %v2939 = vpop.permute.xlu0 %2938
    %v2941 = vrot.slane %v2607, 4
    %v2942 = vrot.slane %v2615, 3
    %v2943 = vsel %vm2619, %v2942, %v2941
    %v2945 = vrot.slane %v2607, 5
    %v2946 = vrot.slane %v2615, 4
    %v2947 = vsel %vm2619, %v2946, %v2945
    %2948 = vrot.lane.b32.xlu0 %v2947, 64
    %v2949 = vpop.permute.xlu0 %2948
    %v2951 = vrot.slane %v2607, 6
    %v2952 = vrot.slane %v2615, 5
    %v2953 = vsel %vm2619, %v2952, %v2951
    %v2955 = vrot.slane %v2607, 7
    %v2956 = vrot.slane %v2615, 6
    %v2957 = vsel %vm2619, %v2956, %v2955
    %2958 = vrot.lane.b32.xlu0 %v2957, 64
    %v2959 = vpop.permute.xlu0 %2958
    %v2961 = vsel %vm451, %v2884, %v2889
    %v2962 = vsel %vm451, %v2893, %v2899
    %v2963 = vsel %vm451, %v2903, %v2909
    %v2964 = vsel %vm451, %v2913, %v2919
    %v2965 = vsel %vm451, %v2924, %v2929
    %v2966 = vsel %vm451, %v2933, %v2939
    %v2967 = vsel %vm451, %v2943, %v2949
    %v2968 = vsel %vm451, %v2953, %v2959
    %v2969 = vpack.c.bf16 %v2697, %v2697
    %v2970 = vpack.c.bf16 %v2698, %v2698
    %v2971 = vpack.c.bf16 %v2699, %v2699
    %v2972 = vpack.c.bf16 %v2700, %v2700
    %v2973 = vpack.c.bf16 %v2701, %v2701
    %v2974 = vpack.c.bf16 %v2702, %v2702
    %v2975 = vpack.c.bf16 %v2703, %v2703
    %v2976 = vpack.c.bf16 %v2704, %v2704
    %v2977 = vpack.c.bf16 %v2785, %v2785
    %v2978 = vpack.c.bf16 %v2786, %v2786
    %v2979 = vpack.c.bf16 %v2787, %v2787
    %v2980 = vpack.c.bf16 %v2788, %v2788
    %v2981 = vpack.c.bf16 %v2789, %v2789
    %v2982 = vpack.c.bf16 %v2790, %v2790
    %v2983 = vpack.c.bf16 %v2791, %v2791
    %v2984 = vpack.c.bf16 %v2792, %v2792
    %v2985 = vpack.c.bf16 %v2873, %v2873
    %v2986 = vpack.c.bf16 %v2874, %v2874
    %v2987 = vpack.c.bf16 %v2875, %v2875
    %v2988 = vpack.c.bf16 %v2876, %v2876
    %v2989 = vpack.c.bf16 %v2877, %v2877
    %v2990 = vpack.c.bf16 %v2878, %v2878
    %v2991 = vpack.c.bf16 %v2879, %v2879
    %v2992 = vpack.c.bf16 %v2880, %v2880
    %v2993 = vpack.c.bf16 %v2961, %v2961
    %v2994 = vpack.c.bf16 %v2962, %v2962
    %v2995 = vpack.c.bf16 %v2963, %v2963
    %v2996 = vpack.c.bf16 %v2964, %v2964
    %v2997 = vpack.c.bf16 %v2965, %v2965
    %v2998 = vpack.c.bf16 %v2966, %v2966
    %v2999 = vpack.c.bf16 %v2967, %v2967
    %v3000 = vpack.c.bf16 %v2968, %v2968
    %v3001 = vld [vmem:[%s5] sm:$0xf]
    %v3002 = vld [vmem:[%s5 + $0x4] sm:$0xf]
    %v3003 = vld [vmem:[%s5 + $0x8] sm:$0xf]
    %v3004 = vld [vmem:[%s5 + $0xc] sm:$0xf]
    %v3005 = vld [vmem:[%s5 + $0x10] sm:$0xf]
    %v3006 = vld [vmem:[%s5 + $0x14] sm:$0xf]
    %v3007 = vld [vmem:[%s5 + $0x18] sm:$0xf]
    %v3008 = vld [vmem:[%s5 + $0x1c] sm:$0xf]
    %v3009 = vld [vmem:[%s5 + $0x20] sm:$0xf]
    %v3010 = vld [vmem:[%s5 + $0x24] sm:$0xf]
    %v3011 = vld [vmem:[%s5 + $0x28] sm:$0xf]
    %v3012 = vld [vmem:[%s5 + $0x2c] sm:$0xf]
    %v3013 = vld [vmem:[%s5 + $0x30] sm:$0xf]
    %v3014 = vld [vmem:[%s5 + $0x34] sm:$0xf]
    %v3015 = vld [vmem:[%s5 + $0x38] sm:$0xf]
    %v3016 = vld [vmem:[%s5 + $0x3c] sm:$0xf]
    %v3017 = vld [vmem:[%s5 + $0x40] sm:$0xf]
    %v3018 = vld [vmem:[%s5 + $0x44] sm:$0xf]
    %v3019 = vld [vmem:[%s5 + $0x48] sm:$0xf]
    %v3020 = vld [vmem:[%s5 + $0x4c] sm:$0xf]
    %v3021 = vld [vmem:[%s5 + $0x50] sm:$0xf]
    %v3022 = vld [vmem:[%s5 + $0x54] sm:$0xf]
    %v3023 = vld [vmem:[%s5 + $0x58] sm:$0xf]
    %v3024 = vld [vmem:[%s5 + $0x5c] sm:$0xf]
    %v3025 = vld [vmem:[%s5 + $0x60] sm:$0xf]
    %v3026 = vld [vmem:[%s5 + $0x64] sm:$0xf]
    %v3027 = vld [vmem:[%s5 + $0x68] sm:$0xf]
    %v3028 = vld [vmem:[%s5 + $0x6c] sm:$0xf]
    %v3029 = vld [vmem:[%s5 + $0x70] sm:$0xf]
    %v3030 = vld [vmem:[%s5 + $0x74] sm:$0xf]
    %v3031 = vld [vmem:[%s5 + $0x78] sm:$0xf]
    %v3032 = vld [vmem:[%s5 + $0x7c] sm:$0xf]
    %v3033 = vld [vmem:[%s5 + $0x80] sm:$0xf]
    %v3034 = vld [vmem:[%s5 + $0x84] sm:$0xf]
    %v3035 = vld [vmem:[%s5 + $0x88] sm:$0xf]
    %v3036 = vld [vmem:[%s5 + $0x8c] sm:$0xf]
    %v3037 = vld [vmem:[%s5 + $0x90] sm:$0xf]
    %v3038 = vld [vmem:[%s5 + $0x94] sm:$0xf]
    %v3039 = vld [vmem:[%s5 + $0x98] sm:$0xf]
    %v3040 = vld [vmem:[%s5 + $0x9c] sm:$0xf]
    %v3041 = vld [vmem:[%s5 + $0xa0] sm:$0xf]
    %v3042 = vld [vmem:[%s5 + $0xa4] sm:$0xf]
    %v3043 = vld [vmem:[%s5 + $0xa8] sm:$0xf]
    %v3044 = vld [vmem:[%s5 + $0xac] sm:$0xf]
    %v3045 = vld [vmem:[%s5 + $0xb0] sm:$0xf]
    %v3046 = vld [vmem:[%s5 + $0xb4] sm:$0xf]
    %v3047 = vld [vmem:[%s5 + $0xb8] sm:$0xf]
    %v3048 = vld [vmem:[%s5 + $0xbc] sm:$0xf]
    %v3049 = vld [vmem:[%s5 + $0xc0] sm:$0xf]
    %v3050 = vld [vmem:[%s5 + $0xc4] sm:$0xf]
    %v3051 = vld [vmem:[%s5 + $0xc8] sm:$0xf]
    %v3052 = vld [vmem:[%s5 + $0xcc] sm:$0xf]
    %v3053 = vld [vmem:[%s5 + $0xd0] sm:$0xf]
    %v3054 = vld [vmem:[%s5 + $0xd4] sm:$0xf]
    %v3055 = vld [vmem:[%s5 + $0xd8] sm:$0xf]
    %v3056 = vld [vmem:[%s5 + $0xdc] sm:$0xf]
    %v3057 = vld [vmem:[%s5 + $0xe0] sm:$0xf]
    %v3058 = vld [vmem:[%s5 + $0xe4] sm:$0xf]
    %v3059 = vld [vmem:[%s5 + $0xe8] sm:$0xf]
    %v3060 = vld [vmem:[%s5 + $0xec] sm:$0xf]
    %v3061 = vld [vmem:[%s5 + $0xf0] sm:$0xf]
    %v3062 = vld [vmem:[%s5 + $0xf4] sm:$0xf]
    %v3063 = vld [vmem:[%s5 + $0xf8] sm:$0xf]
    %v3064 = vld [vmem:[%s5 + $0xfc] sm:$0xf]
    %v3065 = vld [vmem:[%s5 + $0x100] sm:$0xf]
    %v3066 = vld [vmem:[%s5 + $0x104] sm:$0xf]
    %v3067 = vld [vmem:[%s5 + $0x108] sm:$0xf]
    %v3068 = vld [vmem:[%s5 + $0x10c] sm:$0xf]
    %v3069 = vld [vmem:[%s5 + $0x110] sm:$0xf]
    %v3070 = vld [vmem:[%s5 + $0x114] sm:$0xf]
    %v3071 = vld [vmem:[%s5 + $0x118] sm:$0xf]
    %v3072 = vld [vmem:[%s5 + $0x11c] sm:$0xf]
    %v3073 = vld [vmem:[%s5 + $0x120] sm:$0xf]
    %v3074 = vld [vmem:[%s5 + $0x124] sm:$0xf]
    %v3075 = vld [vmem:[%s5 + $0x128] sm:$0xf]
    %v3076 = vld [vmem:[%s5 + $0x12c] sm:$0xf]
    %v3077 = vld [vmem:[%s5 + $0x130] sm:$0xf]
    %v3078 = vld [vmem:[%s5 + $0x134] sm:$0xf]
    %v3079 = vld [vmem:[%s5 + $0x138] sm:$0xf]
    %v3080 = vld [vmem:[%s5 + $0x13c] sm:$0xf]
    %v3081 = vld [vmem:[%s5 + $0x140] sm:$0xf]
    %v3082 = vld [vmem:[%s5 + $0x144] sm:$0xf]
    %v3083 = vld [vmem:[%s5 + $0x148] sm:$0xf]
    %v3084 = vld [vmem:[%s5 + $0x14c] sm:$0xf]
    %v3085 = vld [vmem:[%s5 + $0x150] sm:$0xf]
    %v3086 = vld [vmem:[%s5 + $0x154] sm:$0xf]
    %v3087 = vld [vmem:[%s5 + $0x158] sm:$0xf]
    %v3088 = vld [vmem:[%s5 + $0x15c] sm:$0xf]
    %v3089 = vld [vmem:[%s5 + $0x160] sm:$0xf]
    %v3090 = vld [vmem:[%s5 + $0x164] sm:$0xf]
    %v3091 = vld [vmem:[%s5 + $0x168] sm:$0xf]
    %v3092 = vld [vmem:[%s5 + $0x16c] sm:$0xf]
    %v3093 = vld [vmem:[%s5 + $0x170] sm:$0xf]
    %v3094 = vld [vmem:[%s5 + $0x174] sm:$0xf]
    %v3095 = vld [vmem:[%s5 + $0x178] sm:$0xf]
    %v3096 = vld [vmem:[%s5 + $0x17c] sm:$0xf]
    %v3097 = vld [vmem:[%s5 + $0x180] sm:$0xf]
    %v3098 = vld [vmem:[%s5 + $0x184] sm:$0xf]
    %v3099 = vld [vmem:[%s5 + $0x188] sm:$0xf]
    %v3100 = vld [vmem:[%s5 + $0x18c] sm:$0xf]
    %v3101 = vld [vmem:[%s5 + $0x190] sm:$0xf]
    %v3102 = vld [vmem:[%s5 + $0x194] sm:$0xf]
    %v3103 = vld [vmem:[%s5 + $0x198] sm:$0xf]
    %v3104 = vld [vmem:[%s5 + $0x19c] sm:$0xf]
    %v3105 = vld [vmem:[%s5 + $0x1a0] sm:$0xf]
    %v3106 = vld [vmem:[%s5 + $0x1a4] sm:$0xf]
    %v3107 = vld [vmem:[%s5 + $0x1a8] sm:$0xf]
    %v3108 = vld [vmem:[%s5 + $0x1ac] sm:$0xf]
    %v3109 = vld [vmem:[%s5 + $0x1b0] sm:$0xf]
    %v3110 = vld [vmem:[%s5 + $0x1b4] sm:$0xf]
    %v3111 = vld [vmem:[%s5 + $0x1b8] sm:$0xf]
    %v3112 = vld [vmem:[%s5 + $0x1bc] sm:$0xf]
    %v3113 = vld [vmem:[%s5 + $0x1c0] sm:$0xf]
    %v3114 = vld [vmem:[%s5 + $0x1c4] sm:$0xf]
    %v3115 = vld [vmem:[%s5 + $0x1c8] sm:$0xf]
    %v3116 = vld [vmem:[%s5 + $0x1cc] sm:$0xf]
    %v3117 = vld [vmem:[%s5 + $0x1d0] sm:$0xf]
    %v3118 = vld [vmem:[%s5 + $0x1d4] sm:$0xf]
    %v3119 = vld [vmem:[%s5 + $0x1d8] sm:$0xf]
    %v3120 = vld [vmem:[%s5 + $0x1dc] sm:$0xf]
    %v3121 = vld [vmem:[%s5 + $0x1e0] sm:$0xf]
    %v3122 = vld [vmem:[%s5 + $0x1e4] sm:$0xf]
    %v3123 = vld [vmem:[%s5 + $0x1e8] sm:$0xf]
    %v3124 = vld [vmem:[%s5 + $0x1ec] sm:$0xf]
    %v3125 = vld [vmem:[%s5 + $0x1f0] sm:$0xf]
    %v3126 = vld [vmem:[%s5 + $0x1f4] sm:$0xf]
    %v3127 = vld [vmem:[%s5 + $0x1f8] sm:$0xf]
    %v3128 = vld [vmem:[%s5 + $0x1fc] sm:$0xf]
    %v3129 = vld [vmem:[%s5 + $0x200] sm:$0xf]
    %v3130 = vld [vmem:[%s5 + $0x204] sm:$0xf]
    %v3131 = vld [vmem:[%s5 + $0x208] sm:$0xf]
    %v3132 = vld [vmem:[%s5 + $0x20c] sm:$0xf]
    %v3133 = vld [vmem:[%s5 + $0x210] sm:$0xf]
    %v3134 = vld [vmem:[%s5 + $0x214] sm:$0xf]
    %v3135 = vld [vmem:[%s5 + $0x218] sm:$0xf]
    %v3136 = vld [vmem:[%s5 + $0x21c] sm:$0xf]
    %v3137 = vld [vmem:[%s5 + $0x220] sm:$0xf]
    %v3138 = vld [vmem:[%s5 + $0x224] sm:$0xf]
    %v3139 = vld [vmem:[%s5 + $0x228] sm:$0xf]
    %v3140 = vld [vmem:[%s5 + $0x22c] sm:$0xf]
    %v3141 = vld [vmem:[%s5 + $0x230] sm:$0xf]
    %v3142 = vld [vmem:[%s5 + $0x234] sm:$0xf]
    %v3143 = vld [vmem:[%s5 + $0x238] sm:$0xf]
    %v3144 = vld [vmem:[%s5 + $0x23c] sm:$0xf]
    %v3145 = vld [vmem:[%s5 + $0x240] sm:$0xf]
    %v3146 = vld [vmem:[%s5 + $0x244] sm:$0xf]
    %v3147 = vld [vmem:[%s5 + $0x248] sm:$0xf]
    %v3148 = vld [vmem:[%s5 + $0x24c] sm:$0xf]
    %v3149 = vld [vmem:[%s5 + $0x250] sm:$0xf]
    %v3150 = vld [vmem:[%s5 + $0x254] sm:$0xf]
    %v3151 = vld [vmem:[%s5 + $0x258] sm:$0xf]
    %v3152 = vld [vmem:[%s5 + $0x25c] sm:$0xf]
    %v3153 = vld [vmem:[%s5 + $0x260] sm:$0xf]
    %v3154 = vld [vmem:[%s5 + $0x264] sm:$0xf]
    %v3155 = vld [vmem:[%s5 + $0x268] sm:$0xf]
    %v3156 = vld [vmem:[%s5 + $0x26c] sm:$0xf]
    %v3157 = vld [vmem:[%s5 + $0x270] sm:$0xf]
    %v3158 = vld [vmem:[%s5 + $0x274] sm:$0xf]
    %v3159 = vld [vmem:[%s5 + $0x278] sm:$0xf]
    %v3160 = vld [vmem:[%s5 + $0x27c] sm:$0xf]
    %v3161 = vld [vmem:[%s5 + $0x280] sm:$0xf]
    %v3162 = vld [vmem:[%s5 + $0x284] sm:$0xf]
    %v3163 = vld [vmem:[%s5 + $0x288] sm:$0xf]
    %v3164 = vld [vmem:[%s5 + $0x28c] sm:$0xf]
    %v3165 = vld [vmem:[%s5 + $0x290] sm:$0xf]
    %v3166 = vld [vmem:[%s5 + $0x294] sm:$0xf]
    %v3167 = vld [vmem:[%s5 + $0x298] sm:$0xf]
    %v3168 = vld [vmem:[%s5 + $0x29c] sm:$0xf]
    %v3169 = vld [vmem:[%s5 + $0x2a0] sm:$0xf]
    %v3170 = vld [vmem:[%s5 + $0x2a4] sm:$0xf]
    %v3171 = vld [vmem:[%s5 + $0x2a8] sm:$0xf]
    %v3172 = vld [vmem:[%s5 + $0x2ac] sm:$0xf]
    %v3173 = vld [vmem:[%s5 + $0x2b0] sm:$0xf]
    %v3174 = vld [vmem:[%s5 + $0x2b4] sm:$0xf]
    %v3175 = vld [vmem:[%s5 + $0x2b8] sm:$0xf]
    %v3176 = vld [vmem:[%s5 + $0x2bc] sm:$0xf]
    %v3177 = vld [vmem:[%s5 + $0x2c0] sm:$0xf]
    %v3178 = vld [vmem:[%s5 + $0x2c4] sm:$0xf]
    %v3179 = vld [vmem:[%s5 + $0x2c8] sm:$0xf]
    %v3180 = vld [vmem:[%s5 + $0x2cc] sm:$0xf]
    %v3181 = vld [vmem:[%s5 + $0x2d0] sm:$0xf]
    %v3182 = vld [vmem:[%s5 + $0x2d4] sm:$0xf]
    %v3183 = vld [vmem:[%s5 + $0x2d8] sm:$0xf]
    %v3184 = vld [vmem:[%s5 + $0x2dc] sm:$0xf]
    %v3185 = vld [vmem:[%s5 + $0x2e0] sm:$0xf]
    %v3186 = vld [vmem:[%s5 + $0x2e4] sm:$0xf]
    %v3187 = vld [vmem:[%s5 + $0x2e8] sm:$0xf]
    %v3188 = vld [vmem:[%s5 + $0x2ec] sm:$0xf]
    %v3189 = vld [vmem:[%s5 + $0x2f0] sm:$0xf]
    %v3190 = vld [vmem:[%s5 + $0x2f4] sm:$0xf]
    %v3191 = vld [vmem:[%s5 + $0x2f8] sm:$0xf]
    %v3192 = vld [vmem:[%s5 + $0x2fc] sm:$0xf]
    %v3193 = vld [vmem:[%s5 + $0x300] sm:$0xf]
    %v3194 = vld [vmem:[%s5 + $0x304] sm:$0xf]
    %v3195 = vld [vmem:[%s5 + $0x308] sm:$0xf]
    %v3196 = vld [vmem:[%s5 + $0x30c] sm:$0xf]
    %v3197 = vld [vmem:[%s5 + $0x310] sm:$0xf]
    %v3198 = vld [vmem:[%s5 + $0x314] sm:$0xf]
    %v3199 = vld [vmem:[%s5 + $0x318] sm:$0xf]
    %v3200 = vld [vmem:[%s5 + $0x31c] sm:$0xf]
    %v3201 = vld [vmem:[%s5 + $0x320] sm:$0xf]
    %v3202 = vld [vmem:[%s5 + $0x324] sm:$0xf]
    %v3203 = vld [vmem:[%s5 + $0x328] sm:$0xf]
    %v3204 = vld [vmem:[%s5 + $0x32c] sm:$0xf]
    %v3205 = vld [vmem:[%s5 + $0x330] sm:$0xf]
    %v3206 = vld [vmem:[%s5 + $0x334] sm:$0xf]
    %v3207 = vld [vmem:[%s5 + $0x338] sm:$0xf]
    %v3208 = vld [vmem:[%s5 + $0x33c] sm:$0xf]
    %v3209 = vld [vmem:[%s5 + $0x340] sm:$0xf]
    %v3210 = vld [vmem:[%s5 + $0x344] sm:$0xf]
    %v3211 = vld [vmem:[%s5 + $0x348] sm:$0xf]
    %v3212 = vld [vmem:[%s5 + $0x34c] sm:$0xf]
    %v3213 = vld [vmem:[%s5 + $0x350] sm:$0xf]
    %v3214 = vld [vmem:[%s5 + $0x354] sm:$0xf]
    %v3215 = vld [vmem:[%s5 + $0x358] sm:$0xf]
    %v3216 = vld [vmem:[%s5 + $0x35c] sm:$0xf]
    %v3217 = vld [vmem:[%s5 + $0x360] sm:$0xf]
    %v3218 = vld [vmem:[%s5 + $0x364] sm:$0xf]
    %v3219 = vld [vmem:[%s5 + $0x368] sm:$0xf]
    %v3220 = vld [vmem:[%s5 + $0x36c] sm:$0xf]
    %v3221 = vld [vmem:[%s5 + $0x370] sm:$0xf]
    %v3222 = vld [vmem:[%s5 + $0x374] sm:$0xf]
    %v3223 = vld [vmem:[%s5 + $0x378] sm:$0xf]
    %v3224 = vld [vmem:[%s5 + $0x37c] sm:$0xf]
    %v3225 = vld [vmem:[%s5 + $0x380] sm:$0xf]
    %v3226 = vld [vmem:[%s5 + $0x384] sm:$0xf]
    %v3227 = vld [vmem:[%s5 + $0x388] sm:$0xf]
    %v3228 = vld [vmem:[%s5 + $0x38c] sm:$0xf]
    %v3229 = vld [vmem:[%s5 + $0x390] sm:$0xf]
    %v3230 = vld [vmem:[%s5 + $0x394] sm:$0xf]
    %v3231 = vld [vmem:[%s5 + $0x398] sm:$0xf]
    %v3232 = vld [vmem:[%s5 + $0x39c] sm:$0xf]
    %v3233 = vld [vmem:[%s5 + $0x3a0] sm:$0xf]
    %v3234 = vld [vmem:[%s5 + $0x3a4] sm:$0xf]
    %v3235 = vld [vmem:[%s5 + $0x3a8] sm:$0xf]
    %v3236 = vld [vmem:[%s5 + $0x3ac] sm:$0xf]
    %v3237 = vld [vmem:[%s5 + $0x3b0] sm:$0xf]
    %v3238 = vld [vmem:[%s5 + $0x3b4] sm:$0xf]
    %v3239 = vld [vmem:[%s5 + $0x3b8] sm:$0xf]
    %v3240 = vld [vmem:[%s5 + $0x3bc] sm:$0xf]
    %v3241 = vld [vmem:[%s5 + $0x3c0] sm:$0xf]
    %v3242 = vld [vmem:[%s5 + $0x3c4] sm:$0xf]
    %v3243 = vld [vmem:[%s5 + $0x3c8] sm:$0xf]
    %v3244 = vld [vmem:[%s5 + $0x3cc] sm:$0xf]
    %v3245 = vld [vmem:[%s5 + $0x3d0] sm:$0xf]
    %v3246 = vld [vmem:[%s5 + $0x3d4] sm:$0xf]
    %v3247 = vld [vmem:[%s5 + $0x3d8] sm:$0xf]
    %v3248 = vld [vmem:[%s5 + $0x3dc] sm:$0xf]
    %v3249 = vld [vmem:[%s5 + $0x3e0] sm:$0xf]
    %v3250 = vld [vmem:[%s5 + $0x3e4] sm:$0xf]
    %v3251 = vld [vmem:[%s5 + $0x3e8] sm:$0xf]
    %v3252 = vld [vmem:[%s5 + $0x3ec] sm:$0xf]
    %v3253 = vld [vmem:[%s5 + $0x3f0] sm:$0xf]
    %v3254 = vld [vmem:[%s5 + $0x3f4] sm:$0xf]
    %v3255 = vld [vmem:[%s5 + $0x3f8] sm:$0xf]
    %v3256 = vld [vmem:[%s5 + $0x3fc] sm:$0xf]
    %v3257 = vld [vmem:[%s5 + $0x400] sm:$0xf]
    %v3258 = vld [vmem:[%s5 + $0x404] sm:$0xf]
    %v3259 = vld [vmem:[%s5 + $0x408] sm:$0xf]
    %v3260 = vld [vmem:[%s5 + $0x40c] sm:$0xf]
    %v3261 = vld [vmem:[%s5 + $0x410] sm:$0xf]
    %v3262 = vld [vmem:[%s5 + $0x414] sm:$0xf]
    %v3263 = vld [vmem:[%s5 + $0x418] sm:$0xf]
    %v3264 = vld [vmem:[%s5 + $0x41c] sm:$0xf]
    %v3265 = vld [vmem:[%s5 + $0x420] sm:$0xf]
    %v3266 = vld [vmem:[%s5 + $0x424] sm:$0xf]
    %v3267 = vld [vmem:[%s5 + $0x428] sm:$0xf]
    %v3268 = vld [vmem:[%s5 + $0x42c] sm:$0xf]
    %v3269 = vld [vmem:[%s5 + $0x430] sm:$0xf]
    %v3270 = vld [vmem:[%s5 + $0x434] sm:$0xf]
    %v3271 = vld [vmem:[%s5 + $0x438] sm:$0xf]
    %v3272 = vld [vmem:[%s5 + $0x43c] sm:$0xf]
    %v3273 = vld [vmem:[%s5 + $0x440] sm:$0xf]
    %v3274 = vld [vmem:[%s5 + $0x444] sm:$0xf]
    %v3275 = vld [vmem:[%s5 + $0x448] sm:$0xf]
    %v3276 = vld [vmem:[%s5 + $0x44c] sm:$0xf]
    %v3277 = vld [vmem:[%s5 + $0x450] sm:$0xf]
    %v3278 = vld [vmem:[%s5 + $0x454] sm:$0xf]
    %v3279 = vld [vmem:[%s5 + $0x458] sm:$0xf]
    %v3280 = vld [vmem:[%s5 + $0x45c] sm:$0xf]
    %v3281 = vld [vmem:[%s5 + $0x460] sm:$0xf]
    %v3282 = vld [vmem:[%s5 + $0x464] sm:$0xf]
    %v3283 = vld [vmem:[%s5 + $0x468] sm:$0xf]
    %v3284 = vld [vmem:[%s5 + $0x46c] sm:$0xf]
    %v3285 = vld [vmem:[%s5 + $0x470] sm:$0xf]
    %v3286 = vld [vmem:[%s5 + $0x474] sm:$0xf]
    %v3287 = vld [vmem:[%s5 + $0x478] sm:$0xf]
    %v3288 = vld [vmem:[%s5 + $0x47c] sm:$0xf]
    %v3289 = vld [vmem:[%s5 + $0x480] sm:$0xf]
    %v3290 = vld [vmem:[%s5 + $0x484] sm:$0xf]
    %v3291 = vld [vmem:[%s5 + $0x488] sm:$0xf]
    %v3292 = vld [vmem:[%s5 + $0x48c] sm:$0xf]
    %v3293 = vld [vmem:[%s5 + $0x490] sm:$0xf]
    %v3294 = vld [vmem:[%s5 + $0x494] sm:$0xf]
    %v3295 = vld [vmem:[%s5 + $0x498] sm:$0xf]
    %v3296 = vld [vmem:[%s5 + $0x49c] sm:$0xf]
    %v3297 = vld [vmem:[%s5 + $0x4a0] sm:$0xf]
    %v3298 = vld [vmem:[%s5 + $0x4a4] sm:$0xf]
    %v3299 = vld [vmem:[%s5 + $0x4a8] sm:$0xf]
    %v3300 = vld [vmem:[%s5 + $0x4ac] sm:$0xf]
    %v3301 = vld [vmem:[%s5 + $0x4b0] sm:$0xf]
    %v3302 = vld [vmem:[%s5 + $0x4b4] sm:$0xf]
    %v3303 = vld [vmem:[%s5 + $0x4b8] sm:$0xf]
    %v3304 = vld [vmem:[%s5 + $0x4bc] sm:$0xf]
    %v3305 = vld [vmem:[%s5 + $0x4c0] sm:$0xf]
    %v3306 = vld [vmem:[%s5 + $0x4c4] sm:$0xf]
    %v3307 = vld [vmem:[%s5 + $0x4c8] sm:$0xf]
    %v3308 = vld [vmem:[%s5 + $0x4cc] sm:$0xf]
    %v3309 = vld [vmem:[%s5 + $0x4d0] sm:$0xf]
    %v3310 = vld [vmem:[%s5 + $0x4d4] sm:$0xf]
    %v3311 = vld [vmem:[%s5 + $0x4d8] sm:$0xf]
    %v3312 = vld [vmem:[%s5 + $0x4dc] sm:$0xf]
    %v3313 = vld [vmem:[%s5 + $0x4e0] sm:$0xf]
    %v3314 = vld [vmem:[%s5 + $0x4e4] sm:$0xf]
    %v3315 = vld [vmem:[%s5 + $0x4e8] sm:$0xf]
    %v3316 = vld [vmem:[%s5 + $0x4ec] sm:$0xf]
    %v3317 = vld [vmem:[%s5 + $0x4f0] sm:$0xf]
    %v3318 = vld [vmem:[%s5 + $0x4f4] sm:$0xf]
    %v3319 = vld [vmem:[%s5 + $0x4f8] sm:$0xf]
    %v3320 = vld [vmem:[%s5 + $0x4fc] sm:$0xf]
    %v3321 = vld [vmem:[%s5 + $0x500] sm:$0xf]
    %v3322 = vld [vmem:[%s5 + $0x504] sm:$0xf]
    %v3323 = vld [vmem:[%s5 + $0x508] sm:$0xf]
    %v3324 = vld [vmem:[%s5 + $0x50c] sm:$0xf]
    %v3325 = vld [vmem:[%s5 + $0x510] sm:$0xf]
    %v3326 = vld [vmem:[%s5 + $0x514] sm:$0xf]
    %v3327 = vld [vmem:[%s5 + $0x518] sm:$0xf]
    %v3328 = vld [vmem:[%s5 + $0x51c] sm:$0xf]
    %v3329 = vld [vmem:[%s5 + $0x520] sm:$0xf]
    %v3330 = vld [vmem:[%s5 + $0x524] sm:$0xf]
    %v3331 = vld [vmem:[%s5 + $0x528] sm:$0xf]
    %v3332 = vld [vmem:[%s5 + $0x52c] sm:$0xf]
    %v3333 = vld [vmem:[%s5 + $0x530] sm:$0xf]
    %v3334 = vld [vmem:[%s5 + $0x534] sm:$0xf]
    %v3335 = vld [vmem:[%s5 + $0x538] sm:$0xf]
    %v3336 = vld [vmem:[%s5 + $0x53c] sm:$0xf]
    %v3337 = vld [vmem:[%s5 + $0x540] sm:$0xf]
    %v3338 = vld [vmem:[%s5 + $0x544] sm:$0xf]
    %v3339 = vld [vmem:[%s5 + $0x548] sm:$0xf]
    %v3340 = vld [vmem:[%s5 + $0x54c] sm:$0xf]
    %v3341 = vld [vmem:[%s5 + $0x550] sm:$0xf]
    %v3342 = vld [vmem:[%s5 + $0x554] sm:$0xf]
    %v3343 = vld [vmem:[%s5 + $0x558] sm:$0xf]
    %v3344 = vld [vmem:[%s5 + $0x55c] sm:$0xf]
    %v3345 = vld [vmem:[%s5 + $0x560] sm:$0xf]
    %v3346 = vld [vmem:[%s5 + $0x564] sm:$0xf]
    %v3347 = vld [vmem:[%s5 + $0x568] sm:$0xf]
    %v3348 = vld [vmem:[%s5 + $0x56c] sm:$0xf]
    %v3349 = vld [vmem:[%s5 + $0x570] sm:$0xf]
    %v3350 = vld [vmem:[%s5 + $0x574] sm:$0xf]
    %v3351 = vld [vmem:[%s5 + $0x578] sm:$0xf]
    %v3352 = vld [vmem:[%s5 + $0x57c] sm:$0xf]
    %v3353 = vld [vmem:[%s5 + $0x580] sm:$0xf]
    %v3354 = vld [vmem:[%s5 + $0x584] sm:$0xf]
    %v3355 = vld [vmem:[%s5 + $0x588] sm:$0xf]
    %v3356 = vld [vmem:[%s5 + $0x58c] sm:$0xf]
    %v3357 = vld [vmem:[%s5 + $0x590] sm:$0xf]
    %v3358 = vld [vmem:[%s5 + $0x594] sm:$0xf]
    %v3359 = vld [vmem:[%s5 + $0x598] sm:$0xf]
    %v3360 = vld [vmem:[%s5 + $0x59c] sm:$0xf]
    %v3361 = vld [vmem:[%s5 + $0x5a0] sm:$0xf]
    %v3362 = vld [vmem:[%s5 + $0x5a4] sm:$0xf]
    %v3363 = vld [vmem:[%s5 + $0x5a8] sm:$0xf]
    %v3364 = vld [vmem:[%s5 + $0x5ac] sm:$0xf]
    %v3365 = vld [vmem:[%s5 + $0x5b0] sm:$0xf]
    %v3366 = vld [vmem:[%s5 + $0x5b4] sm:$0xf]
    %v3367 = vld [vmem:[%s5 + $0x5b8] sm:$0xf]
    %v3368 = vld [vmem:[%s5 + $0x5bc] sm:$0xf]
    %v3369 = vld [vmem:[%s5 + $0x5c0] sm:$0xf]
    %v3370 = vld [vmem:[%s5 + $0x5c4] sm:$0xf]
    %v3371 = vld [vmem:[%s5 + $0x5c8] sm:$0xf]
    %v3372 = vld [vmem:[%s5 + $0x5cc] sm:$0xf]
    %v3373 = vld [vmem:[%s5 + $0x5d0] sm:$0xf]
    %v3374 = vld [vmem:[%s5 + $0x5d4] sm:$0xf]
    %v3375 = vld [vmem:[%s5 + $0x5d8] sm:$0xf]
    %v3376 = vld [vmem:[%s5 + $0x5dc] sm:$0xf]
    %v3377 = vld [vmem:[%s5 + $0x5e0] sm:$0xf]
    %v3378 = vld [vmem:[%s5 + $0x5e4] sm:$0xf]
    %v3379 = vld [vmem:[%s5 + $0x5e8] sm:$0xf]
    %v3380 = vld [vmem:[%s5 + $0x5ec] sm:$0xf]
    %v3381 = vld [vmem:[%s5 + $0x5f0] sm:$0xf]
    %v3382 = vld [vmem:[%s5 + $0x5f4] sm:$0xf]
    %v3383 = vld [vmem:[%s5 + $0x5f8] sm:$0xf]
    %v3384 = vld [vmem:[%s5 + $0x5fc] sm:$0xf]
    %v3385 = vld [vmem:[%s5 + $0x600] sm:$0xf]
    %v3386 = vld [vmem:[%s5 + $0x604] sm:$0xf]
    %v3387 = vld [vmem:[%s5 + $0x608] sm:$0xf]
    %v3388 = vld [vmem:[%s5 + $0x60c] sm:$0xf]
    %v3389 = vld [vmem:[%s5 + $0x610] sm:$0xf]
    %v3390 = vld [vmem:[%s5 + $0x614] sm:$0xf]
    %v3391 = vld [vmem:[%s5 + $0x618] sm:$0xf]
    %v3392 = vld [vmem:[%s5 + $0x61c] sm:$0xf]
    %v3393 = vld [vmem:[%s5 + $0x620] sm:$0xf]
    %v3394 = vld [vmem:[%s5 + $0x624] sm:$0xf]
    %v3395 = vld [vmem:[%s5 + $0x628] sm:$0xf]
    %v3396 = vld [vmem:[%s5 + $0x62c] sm:$0xf]
    %v3397 = vld [vmem:[%s5 + $0x630] sm:$0xf]
    %v3398 = vld [vmem:[%s5 + $0x634] sm:$0xf]
    %v3399 = vld [vmem:[%s5 + $0x638] sm:$0xf]
    %v3400 = vld [vmem:[%s5 + $0x63c] sm:$0xf]
    %v3401 = vld [vmem:[%s5 + $0x640] sm:$0xf]
    %v3402 = vld [vmem:[%s5 + $0x644] sm:$0xf]
    %v3403 = vld [vmem:[%s5 + $0x648] sm:$0xf]
    %v3404 = vld [vmem:[%s5 + $0x64c] sm:$0xf]
    %v3405 = vld [vmem:[%s5 + $0x650] sm:$0xf]
    %v3406 = vld [vmem:[%s5 + $0x654] sm:$0xf]
    %v3407 = vld [vmem:[%s5 + $0x658] sm:$0xf]
    %v3408 = vld [vmem:[%s5 + $0x65c] sm:$0xf]
    %v3409 = vld [vmem:[%s5 + $0x660] sm:$0xf]
    %v3410 = vld [vmem:[%s5 + $0x664] sm:$0xf]
    %v3411 = vld [vmem:[%s5 + $0x668] sm:$0xf]
    %v3412 = vld [vmem:[%s5 + $0x66c] sm:$0xf]
    %v3413 = vld [vmem:[%s5 + $0x670] sm:$0xf]
    %v3414 = vld [vmem:[%s5 + $0x674] sm:$0xf]
    %v3415 = vld [vmem:[%s5 + $0x678] sm:$0xf]
    %v3416 = vld [vmem:[%s5 + $0x67c] sm:$0xf]
    %v3417 = vld [vmem:[%s5 + $0x680] sm:$0xf]
    %v3418 = vld [vmem:[%s5 + $0x684] sm:$0xf]
    %v3419 = vld [vmem:[%s5 + $0x688] sm:$0xf]
    %v3420 = vld [vmem:[%s5 + $0x68c] sm:$0xf]
    %v3421 = vld [vmem:[%s5 + $0x690] sm:$0xf]
    %v3422 = vld [vmem:[%s5 + $0x694] sm:$0xf]
    %v3423 = vld [vmem:[%s5 + $0x698] sm:$0xf]
    %v3424 = vld [vmem:[%s5 + $0x69c] sm:$0xf]
    %v3425 = vld [vmem:[%s5 + $0x6a0] sm:$0xf]
    %v3426 = vld [vmem:[%s5 + $0x6a4] sm:$0xf]
    %v3427 = vld [vmem:[%s5 + $0x6a8] sm:$0xf]
    %v3428 = vld [vmem:[%s5 + $0x6ac] sm:$0xf]
    %v3429 = vld [vmem:[%s5 + $0x6b0] sm:$0xf]
    %v3430 = vld [vmem:[%s5 + $0x6b4] sm:$0xf]
    %v3431 = vld [vmem:[%s5 + $0x6b8] sm:$0xf]
    %v3432 = vld [vmem:[%s5 + $0x6bc] sm:$0xf]
    %v3433 = vld [vmem:[%s5 + $0x6c0] sm:$0xf]
    %v3434 = vld [vmem:[%s5 + $0x6c4] sm:$0xf]
    %v3435 = vld [vmem:[%s5 + $0x6c8] sm:$0xf]
    %v3436 = vld [vmem:[%s5 + $0x6cc] sm:$0xf]
    %v3437 = vld [vmem:[%s5 + $0x6d0] sm:$0xf]
    %v3438 = vld [vmem:[%s5 + $0x6d4] sm:$0xf]
    %v3439 = vld [vmem:[%s5 + $0x6d8] sm:$0xf]
    %v3440 = vld [vmem:[%s5 + $0x6dc] sm:$0xf]
    %v3441 = vld [vmem:[%s5 + $0x6e0] sm:$0xf]
    %v3442 = vld [vmem:[%s5 + $0x6e4] sm:$0xf]
    %v3443 = vld [vmem:[%s5 + $0x6e8] sm:$0xf]
    %v3444 = vld [vmem:[%s5 + $0x6ec] sm:$0xf]
    %v3445 = vld [vmem:[%s5 + $0x6f0] sm:$0xf]
    %v3446 = vld [vmem:[%s5 + $0x6f4] sm:$0xf]
    %v3447 = vld [vmem:[%s5 + $0x6f8] sm:$0xf]
    %v3448 = vld [vmem:[%s5 + $0x6fc] sm:$0xf]
    %v3449 = vld [vmem:[%s5 + $0x700] sm:$0xf]
    %v3450 = vld [vmem:[%s5 + $0x704] sm:$0xf]
    %v3451 = vld [vmem:[%s5 + $0x708] sm:$0xf]
    %v3452 = vld [vmem:[%s5 + $0x70c] sm:$0xf]
    %v3453 = vld [vmem:[%s5 + $0x710] sm:$0xf]
    %v3454 = vld [vmem:[%s5 + $0x714] sm:$0xf]
    %v3455 = vld [vmem:[%s5 + $0x718] sm:$0xf]
    %v3456 = vld [vmem:[%s5 + $0x71c] sm:$0xf]
    %v3457 = vld [vmem:[%s5 + $0x720] sm:$0xf]
    %v3458 = vld [vmem:[%s5 + $0x724] sm:$0xf]
    %v3459 = vld [vmem:[%s5 + $0x728] sm:$0xf]
    %v3460 = vld [vmem:[%s5 + $0x72c] sm:$0xf]
    %v3461 = vld [vmem:[%s5 + $0x730] sm:$0xf]
    %v3462 = vld [vmem:[%s5 + $0x734] sm:$0xf]
    %v3463 = vld [vmem:[%s5 + $0x738] sm:$0xf]
    %v3464 = vld [vmem:[%s5 + $0x73c] sm:$0xf]
    %v3465 = vld [vmem:[%s5 + $0x740] sm:$0xf]
    %v3466 = vld [vmem:[%s5 + $0x744] sm:$0xf]
    %v3467 = vld [vmem:[%s5 + $0x748] sm:$0xf]
    %v3468 = vld [vmem:[%s5 + $0x74c] sm:$0xf]
    %v3469 = vld [vmem:[%s5 + $0x750] sm:$0xf]
    %v3470 = vld [vmem:[%s5 + $0x754] sm:$0xf]
    %v3471 = vld [vmem:[%s5 + $0x758] sm:$0xf]
    %v3472 = vld [vmem:[%s5 + $0x75c] sm:$0xf]
    %v3473 = vld [vmem:[%s5 + $0x760] sm:$0xf]
    %v3474 = vld [vmem:[%s5 + $0x764] sm:$0xf]
    %v3475 = vld [vmem:[%s5 + $0x768] sm:$0xf]
    %v3476 = vld [vmem:[%s5 + $0x76c] sm:$0xf]
    %v3477 = vld [vmem:[%s5 + $0x770] sm:$0xf]
    %v3478 = vld [vmem:[%s5 + $0x774] sm:$0xf]
    %v3479 = vld [vmem:[%s5 + $0x778] sm:$0xf]
    %v3480 = vld [vmem:[%s5 + $0x77c] sm:$0xf]
    %v3481 = vld [vmem:[%s5 + $0x780] sm:$0xf]
    %v3482 = vld [vmem:[%s5 + $0x784] sm:$0xf]
    %v3483 = vld [vmem:[%s5 + $0x788] sm:$0xf]
    %v3484 = vld [vmem:[%s5 + $0x78c] sm:$0xf]
    %v3485 = vld [vmem:[%s5 + $0x790] sm:$0xf]
    %v3486 = vld [vmem:[%s5 + $0x794] sm:$0xf]
    %v3487 = vld [vmem:[%s5 + $0x798] sm:$0xf]
    %v3488 = vld [vmem:[%s5 + $0x79c] sm:$0xf]
    %v3489 = vld [vmem:[%s5 + $0x7a0] sm:$0xf]
    %v3490 = vld [vmem:[%s5 + $0x7a4] sm:$0xf]
    %v3491 = vld [vmem:[%s5 + $0x7a8] sm:$0xf]
    %v3492 = vld [vmem:[%s5 + $0x7ac] sm:$0xf]
    %v3493 = vld [vmem:[%s5 + $0x7b0] sm:$0xf]
    %v3494 = vld [vmem:[%s5 + $0x7b4] sm:$0xf]
    %v3495 = vld [vmem:[%s5 + $0x7b8] sm:$0xf]
    %v3496 = vld [vmem:[%s5 + $0x7bc] sm:$0xf]
    %v3497 = vld [vmem:[%s5 + $0x7c0] sm:$0xf]
    %v3498 = vld [vmem:[%s5 + $0x7c4] sm:$0xf]
    %v3499 = vld [vmem:[%s5 + $0x7c8] sm:$0xf]
    %v3500 = vld [vmem:[%s5 + $0x7cc] sm:$0xf]
    %v3501 = vld [vmem:[%s5 + $0x7d0] sm:$0xf]
    %v3502 = vld [vmem:[%s5 + $0x7d4] sm:$0xf]
    %v3503 = vld [vmem:[%s5 + $0x7d8] sm:$0xf]
    %v3504 = vld [vmem:[%s5 + $0x7dc] sm:$0xf]
    %v3505 = vld [vmem:[%s5 + $0x7e0] sm:$0xf]
    %v3506 = vld [vmem:[%s5 + $0x7e4] sm:$0xf]
    %v3507 = vld [vmem:[%s5 + $0x7e8] sm:$0xf]
    %v3508 = vld [vmem:[%s5 + $0x7ec] sm:$0xf]
    %v3509 = vld [vmem:[%s5 + $0x7f0] sm:$0xf]
    %v3510 = vld [vmem:[%s5 + $0x7f4] sm:$0xf]
    %v3511 = vld [vmem:[%s5 + $0x7f8] sm:$0xf]
    %v3512 = vld [vmem:[%s5 + $0x7fc] sm:$0xf]
    %v3513 = vld [vmem:[%s6] sm:$0x1]
    %v3515 = vlaneseq
    %v3516 = vshrl.u32 %v3515, 7
    %v3517 = vsub.s32 0, %v3516
    %v3518 = vrot.slane %v3513, %v3517
    %v4032 = vunpack.c.l.b16 %v3001
    %v4033 = vunpack.c.l.b16 %v3002
    %v4034 = vunpack.c.l.b16 %v3003
    %v4035 = vunpack.c.l.b16 %v3004
    %v4036 = vunpack.c.l.b16 %v3005
    %v4037 = vunpack.c.l.b16 %v3006
    %v4038 = vunpack.c.l.b16 %v3007
    %v4039 = vunpack.c.l.b16 %v3008
    %v4040 = vunpack.c.l.b16 %v3009
    %v4041 = vunpack.c.l.b16 %v3010
    %v4042 = vunpack.c.l.b16 %v3011
    %v4043 = vunpack.c.l.b16 %v3012
    %v4044 = vunpack.c.l.b16 %v3013
    %v4045 = vunpack.c.l.b16 %v3014
    %v4046 = vunpack.c.l.b16 %v3015
    %v4047 = vunpack.c.l.b16 %v3016
    %v4048 = vunpack.c.l.b16 %v3017
    %v4049 = vunpack.c.l.b16 %v3018
    %v4050 = vunpack.c.l.b16 %v3019
    %v4051 = vunpack.c.l.b16 %v3020
    %v4052 = vunpack.c.l.b16 %v3021
    %v4053 = vunpack.c.l.b16 %v3022
    %v4054 = vunpack.c.l.b16 %v3023
    %v4055 = vunpack.c.l.b16 %v3024
    %v4056 = vunpack.c.l.b16 %v3025
    %v4057 = vunpack.c.l.b16 %v3026
    %v4058 = vunpack.c.l.b16 %v3027
    %v4059 = vunpack.c.l.b16 %v3028
    %v4060 = vunpack.c.l.b16 %v3029
    %v4061 = vunpack.c.l.b16 %v3030
    %v4062 = vunpack.c.l.b16 %v3031
    %v4063 = vunpack.c.l.b16 %v3032
    %v4064 = vunpack.c.l.b16 %v3033
    %v4065 = vunpack.c.l.b16 %v3034
    %v4066 = vunpack.c.l.b16 %v3035
    %v4067 = vunpack.c.l.b16 %v3036
    %v4068 = vunpack.c.l.b16 %v3037
    %v4069 = vunpack.c.l.b16 %v3038
    %v4070 = vunpack.c.l.b16 %v3039
    %v4071 = vunpack.c.l.b16 %v3040
    %v4072 = vunpack.c.l.b16 %v3041
    %v4073 = vunpack.c.l.b16 %v3042
    %v4074 = vunpack.c.l.b16 %v3043
    %v4075 = vunpack.c.l.b16 %v3044
    %v4076 = vunpack.c.l.b16 %v3045
    %v4077 = vunpack.c.l.b16 %v3046
    %v4078 = vunpack.c.l.b16 %v3047
    %v4079 = vunpack.c.l.b16 %v3048
    %v4080 = vunpack.c.l.b16 %v3049
    %v4081 = vunpack.c.l.b16 %v3050
    %v4082 = vunpack.c.l.b16 %v3051
    %v4083 = vunpack.c.l.b16 %v3052
    %v4084 = vunpack.c.l.b16 %v3053
    %v4085 = vunpack.c.l.b16 %v3054
    %v4086 = vunpack.c.l.b16 %v3055
    %v4087 = vunpack.c.l.b16 %v3056
    %v4088 = vunpack.c.l.b16 %v3057
    %v4089 = vunpack.c.l.b16 %v3058
    %v4090 = vunpack.c.l.b16 %v3059
    %v4091 = vunpack.c.l.b16 %v3060
    %v4092 = vunpack.c.l.b16 %v3061
    %v4093 = vunpack.c.l.b16 %v3062
    %v4094 = vunpack.c.l.b16 %v3063
    %v4095 = vunpack.c.l.b16 %v3064
    %v4096 = vunpack.c.l.b16 %v3065
    %v4097 = vunpack.c.l.b16 %v3066
    %v4098 = vunpack.c.l.b16 %v3067
    %v4099 = vunpack.c.l.b16 %v3068
    %v4100 = vunpack.c.l.b16 %v3069
    %v4101 = vunpack.c.l.b16 %v3070
    %v4102 = vunpack.c.l.b16 %v3071
    %v4103 = vunpack.c.l.b16 %v3072
    %v4104 = vunpack.c.l.b16 %v3073
    %v4105 = vunpack.c.l.b16 %v3074
    %v4106 = vunpack.c.l.b16 %v3075
    %v4107 = vunpack.c.l.b16 %v3076
    %v4108 = vunpack.c.l.b16 %v3077
    %v4109 = vunpack.c.l.b16 %v3078
    %v4110 = vunpack.c.l.b16 %v3079
    %v4111 = vunpack.c.l.b16 %v3080
    %v4112 = vunpack.c.l.b16 %v3081
    %v4113 = vunpack.c.l.b16 %v3082
    %v4114 = vunpack.c.l.b16 %v3083
    %v4115 = vunpack.c.l.b16 %v3084
    %v4116 = vunpack.c.l.b16 %v3085
    %v4117 = vunpack.c.l.b16 %v3086
    %v4118 = vunpack.c.l.b16 %v3087
    %v4119 = vunpack.c.l.b16 %v3088
    %v4120 = vunpack.c.l.b16 %v3089
    %v4121 = vunpack.c.l.b16 %v3090
    %v4122 = vunpack.c.l.b16 %v3091
    %v4123 = vunpack.c.l.b16 %v3092
    %v4124 = vunpack.c.l.b16 %v3093
    %v4125 = vunpack.c.l.b16 %v3094
    %v4126 = vunpack.c.l.b16 %v3095
    %v4127 = vunpack.c.l.b16 %v3096
    %v4128 = vunpack.c.l.b16 %v3097
    %v4129 = vunpack.c.l.b16 %v3098
    %v4130 = vunpack.c.l.b16 %v3099
    %v4131 = vunpack.c.l.b16 %v3100
    %v4132 = vunpack.c.l.b16 %v3101
    %v4133 = vunpack.c.l.b16 %v3102
    %v4134 = vunpack.c.l.b16 %v3103
    %v4135 = vunpack.c.l.b16 %v3104
    %v4136 = vunpack.c.l.b16 %v3105
    %v4137 = vunpack.c.l.b16 %v3106
    %v4138 = vunpack.c.l.b16 %v3107
    %v4139 = vunpack.c.l.b16 %v3108
    %v4140 = vunpack.c.l.b16 %v3109
    %v4141 = vunpack.c.l.b16 %v3110
    %v4142 = vunpack.c.l.b16 %v3111
    %v4143 = vunpack.c.l.b16 %v3112
    %v4144 = vunpack.c.l.b16 %v3113
    %v4145 = vunpack.c.l.b16 %v3114
    %v4146 = vunpack.c.l.b16 %v3115
    %v4147 = vunpack.c.l.b16 %v3116
    %v4148 = vunpack.c.l.b16 %v3117
    %v4149 = vunpack.c.l.b16 %v3118
    %v4150 = vunpack.c.l.b16 %v3119
    %v4151 = vunpack.c.l.b16 %v3120
    %v4152 = vunpack.c.l.b16 %v3121
    %v4153 = vunpack.c.l.b16 %v3122
    %v4154 = vunpack.c.l.b16 %v3123
    %v4155 = vunpack.c.l.b16 %v3124
    %v4156 = vunpack.c.l.b16 %v3125
    %v4157 = vunpack.c.l.b16 %v3126
    %v4158 = vunpack.c.l.b16 %v3127
    %v4159 = vunpack.c.l.b16 %v3128
    %v4160 = vunpack.c.l.b16 %v3129
    %v4161 = vunpack.c.l.b16 %v3130
    %v4162 = vunpack.c.l.b16 %v3131
    %v4163 = vunpack.c.l.b16 %v3132
    %v4164 = vunpack.c.l.b16 %v3133
    %v4165 = vunpack.c.l.b16 %v3134
    %v4166 = vunpack.c.l.b16 %v3135
    %v4167 = vunpack.c.l.b16 %v3136
    %v4168 = vunpack.c.l.b16 %v3137
    %v4169 = vunpack.c.l.b16 %v3138
    %v4170 = vunpack.c.l.b16 %v3139
    %v4171 = vunpack.c.l.b16 %v3140
    %v4172 = vunpack.c.l.b16 %v3141
    %v4173 = vunpack.c.l.b16 %v3142
    %v4174 = vunpack.c.l.b16 %v3143
    %v4175 = vunpack.c.l.b16 %v3144
    %v4176 = vunpack.c.l.b16 %v3145
    %v4177 = vunpack.c.l.b16 %v3146
    %v4178 = vunpack.c.l.b16 %v3147
    %v4179 = vunpack.c.l.b16 %v3148
    %v4180 = vunpack.c.l.b16 %v3149
    %v4181 = vunpack.c.l.b16 %v3150
    %v4182 = vunpack.c.l.b16 %v3151
    %v4183 = vunpack.c.l.b16 %v3152
    %v4184 = vunpack.c.l.b16 %v3153
    %v4185 = vunpack.c.l.b16 %v3154
    %v4186 = vunpack.c.l.b16 %v3155
    %v4187 = vunpack.c.l.b16 %v3156
    %v4188 = vunpack.c.l.b16 %v3157
    %v4189 = vunpack.c.l.b16 %v3158
    %v4190 = vunpack.c.l.b16 %v3159
    %v4191 = vunpack.c.l.b16 %v3160
    %v4192 = vunpack.c.l.b16 %v3161
    %v4193 = vunpack.c.l.b16 %v3162
    %v4194 = vunpack.c.l.b16 %v3163
    %v4195 = vunpack.c.l.b16 %v3164
    %v4196 = vunpack.c.l.b16 %v3165
    %v4197 = vunpack.c.l.b16 %v3166
    %v4198 = vunpack.c.l.b16 %v3167
    %v4199 = vunpack.c.l.b16 %v3168
    %v4200 = vunpack.c.l.b16 %v3169
    %v4201 = vunpack.c.l.b16 %v3170
    %v4202 = vunpack.c.l.b16 %v3171
    %v4203 = vunpack.c.l.b16 %v3172
    %v4204 = vunpack.c.l.b16 %v3173
    %v4205 = vunpack.c.l.b16 %v3174
    %v4206 = vunpack.c.l.b16 %v3175
    %v4207 = vunpack.c.l.b16 %v3176
    %v4208 = vunpack.c.l.b16 %v3177
    %v4209 = vunpack.c.l.b16 %v3178
    %v4210 = vunpack.c.l.b16 %v3179
    %v4211 = vunpack.c.l.b16 %v3180
    %v4212 = vunpack.c.l.b16 %v3181
    %v4213 = vunpack.c.l.b16 %v3182
    %v4214 = vunpack.c.l.b16 %v3183
    %v4215 = vunpack.c.l.b16 %v3184
    %v4216 = vunpack.c.l.b16 %v3185
    %v4217 = vunpack.c.l.b16 %v3186
    %v4218 = vunpack.c.l.b16 %v3187
    %v4219 = vunpack.c.l.b16 %v3188
    %v4220 = vunpack.c.l.b16 %v3189
    %v4221 = vunpack.c.l.b16 %v3190
    %v4222 = vunpack.c.l.b16 %v3191
    %v4223 = vunpack.c.l.b16 %v3192
    %v4224 = vunpack.c.l.b16 %v3193
    %v4225 = vunpack.c.l.b16 %v3194
    %v4226 = vunpack.c.l.b16 %v3195
    %v4227 = vunpack.c.l.b16 %v3196
    %v4228 = vunpack.c.l.b16 %v3197
    %v4229 = vunpack.c.l.b16 %v3198
    %v4230 = vunpack.c.l.b16 %v3199
    %v4231 = vunpack.c.l.b16 %v3200
    %v4232 = vunpack.c.l.b16 %v3201
    %v4233 = vunpack.c.l.b16 %v3202
    %v4234 = vunpack.c.l.b16 %v3203
    %v4235 = vunpack.c.l.b16 %v3204
    %v4236 = vunpack.c.l.b16 %v3205
    %v4237 = vunpack.c.l.b16 %v3206
    %v4238 = vunpack.c.l.b16 %v3207
    %v4239 = vunpack.c.l.b16 %v3208
    %v4240 = vunpack.c.l.b16 %v3209
    %v4241 = vunpack.c.l.b16 %v3210
    %v4242 = vunpack.c.l.b16 %v3211
    %v4243 = vunpack.c.l.b16 %v3212
    %v4244 = vunpack.c.l.b16 %v3213
    %v4245 = vunpack.c.l.b16 %v3214
    %v4246 = vunpack.c.l.b16 %v3215
    %v4247 = vunpack.c.l.b16 %v3216
    %v4248 = vunpack.c.l.b16 %v3217
    %v4249 = vunpack.c.l.b16 %v3218
    %v4250 = vunpack.c.l.b16 %v3219
    %v4251 = vunpack.c.l.b16 %v3220
    %v4252 = vunpack.c.l.b16 %v3221
    %v4253 = vunpack.c.l.b16 %v3222
    %v4254 = vunpack.c.l.b16 %v3223
    %v4255 = vunpack.c.l.b16 %v3224
    %v4256 = vunpack.c.l.b16 %v3225
    %v4257 = vunpack.c.l.b16 %v3226
    %v4258 = vunpack.c.l.b16 %v3227
    %v4259 = vunpack.c.l.b16 %v3228
    %v4260 = vunpack.c.l.b16 %v3229
    %v4261 = vunpack.c.l.b16 %v3230
    %v4262 = vunpack.c.l.b16 %v3231
    %v4263 = vunpack.c.l.b16 %v3232
    %v4264 = vunpack.c.l.b16 %v3233
    %v4265 = vunpack.c.l.b16 %v3234
    %v4266 = vunpack.c.l.b16 %v3235
    %v4267 = vunpack.c.l.b16 %v3236
    %v4268 = vunpack.c.l.b16 %v3237
    %v4269 = vunpack.c.l.b16 %v3238
    %v4270 = vunpack.c.l.b16 %v3239
    %v4271 = vunpack.c.l.b16 %v3240
    %v4272 = vunpack.c.l.b16 %v3241
    %v4273 = vunpack.c.l.b16 %v3242
    %v4274 = vunpack.c.l.b16 %v3243
    %v4275 = vunpack.c.l.b16 %v3244
    %v4276 = vunpack.c.l.b16 %v3245
    %v4277 = vunpack.c.l.b16 %v3246
    %v4278 = vunpack.c.l.b16 %v3247
    %v4279 = vunpack.c.l.b16 %v3248
    %v4280 = vunpack.c.l.b16 %v3249
    %v4281 = vunpack.c.l.b16 %v3250
    %v4282 = vunpack.c.l.b16 %v3251
    %v4283 = vunpack.c.l.b16 %v3252
    %v4284 = vunpack.c.l.b16 %v3253
    %v4285 = vunpack.c.l.b16 %v3254
    %v4286 = vunpack.c.l.b16 %v3255
    %v4287 = vunpack.c.l.b16 %v3256
    %v4288 = vunpack.c.l.b16 %v3257
    %v4289 = vunpack.c.l.b16 %v3258
    %v4290 = vunpack.c.l.b16 %v3259
    %v4291 = vunpack.c.l.b16 %v3260
    %v4292 = vunpack.c.l.b16 %v3261
    %v4293 = vunpack.c.l.b16 %v3262
    %v4294 = vunpack.c.l.b16 %v3263
    %v4295 = vunpack.c.l.b16 %v3264
    %v4296 = vunpack.c.l.b16 %v3265
    %v4297 = vunpack.c.l.b16 %v3266
    %v4298 = vunpack.c.l.b16 %v3267
    %v4299 = vunpack.c.l.b16 %v3268
    %v4300 = vunpack.c.l.b16 %v3269
    %v4301 = vunpack.c.l.b16 %v3270
    %v4302 = vunpack.c.l.b16 %v3271
    %v4303 = vunpack.c.l.b16 %v3272
    %v4304 = vunpack.c.l.b16 %v3273
    %v4305 = vunpack.c.l.b16 %v3274
    %v4306 = vunpack.c.l.b16 %v3275
    %v4307 = vunpack.c.l.b16 %v3276
    %v4308 = vunpack.c.l.b16 %v3277
    %v4309 = vunpack.c.l.b16 %v3278
    %v4310 = vunpack.c.l.b16 %v3279
    %v4311 = vunpack.c.l.b16 %v3280
    %v4312 = vunpack.c.l.b16 %v3281
    %v4313 = vunpack.c.l.b16 %v3282
    %v4314 = vunpack.c.l.b16 %v3283
    %v4315 = vunpack.c.l.b16 %v3284
    %v4316 = vunpack.c.l.b16 %v3285
    %v4317 = vunpack.c.l.b16 %v3286
    %v4318 = vunpack.c.l.b16 %v3287
    %v4319 = vunpack.c.l.b16 %v3288
    %v4320 = vunpack.c.l.b16 %v3289
    %v4321 = vunpack.c.l.b16 %v3290
    %v4322 = vunpack.c.l.b16 %v3291
    %v4323 = vunpack.c.l.b16 %v3292
    %v4324 = vunpack.c.l.b16 %v3293
    %v4325 = vunpack.c.l.b16 %v3294
    %v4326 = vunpack.c.l.b16 %v3295
    %v4327 = vunpack.c.l.b16 %v3296
    %v4328 = vunpack.c.l.b16 %v3297
    %v4329 = vunpack.c.l.b16 %v3298
    %v4330 = vunpack.c.l.b16 %v3299
    %v4331 = vunpack.c.l.b16 %v3300
    %v4332 = vunpack.c.l.b16 %v3301
    %v4333 = vunpack.c.l.b16 %v3302
    %v4334 = vunpack.c.l.b16 %v3303
    %v4335 = vunpack.c.l.b16 %v3304
    %v4336 = vunpack.c.l.b16 %v3305
    %v4337 = vunpack.c.l.b16 %v3306
    %v4338 = vunpack.c.l.b16 %v3307
    %v4339 = vunpack.c.l.b16 %v3308
    %v4340 = vunpack.c.l.b16 %v3309
    %v4341 = vunpack.c.l.b16 %v3310
    %v4342 = vunpack.c.l.b16 %v3311
    %v4343 = vunpack.c.l.b16 %v3312
    %v4344 = vunpack.c.l.b16 %v3313
    %v4345 = vunpack.c.l.b16 %v3314
    %v4346 = vunpack.c.l.b16 %v3315
    %v4347 = vunpack.c.l.b16 %v3316
    %v4348 = vunpack.c.l.b16 %v3317
    %v4349 = vunpack.c.l.b16 %v3318
    %v4350 = vunpack.c.l.b16 %v3319
    %v4351 = vunpack.c.l.b16 %v3320
    %v4352 = vunpack.c.l.b16 %v3321
    %v4353 = vunpack.c.l.b16 %v3322
    %v4354 = vunpack.c.l.b16 %v3323
    %v4355 = vunpack.c.l.b16 %v3324
    %v4356 = vunpack.c.l.b16 %v3325
    %v4357 = vunpack.c.l.b16 %v3326
    %v4358 = vunpack.c.l.b16 %v3327
    %v4359 = vunpack.c.l.b16 %v3328
    %v4360 = vunpack.c.l.b16 %v3329
    %v4361 = vunpack.c.l.b16 %v3330
    %v4362 = vunpack.c.l.b16 %v3331
    %v4363 = vunpack.c.l.b16 %v3332
    %v4364 = vunpack.c.l.b16 %v3333
    %v4365 = vunpack.c.l.b16 %v3334
    %v4366 = vunpack.c.l.b16 %v3335
    %v4367 = vunpack.c.l.b16 %v3336
    %v4368 = vunpack.c.l.b16 %v3337
    %v4369 = vunpack.c.l.b16 %v3338
    %v4370 = vunpack.c.l.b16 %v3339
    %v4371 = vunpack.c.l.b16 %v3340
    %v4372 = vunpack.c.l.b16 %v3341
    %v4373 = vunpack.c.l.b16 %v3342
    %v4374 = vunpack.c.l.b16 %v3343
    %v4375 = vunpack.c.l.b16 %v3344
    %v4376 = vunpack.c.l.b16 %v3345
    %v4377 = vunpack.c.l.b16 %v3346
    %v4378 = vunpack.c.l.b16 %v3347
    %v4379 = vunpack.c.l.b16 %v3348
    %v4380 = vunpack.c.l.b16 %v3349
    %v4381 = vunpack.c.l.b16 %v3350
    %v4382 = vunpack.c.l.b16 %v3351
    %v4383 = vunpack.c.l.b16 %v3352
    %v4384 = vunpack.c.l.b16 %v3353
    %v4385 = vunpack.c.l.b16 %v3354
    %v4386 = vunpack.c.l.b16 %v3355
    %v4387 = vunpack.c.l.b16 %v3356
    %v4388 = vunpack.c.l.b16 %v3357
    %v4389 = vunpack.c.l.b16 %v3358
    %v4390 = vunpack.c.l.b16 %v3359
    %v4391 = vunpack.c.l.b16 %v3360
    %v4392 = vunpack.c.l.b16 %v3361
    %v4393 = vunpack.c.l.b16 %v3362
    %v4394 = vunpack.c.l.b16 %v3363
    %v4395 = vunpack.c.l.b16 %v3364
    %v4396 = vunpack.c.l.b16 %v3365
    %v4397 = vunpack.c.l.b16 %v3366
    %v4398 = vunpack.c.l.b16 %v3367
    %v4399 = vunpack.c.l.b16 %v3368
    %v4400 = vunpack.c.l.b16 %v3369
    %v4401 = vunpack.c.l.b16 %v3370
    %v4402 = vunpack.c.l.b16 %v3371
    %v4403 = vunpack.c.l.b16 %v3372
    %v4404 = vunpack.c.l.b16 %v3373
    %v4405 = vunpack.c.l.b16 %v3374
    %v4406 = vunpack.c.l.b16 %v3375
    %v4407 = vunpack.c.l.b16 %v3376
    %v4408 = vunpack.c.l.b16 %v3377
    %v4409 = vunpack.c.l.b16 %v3378
    %v4410 = vunpack.c.l.b16 %v3379
    %v4411 = vunpack.c.l.b16 %v3380
    %v4412 = vunpack.c.l.b16 %v3381
    %v4413 = vunpack.c.l.b16 %v3382
    %v4414 = vunpack.c.l.b16 %v3383
    %v4415 = vunpack.c.l.b16 %v3384
    %v4416 = vunpack.c.l.b16 %v3385
    %v4417 = vunpack.c.l.b16 %v3386
    %v4418 = vunpack.c.l.b16 %v3387
    %v4419 = vunpack.c.l.b16 %v3388
    %v4420 = vunpack.c.l.b16 %v3389
    %v4421 = vunpack.c.l.b16 %v3390
    %v4422 = vunpack.c.l.b16 %v3391
    %v4423 = vunpack.c.l.b16 %v3392
    %v4424 = vunpack.c.l.b16 %v3393
    %v4425 = vunpack.c.l.b16 %v3394
    %v4426 = vunpack.c.l.b16 %v3395
    %v4427 = vunpack.c.l.b16 %v3396
    %v4428 = vunpack.c.l.b16 %v3397
    %v4429 = vunpack.c.l.b16 %v3398
    %v4430 = vunpack.c.l.b16 %v3399
    %v4431 = vunpack.c.l.b16 %v3400
    %v4432 = vunpack.c.l.b16 %v3401
    %v4433 = vunpack.c.l.b16 %v3402
    %v4434 = vunpack.c.l.b16 %v3403
    %v4435 = vunpack.c.l.b16 %v3404
    %v4436 = vunpack.c.l.b16 %v3405
    %v4437 = vunpack.c.l.b16 %v3406
    %v4438 = vunpack.c.l.b16 %v3407
    %v4439 = vunpack.c.l.b16 %v3408
    %v4440 = vunpack.c.l.b16 %v3409
    %v4441 = vunpack.c.l.b16 %v3410
    %v4442 = vunpack.c.l.b16 %v3411
    %v4443 = vunpack.c.l.b16 %v3412
    %v4444 = vunpack.c.l.b16 %v3413
    %v4445 = vunpack.c.l.b16 %v3414
    %v4446 = vunpack.c.l.b16 %v3415
    %v4447 = vunpack.c.l.b16 %v3416
    %v4448 = vunpack.c.l.b16 %v3417
    %v4449 = vunpack.c.l.b16 %v3418
    %v4450 = vunpack.c.l.b16 %v3419
    %v4451 = vunpack.c.l.b16 %v3420
    %v4452 = vunpack.c.l.b16 %v3421
    %v4453 = vunpack.c.l.b16 %v3422
    %v4454 = vunpack.c.l.b16 %v3423
    %v4455 = vunpack.c.l.b16 %v3424
    %v4456 = vunpack.c.l.b16 %v3425
    %v4457 = vunpack.c.l.b16 %v3426
    %v4458 = vunpack.c.l.b16 %v3427
    %v4459 = vunpack.c.l.b16 %v3428
    %v4460 = vunpack.c.l.b16 %v3429
    %v4461 = vunpack.c.l.b16 %v3430
    %v4462 = vunpack.c.l.b16 %v3431
    %v4463 = vunpack.c.l.b16 %v3432
    %v4464 = vunpack.c.l.b16 %v3433
    %v4465 = vunpack.c.l.b16 %v3434
    %v4466 = vunpack.c.l.b16 %v3435
    %v4467 = vunpack.c.l.b16 %v3436
    %v4468 = vunpack.c.l.b16 %v3437
    %v4469 = vunpack.c.l.b16 %v3438
    %v4470 = vunpack.c.l.b16 %v3439
    %v4471 = vunpack.c.l.b16 %v3440
    %v4472 = vunpack.c.l.b16 %v3441
    %v4473 = vunpack.c.l.b16 %v3442
    %v4474 = vunpack.c.l.b16 %v3443
    %v4475 = vunpack.c.l.b16 %v3444
    %v4476 = vunpack.c.l.b16 %v3445
    %v4477 = vunpack.c.l.b16 %v3446
    %v4478 = vunpack.c.l.b16 %v3447
    %v4479 = vunpack.c.l.b16 %v3448
    %v4480 = vunpack.c.l.b16 %v3449
    %v4481 = vunpack.c.l.b16 %v3450
    %v4482 = vunpack.c.l.b16 %v3451
    %v4483 = vunpack.c.l.b16 %v3452
    %v4484 = vunpack.c.l.b16 %v3453
    %v4485 = vunpack.c.l.b16 %v3454
    %v4486 = vunpack.c.l.b16 %v3455
    %v4487 = vunpack.c.l.b16 %v3456
    %v4488 = vunpack.c.l.b16 %v3457
    %v4489 = vunpack.c.l.b16 %v3458
    %v4490 = vunpack.c.l.b16 %v3459
    %v4491 = vunpack.c.l.b16 %v3460
    %v4492 = vunpack.c.l.b16 %v3461
    %v4493 = vunpack.c.l.b16 %v3462
    %v4494 = vunpack.c.l.b16 %v3463
    %v4495 = vunpack.c.l.b16 %v3464
    %v4496 = vunpack.c.l.b16 %v3465
    %v4497 = vunpack.c.l.b16 %v3466
    %v4498 = vunpack.c.l.b16 %v3467
    %v4499 = vunpack.c.l.b16 %v3468
    %v4500 = vunpack.c.l.b16 %v3469
    %v4501 = vunpack.c.l.b16 %v3470
    %v4502 = vunpack.c.l.b16 %v3471
    %v4503 = vunpack.c.l.b16 %v3472
    %v4504 = vunpack.c.l.b16 %v3473
    %v4505 = vunpack.c.l.b16 %v3474
    %v4506 = vunpack.c.l.b16 %v3475
    %v4507 = vunpack.c.l.b16 %v3476
    %v4508 = vunpack.c.l.b16 %v3477
    %v4509 = vunpack.c.l.b16 %v3478
    %v4510 = vunpack.c.l.b16 %v3479
    %v4511 = vunpack.c.l.b16 %v3480
    %v4512 = vunpack.c.l.b16 %v3481
    %v4513 = vunpack.c.l.b16 %v3482
    %v4514 = vunpack.c.l.b16 %v3483
    %v4515 = vunpack.c.l.b16 %v3484
    %v4516 = vunpack.c.l.b16 %v3485
    %v4517 = vunpack.c.l.b16 %v3486
    %v4518 = vunpack.c.l.b16 %v3487
    %v4519 = vunpack.c.l.b16 %v3488
    %v4520 = vunpack.c.l.b16 %v3489
    %v4521 = vunpack.c.l.b16 %v3490
    %v4522 = vunpack.c.l.b16 %v3491
    %v4523 = vunpack.c.l.b16 %v3492
    %v4524 = vunpack.c.l.b16 %v3493
    %v4525 = vunpack.c.l.b16 %v3494
    %v4526 = vunpack.c.l.b16 %v3495
    %v4527 = vunpack.c.l.b16 %v3496
    %v4528 = vunpack.c.l.b16 %v3497
    %v4529 = vunpack.c.l.b16 %v3498
    %v4530 = vunpack.c.l.b16 %v3499
    %v4531 = vunpack.c.l.b16 %v3500
    %v4532 = vunpack.c.l.b16 %v3501
    %v4533 = vunpack.c.l.b16 %v3502
    %v4534 = vunpack.c.l.b16 %v3503
    %v4535 = vunpack.c.l.b16 %v3504
    %v4536 = vunpack.c.l.b16 %v3505
    %v4537 = vunpack.c.l.b16 %v3506
    %v4538 = vunpack.c.l.b16 %v3507
    %v4539 = vunpack.c.l.b16 %v3508
    %v4540 = vunpack.c.l.b16 %v3509
    %v4541 = vunpack.c.l.b16 %v3510
    %v4542 = vunpack.c.l.b16 %v3511
    %v4543 = vunpack.c.l.b16 %v3512
    %v4544 = vpack.c.b16 %v4033, %v4032
    %v4545 = vpack.c.b16 %v4035, %v4034
    %v4546 = vpack.c.b16 %v4037, %v4036
    %v4547 = vpack.c.b16 %v4039, %v4038
    %v4548 = vpack.c.b16 %v4041, %v4040
    %v4549 = vpack.c.b16 %v4043, %v4042
    %v4550 = vpack.c.b16 %v4045, %v4044
    %v4551 = vpack.c.b16 %v4047, %v4046
    %v4552 = vpack.c.b16 %v4049, %v4048
    %v4553 = vpack.c.b16 %v4051, %v4050
    %v4554 = vpack.c.b16 %v4053, %v4052
    %v4555 = vpack.c.b16 %v4055, %v4054
    %v4556 = vpack.c.b16 %v4057, %v4056
    %v4557 = vpack.c.b16 %v4059, %v4058
    %v4558 = vpack.c.b16 %v4061, %v4060
    %v4559 = vpack.c.b16 %v4063, %v4062
    %v4560 = vpack.c.b16 %v4065, %v4064
    %v4561 = vpack.c.b16 %v4067, %v4066
    %v4562 = vpack.c.b16 %v4069, %v4068
    %v4563 = vpack.c.b16 %v4071, %v4070
    %v4564 = vpack.c.b16 %v4073, %v4072
    %v4565 = vpack.c.b16 %v4075, %v4074
    %v4566 = vpack.c.b16 %v4077, %v4076
    %v4567 = vpack.c.b16 %v4079, %v4078
    %v4568 = vpack.c.b16 %v4081, %v4080
    %v4569 = vpack.c.b16 %v4083, %v4082
    %v4570 = vpack.c.b16 %v4085, %v4084
    %v4571 = vpack.c.b16 %v4087, %v4086
    %v4572 = vpack.c.b16 %v4089, %v4088
    %v4573 = vpack.c.b16 %v4091, %v4090
    %v4574 = vpack.c.b16 %v4093, %v4092
    %v4575 = vpack.c.b16 %v4095, %v4094
    %v4576 = vpack.c.b16 %v4097, %v4096
    %v4577 = vpack.c.b16 %v4099, %v4098
    %v4578 = vpack.c.b16 %v4101, %v4100
    %v4579 = vpack.c.b16 %v4103, %v4102
    %v4580 = vpack.c.b16 %v4105, %v4104
    %v4581 = vpack.c.b16 %v4107, %v4106
    %v4582 = vpack.c.b16 %v4109, %v4108
    %v4583 = vpack.c.b16 %v4111, %v4110
    %v4584 = vpack.c.b16 %v4113, %v4112
    %v4585 = vpack.c.b16 %v4115, %v4114
    %v4586 = vpack.c.b16 %v4117, %v4116
    %v4587 = vpack.c.b16 %v4119, %v4118
    %v4588 = vpack.c.b16 %v4121, %v4120
    %v4589 = vpack.c.b16 %v4123, %v4122
    %v4590 = vpack.c.b16 %v4125, %v4124
    %v4591 = vpack.c.b16 %v4127, %v4126
    %v4592 = vpack.c.b16 %v4129, %v4128
    %v4593 = vpack.c.b16 %v4131, %v4130
    %v4594 = vpack.c.b16 %v4133, %v4132
    %v4595 = vpack.c.b16 %v4135, %v4134
    %v4596 = vpack.c.b16 %v4137, %v4136
    %v4597 = vpack.c.b16 %v4139, %v4138
    %v4598 = vpack.c.b16 %v4141, %v4140
    %v4599 = vpack.c.b16 %v4143, %v4142
    %v4600 = vpack.c.b16 %v4145, %v4144
    %v4601 = vpack.c.b16 %v4147, %v4146
    %v4602 = vpack.c.b16 %v4149, %v4148
    %v4603 = vpack.c.b16 %v4151, %v4150
    %v4604 = vpack.c.b16 %v4153, %v4152
    %v4605 = vpack.c.b16 %v4155, %v4154
    %v4606 = vpack.c.b16 %v4157, %v4156
    %v4607 = vpack.c.b16 %v4159, %v4158
    %v4608 = vpack.c.b16 %v4161, %v4160
    %v4609 = vpack.c.b16 %v4163, %v4162
    %v4610 = vpack.c.b16 %v4165, %v4164
    %v4611 = vpack.c.b16 %v4167, %v4166
    %v4612 = vpack.c.b16 %v4169, %v4168
    %v4613 = vpack.c.b16 %v4171, %v4170
    %v4614 = vpack.c.b16 %v4173, %v4172
    %v4615 = vpack.c.b16 %v4175, %v4174
    %v4616 = vpack.c.b16 %v4177, %v4176
    %v4617 = vpack.c.b16 %v4179, %v4178
    %v4618 = vpack.c.b16 %v4181, %v4180
    %v4619 = vpack.c.b16 %v4183, %v4182
    %v4620 = vpack.c.b16 %v4185, %v4184
    %v4621 = vpack.c.b16 %v4187, %v4186
    %v4622 = vpack.c.b16 %v4189, %v4188
    %v4623 = vpack.c.b16 %v4191, %v4190
    %v4624 = vpack.c.b16 %v4193, %v4192
    %v4625 = vpack.c.b16 %v4195, %v4194
    %v4626 = vpack.c.b16 %v4197, %v4196
    %v4627 = vpack.c.b16 %v4199, %v4198
    %v4628 = vpack.c.b16 %v4201, %v4200
    %v4629 = vpack.c.b16 %v4203, %v4202
    %v4630 = vpack.c.b16 %v4205, %v4204
    %v4631 = vpack.c.b16 %v4207, %v4206
    %v4632 = vpack.c.b16 %v4209, %v4208
    %v4633 = vpack.c.b16 %v4211, %v4210
    %v4634 = vpack.c.b16 %v4213, %v4212
    %v4635 = vpack.c.b16 %v4215, %v4214
    %v4636 = vpack.c.b16 %v4217, %v4216
    %v4637 = vpack.c.b16 %v4219, %v4218
    %v4638 = vpack.c.b16 %v4221, %v4220
    %v4639 = vpack.c.b16 %v4223, %v4222
    %v4640 = vpack.c.b16 %v4225, %v4224
    %v4641 = vpack.c.b16 %v4227, %v4226
    %v4642 = vpack.c.b16 %v4229, %v4228
    %v4643 = vpack.c.b16 %v4231, %v4230
    %v4644 = vpack.c.b16 %v4233, %v4232
    %v4645 = vpack.c.b16 %v4235, %v4234
    %v4646 = vpack.c.b16 %v4237, %v4236
    %v4647 = vpack.c.b16 %v4239, %v4238
    %v4648 = vpack.c.b16 %v4241, %v4240
    %v4649 = vpack.c.b16 %v4243, %v4242
    %v4650 = vpack.c.b16 %v4245, %v4244
    %v4651 = vpack.c.b16 %v4247, %v4246
    %v4652 = vpack.c.b16 %v4249, %v4248
    %v4653 = vpack.c.b16 %v4251, %v4250
    %v4654 = vpack.c.b16 %v4253, %v4252
    %v4655 = vpack.c.b16 %v4255, %v4254
    %v4656 = vpack.c.b16 %v4257, %v4256
    %v4657 = vpack.c.b16 %v4259, %v4258
    %v4658 = vpack.c.b16 %v4261, %v4260
    %v4659 = vpack.c.b16 %v4263, %v4262
    %v4660 = vpack.c.b16 %v4265, %v4264
    %v4661 = vpack.c.b16 %v4267, %v4266
    %v4662 = vpack.c.b16 %v4269, %v4268
    %v4663 = vpack.c.b16 %v4271, %v4270
    %v4664 = vpack.c.b16 %v4273, %v4272
    %v4665 = vpack.c.b16 %v4275, %v4274
    %v4666 = vpack.c.b16 %v4277, %v4276
    %v4667 = vpack.c.b16 %v4279, %v4278
    %v4668 = vpack.c.b16 %v4281, %v4280
    %v4669 = vpack.c.b16 %v4283, %v4282
    %v4670 = vpack.c.b16 %v4285, %v4284
    %v4671 = vpack.c.b16 %v4287, %v4286
    %v4672 = vpack.c.b16 %v4289, %v4288
    %v4673 = vpack.c.b16 %v4291, %v4290
    %v4674 = vpack.c.b16 %v4293, %v4292
    %v4675 = vpack.c.b16 %v4295, %v4294
    %v4676 = vpack.c.b16 %v4297, %v4296
    %v4677 = vpack.c.b16 %v4299, %v4298
    %v4678 = vpack.c.b16 %v4301, %v4300
    %v4679 = vpack.c.b16 %v4303, %v4302
    %v4680 = vpack.c.b16 %v4305, %v4304
    %v4681 = vpack.c.b16 %v4307, %v4306
    %v4682 = vpack.c.b16 %v4309, %v4308
    %v4683 = vpack.c.b16 %v4311, %v4310
    %v4684 = vpack.c.b16 %v4313, %v4312
    %v4685 = vpack.c.b16 %v4315, %v4314
    %v4686 = vpack.c.b16 %v4317, %v4316
    %v4687 = vpack.c.b16 %v4319, %v4318
    %v4688 = vpack.c.b16 %v4321, %v4320
    %v4689 = vpack.c.b16 %v4323, %v4322
    %v4690 = vpack.c.b16 %v4325, %v4324
    %v4691 = vpack.c.b16 %v4327, %v4326
    %v4692 = vpack.c.b16 %v4329, %v4328
    %v4693 = vpack.c.b16 %v4331, %v4330
    %v4694 = vpack.c.b16 %v4333, %v4332
    %v4695 = vpack.c.b16 %v4335, %v4334
    %v4696 = vpack.c.b16 %v4337, %v4336
    %v4697 = vpack.c.b16 %v4339, %v4338
    %v4698 = vpack.c.b16 %v4341, %v4340
    %v4699 = vpack.c.b16 %v4343, %v4342
    %v4700 = vpack.c.b16 %v4345, %v4344
    %v4701 = vpack.c.b16 %v4347, %v4346
    %v4702 = vpack.c.b16 %v4349, %v4348
    %v4703 = vpack.c.b16 %v4351, %v4350
    %v4704 = vpack.c.b16 %v4353, %v4352
    %v4705 = vpack.c.b16 %v4355, %v4354
    %v4706 = vpack.c.b16 %v4357, %v4356
    %v4707 = vpack.c.b16 %v4359, %v4358
    %v4708 = vpack.c.b16 %v4361, %v4360
    %v4709 = vpack.c.b16 %v4363, %v4362
    %v4710 = vpack.c.b16 %v4365, %v4364
    %v4711 = vpack.c.b16 %v4367, %v4366
    %v4712 = vpack.c.b16 %v4369, %v4368
    %v4713 = vpack.c.b16 %v4371, %v4370
    %v4714 = vpack.c.b16 %v4373, %v4372
    %v4715 = vpack.c.b16 %v4375, %v4374
    %v4716 = vpack.c.b16 %v4377, %v4376
    %v4717 = vpack.c.b16 %v4379, %v4378
    %v4718 = vpack.c.b16 %v4381, %v4380
    %v4719 = vpack.c.b16 %v4383, %v4382
    %v4720 = vpack.c.b16 %v4385, %v4384
    %v4721 = vpack.c.b16 %v4387, %v4386
    %v4722 = vpack.c.b16 %v4389, %v4388
    %v4723 = vpack.c.b16 %v4391, %v4390
    %v4724 = vpack.c.b16 %v4393, %v4392
    %v4725 = vpack.c.b16 %v4395, %v4394
    %v4726 = vpack.c.b16 %v4397, %v4396
    %v4727 = vpack.c.b16 %v4399, %v4398
    %v4728 = vpack.c.b16 %v4401, %v4400
    %v4729 = vpack.c.b16 %v4403, %v4402
    %v4730 = vpack.c.b16 %v4405, %v4404
    %v4731 = vpack.c.b16 %v4407, %v4406
    %v4732 = vpack.c.b16 %v4409, %v4408
    %v4733 = vpack.c.b16 %v4411, %v4410
    %v4734 = vpack.c.b16 %v4413, %v4412
    %v4735 = vpack.c.b16 %v4415, %v4414
    %v4736 = vpack.c.b16 %v4417, %v4416
    %v4737 = vpack.c.b16 %v4419, %v4418
    %v4738 = vpack.c.b16 %v4421, %v4420
    %v4739 = vpack.c.b16 %v4423, %v4422
    %v4740 = vpack.c.b16 %v4425, %v4424
    %v4741 = vpack.c.b16 %v4427, %v4426
    %v4742 = vpack.c.b16 %v4429, %v4428
    %v4743 = vpack.c.b16 %v4431, %v4430
    %v4744 = vpack.c.b16 %v4433, %v4432
    %v4745 = vpack.c.b16 %v4435, %v4434
    %v4746 = vpack.c.b16 %v4437, %v4436
    %v4747 = vpack.c.b16 %v4439, %v4438
    %v4748 = vpack.c.b16 %v4441, %v4440
    %v4749 = vpack.c.b16 %v4443, %v4442
    %v4750 = vpack.c.b16 %v4445, %v4444
    %v4751 = vpack.c.b16 %v4447, %v4446
    %v4752 = vpack.c.b16 %v4449, %v4448
    %v4753 = vpack.c.b16 %v4451, %v4450
    %v4754 = vpack.c.b16 %v4453, %v4452
    %v4755 = vpack.c.b16 %v4455, %v4454
    %v4756 = vpack.c.b16 %v4457, %v4456
    %v4757 = vpack.c.b16 %v4459, %v4458
    %v4758 = vpack.c.b16 %v4461, %v4460
    %v4759 = vpack.c.b16 %v4463, %v4462
    %v4760 = vpack.c.b16 %v4465, %v4464
    %v4761 = vpack.c.b16 %v4467, %v4466
    %v4762 = vpack.c.b16 %v4469, %v4468
    %v4763 = vpack.c.b16 %v4471, %v4470
    %v4764 = vpack.c.b16 %v4473, %v4472
    %v4765 = vpack.c.b16 %v4475, %v4474
    %v4766 = vpack.c.b16 %v4477, %v4476
    %v4767 = vpack.c.b16 %v4479, %v4478
    %v4768 = vpack.c.b16 %v4481, %v4480
    %v4769 = vpack.c.b16 %v4483, %v4482
    %v4770 = vpack.c.b16 %v4485, %v4484
    %v4771 = vpack.c.b16 %v4487, %v4486
    %v4772 = vpack.c.b16 %v4489, %v4488
    %v4773 = vpack.c.b16 %v4491, %v4490
    %v4774 = vpack.c.b16 %v4493, %v4492
    %v4775 = vpack.c.b16 %v4495, %v4494
    %v4776 = vpack.c.b16 %v4497, %v4496
    %v4777 = vpack.c.b16 %v4499, %v4498
    %v4778 = vpack.c.b16 %v4501, %v4500
    %v4779 = vpack.c.b16 %v4503, %v4502
    %v4780 = vpack.c.b16 %v4505, %v4504
    %v4781 = vpack.c.b16 %v4507, %v4506
    %v4782 = vpack.c.b16 %v4509, %v4508
    %v4783 = vpack.c.b16 %v4511, %v4510
    %v4784 = vpack.c.b16 %v4513, %v4512
    %v4785 = vpack.c.b16 %v4515, %v4514
    %v4786 = vpack.c.b16 %v4517, %v4516
    %v4787 = vpack.c.b16 %v4519, %v4518
    %v4788 = vpack.c.b16 %v4521, %v4520
    %v4789 = vpack.c.b16 %v4523, %v4522
    %v4790 = vpack.c.b16 %v4525, %v4524
    %v4791 = vpack.c.b16 %v4527, %v4526
    %v4792 = vpack.c.b16 %v4529, %v4528
    %v4793 = vpack.c.b16 %v4531, %v4530
    %v4794 = vpack.c.b16 %v4533, %v4532
    %v4795 = vpack.c.b16 %v4535, %v4534
    %v4796 = vpack.c.b16 %v4537, %v4536
    %v4797 = vpack.c.b16 %v4539, %v4538
    %v4798 = vpack.c.b16 %v4541, %v4540
    %v4799 = vpack.c.b16 %v4543, %v4542
    %5056 = vmatprep.subr.bf16.mxu0 0
    %5057 = vmatpush1.bf16.msra.mxu0 %v4544
    %5058 = vmatprep.subr.bf16.mxu0 0
    %5059 = vmatpush1.bf16.msra.mxu0 %v4545
    %5060 = vmatprep.subr.bf16.mxu0 0
    %5061 = vmatpush1.bf16.msra.mxu0 %v4546
    %5062 = vmatprep.subr.bf16.mxu0 0
    %5063 = vmatpush1.bf16.msra.mxu0 %v4547
    %5064 = vmatprep.subr.bf16.mxu0 0
    %5065 = vmatpush1.bf16.msra.mxu0 %v4548
    %5066 = vmatprep.subr.bf16.mxu0 0
    %5067 = vmatpush1.bf16.msra.mxu0 %v4549
    %5068 = vmatprep.subr.bf16.mxu0 0
    %5069 = vmatpush1.bf16.msra.mxu0 %v4550
    %5070 = vmatprep.subr.bf16.mxu0 0
    %5071 = vmatpush1.bf16.msra.mxu0 %v4551
    %5072 = vmatprep.subr.bf16.mxu0 0
    %5073 = vmatpush1.bf16.msra.mxu0 %v4552
    %5074 = vmatprep.subr.bf16.mxu0 0
    %5075 = vmatpush1.bf16.msra.mxu0 %v4553
    %5076 = vmatprep.subr.bf16.mxu0 0
    %5077 = vmatpush1.bf16.msra.mxu0 %v4554
    %5078 = vmatprep.subr.bf16.mxu0 0
    %5079 = vmatpush1.bf16.msra.mxu0 %v4555
    %5080 = vmatprep.subr.bf16.mxu0 0
    %5081 = vmatpush1.bf16.msra.mxu0 %v4556
    %5082 = vmatprep.subr.bf16.mxu0 0
    %5083 = vmatpush1.bf16.msra.mxu0 %v4557
    %5084 = vmatprep.subr.bf16.mxu0 0
    %5085 = vmatpush1.bf16.msra.mxu0 %v4558
    %5086 = vmatprep.subr.bf16.mxu0 0
    %5087 = vmatpush1.bf16.msra.mxu0 %v4559
    %5088 = vmatprep.mubr.bf16.mxu0 %v2970
    %5089 = vmatmul.mubr.bf16.gmra.mrb[0].mxu0 %v2969
    %v5090 = vpop.f32.mrb[0].mxu0
    %v5091 = vadd.f32 %v3518, %v5090
    %v5092 = vpop.f32.mrb[0].mxu0
    %v5093 = vpop.f32.mrb[0].mxu0
    %v5094 = vpop.f32.mrb[0].mxu0
    %5095 = vdwg.mxu0
    %5096 = vmatprep.subr.bf16.mxu0 0
    %5097 = vmatpush1.bf16.msra.mxu0 %v4560
    %5098 = vmatprep.subr.bf16.mxu0 0
    %5099 = vmatpush1.bf16.msra.mxu0 %v4561
    %5100 = vmatprep.subr.bf16.mxu0 0
    %5101 = vmatpush1.bf16.msra.mxu0 %v4562
    %5102 = vmatprep.subr.bf16.mxu0 0
    %5103 = vmatpush1.bf16.msra.mxu0 %v4563
    %5104 = vmatprep.subr.bf16.mxu0 0
    %5105 = vmatpush1.bf16.msra.mxu0 %v4564
    %5106 = vmatprep.subr.bf16.mxu0 0
    %5107 = vmatpush1.bf16.msra.mxu0 %v4565
    %5108 = vmatprep.subr.bf16.mxu0 0
    %5109 = vmatpush1.bf16.msra.mxu0 %v4566
    %5110 = vmatprep.subr.bf16.mxu0 0
    %5111 = vmatpush1.bf16.msra.mxu0 %v4567
    %5112 = vmatprep.subr.bf16.mxu0 0
    %5113 = vmatpush1.bf16.msra.mxu0 %v4568
    %5114 = vmatprep.subr.bf16.mxu0 0
    %5115 = vmatpush1.bf16.msra.mxu0 %v4569
    %5116 = vmatprep.subr.bf16.mxu0 0
    %5117 = vmatpush1.bf16.msra.mxu0 %v4570
    %5118 = vmatprep.subr.bf16.mxu0 0
    %5119 = vmatpush1.bf16.msra.mxu0 %v4571
    %5120 = vmatprep.subr.bf16.mxu0 0
    %5121 = vmatpush1.bf16.msra.mxu0 %v4572
    %5122 = vmatprep.subr.bf16.mxu0 0
    %5123 = vmatpush1.bf16.msra.mxu0 %v4573
    %5124 = vmatprep.subr.bf16.mxu0 0
    %5125 = vmatpush1.bf16.msra.mxu0 %v4574
    %5126 = vmatprep.subr.bf16.mxu0 0
    %5127 = vmatpush1.bf16.msra.mxu0 %v4575
    %5128 = vmatprep.mubr.bf16.mxu0 %v2972
    %5129 = vmatmul.mubr.bf16.gmra.mrb[0].mxu0 %v2971
    %v5130 = vpop.f32.mrb[0].mxu0
    %v5131 = vadd.f32 %v5091, %v5130
    %v5132 = vpop.f32.mrb[0].mxu0
    %v5133 = vpop.f32.mrb[0].mxu0
    %v5134 = vpop.f32.mrb[0].mxu0
    %5135 = vdwg.mxu0
    %5136 = vmatprep.subr.bf16.mxu0 0
    %5137 = vmatpush1.bf16.msra.mxu0 %v4576
    %5138 = vmatprep.subr.bf16.mxu0 0
    %5139 = vmatpush1.bf16.msra.mxu0 %v4577
    %5140 = vmatprep.subr.bf16.mxu0 0
    %5141 = vmatpush1.bf16.msra.mxu0 %v4578
    %5142 = vmatprep.subr.bf16.mxu0 0
    %5143 = vmatpush1.bf16.msra.mxu0 %v4579
    %5144 = vmatprep.subr.bf16.mxu0 0
    %5145 = vmatpush1.bf16.msra.mxu0 %v4580
    %5146 = vmatprep.subr.bf16.mxu0 0
    %5147 = vmatpush1.bf16.msra.mxu0 %v4581
    %5148 = vmatprep.subr.bf16.mxu0 0
    %5149 = vmatpush1.bf16.msra.mxu0 %v4582
    %5150 = vmatprep.subr.bf16.mxu0 0
    %5151 = vmatpush1.bf16.msra.mxu0 %v4583
    %5152 = vmatprep.subr.bf16.mxu0 0
    %5153 = vmatpush1.bf16.msra.mxu0 %v4584
    %5154 = vmatprep.subr.bf16.mxu0 0
    %5155 = vmatpush1.bf16.msra.mxu0 %v4585
    %5156 = vmatprep.subr.bf16.mxu0 0
    %5157 = vmatpush1.bf16.msra.mxu0 %v4586
    %5158 = vmatprep.subr.bf16.mxu0 0
    %5159 = vmatpush1.bf16.msra.mxu0 %v4587
    %5160 = vmatprep.subr.bf16.mxu0 0
    %5161 = vmatpush1.bf16.msra.mxu0 %v4588
    %5162 = vmatprep.subr.bf16.mxu0 0
    %5163 = vmatpush1.bf16.msra.mxu0 %v4589
    %5164 = vmatprep.subr.bf16.mxu0 0
    %5165 = vmatpush1.bf16.msra.mxu0 %v4590
    %5166 = vmatprep.subr.bf16.mxu0 0
    %5167 = vmatpush1.bf16.msra.mxu0 %v4591
    %5168 = vmatprep.mubr.bf16.mxu0 %v2974
    %5169 = vmatmul.mubr.bf16.gmra.mrb[0].mxu0 %v2973
    %v5170 = vpop.f32.mrb[0].mxu0
    %v5171 = vadd.f32 %v5131, %v5170
    %v5172 = vpop.f32.mrb[0].mxu0
    %v5173 = vpop.f32.mrb[0].mxu0
    %v5174 = vpop.f32.mrb[0].mxu0
    %5175 = vdwg.mxu0
    %5176 = vmatprep.subr.bf16.mxu0 0
    %5177 = vmatpush1.bf16.msra.mxu0 %v4592
    %5178 = vmatprep.subr.bf16.mxu0 0
    %5179 = vmatpush1.bf16.msra.mxu0 %v4593
    %5180 = vmatprep.subr.bf16.mxu0 0
    %5181 = vmatpush1.bf16.msra.mxu0 %v4594
    %5182 = vmatprep.subr.bf16.mxu0 0
    %5183 = vmatpush1.bf16.msra.mxu0 %v4595
    %5184 = vmatprep.subr.bf16.mxu0 0
    %5185 = vmatpush1.bf16.msra.mxu0 %v4596
    %5186 = vmatprep.subr.bf16.mxu0 0
    %5187 = vmatpush1.bf16.msra.mxu0 %v4597
    %5188 = vmatprep.subr.bf16.mxu0 0
    %5189 = vmatpush1.bf16.msra.mxu0 %v4598
    %5190 = vmatprep.subr.bf16.mxu0 0
    %5191 = vmatpush1.bf16.msra.mxu0 %v4599
    %5192 = vmatprep.subr.bf16.mxu0 0
    %5193 = vmatpush1.bf16.msra.mxu0 %v4600
    %5194 = vmatprep.subr.bf16.mxu0 0
    %5195 = vmatpush1.bf16.msra.mxu0 %v4601
    %5196 = vmatprep.subr.bf16.mxu0 0
    %5197 = vmatpush1.bf16.msra.mxu0 %v4602
    %5198 = vmatprep.subr.bf16.mxu0 0
    %5199 = vmatpush1.bf16.msra.mxu0 %v4603
    %5200 = vmatprep.subr.bf16.mxu0 0
    %5201 = vmatpush1.bf16.msra.mxu0 %v4604
    %5202 = vmatprep.subr.bf16.mxu0 0
    %5203 = vmatpush1.bf16.msra.mxu0 %v4605
    %5204 = vmatprep.subr.bf16.mxu0 0
    %5205 = vmatpush1.bf16.msra.mxu0 %v4606
    %5206 = vmatprep.subr.bf16.mxu0 0
    %5207 = vmatpush1.bf16.msra.mxu0 %v4607
    %5208 = vmatprep.mubr.bf16.mxu0 %v2976
    %5209 = vmatmul.mubr.bf16.gmra.mrb[0].mxu0 %v2975
    %v5210 = vpop.f32.mrb[0].mxu0
    %v5211 = vadd.f32 %v5171, %v5210
    %v5212 = vpop.f32.mrb[0].mxu0
    %v5213 = vpop.f32.mrb[0].mxu0
    %v5214 = vpop.f32.mrb[0].mxu0
    %5215 = vdwg.mxu0
    %5216 = vmatprep.subr.bf16.mxu0 0
    %5217 = vmatpush1.bf16.msra.mxu0 %v4608
    %5218 = vmatprep.subr.bf16.mxu0 0
    %5219 = vmatpush1.bf16.msra.mxu0 %v4609
    %5220 = vmatprep.subr.bf16.mxu0 0
    %5221 = vmatpush1.bf16.msra.mxu0 %v4610
    %5222 = vmatprep.subr.bf16.mxu0 0
    %5223 = vmatpush1.bf16.msra.mxu0 %v4611
    %5224 = vmatprep.subr.bf16.mxu0 0
    %5225 = vmatpush1.bf16.msra.mxu0 %v4612
    %5226 = vmatprep.subr.bf16.mxu0 0
    %5227 = vmatpush1.bf16.msra.mxu0 %v4613
    %5228 = vmatprep.subr.bf16.mxu0 0
    %5229 = vmatpush1.bf16.msra.mxu0 %v4614
    %5230 = vmatprep.subr.bf16.mxu0 0
    %5231 = vmatpush1.bf16.msra.mxu0 %v4615
    %5232 = vmatprep.subr.bf16.mxu0 0
    %5233 = vmatpush1.bf16.msra.mxu0 %v4616
    %5234 = vmatprep.subr.bf16.mxu0 0
    %5235 = vmatpush1.bf16.msra.mxu0 %v4617
    %5236 = vmatprep.subr.bf16.mxu0 0
    %5237 = vmatpush1.bf16.msra.mxu0 %v4618
    %5238 = vmatprep.subr.bf16.mxu0 0
    %5239 = vmatpush1.bf16.msra.mxu0 %v4619
    %5240 = vmatprep.subr.bf16.mxu0 0
    %5241 = vmatpush1.bf16.msra.mxu0 %v4620
    %5242 = vmatprep.subr.bf16.mxu0 0
    %5243 = vmatpush1.bf16.msra.mxu0 %v4621
    %5244 = vmatprep.subr.bf16.mxu0 0
    %5245 = vmatpush1.bf16.msra.mxu0 %v4622
    %5246 = vmatprep.subr.bf16.mxu0 0
    %5247 = vmatpush1.bf16.msra.mxu0 %v4623
    %5248 = vmatprep.mubr.bf16.mxu0 %v2978
    %5249 = vmatmul.mubr.bf16.gmra.mrb[0].mxu0 %v2977
    %v5250 = vpop.f32.mrb[0].mxu0
    %v5251 = vadd.f32 %v5211, %v5250
    %v5252 = vpop.f32.mrb[0].mxu0
    %v5253 = vpop.f32.mrb[0].mxu0
    %v5254 = vpop.f32.mrb[0].mxu0
    %5255 = vdwg.mxu0
    %5256 = vmatprep.subr.bf16.mxu0 0
    %5257 = vmatpush1.bf16.msra.mxu0 %v4624
    %5258 = vmatprep.subr.bf16.mxu0 0
    %5259 = vmatpush1.bf16.msra.mxu0 %v4625
    %5260 = vmatprep.subr.bf16.mxu0 0
    %5261 = vmatpush1.bf16.msra.mxu0 %v4626
    %5262 = vmatprep.subr.bf16.mxu0 0
    %5263 = vmatpush1.bf16.msra.mxu0 %v4627
    %5264 = vmatprep.subr.bf16.mxu0 0
    %5265 = vmatpush1.bf16.msra.mxu0 %v4628
    %5266 = vmatprep.subr.bf16.mxu0 0
    %5267 = vmatpush1.bf16.msra.mxu0 %v4629
    %5268 = vmatprep.subr.bf16.mxu0 0
    %5269 = vmatpush1.bf16.msra.mxu0 %v4630
    %5270 = vmatprep.subr.bf16.mxu0 0
    %5271 = vmatpush1.bf16.msra.mxu0 %v4631
    %5272 = vmatprep.subr.bf16.mxu0 0
    %5273 = vmatpush1.bf16.msra.mxu0 %v4632
    %5274 = vmatprep.subr.bf16.mxu0 0
    %5275 = vmatpush1.bf16.msra.mxu0 %v4633
    %5276 = vmatprep.subr.bf16.mxu0 0
    %5277 = vmatpush1.bf16.msra.mxu0 %v4634
    %5278 = vmatprep.subr.bf16.mxu0 0
    %5279 = vmatpush1.bf16.msra.mxu0 %v4635
    %5280 = vmatprep.subr.bf16.mxu0 0
    %5281 = vmatpush1.bf16.msra.mxu0 %v4636
    %5282 = vmatprep.subr.bf16.mxu0 0
    %5283 = vmatpush1.bf16.msra.mxu0 %v4637
    %5284 = vmatprep.subr.bf16.mxu0 0
    %5285 = vmatpush1.bf16.msra.mxu0 %v4638
    %5286 = vmatprep.subr.bf16.mxu0 0
    %5287 = vmatpush1.bf16.msra.mxu0 %v4639
    %5288 = vmatprep.mubr.bf16.mxu0 %v2980
    %5289 = vmatmul.mubr.bf16.gmra.mrb[0].mxu0 %v2979
    %v5290 = vpop.f32.mrb[0].mxu0
    %v5291 = vadd.f32 %v5251, %v5290
    %v5292 = vpop.f32.mrb[0].mxu0
    %v5293 = vpop.f32.mrb[0].mxu0
    %v5294 = vpop.f32.mrb[0].mxu0
    %5295 = vdwg.mxu0
    %5296 = vmatprep.subr.bf16.mxu0 0
    %5297 = vmatpush1.bf16.msra.mxu0 %v4640
    %5298 = vmatprep.subr.bf16.mxu0 0
    %5299 = vmatpush1.bf16.msra.mxu0 %v4641
    %5300 = vmatprep.subr.bf16.mxu0 0
    %5301 = vmatpush1.bf16.msra.mxu0 %v4642
    %5302 = vmatprep.subr.bf16.mxu0 0
    %5303 = vmatpush1.bf16.msra.mxu0 %v4643
    %5304 = vmatprep.subr.bf16.mxu0 0
    %5305 = vmatpush1.bf16.msra.mxu0 %v4644
    %5306 = vmatprep.subr.bf16.mxu0 0
    %5307 = vmatpush1.bf16.msra.mxu0 %v4645
    %5308 = vmatprep.subr.bf16.mxu0 0
    %5309 = vmatpush1.bf16.msra.mxu0 %v4646
    %5310 = vmatprep.subr.bf16.mxu0 0
    %5311 = vmatpush1.bf16.msra.mxu0 %v4647
    %5312 = vmatprep.subr.bf16.mxu0 0
    %5313 = vmatpush1.bf16.msra.mxu0 %v4648
    %5314 = vmatprep.subr.bf16.mxu0 0
    %5315 = vmatpush1.bf16.msra.mxu0 %v4649
    %5316 = vmatprep.subr.bf16.mxu0 0
    %5317 = vmatpush1.bf16.msra.mxu0 %v4650
    %5318 = vmatprep.subr.bf16.mxu0 0
    %5319 = vmatpush1.bf16.msra.mxu0 %v4651
    %5320 = vmatprep.subr.bf16.mxu0 0
    %5321 = vmatpush1.bf16.msra.mxu0 %v4652
    %5322 = vmatprep.subr.bf16.mxu0 0
    %5323 = vmatpush1.bf16.msra.mxu0 %v4653
    %5324 = vmatprep.subr.bf16.mxu0 0
    %5325 = vmatpush1.bf16.msra.mxu0 %v4654
    %5326 = vmatprep.subr.bf16.mxu0 0
    %5327 = vmatpush1.bf16.msra.mxu0 %v4655
    %5328 = vmatprep.mubr.bf16.mxu0 %v2982
    %5329 = vmatmul.mubr.bf16.gmra.mrb[0].mxu0 %v2981
    %v5330 = vpop.f32.mrb[0].mxu0
    %v5331 = vadd.f32 %v5291, %v5330
    %v5332 = vpop.f32.mrb[0].mxu0
    %v5333 = vpop.f32.mrb[0].mxu0
    %v5334 = vpop.f32.mrb[0].mxu0
    %5335 = vdwg.mxu0
    %5336 = vmatprep.subr.bf16.mxu0 0
    %5337 = vmatpush1.bf16.msra.mxu0 %v4656
    %5338 = vmatprep.subr.bf16.mxu0 0
    %5339 = vmatpush1.bf16.msra.mxu0 %v4657
    %5340 = vmatprep.subr.bf16.mxu0 0
    %5341 = vmatpush1.bf16.msra.mxu0 %v4658
    %5342 = vmatprep.subr.bf16.mxu0 0
    %5343 = vmatpush1.bf16.msra.mxu0 %v4659
    %5344 = vmatprep.subr.bf16.mxu0 0
    %5345 = vmatpush1.bf16.msra.mxu0 %v4660
    %5346 = vmatprep.subr.bf16.mxu0 0
    %5347 = vmatpush1.bf16.msra.mxu0 %v4661
    %5348 = vmatprep.subr.bf16.mxu0 0
    %5349 = vmatpush1.bf16.msra.mxu0 %v4662
    %5350 = vmatprep.subr.bf16.mxu0 0
    %5351 = vmatpush1.bf16.msra.mxu0 %v4663
    %5352 = vmatprep.subr.bf16.mxu0 0
    %5353 = vmatpush1.bf16.msra.mxu0 %v4664
    %5354 = vmatprep.subr.bf16.mxu0 0
    %5355 = vmatpush1.bf16.msra.mxu0 %v4665
    %5356 = vmatprep.subr.bf16.mxu0 0
    %5357 = vmatpush1.bf16.msra.mxu0 %v4666
    %5358 = vmatprep.subr.bf16.mxu0 0
    %5359 = vmatpush1.bf16.msra.mxu0 %v4667
    %5360 = vmatprep.subr.bf16.mxu0 0
    %5361 = vmatpush1.bf16.msra.mxu0 %v4668
    %5362 = vmatprep.subr.bf16.mxu0 0
    %5363 = vmatpush1.bf16.msra.mxu0 %v4669
    %5364 = vmatprep.subr.bf16.mxu0 0
    %5365 = vmatpush1.bf16.msra.mxu0 %v4670
    %5366 = vmatprep.subr.bf16.mxu0 0
    %5367 = vmatpush1.bf16.msra.mxu0 %v4671
    %5368 = vmatprep.mubr.bf16.mxu0 %v2984
    %5369 = vmatmul.mubr.bf16.gmra.mrb[0].mxu0 %v2983
    %v5370 = vpop.f32.mrb[0].mxu0
    %v5371 = vadd.f32 %v5331, %v5370
    %v5372 = vpop.f32.mrb[0].mxu0
    %v5373 = vpop.f32.mrb[0].mxu0
    %v5374 = vpop.f32.mrb[0].mxu0
    %5375 = vdwg.mxu0
    %5376 = vmatprep.subr.bf16.mxu0 0
    %5377 = vmatpush1.bf16.msra.mxu0 %v4672
    %5378 = vmatprep.subr.bf16.mxu0 0
    %5379 = vmatpush1.bf16.msra.mxu0 %v4673
    %5380 = vmatprep.subr.bf16.mxu0 0
    %5381 = vmatpush1.bf16.msra.mxu0 %v4674
    %5382 = vmatprep.subr.bf16.mxu0 0
    %5383 = vmatpush1.bf16.msra.mxu0 %v4675
    %5384 = vmatprep.subr.bf16.mxu0 0
    %5385 = vmatpush1.bf16.msra.mxu0 %v4676
    %5386 = vmatprep.subr.bf16.mxu0 0
    %5387 = vmatpush1.bf16.msra.mxu0 %v4677
    %5388 = vmatprep.subr.bf16.mxu0 0
    %5389 = vmatpush1.bf16.msra.mxu0 %v4678
    %5390 = vmatprep.subr.bf16.mxu0 0
    %5391 = vmatpush1.bf16.msra.mxu0 %v4679
    %5392 = vmatprep.subr.bf16.mxu0 0
    %5393 = vmatpush1.bf16.msra.mxu0 %v4680
    %5394 = vmatprep.subr.bf16.mxu0 0
    %5395 = vmatpush1.bf16.msra.mxu0 %v4681
    %5396 = vmatprep.subr.bf16.mxu0 0
    %5397 = vmatpush1.bf16.msra.mxu0 %v4682
    %5398 = vmatprep.subr.bf16.mxu0 0
    %5399 = vmatpush1.bf16.msra.mxu0 %v4683
    %5400 = vmatprep.subr.bf16.mxu0 0
    %5401 = vmatpush1.bf16.msra.mxu0 %v4684
    %5402 = vmatprep.subr.bf16.mxu0 0
    %5403 = vmatpush1.bf16.msra.mxu0 %v4685
    %5404 = vmatprep.subr.bf16.mxu0 0
    %5405 = vmatpush1.bf16.msra.mxu0 %v4686
    %5406 = vmatprep.subr.bf16.mxu0 0
    %5407 = vmatpush1.bf16.msra.mxu0 %v4687
    %5408 = vmatprep.mubr.bf16.mxu0 %v2986
    %5409 = vmatmul.mubr.bf16.gmra.mrb[0].mxu0 %v2985
    %v5410 = vpop.f32.mrb[0].mxu0
    %v5411 = vadd.f32 %v5371, %v5410
    %v5412 = vpop.f32.mrb[0].mxu0
    %v5413 = vpop.f32.mrb[0].mxu0
    %v5414 = vpop.f32.mrb[0].mxu0
    %5415 = vdwg.mxu0
    %5416 = vmatprep.subr.bf16.mxu0 0
    %5417 = vmatpush1.bf16.msra.mxu0 %v4688
    %5418 = vmatprep.subr.bf16.mxu0 0
    %5419 = vmatpush1.bf16.msra.mxu0 %v4689
    %5420 = vmatprep.subr.bf16.mxu0 0
    %5421 = vmatpush1.bf16.msra.mxu0 %v4690
    %5422 = vmatprep.subr.bf16.mxu0 0
    %5423 = vmatpush1.bf16.msra.mxu0 %v4691
    %5424 = vmatprep.subr.bf16.mxu0 0
    %5425 = vmatpush1.bf16.msra.mxu0 %v4692
    %5426 = vmatprep.subr.bf16.mxu0 0
    %5427 = vmatpush1.bf16.msra.mxu0 %v4693
    %5428 = vmatprep.subr.bf16.mxu0 0
    %5429 = vmatpush1.bf16.msra.mxu0 %v4694
    %5430 = vmatprep.subr.bf16.mxu0 0
    %5431 = vmatpush1.bf16.msra.mxu0 %v4695
    %5432 = vmatprep.subr.bf16.mxu0 0
    %5433 = vmatpush1.bf16.msra.mxu0 %v4696
    %5434 = vmatprep.subr.bf16.mxu0 0
    %5435 = vmatpush1.bf16.msra.mxu0 %v4697
    %5436 = vmatprep.subr.bf16.mxu0 0
    %5437 = vmatpush1.bf16.msra.mxu0 %v4698
    %5438 = vmatprep.subr.bf16.mxu0 0
    %5439 = vmatpush1.bf16.msra.mxu0 %v4699
    %5440 = vmatprep.subr.bf16.mxu0 0
    %5441 = vmatpush1.bf16.msra.mxu0 %v4700
    %5442 = vmatprep.subr.bf16.mxu0 0
    %5443 = vmatpush1.bf16.msra.mxu0 %v4701
    %5444 = vmatprep.subr.bf16.mxu0 0
    %5445 = vmatpush1.bf16.msra.mxu0 %v4702
    %5446 = vmatprep.subr.bf16.mxu0 0
    %5447 = vmatpush1.bf16.msra.mxu0 %v4703
    %5448 = vmatprep.mubr.bf16.mxu0 %v2988
    %5449 = vmatmul.mubr.bf16.gmra.mrb[0].mxu0 %v2987
    %v5450 = vpop.f32.mrb[0].mxu0
    %v5451 = vadd.f32 %v5411, %v5450
    %v5452 = vpop.f32.mrb[0].mxu0
    %v5453 = vpop.f32.mrb[0].mxu0
    %v5454 = vpop.f32.mrb[0].mxu0
    %5455 = vdwg.mxu0
    %5456 = vmatprep.subr.bf16.mxu0 0
    %5457 = vmatpush1.bf16.msra.mxu0 %v4704
    %5458 = vmatprep.subr.bf16.mxu0 0
    %5459 = vmatpush1.bf16.msra.mxu0 %v4705
    %5460 = vmatprep.subr.bf16.mxu0 0
    %5461 = vmatpush1.bf16.msra.mxu0 %v4706
    %5462 = vmatprep.subr.bf16.mxu0 0
    %5463 = vmatpush1.bf16.msra.mxu0 %v4707
    %5464 = vmatprep.subr.bf16.mxu0 0
    %5465 = vmatpush1.bf16.msra.mxu0 %v4708
    %5466 = vmatprep.subr.bf16.mxu0 0
    %5467 = vmatpush1.bf16.msra.mxu0 %v4709
    %5468 = vmatprep.subr.bf16.mxu0 0
    %5469 = vmatpush1.bf16.msra.mxu0 %v4710
    %5470 = vmatprep.subr.bf16.mxu0 0
    %5471 = vmatpush1.bf16.msra.mxu0 %v4711
    %5472 = vmatprep.subr.bf16.mxu0 0
    %5473 = vmatpush1.bf16.msra.mxu0 %v4712
    %5474 = vmatprep.subr.bf16.mxu0 0
    %5475 = vmatpush1.bf16.msra.mxu0 %v4713
    %5476 = vmatprep.subr.bf16.mxu0 0
    %5477 = vmatpush1.bf16.msra.mxu0 %v4714
    %5478 = vmatprep.subr.bf16.mxu0 0
    %5479 = vmatpush1.bf16.msra.mxu0 %v4715
    %5480 = vmatprep.subr.bf16.mxu0 0
    %5481 = vmatpush1.bf16.msra.mxu0 %v4716
    %5482 = vmatprep.subr.bf16.mxu0 0
    %5483 = vmatpush1.bf16.msra.mxu0 %v4717
    %5484 = vmatprep.subr.bf16.mxu0 0
    %5485 = vmatpush1.bf16.msra.mxu0 %v4718
    %5486 = vmatprep.subr.bf16.mxu0 0
    %5487 = vmatpush1.bf16.msra.mxu0 %v4719
    %5488 = vmatprep.mubr.bf16.mxu0 %v2990
    %5489 = vmatmul.mubr.bf16.gmra.mrb[0].mxu0 %v2989
    %v5490 = vpop.f32.mrb[0].mxu0
    %v5491 = vadd.f32 %v5451, %v5490
    %v5492 = vpop.f32.mrb[0].mxu0
    %v5493 = vpop.f32.mrb[0].mxu0
    %v5494 = vpop.f32.mrb[0].mxu0
    %5495 = vdwg.mxu0
    %5496 = vmatprep.subr.bf16.mxu0 0
    %5497 = vmatpush1.bf16.msra.mxu0 %v4720
    %5498 = vmatprep.subr.bf16.mxu0 0
    %5499 = vmatpush1.bf16.msra.mxu0 %v4721
    %5500 = vmatprep.subr.bf16.mxu0 0
    %5501 = vmatpush1.bf16.msra.mxu0 %v4722
    %5502 = vmatprep.subr.bf16.mxu0 0
    %5503 = vmatpush1.bf16.msra.mxu0 %v4723
    %5504 = vmatprep.subr.bf16.mxu0 0
    %5505 = vmatpush1.bf16.msra.mxu0 %v4724
    %5506 = vmatprep.subr.bf16.mxu0 0
    %5507 = vmatpush1.bf16.msra.mxu0 %v4725
    %5508 = vmatprep.subr.bf16.mxu0 0
    %5509 = vmatpush1.bf16.msra.mxu0 %v4726
    %5510 = vmatprep.subr.bf16.mxu0 0
    %5511 = vmatpush1.bf16.msra.mxu0 %v4727
    %5512 = vmatprep.subr.bf16.mxu0 0
    %5513 = vmatpush1.bf16.msra.mxu0 %v4728
    %5514 = vmatprep.subr.bf16.mxu0 0
    %5515 = vmatpush1.bf16.msra.mxu0 %v4729
    %5516 = vmatprep.subr.bf16.mxu0 0
    %5517 = vmatpush1.bf16.msra.mxu0 %v4730
    %5518 = vmatprep.subr.bf16.mxu0 0
    %5519 = vmatpush1.bf16.msra.mxu0 %v4731
    %5520 = vmatprep.subr.bf16.mxu0 0
    %5521 = vmatpush1.bf16.msra.mxu0 %v4732
    %5522 = vmatprep.subr.bf16.mxu0 0
    %5523 = vmatpush1.bf16.msra.mxu0 %v4733
    %5524 = vmatprep.subr.bf16.mxu0 0
    %5525 = vmatpush1.bf16.msra.mxu0 %v4734
    %5526 = vmatprep.subr.bf16.mxu0 0
    %5527 = vmatpush1.bf16.msra.mxu0 %v4735
    %5528 = vmatprep.mubr.bf16.mxu0 %v2992
    %5529 = vmatmul.mubr.bf16.gmra.mrb[0].mxu0 %v2991
    %v5530 = vpop.f32.mrb[0].mxu0
    %v5531 = vadd.f32 %v5491, %v5530
    %v5532 = vpop.f32.mrb[0].mxu0
    %v5533 = vpop.f32.mrb[0].mxu0
    %v5534 = vpop.f32.mrb[0].mxu0
    %5535 = vdwg.mxu0
    %5536 = vmatprep.subr.bf16.mxu0 0
    %5537 = vmatpush1.bf16.msra.mxu0 %v4736
    %5538 = vmatprep.subr.bf16.mxu0 0
    %5539 = vmatpush1.bf16.msra.mxu0 %v4737
    %5540 = vmatprep.subr.bf16.mxu0 0
    %5541 = vmatpush1.bf16.msra.mxu0 %v4738
    %5542 = vmatprep.subr.bf16.mxu0 0
    %5543 = vmatpush1.bf16.msra.mxu0 %v4739
    %5544 = vmatprep.subr.bf16.mxu0 0
    %5545 = vmatpush1.bf16.msra.mxu0 %v4740
    %5546 = vmatprep.subr.bf16.mxu0 0
    %5547 = vmatpush1.bf16.msra.mxu0 %v4741
    %5548 = vmatprep.subr.bf16.mxu0 0
    %5549 = vmatpush1.bf16.msra.mxu0 %v4742
    %5550 = vmatprep.subr.bf16.mxu0 0
    %5551 = vmatpush1.bf16.msra.mxu0 %v4743
    %5552 = vmatprep.subr.bf16.mxu0 0
    %5553 = vmatpush1.bf16.msra.mxu0 %v4744
    %5554 = vmatprep.subr.bf16.mxu0 0
    %5555 = vmatpush1.bf16.msra.mxu0 %v4745
    %5556 = vmatprep.subr.bf16.mxu0 0
    %5557 = vmatpush1.bf16.msra.mxu0 %v4746
    %5558 = vmatprep.subr.bf16.mxu0 0
    %5559 = vmatpush1.bf16.msra.mxu0 %v4747
    %5560 = vmatprep.subr.bf16.mxu0 0
    %5561 = vmatpush1.bf16.msra.mxu0 %v4748
    %5562 = vmatprep.subr.bf16.mxu0 0
    %5563 = vmatpush1.bf16.msra.mxu0 %v4749
    %5564 = vmatprep.subr.bf16.mxu0 0
    %5565 = vmatpush1.bf16.msra.mxu0 %v4750
    %5566 = vmatprep.subr.bf16.mxu0 0
    %5567 = vmatpush1.bf16.msra.mxu0 %v4751
    %5568 = vmatprep.mubr.bf16.mxu0 %v2994
    %5569 = vmatmul.mubr.bf16.gmra.mrb[0].mxu0 %v2993
    %v5570 = vpop.f32.mrb[0].mxu0
    %v5571 = vadd.f32 %v5531, %v5570
    %v5572 = vpop.f32.mrb[0].mxu0
    %v5573 = vpop.f32.mrb[0].mxu0
    %v5574 = vpop.f32.mrb[0].mxu0
    %5575 = vdwg.mxu0
    %5576 = vmatprep.subr.bf16.mxu0 0
    %5577 = vmatpush1.bf16.msra.mxu0 %v4752
    %5578 = vmatprep.subr.bf16.mxu0 0
    %5579 = vmatpush1.bf16.msra.mxu0 %v4753
    %5580 = vmatprep.subr.bf16.mxu0 0
    %5581 = vmatpush1.bf16.msra.mxu0 %v4754
    %5582 = vmatprep.subr.bf16.mxu0 0
    %5583 = vmatpush1.bf16.msra.mxu0 %v4755
    %5584 = vmatprep.subr.bf16.mxu0 0
    %5585 = vmatpush1.bf16.msra.mxu0 %v4756
    %5586 = vmatprep.subr.bf16.mxu0 0
    %5587 = vmatpush1.bf16.msra.mxu0 %v4757
    %5588 = vmatprep.subr.bf16.mxu0 0
    %5589 = vmatpush1.bf16.msra.mxu0 %v4758
    %5590 = vmatprep.subr.bf16.mxu0 0
    %5591 = vmatpush1.bf16.msra.mxu0 %v4759
    %5592 = vmatprep.subr.bf16.mxu0 0
    %5593 = vmatpush1.bf16.msra.mxu0 %v4760
    %5594 = vmatprep.subr.bf16.mxu0 0
    %5595 = vmatpush1.bf16.msra.mxu0 %v4761
    %5596 = vmatprep.subr.bf16.mxu0 0
    %5597 = vmatpush1.bf16.msra.mxu0 %v4762
    %5598 = vmatprep.subr.bf16.mxu0 0
    %5599 = vmatpush1.bf16.msra.mxu0 %v4763
    %5600 = vmatprep.subr.bf16.mxu0 0
    %5601 = vmatpush1.bf16.msra.mxu0 %v4764
    %5602 = vmatprep.subr.bf16.mxu0 0
    %5603 = vmatpush1.bf16.msra.mxu0 %v4765
    %5604 = vmatprep.subr.bf16.mxu0 0
    %5605 = vmatpush1.bf16.msra.mxu0 %v4766
    %5606 = vmatprep.subr.bf16.mxu0 0
    %5607 = vmatpush1.bf16.msra.mxu0 %v4767
    %5608 = vmatprep.mubr.bf16.mxu0 %v2996
    %5609 = vmatmul.mubr.bf16.gmra.mrb[0].mxu0 %v2995
    %v5610 = vpop.f32.mrb[0].mxu0
    %v5611 = vadd.f32 %v5571, %v5610
    %v5612 = vpop.f32.mrb[0].mxu0
    %v5613 = vpop.f32.mrb[0].mxu0
    %v5614 = vpop.f32.mrb[0].mxu0
    %5615 = vdwg.mxu0
    %5616 = vmatprep.subr.bf16.mxu0 0
    %5617 = vmatpush1.bf16.msra.mxu0 %v4768
    %5618 = vmatprep.subr.bf16.mxu0 0
    %5619 = vmatpush1.bf16.msra.mxu0 %v4769
    %5620 = vmatprep.subr.bf16.mxu0 0
    %5621 = vmatpush1.bf16.msra.mxu0 %v4770
    %5622 = vmatprep.subr.bf16.mxu0 0
    %5623 = vmatpush1.bf16.msra.mxu0 %v4771
    %5624 = vmatprep.subr.bf16.mxu0 0
    %5625 = vmatpush1.bf16.msra.mxu0 %v4772
    %5626 = vmatprep.subr.bf16.mxu0 0
    %5627 = vmatpush1.bf16.msra.mxu0 %v4773
    %5628 = vmatprep.subr.bf16.mxu0 0
    %5629 = vmatpush1.bf16.msra.mxu0 %v4774
    %5630 = vmatprep.subr.bf16.mxu0 0
    %5631 = vmatpush1.bf16.msra.mxu0 %v4775
    %5632 = vmatprep.subr.bf16.mxu0 0
    %5633 = vmatpush1.bf16.msra.mxu0 %v4776
    %5634 = vmatprep.subr.bf16.mxu0 0
    %5635 = vmatpush1.bf16.msra.mxu0 %v4777
    %5636 = vmatprep.subr.bf16.mxu0 0
    %5637 = vmatpush1.bf16.msra.mxu0 %v4778
    %5638 = vmatprep.subr.bf16.mxu0 0
    %5639 = vmatpush1.bf16.msra.mxu0 %v4779
    %5640 = vmatprep.subr.bf16.mxu0 0
    %5641 = vmatpush1.bf16.msra.mxu0 %v4780
    %5642 = vmatprep.subr.bf16.mxu0 0
    %5643 = vmatpush1.bf16.msra.mxu0 %v4781
    %5644 = vmatprep.subr.bf16.mxu0 0
    %5645 = vmatpush1.bf16.msra.mxu0 %v4782
    %5646 = vmatprep.subr.bf16.mxu0 0
    %5647 = vmatpush1.bf16.msra.mxu0 %v4783
    %5648 = vmatprep.mubr.bf16.mxu0 %v2998
    %5649 = vmatmul.mubr.bf16.gmra.mrb[0].mxu0 %v2997
    %v5650 = vpop.f32.mrb[0].mxu0
    %v5651 = vadd.f32 %v5611, %v5650
    %v5652 = vpop.f32.mrb[0].mxu0
    %v5653 = vpop.f32.mrb[0].mxu0
    %v5654 = vpop.f32.mrb[0].mxu0
    %5655 = vdwg.mxu0
    %5656 = vmatprep.subr.bf16.mxu0 0
    %5657 = vmatpush1.bf16.msra.mxu0 %v4784
    %5658 = vmatprep.subr.bf16.mxu0 0
    %5659 = vmatpush1.bf16.msra.mxu0 %v4785
    %5660 = vmatprep.subr.bf16.mxu0 0
    %5661 = vmatpush1.bf16.msra.mxu0 %v4786
    %5662 = vmatprep.subr.bf16.mxu0 0
    %5663 = vmatpush1.bf16.msra.mxu0 %v4787
    %5664 = vmatprep.subr.bf16.mxu0 0
    %5665 = vmatpush1.bf16.msra.mxu0 %v4788
    %5666 = vmatprep.subr.bf16.mxu0 0
    %5667 = vmatpush1.bf16.msra.mxu0 %v4789
    %5668 = vmatprep.subr.bf16.mxu0 0
    %5669 = vmatpush1.bf16.msra.mxu0 %v4790
    %5670 = vmatprep.subr.bf16.mxu0 0
    %5671 = vmatpush1.bf16.msra.mxu0 %v4791
    %5672 = vmatprep.subr.bf16.mxu0 0
    %5673 = vmatpush1.bf16.msra.mxu0 %v4792
    %5674 = vmatprep.subr.bf16.mxu0 0
    %5675 = vmatpush1.bf16.msra.mxu0 %v4793
    %5676 = vmatprep.subr.bf16.mxu0 0
    %5677 = vmatpush1.bf16.msra.mxu0 %v4794
    %5678 = vmatprep.subr.bf16.mxu0 0
    %5679 = vmatpush1.bf16.msra.mxu0 %v4795
    %5680 = vmatprep.subr.bf16.mxu0 0
    %5681 = vmatpush1.bf16.msra.mxu0 %v4796
    %5682 = vmatprep.subr.bf16.mxu0 0
    %5683 = vmatpush1.bf16.msra.mxu0 %v4797
    %5684 = vmatprep.subr.bf16.mxu0 0
    %5685 = vmatpush1.bf16.msra.mxu0 %v4798
    %5686 = vmatprep.subr.bf16.mxu0 0
    %5687 = vmatpush1.bf16.msra.mxu0 %v4799
    %5688 = vmatprep.mubr.bf16.mxu0 %v3000
    %5689 = vmatmul.mubr.bf16.gmra.mrb[0].mxu0 %v2999
    %v5690 = vpop.f32.mrb[0].mxu0
    %v5691 = vadd.f32 %v5651, %v5690
    %v5692 = vpop.f32.mrb[0].mxu0
    %v5693 = vpop.f32.mrb[0].mxu0
    %v5694 = vpop.f32.mrb[0].mxu0
    %5695 = vdwg.mxu0
    %v5696 = vmax.f32 %v5691, 0.0
    %v5697 = vpack.c.bf16 %v5696, %v5696
    %v5698 = vld [vmem:[%s7] sm:$0xf]
    %v5699 = vld [vmem:[%s7 + $0x4] sm:$0xf]
    %v5700 = vld [vmem:[%s7 + $0x8] sm:$0xf]
    %v5701 = vld [vmem:[%s7 + $0xc] sm:$0xf]
    %v5702 = vld [vmem:[%s7 + $0x10] sm:$0xf]
    %v5703 = vld [vmem:[%s7 + $0x14] sm:$0xf]
    %v5704 = vld [vmem:[%s7 + $0x18] sm:$0xf]
    %v5705 = vld [vmem:[%s7 + $0x1c] sm:$0xf]
    %v5706 = vld [vmem:[%s7 + $0x20] sm:$0xf]
    %v5707 = vld [vmem:[%s7 + $0x24] sm:$0xf]
    %v5708 = vld [vmem:[%s7 + $0x28] sm:$0xf]
    %v5709 = vld [vmem:[%s7 + $0x2c] sm:$0xf]
    %v5710 = vld [vmem:[%s7 + $0x30] sm:$0xf]
    %v5711 = vld [vmem:[%s7 + $0x34] sm:$0xf]
    %v5712 = vld [vmem:[%s7 + $0x38] sm:$0xf]
    %v5713 = vld [vmem:[%s7 + $0x3c] sm:$0xf]
    %v5714 = vld [vmem:[%s8] sm:$0x1]
    %v5716 = vlaneseq
    %v5717 = vshrl.u32 %v5716, 7
    %v5718 = vsub.s32 0, %v5717
    %v5719 = vrot.slane %v5714, %v5718
    %v5737 = vunpack.c.l.b16 %v5698
    %v5738 = vunpack.c.l.b16 %v5699
    %v5739 = vunpack.c.l.b16 %v5700
    %v5740 = vunpack.c.l.b16 %v5701
    %v5741 = vunpack.c.l.b16 %v5702
    %v5742 = vunpack.c.l.b16 %v5703
    %v5743 = vunpack.c.l.b16 %v5704
    %v5744 = vunpack.c.l.b16 %v5705
    %v5745 = vunpack.c.l.b16 %v5706
    %v5746 = vunpack.c.l.b16 %v5707
    %v5747 = vunpack.c.l.b16 %v5708
    %v5748 = vunpack.c.l.b16 %v5709
    %v5749 = vunpack.c.l.b16 %v5710
    %v5750 = vunpack.c.l.b16 %v5711
    %v5751 = vunpack.c.l.b16 %v5712
    %v5752 = vunpack.c.l.b16 %v5713
    %v5753 = vpack.c.b16 %v5738, %v5737
    %v5754 = vpack.c.b16 %v5740, %v5739
    %v5755 = vpack.c.b16 %v5742, %v5741
    %v5756 = vpack.c.b16 %v5744, %v5743
    %v5757 = vpack.c.b16 %v5746, %v5745
    %v5758 = vpack.c.b16 %v5748, %v5747
    %v5759 = vpack.c.b16 %v5750, %v5749
    %v5760 = vpack.c.b16 %v5752, %v5751
    %5769 = vmatprep.subr.bf16.mxu0 0
    %5770 = vmatpush1.bf16.msra.mxu0 %v5753
    %5771 = vmatprep.subr.bf16.mxu0 0
    %5772 = vmatpush1.bf16.msra.mxu0 %v5754
    %5773 = vmatprep.subr.bf16.mxu0 0
    %5774 = vmatpush1.bf16.msra.mxu0 %v5755
    %5775 = vmatprep.subr.bf16.mxu0 0
    %5776 = vmatpush1.bf16.msra.mxu0 %v5756
    %5777 = vmatprep.subr.bf16.mxu0 0
    %5778 = vmatpush1.bf16.msra.mxu0 %v5757
    %5779 = vmatprep.subr.bf16.mxu0 0
    %5780 = vmatpush1.bf16.msra.mxu0 %v5758
    %5781 = vmatprep.subr.bf16.mxu0 0
    %5782 = vmatpush1.bf16.msra.mxu0 %v5759
    %5783 = vmatprep.subr.bf16.mxu0 0
    %5784 = vmatpush1.bf16.msra.mxu0 %v5760
    %5785 = vmatprep.subr.bf16.mxu0 0
    %5786 = vmatpush1.bf16.msra.mxu0 0
    %5787 = vmatprep.subr.bf16.mxu0 0
    %5788 = vmatpush1.bf16.msra.mxu0 0
    %5789 = vmatprep.subr.bf16.mxu0 0
    %5790 = vmatpush1.bf16.msra.mxu0 0
    %5791 = vmatprep.subr.bf16.mxu0 0
    %5792 = vmatpush1.bf16.msra.mxu0 0
    %5793 = vmatprep.subr.bf16.mxu0 0
    %5794 = vmatpush1.bf16.msra.mxu0 0
    %5795 = vmatprep.subr.bf16.mxu0 0
    %5796 = vmatpush1.bf16.msra.mxu0 0
    %5797 = vmatprep.subr.bf16.mxu0 0
    %5798 = vmatpush1.bf16.msra.mxu0 0
    %5799 = vmatprep.subr.bf16.mxu0 0
    %5800 = vmatpush1.bf16.msra.mxu0 0
    %5801 = vmatprep.mubr.bf16.mxu0 0
    %5802 = vmatmul.mubr.bf16.gmra.mrb[0].mxu0 %v5697
    %v5803 = vpop.f32.mrb[0].mxu0
    %v5804 = vadd.f32 %v5719, %v5803
    %v5805 = vpop.f32.mrb[0].mxu0
    %v5806 = vpop.f32.mrb[0].mxu0
    %v5807 = vpop.f32.mrb[0].mxu0
    %5808 = vdwg.mxu0
    %5809 = vst [vmem:[#allocation3] sm:$0x3] %v5804
    // Predicated region
    $region38: #{model_a_forward.1} parent=1 // pred_check
      _
    $region39: #{model_a_forward.1} parent=1 // pred_check_branch
      %5811 = sbr.rel (0) target = $region41
    $region40: #{model_a_forward.1} parent=1 // pred_region
      %s5813 = ssub.s32 32, 32
      %5814 = vsyncadd [#allocation4], %s5813
      %s5816 = sshll.u32 [#allocation3], 4
      %s5817 = int_to_ptr.vmem [resolvable:$true] %s5816
      %5819 = dma.vmem_to_hbm [thread:$0]  %s5817, 32, %s9, [#allocation4]
    $region41: #{model_a_forward.1} parent=1 // pred_fallthru
      _
    // Predicated region
    $region42: #{model_a_forward.1} parent=1 // pred_check
      _
    $region43: #{model_a_forward.1} parent=1 // pred_check_branch
      %5821 = sbr.rel (0) target = $region45
    $region44: #{model_a_forward.1} parent=1 // pred_region
      %5822 = dma.done [#allocation4], 32
    $region45: #{model_a_forward.1} parent=1 // pred_fallthru
      _
    %5823 = vsyncpa [#allocation4], 1

</llo_original>
